<compile_context>
chip_gen: v5e
topology: v5e:2x2
jax: 0.10.0
libtpu: 0.0.40
codegen_flags: <defaults>
</compile_context>

<pallas_src>
import numpy as np
import jax
import jax.numpy as jnp
from jax.experimental import pallas as pl
from jax.experimental.pallas import tpu as pltpu

FEATURE_DIM = 50      # args.feature_dim
HIDDEN_DIM = 256      # hidden_dim default
NUM_FILTERS = 32
KSIZE = 3
LN_EPS = 1e-5
CONV_STRIDES = (2, 1, 1, 1)


# --------------------------- static conv geometry -----------------------------
def _conv_plan(batch, height, width):
    """Per-layer conv geometry plus flattened source-row base indices.

    Rows of every activation matrix are ordered (b, h, w); base[m] is the
    flattened input row of output row m for kernel offset (dy, dx) = (0, 0).
    """
    plan = []
    h, w = height, width
    for s in CONV_STRIDES:
        ho = (h - KSIZE) // s + 1
        wo = (w - KSIZE) // s + 1
        b_i = np.arange(batch)[:, None, None]
        y_i = np.arange(ho)[None, :, None]
        x_i = np.arange(wo)[None, None, :]
        base = (b_i * (h * w) + (y_i * s) * w + (x_i * s)).reshape(-1, 1)
        plan.append(dict(h=h, w=w, ho=ho, wo=wo, stride=s,
                         m_in=batch * h * w, m_out=batch * ho * wo,
                         base=jnp.asarray(base, jnp.int32)))
        h, w = ho, wo
    return plan, h * w


# ------------------------------ fused kernel ----------------------------------
def _make_fused_kernel(plan):
    def kernel(x_ref, act_ref,
               base1, base2, base3, base4,
               cw1, cb1, cw2, cb2, cw3, cb3, cw4, cb4,
               fc_w, fc_b, ln_g, ln_b,
               w1f, w1a, b1, w2bd, b2, w3pd, b3,
               q_ref):
        bases = (base1, base2, base3, base4)
        conv_ws = (cw1, cw2, cw3, cw4)
        conv_bs = (cb1, cb2, cb3, cb4)

        def dot(a, b):
            # bf16 MXU inputs, f32 accumulate (cast is a no-op for bf16 weights).
            return jnp.dot(a.astype(jnp.bfloat16), b.astype(jnp.bfloat16),
                           preferred_element_type=jnp.float32)

        def conv3x3_relu(x, layer):
            meta = plan[layer]
            m_in, m_out, w_img = meta["m_in"], meta["m_out"], meta["w"]
            w_ref, b_ref = conv_ws[layer], conv_bs[layer]
            cout = w_ref.shape[-1]
            # relative source-row index of every (output row, input row) pair
            col = jax.lax.broadcasted_iota(jnp.int32, (m_out, m_in), 1)
            rel = col - bases[layer][...]                       # (m_out, m_in)
            acc = jnp.zeros((m_out, cout), jnp.float32)
            for dy in range(KSIZE):
                for dx in range(KSIZE):
                    off = dy * w_img + dx                       # static int
                    sel = jnp.where(rel == off, 1.0, 0.0)       # one-hot gather
                    gathered = dot(sel, x)                      # (m_out, cin)
                    acc = acc + dot(gathered, w_ref[dy * KSIZE + dx])
            return jnp.maximum(acc + b_ref[...], 0.0)

        # ---- encoder conv stack (all VMEM resident) ----
        x = x_ref[...]                                          # (B*H*W, 2C) f32
        for layer in range(len(plan)):
            x = conv3x3_relu(x, layer)                          # final: (B, 32)

        # ---- encoder head: Linear -> LayerNorm(biased var) -> tanh (f32) ----
        h = dot(x, fc_w[...]) + fc_b[...]
        mu = jnp.mean(h, axis=-1, keepdims=True)
        var = jnp.mean((h - mu) ** 2, axis=-1, keepdims=True)
        feat = jnp.tanh((h - mu) * jax.lax.rsqrt(var + LN_EPS)
                        * ln_g[...] + ln_b[...])                # (B, 50)

        # ---- fused double critic: q[:, 0] = critic1(oa), q[:, 1] = critic2(oa)
        # oa = [feat | action] is never materialized: split-weight dots instead.
        h1 = dot(feat, w1f[...]) + dot(act_ref[...], w1a[...]) + b1[...]
        h1 = jnp.maximum(h1, 0.0)                               # (B, 512)
        h2 = jnp.maximum(dot(h1, w2bd[...]) + b2[...], 0.0)     # (B, 512)
        q_ref[...] = dot(h2, w3pd[...]) + b3[...]               # (B, 128) dense

    return kernel


# ------------------------------ parameter init --------------------------------
def xavier_uniform(key, fan_in, fan_out):
    limit = jnp.sqrt(6.0 / (fan_in + fan_out))
    return jax.random.uniform(key, (fan_in, fan_out), jnp.float32, -limit, limit)


def orthogonal_conv(key, cout, cin, kh, kw, gain):
    # TODO(synk): matches torch orthogonal_ only when cin*kh*kw >= cout (true here).
    fan_in = cin * kh * kw
    a = jax.random.normal(key, (fan_in, cout), jnp.float32)
    q, _ = jnp.linalg.qr(a)
    return (gain * q.T).reshape(cout, cin, kh, kw)


def make_params(key, in_channels, action_dim):
    ks = jax.random.split(key, 16)
    gain = jnp.sqrt(2.0)  # calculate_gain('relu')
    params = {"conv_w": [], "conv_b": []}
    cins = [in_channels, NUM_FILTERS, NUM_FILTERS, NUM_FILTERS]
    for i, cin in enumerate(cins):
        params["conv_w"].append(orthogonal_conv(ks[i], NUM_FILTERS, cin, KSIZE, KSIZE, gain))
        params["conv_b"].append(jnp.zeros((NUM_FILTERS,), jnp.float32))
    params["enc_fc_w"] = xavier_uniform(ks[4], NUM_FILTERS, FEATURE_DIM)
    params["enc_fc_b"] = jnp.zeros((FEATURE_DIM,), jnp.float32)
    params["ln_gamma"] = jnp.ones((FEATURE_DIM,), jnp.float32)
    params["ln_beta"] = jnp.zeros((FEATURE_DIM,), jnp.float32)
    in_dim = FEATURE_DIM + action_dim

    def critic(k0, k1, k2):
        return {"w1": xavier_uniform(k0, in_dim, HIDDEN_DIM),
                "b1": jnp.zeros((HIDDEN_DIM,), jnp.float32),
                "w2": xavier_uniform(k1, HIDDEN_DIM, HIDDEN_DIM),
                "b2": jnp.zeros((HIDDEN_DIM,), jnp.float32),
                "w3": xavier_uniform(k2, HIDDEN_DIM, 1),
                "b3": jnp.zeros((1,), jnp.float32)}

    params["critic1"] = critic(ks[5], ks[6], ks[7])
    params["critic2"] = critic(ks[8], ks[9], ks[10])
    return params


def prepare_fused_weights(params):
    """One-time re-layout: bf16 matmul weights, conv filters as (9, Cin, Cout),
    and the double-critic fused (concat / block-diag / lane-padded) matrices."""
    f = {"conv_w": [], "conv_b": []}
    for w_oihw, b in zip(params["conv_w"], params["conv_b"]):
        cout, cin, kh, kw = w_oihw.shape
        wk = jnp.transpose(w_oihw, (2, 3, 1, 0)).reshape(kh * kw, cin, cout)
        f["conv_w"].append(wk.astype(jnp.bfloat16))
        f["conv_b"].append(b.reshape(1, cout).astype(jnp.float32))
    f["fc_w"] = params["enc_fc_w"].astype(jnp.bfloat16)
    f["fc_b"] = params["enc_fc_b"].reshape(1, -1)
    f["ln_g"] = params["ln_gamma"].reshape(1, -1)
    f["ln_b"] = params["ln_beta"].reshape(1, -1)

    c1, c2 = params["critic1"], params["critic2"]
    hd = HIDDEN_DIM
    w1cat = jnp.concatenate([c1["w1"], c2["w1"]], axis=1)          # (F+A, 2H)
    f["w1f"] = w1cat[:FEATURE_DIM].astype(jnp.bfloat16)            # feat rows
    f["w1a"] = w1cat[FEATURE_DIM:].astype(jnp.bfloat16)            # action rows
    f["b1"] = jnp.concatenate([c1["b1"], c2["b1"]]).reshape(1, 2 * hd)
    w2bd = jnp.zeros((2 * hd, 2 * hd), jnp.float32)
    w2bd = w2bd.at[:hd, :hd].set(c1["w2"]).at[hd:, hd:].set(c2["w2"])
    f["w2bd"] = w2bd.astype(jnp.bfloat16)
    f["b2"] = jnp.concatenate([c1["b2"], c2["b2"]]).reshape(1, 2 * hd)
    w3pd = jnp.zeros((2 * hd, 128), jnp.float32)                   # lane-dense out
    w3pd = w3pd.at[:hd, 0].set(c1["w3"][:, 0]).at[hd:, 1].set(c2["w3"][:, 0])
    f["w3pd"] = w3pd.astype(jnp.bfloat16)
    b3 = jnp.zeros((1, 128), jnp.float32)
    b3 = b3.at[0, 0].set(c1["b3"][0]).at[0, 1].set(c2["b3"][0])
    f["b3"] = b3
    return f


# ------------------------------ forward pass ----------------------------------
def make_critic_forward(batch, channels, height, width):
    """Builds a jitted forward(weights, obs, goal_obs, action) -> (q1, q2)."""
    plan, final_hw = _conv_plan(batch, height, width)
    assert final_hw == 1, "conv stack must reduce spatial dims to 1x1"
    kernel = _make_fused_kernel(plan)
    bases = [p["base"] for p in plan]
    vmem = pl.BlockSpec(memory_space=pltpu.MemorySpace.VMEM)

    def forward(weights, obs, goal_obs, action):
        b, c, h, w = obs.shape
        assert (b, c, h, w) == (batch, channels, height, width)
        # torch.cat([obs, goal_obs], dim=1): channel concat; NCHW -> NHWC and
        # flatten spatial into rows so channels sit on the lane dimension.
        x = jnp.concatenate([obs, goal_obs], axis=1)
        x = jnp.transpose(x, (0, 2, 3, 1)).astype(jnp.float32)
        x = x.reshape(b * h * w, 2 * c)

        args = [x, action.astype(jnp.float32), *bases]
        for l in range(len(plan)):
            args += [weights["conv_w"][l], weights["conv_b"][l]]
        args += [weights["fc_w"], weights["fc_b"], weights["ln_g"], weights["ln_b"],
                 weights["w1f"], weights["w1a"], weights["b1"],
                 weights["w2bd"], weights["b2"], weights["w3pd"], weights["b3"]]

        # Single fused kernel, no grid: weights + activations < 1 MiB, all VMEM.
        # TODO(synk): for large training batches on v7x, add a batch grid axis
        #             with dimension_semantics=("parallel",) to use both cores.
        q_pad = pl.pallas_call(
            kernel,
            in_specs=[vmem] * len(args),
            out_specs=vmem,
            out_shape=jax.ShapeDtypeStruct((b, 128), jnp.float32),
        )(*args)
        return q_pad[:, 0:1], q_pad[:, 1:2]

    return jax.jit(forward)


# --------------------------- pure-JAX f32 reference ----------------------------
def reference_forward(params, obs, goal_obs, action):
    x = jnp.concatenate([obs, goal_obs], axis=1).astype(jnp.float32)
    for w, b, s in zip(params["conv_w"], params["conv_b"], CONV_STRIDES):
        x = jax.lax.conv_general_dilated(
            x, w, window_strides=(s, s), padding="VALID",
            dimension_numbers=("NCHW", "OIHW", "NCHW"))
        x = jax.nn.relu(x + b[None, :, None, None])
    x = x.reshape(x.shape[0], -1)
    h = x @ params["enc_fc_w"] + params["enc_fc_b"]
    mu = h.mean(-1, keepdims=True)
    var = ((h - mu) ** 2).mean(-1, keepdims=True)
    feat = jnp.tanh((h - mu) / jnp.sqrt(var + LN_EPS)
                    * params["ln_gamma"] + params["ln_beta"])
    oa = jnp.concatenate([feat, action], axis=1)

    def mlp(p):
        y = jax.nn.relu(oa @ p["w1"] + p["b1"])
        y = jax.nn.relu(y @ p["w2"] + p["b2"])
        return y @ p["w3"] + p["b3"]

    return mlp(params["critic1"]), mlp(params["critic2"])


# ---------------------------------- main ---------------------------------------
if __name__ == "__main__":
    key = jax.random.PRNGKey(0)
    k_params, k_obs, k_goal, k_act = jax.random.split(key, 4)

    B, C, H, W = 2, 3, 16, 16
    action_dim = 6

    obs = jax.random.normal(k_obs, (B, C, H, W), jnp.float32)
    goal_obs = jax.random.normal(k_goal, (B, C, H, W), jnp.float32)
    action = jax.random.normal(k_act, (B, action_dim), jnp.float32)

    params = make_params(k_params, in_channels=2 * C, action_dim=action_dim)
    weights = prepare_fused_weights(params)
    critic_forward = make_critic_forward(B, C, H, W)

    q1, q2 = critic_forward(weights, obs, goal_obs, action)
    jax.block_until_ready((q1, q2))
    assert q1.shape == (B, 1) and q2.shape == (B, 1)
    assert bool(jnp.all(jnp.isfinite(q1))) and bool(jnp.all(jnp.isfinite(q2)))

    # Validate against the pure-JAX f32 reference (kernel uses bf16 MXU inputs
    # with f32 accumulation -> loose tolerance).
    r1, r2 = reference_forward(params, obs, goal_obs, action)
    assert jnp.allclose(q1, r1, rtol=1e-1, atol=1e-1)
    assert jnp.allclose(q2, r2, rtol=1e-1, atol=1e-1)

    print("KERNEL_OK")
</pallas_src>

<mosaic_0001>
module attributes {stable_mosaic.version = 11 : i64} {
  func.func @kernel(%arg0: memref<512x6xf32, #tpu.memory_space<vmem>>, %arg1: memref<2x6xf32, #tpu.memory_space<vmem>>, %arg2: memref<98x1xi32, #tpu.memory_space<vmem>>, %arg3: memref<50x1xi32, #tpu.memory_space<vmem>>, %arg4: memref<18x1xi32, #tpu.memory_space<vmem>>, %arg5: memref<2x1xi32, #tpu.memory_space<vmem>>, %arg6: memref<9x6x32xbf16, #tpu.memory_space<vmem>>, %arg7: memref<1x32xf32, #tpu.memory_space<vmem>>, %arg8: memref<9x32x32xbf16, #tpu.memory_space<vmem>>, %arg9: memref<1x32xf32, #tpu.memory_space<vmem>>, %arg10: memref<9x32x32xbf16, #tpu.memory_space<vmem>>, %arg11: memref<1x32xf32, #tpu.memory_space<vmem>>, %arg12: memref<9x32x32xbf16, #tpu.memory_space<vmem>>, %arg13: memref<1x32xf32, #tpu.memory_space<vmem>>, %arg14: memref<32x50xbf16, #tpu.memory_space<vmem>>, %arg15: memref<1x50xf32, #tpu.memory_space<vmem>>, %arg16: memref<1x50xf32, #tpu.memory_space<vmem>>, %arg17: memref<1x50xf32, #tpu.memory_space<vmem>>, %arg18: memref<50x512xbf16, #tpu.memory_space<vmem>>, %arg19: memref<6x512xbf16, #tpu.memory_space<vmem>>, %arg20: memref<1x512xf32, #tpu.memory_space<vmem>>, %arg21: memref<512x512xbf16, #tpu.memory_space<vmem>>, %arg22: memref<1x512xf32, #tpu.memory_space<vmem>>, %arg23: memref<512x128xbf16, #tpu.memory_space<vmem>>, %arg24: memref<1x128xf32, #tpu.memory_space<vmem>>, %arg25: memref<2x128xf32, #tpu.memory_space<vmem>>) attributes {dimension_semantics = [], scalar_prefetch = 0 : i64, scratch_operands = 0 : i64, tpu.core_type = #tpu.core_type<tc>} {
    %c0 = arith.constant 0 : index
    %c0_0 = arith.constant 0 : index
    %0 = vector.load %arg0[%c0, %c0_0] : memref<512x6xf32, #tpu.memory_space<vmem>>, vector<512x6xf32>
    %1 = tpu.iota {dimensions = array<i32: 1>} : vector<98x512xi32>
    %c0_1 = arith.constant 0 : index
    %c0_2 = arith.constant 0 : index
    %2 = vector.load %arg2[%c0_1, %c0_2] : memref<98x1xi32, #tpu.memory_space<vmem>>, vector<98x1xi32>
    %3 = vector.broadcast %2 : vector<98x1xi32> to vector<98x512xi32>
    %4 = arith.subi %1, %3 : vector<98x512xi32>
    %cst = arith.constant 0.000000e+00 : f32
    %5 = vector.broadcast %cst : f32 to vector<98x32xf32>
    %c0_i32 = arith.constant 0 : i32
    %6 = vector.broadcast %c0_i32 : i32 to vector<98x512xi32>
    %7 = arith.cmpi eq, %4, %6 : vector<98x512xi32>
    %cst_3 = arith.constant 1.000000e+00 : f32
    %cst_4 = arith.constant 0.000000e+00 : f32
    %8 = vector.broadcast %cst_3 : f32 to vector<98x512xf32>
    %9 = vector.broadcast %cst_4 : f32 to vector<98x512xf32>
    %10 = arith.select %7, %8, %9 : vector<98x512xi1>, vector<98x512xf32>
    %11 = arith.truncf %10 : vector<98x512xf32> to vector<98x512xbf16>
    %12 = arith.truncf %0 : vector<512x6xf32> to vector<512x6xbf16>
    %cst_5 = arith.constant dense<0.000000e+00> : vector<98x6xf32>
    %13 = tpu.matmul %11, %12, %cst_5 {dimension_numbers = #tpu.dot_dimension_numbers<[1], [0], [0], [1], [0, 0, 1, 1], [], []>} : vector<98x512xbf16>, vector<512x6xbf16>, vector<98x6xf32> -> vector<98x6xf32>
    %c0_6 = arith.constant 0 : index
    %c0_7 = arith.constant 0 : index
    %c0_8 = arith.constant 0 : index
    %14 = vector.load %arg6[%c0_6, %c0_7, %c0_8] : memref<9x6x32xbf16, #tpu.memory_space<vmem>>, vector<1x6x32xbf16>
    %15 = vector.shape_cast %14 : vector<1x6x32xbf16> to vector<6x32xbf16>
    %16 = arith.truncf %13 : vector<98x6xf32> to vector<98x6xbf16>
    %cst_9 = arith.constant dense<0.000000e+00> : vector<98x32xf32>
    %17 = tpu.matmul %16, %15, %cst_9 {dimension_numbers = #tpu.dot_dimension_numbers<[1], [0], [0], [1], [0, 0, 1, 1], [], []>} : vector<98x6xbf16>, vector<6x32xbf16>, vector<98x32xf32> -> vector<98x32xf32>
    %18 = arith.addf %5, %17 : vector<98x32xf32>
    %c1_i32 = arith.constant 1 : i32
    %19 = vector.broadcast %c1_i32 : i32 to vector<98x512xi32>
    %20 = arith.cmpi eq, %4, %19 : vector<98x512xi32>
    %cst_10 = arith.constant 1.000000e+00 : f32
    %cst_11 = arith.constant 0.000000e+00 : f32
    %21 = vector.broadcast %cst_10 : f32 to vector<98x512xf32>
    %22 = vector.broadcast %cst_11 : f32 to vector<98x512xf32>
    %23 = arith.select %20, %21, %22 : vector<98x512xi1>, vector<98x512xf32>
    %24 = arith.truncf %23 : vector<98x512xf32> to vector<98x512xbf16>
    %25 = arith.truncf %0 : vector<512x6xf32> to vector<512x6xbf16>
    %cst_12 = arith.constant dense<0.000000e+00> : vector<98x6xf32>
    %26 = tpu.matmul %24, %25, %cst_12 {dimension_numbers = #tpu.dot_dimension_numbers<[1], [0], [0], [1], [0, 0, 1, 1], [], []>} : vector<98x512xbf16>, vector<512x6xbf16>, vector<98x6xf32> -> vector<98x6xf32>
    %c1 = arith.constant 1 : index
    %c0_13 = arith.constant 0 : index
    %c0_14 = arith.constant 0 : index
    %27 = vector.load %arg6[%c1, %c0_13, %c0_14] : memref<9x6x32xbf16, #tpu.memory_space<vmem>>, vector<1x6x32xbf16>
    %28 = vector.shape_cast %27 : vector<1x6x32xbf16> to vector<6x32xbf16>
    %29 = arith.truncf %26 : vector<98x6xf32> to vector<98x6xbf16>
    %cst_15 = arith.constant dense<0.000000e+00> : vector<98x32xf32>
    %30 = tpu.matmul %29, %28, %cst_15 {dimension_numbers = #tpu.dot_dimension_numbers<[1], [0], [0], [1], [0, 0, 1, 1], [], []>} : vector<98x6xbf16>, vector<6x32xbf16>, vector<98x32xf32> -> vector<98x32xf32>
    %31 = arith.addf %18, %30 : vector<98x32xf32>
    %c2_i32 = arith.constant 2 : i32
    %32 = vector.broadcast %c2_i32 : i32 to vector<98x512xi32>
    %33 = arith.cmpi eq, %4, %32 : vector<98x512xi32>
    %cst_16 = arith.constant 1.000000e+00 : f32
    %cst_17 = arith.constant 0.000000e+00 : f32
    %34 = vector.broadcast %cst_16 : f32 to vector<98x512xf32>
    %35 = vector.broadcast %cst_17 : f32 to vector<98x512xf32>
    %36 = arith.select %33, %34, %35 : vector<98x512xi1>, vector<98x512xf32>
    %37 = arith.truncf %36 : vector<98x512xf32> to vector<98x512xbf16>
    %38 = arith.truncf %0 : vector<512x6xf32> to vector<512x6xbf16>
    %cst_18 = arith.constant dense<0.000000e+00> : vector<98x6xf32>
    %39 = tpu.matmul %37, %38, %cst_18 {dimension_numbers = #tpu.dot_dimension_numbers<[1], [0], [0], [1], [0, 0, 1, 1], [], []>} : vector<98x512xbf16>, vector<512x6xbf16>, vector<98x6xf32> -> vector<98x6xf32>
    %c2 = arith.constant 2 : index
    %c0_19 = arith.constant 0 : index
    %c0_20 = arith.constant 0 : index
    %40 = vector.load %arg6[%c2, %c0_19, %c0_20] : memref<9x6x32xbf16, #tpu.memory_space<vmem>>, vector<1x6x32xbf16>
    %41 = vector.shape_cast %40 : vector<1x6x32xbf16> to vector<6x32xbf16>
    %42 = arith.truncf %39 : vector<98x6xf32> to vector<98x6xbf16>
    %cst_21 = arith.constant dense<0.000000e+00> : vector<98x32xf32>
    %43 = tpu.matmul %42, %41, %cst_21 {dimension_numbers = #tpu.dot_dimension_numbers<[1], [0], [0], [1], [0, 0, 1, 1], [], []>} : vector<98x6xbf16>, vector<6x32xbf16>, vector<98x32xf32> -> vector<98x32xf32>
    %44 = arith.addf %31, %43 : vector<98x32xf32>
    %c16_i32 = arith.constant 16 : i32
    %45 = vector.broadcast %c16_i32 : i32 to vector<98x512xi32>
    %46 = arith.cmpi eq, %4, %45 : vector<98x512xi32>
    %cst_22 = arith.constant 1.000000e+00 : f32
    %cst_23 = arith.constant 0.000000e+00 : f32
    %47 = vector.broadcast %cst_22 : f32 to vector<98x512xf32>
    %48 = vector.broadcast %cst_23 : f32 to vector<98x512xf32>
    %49 = arith.select %46, %47, %48 : vector<98x512xi1>, vector<98x512xf32>
    %50 = arith.truncf %49 : vector<98x512xf32> to vector<98x512xbf16>
    %51 = arith.truncf %0 : vector<512x6xf32> to vector<512x6xbf16>
    %cst_24 = arith.constant dense<0.000000e+00> : vector<98x6xf32>
    %52 = tpu.matmul %50, %51, %cst_24 {dimension_numbers = #tpu.dot_dimension_numbers<[1], [0], [0], [1], [0, 0, 1, 1], [], []>} : vector<98x512xbf16>, vector<512x6xbf16>, vector<98x6xf32> -> vector<98x6xf32>
    %c3 = arith.constant 3 : index
    %c0_25 = arith.constant 0 : index
    %c0_26 = arith.constant 0 : index
    %53 = vector.load %arg6[%c3, %c0_25, %c0_26] : memref<9x6x32xbf16, #tpu.memory_space<vmem>>, vector<1x6x32xbf16>
    %54 = vector.shape_cast %53 : vector<1x6x32xbf16> to vector<6x32xbf16>
    %55 = arith.truncf %52 : vector<98x6xf32> to vector<98x6xbf16>
    %cst_27 = arith.constant dense<0.000000e+00> : vector<98x32xf32>
    %56 = tpu.matmul %55, %54, %cst_27 {dimension_numbers = #tpu.dot_dimension_numbers<[1], [0], [0], [1], [0, 0, 1, 1], [], []>} : vector<98x6xbf16>, vector<6x32xbf16>, vector<98x32xf32> -> vector<98x32xf32>
    %57 = arith.addf %44, %56 : vector<98x32xf32>
    %c17_i32 = arith.constant 17 : i32
    %58 = vector.broadcast %c17_i32 : i32 to vector<98x512xi32>
    %59 = arith.cmpi eq, %4, %58 : vector<98x512xi32>
    %cst_28 = arith.constant 1.000000e+00 : f32
    %cst_29 = arith.constant 0.000000e+00 : f32
    %60 = vector.broadcast %cst_28 : f32 to vector<98x512xf32>
    %61 = vector.broadcast %cst_29 : f32 to vector<98x512xf32>
    %62 = arith.select %59, %60, %61 : vector<98x512xi1>, vector<98x512xf32>
    %63 = arith.truncf %62 : vector<98x512xf32> to vector<98x512xbf16>
    %64 = arith.truncf %0 : vector<512x6xf32> to vector<512x6xbf16>
    %cst_30 = arith.constant dense<0.000000e+00> : vector<98x6xf32>
    %65 = tpu.matmul %63, %64, %cst_30 {dimension_numbers = #tpu.dot_dimension_numbers<[1], [0], [0], [1], [0, 0, 1, 1], [], []>} : vector<98x512xbf16>, vector<512x6xbf16>, vector<98x6xf32> -> vector<98x6xf32>
    %c4 = arith.constant 4 : index
    %c0_31 = arith.constant 0 : index
    %c0_32 = arith.constant 0 : index
    %66 = vector.load %arg6[%c4, %c0_31, %c0_32] : memref<9x6x32xbf16, #tpu.memory_space<vmem>>, vector<1x6x32xbf16>
    %67 = vector.shape_cast %66 : vector<1x6x32xbf16> to vector<6x32xbf16>
    %68 = arith.truncf %65 : vector<98x6xf32> to vector<98x6xbf16>
    %cst_33 = arith.constant dense<0.000000e+00> : vector<98x32xf32>
    %69 = tpu.matmul %68, %67, %cst_33 {dimension_numbers = #tpu.dot_dimension_numbers<[1], [0], [0], [1], [0, 0, 1, 1], [], []>} : vector<98x6xbf16>, vector<6x32xbf16>, vector<98x32xf32> -> vector<98x32xf32>
    %70 = arith.addf %57, %69 : vector<98x32xf32>
    %c18_i32 = arith.constant 18 : i32
    %71 = vector.broadcast %c18_i32 : i32 to vector<98x512xi32>
    %72 = arith.cmpi eq, %4, %71 : vector<98x512xi32>
    %cst_34 = arith.constant 1.000000e+00 : f32
    %cst_35 = arith.constant 0.000000e+00 : f32
    %73 = vector.broadcast %cst_34 : f32 to vector<98x512xf32>
    %74 = vector.broadcast %cst_35 : f32 to vector<98x512xf32>
    %75 = arith.select %72, %73, %74 : vector<98x512xi1>, vector<98x512xf32>
    %76 = arith.truncf %75 : vector<98x512xf32> to vector<98x512xbf16>
    %77 = arith.truncf %0 : vector<512x6xf32> to vector<512x6xbf16>
    %cst_36 = arith.constant dense<0.000000e+00> : vector<98x6xf32>
    %78 = tpu.matmul %76, %77, %cst_36 {dimension_numbers = #tpu.dot_dimension_numbers<[1], [0], [0], [1], [0, 0, 1, 1], [], []>} : vector<98x512xbf16>, vector<512x6xbf16>, vector<98x6xf32> -> vector<98x6xf32>
    %c5 = arith.constant 5 : index
    %c0_37 = arith.constant 0 : index
    %c0_38 = arith.constant 0 : index
    %79 = vector.load %arg6[%c5, %c0_37, %c0_38] : memref<9x6x32xbf16, #tpu.memory_space<vmem>>, vector<1x6x32xbf16>
    %80 = vector.shape_cast %79 : vector<1x6x32xbf16> to vector<6x32xbf16>
    %81 = arith.truncf %78 : vector<98x6xf32> to vector<98x6xbf16>
    %cst_39 = arith.constant dense<0.000000e+00> : vector<98x32xf32>
    %82 = tpu.matmul %81, %80, %cst_39 {dimension_numbers = #tpu.dot_dimension_numbers<[1], [0], [0], [1], [0, 0, 1, 1], [], []>} : vector<98x6xbf16>, vector<6x32xbf16>, vector<98x32xf32> -> vector<98x32xf32>
    %83 = arith.addf %70, %82 : vector<98x32xf32>
    %c32_i32 = arith.constant 32 : i32
    %84 = vector.broadcast %c32_i32 : i32 to vector<98x512xi32>
    %85 = arith.cmpi eq, %4, %84 : vector<98x512xi32>
    %cst_40 = arith.constant 1.000000e+00 : f32
    %cst_41 = arith.constant 0.000000e+00 : f32
    %86 = vector.broadcast %cst_40 : f32 to vector<98x512xf32>
    %87 = vector.broadcast %cst_41 : f32 to vector<98x512xf32>
    %88 = arith.select %85, %86, %87 : vector<98x512xi1>, vector<98x512xf32>
    %89 = arith.truncf %88 : vector<98x512xf32> to vector<98x512xbf16>
    %90 = arith.truncf %0 : vector<512x6xf32> to vector<512x6xbf16>
    %cst_42 = arith.constant dense<0.000000e+00> : vector<98x6xf32>
    %91 = tpu.matmul %89, %90, %cst_42 {dimension_numbers = #tpu.dot_dimension_numbers<[1], [0], [0], [1], [0, 0, 1, 1], [], []>} : vector<98x512xbf16>, vector<512x6xbf16>, vector<98x6xf32> -> vector<98x6xf32>
    %c6 = arith.constant 6 : index
    %c0_43 = arith.constant 0 : index
    %c0_44 = arith.constant 0 : index
    %92 = vector.load %arg6[%c6, %c0_43, %c0_44] : memref<9x6x32xbf16, #tpu.memory_space<vmem>>, vector<1x6x32xbf16>
    %93 = vector.shape_cast %92 : vector<1x6x32xbf16> to vector<6x32xbf16>
    %94 = arith.truncf %91 : vector<98x6xf32> to vector<98x6xbf16>
    %cst_45 = arith.constant dense<0.000000e+00> : vector<98x32xf32>
    %95 = tpu.matmul %94, %93, %cst_45 {dimension_numbers = #tpu.dot_dimension_numbers<[1], [0], [0], [1], [0, 0, 1, 1], [], []>} : vector<98x6xbf16>, vector<6x32xbf16>, vector<98x32xf32> -> vector<98x32xf32>
    %96 = arith.addf %83, %95 : vector<98x32xf32>
    %c33_i32 = arith.constant 33 : i32
    %97 = vector.broadcast %c33_i32 : i32 to vector<98x512xi32>
    %98 = arith.cmpi eq, %4, %97 : vector<98x512xi32>
    %cst_46 = arith.constant 1.000000e+00 : f32
    %cst_47 = arith.constant 0.000000e+00 : f32
    %99 = vector.broadcast %cst_46 : f32 to vector<98x512xf32>
    %100 = vector.broadcast %cst_47 : f32 to vector<98x512xf32>
    %101 = arith.select %98, %99, %100 : vector<98x512xi1>, vector<98x512xf32>
    %102 = arith.truncf %101 : vector<98x512xf32> to vector<98x512xbf16>
    %103 = arith.truncf %0 : vector<512x6xf32> to vector<512x6xbf16>
    %cst_48 = arith.constant dense<0.000000e+00> : vector<98x6xf32>
    %104 = tpu.matmul %102, %103, %cst_48 {dimension_numbers = #tpu.dot_dimension_numbers<[1], [0], [0], [1], [0, 0, 1, 1], [], []>} : vector<98x512xbf16>, vector<512x6xbf16>, vector<98x6xf32> -> vector<98x6xf32>
    %c7 = arith.constant 7 : index
    %c0_49 = arith.constant 0 : index
    %c0_50 = arith.constant 0 : index
    %105 = vector.load %arg6[%c7, %c0_49, %c0_50] : memref<9x6x32xbf16, #tpu.memory_space<vmem>>, vector<1x6x32xbf16>
    %106 = vector.shape_cast %105 : vector<1x6x32xbf16> to vector<6x32xbf16>
    %107 = arith.truncf %104 : vector<98x6xf32> to vector<98x6xbf16>
    %cst_51 = arith.constant dense<0.000000e+00> : vector<98x32xf32>
    %108 = tpu.matmul %107, %106, %cst_51 {dimension_numbers = #tpu.dot_dimension_numbers<[1], [0], [0], [1], [0, 0, 1, 1], [], []>} : vector<98x6xbf16>, vector<6x32xbf16>, vector<98x32xf32> -> vector<98x32xf32>
    %109 = arith.addf %96, %108 : vector<98x32xf32>
    %c34_i32 = arith.constant 34 : i32
    %110 = vector.broadcast %c34_i32 : i32 to vector<98x512xi32>
    %111 = arith.cmpi eq, %4, %110 : vector<98x512xi32>
    %cst_52 = arith.constant 1.000000e+00 : f32
    %cst_53 = arith.constant 0.000000e+00 : f32
    %112 = vector.broadcast %cst_52 : f32 to vector<98x512xf32>
    %113 = vector.broadcast %cst_53 : f32 to vector<98x512xf32>
    %114 = arith.select %111, %112, %113 : vector<98x512xi1>, vector<98x512xf32>
    %115 = arith.truncf %114 : vector<98x512xf32> to vector<98x512xbf16>
    %116 = arith.truncf %0 : vector<512x6xf32> to vector<512x6xbf16>
    %cst_54 = arith.constant dense<0.000000e+00> : vector<98x6xf32>
    %117 = tpu.matmul %115, %116, %cst_54 {dimension_numbers = #tpu.dot_dimension_numbers<[1], [0], [0], [1], [0, 0, 1, 1], [], []>} : vector<98x512xbf16>, vector<512x6xbf16>, vector<98x6xf32> -> vector<98x6xf32>
    %c8 = arith.constant 8 : index
    %c0_55 = arith.constant 0 : index
    %c0_56 = arith.constant 0 : index
    %118 = vector.load %arg6[%c8, %c0_55, %c0_56] : memref<9x6x32xbf16, #tpu.memory_space<vmem>>, vector<1x6x32xbf16>
    %119 = vector.shape_cast %118 : vector<1x6x32xbf16> to vector<6x32xbf16>
    %120 = arith.truncf %117 : vector<98x6xf32> to vector<98x6xbf16>
    %cst_57 = arith.constant dense<0.000000e+00> : vector<98x32xf32>
    %121 = tpu.matmul %120, %119, %cst_57 {dimension_numbers = #tpu.dot_dimension_numbers<[1], [0], [0], [1], [0, 0, 1, 1], [], []>} : vector<98x6xbf16>, vector<6x32xbf16>, vector<98x32xf32> -> vector<98x32xf32>
    %122 = arith.addf %109, %121 : vector<98x32xf32>
    %c0_58 = arith.constant 0 : index
    %c0_59 = arith.constant 0 : index
    %123 = vector.load %arg7[%c0_58, %c0_59] : memref<1x32xf32, #tpu.memory_space<vmem>>, vector<1x32xf32>
    %124 = vector.broadcast %123 : vector<1x32xf32> to vector<98x32xf32>
    %125 = arith.addf %122, %124 : vector<98x32xf32>
    %cst_60 = arith.constant 0.000000e+00 : f32
    %126 = vector.broadcast %cst_60 : f32 to vector<98x32xf32>
    %127 = arith.maximumf %125, %126 : vector<98x32xf32>
    %128 = tpu.iota {dimensions = array<i32: 1>} : vector<50x98xi32>
    %c0_61 = arith.constant 0 : index
    %c0_62 = arith.constant 0 : index
    %129 = vector.load %arg3[%c0_61, %c0_62] : memref<50x1xi32, #tpu.memory_space<vmem>>, vector<50x1xi32>
    %130 = vector.broadcast %129 : vector<50x1xi32> to vector<50x98xi32>
    %131 = arith.subi %128, %130 : vector<50x98xi32>
    %cst_63 = arith.constant 0.000000e+00 : f32
    %132 = vector.broadcast %cst_63 : f32 to vector<50x32xf32>
    %c0_i32_64 = arith.constant 0 : i32
    %133 = vector.broadcast %c0_i32_64 : i32 to vector<50x98xi32>
    %134 = arith.cmpi eq, %131, %133 : vector<50x98xi32>
    %cst_65 = arith.constant 1.000000e+00 : f32
    %cst_66 = arith.constant 0.000000e+00 : f32
    %135 = vector.broadcast %cst_65 : f32 to vector<50x98xf32>
    %136 = vector.broadcast %cst_66 : f32 to vector<50x98xf32>
    %137 = arith.select %134, %135, %136 : vector<50x98xi1>, vector<50x98xf32>
    %138 = arith.truncf %137 : vector<50x98xf32> to vector<50x98xbf16>
    %139 = arith.truncf %127 : vector<98x32xf32> to vector<98x32xbf16>
    %cst_67 = arith.constant dense<0.000000e+00> : vector<50x32xf32>
    %140 = tpu.matmul %138, %139, %cst_67 {dimension_numbers = #tpu.dot_dimension_numbers<[1], [0], [0], [1], [0, 0, 1, 1], [], []>} : vector<50x98xbf16>, vector<98x32xbf16>, vector<50x32xf32> -> vector<50x32xf32>
    %c0_68 = arith.constant 0 : index
    %c0_69 = arith.constant 0 : index
    %c0_70 = arith.constant 0 : index
    %141 = vector.load %arg8[%c0_68, %c0_69, %c0_70] : memref<9x32x32xbf16, #tpu.memory_space<vmem>>, vector<1x32x32xbf16>
    %142 = vector.shape_cast %141 : vector<1x32x32xbf16> to vector<32x32xbf16>
    %143 = arith.truncf %140 : vector<50x32xf32> to vector<50x32xbf16>
    %cst_71 = arith.constant dense<0.000000e+00> : vector<50x32xf32>
    %144 = tpu.matmul %143, %142, %cst_71 {dimension_numbers = #tpu.dot_dimension_numbers<[1], [0], [0], [1], [0, 0, 1, 1], [], []>} : vector<50x32xbf16>, vector<32x32xbf16>, vector<50x32xf32> -> vector<50x32xf32>
    %145 = arith.addf %132, %144 : vector<50x32xf32>
    %c1_i32_72 = arith.constant 1 : i32
    %146 = vector.broadcast %c1_i32_72 : i32 to vector<50x98xi32>
    %147 = arith.cmpi eq, %131, %146 : vector<50x98xi32>
    %cst_73 = arith.constant 1.000000e+00 : f32
    %cst_74 = arith.constant 0.000000e+00 : f32
    %148 = vector.broadcast %cst_73 : f32 to vector<50x98xf32>
    %149 = vector.broadcast %cst_74 : f32 to vector<50x98xf32>
    %150 = arith.select %147, %148, %149 : vector<50x98xi1>, vector<50x98xf32>
    %151 = arith.truncf %150 : vector<50x98xf32> to vector<50x98xbf16>
    %152 = arith.truncf %127 : vector<98x32xf32> to vector<98x32xbf16>
    %cst_75 = arith.constant dense<0.000000e+00> : vector<50x32xf32>
    %153 = tpu.matmul %151, %152, %cst_75 {dimension_numbers = #tpu.dot_dimension_numbers<[1], [0], [0], [1], [0, 0, 1, 1], [], []>} : vector<50x98xbf16>, vector<98x32xbf16>, vector<50x32xf32> -> vector<50x32xf32>
    %c1_76 = arith.constant 1 : index
    %c0_77 = arith.constant 0 : index
    %c0_78 = arith.constant 0 : index
    %154 = vector.load %arg8[%c1_76, %c0_77, %c0_78] : memref<9x32x32xbf16, #tpu.memory_space<vmem>>, vector<1x32x32xbf16>
    %155 = vector.shape_cast %154 : vector<1x32x32xbf16> to vector<32x32xbf16>
    %156 = arith.truncf %153 : vector<50x32xf32> to vector<50x32xbf16>
    %cst_79 = arith.constant dense<0.000000e+00> : vector<50x32xf32>
    %157 = tpu.matmul %156, %155, %cst_79 {dimension_numbers = #tpu.dot_dimension_numbers<[1], [0], [0], [1], [0, 0, 1, 1], [], []>} : vector<50x32xbf16>, vector<32x32xbf16>, vector<50x32xf32> -> vector<50x32xf32>
    %158 = arith.addf %145, %157 : vector<50x32xf32>
    %c2_i32_80 = arith.constant 2 : i32
    %159 = vector.broadcast %c2_i32_80 : i32 to vector<50x98xi32>
    %160 = arith.cmpi eq, %131, %159 : vector<50x98xi32>
    %cst_81 = arith.constant 1.000000e+00 : f32
    %cst_82 = arith.constant 0.000000e+00 : f32
    %161 = vector.broadcast %cst_81 : f32 to vector<50x98xf32>
    %162 = vector.broadcast %cst_82 : f32 to vector<50x98xf32>
    %163 = arith.select %160, %161, %162 : vector<50x98xi1>, vector<50x98xf32>
    %164 = arith.truncf %163 : vector<50x98xf32> to vector<50x98xbf16>
    %165 = arith.truncf %127 : vector<98x32xf32> to vector<98x32xbf16>
    %cst_83 = arith.constant dense<0.000000e+00> : vector<50x32xf32>
    %166 = tpu.matmul %164, %165, %cst_83 {dimension_numbers = #tpu.dot_dimension_numbers<[1], [0], [0], [1], [0, 0, 1, 1], [], []>} : vector<50x98xbf16>, vector<98x32xbf16>, vector<50x32xf32> -> vector<50x32xf32>
    %c2_84 = arith.constant 2 : index
    %c0_85 = arith.constant 0 : index
    %c0_86 = arith.constant 0 : index
    %167 = vector.load %arg8[%c2_84, %c0_85, %c0_86] : memref<9x32x32xbf16, #tpu.memory_space<vmem>>, vector<1x32x32xbf16>
    %168 = vector.shape_cast %167 : vector<1x32x32xbf16> to vector<32x32xbf16>
    %169 = arith.truncf %166 : vector<50x32xf32> to vector<50x32xbf16>
    %cst_87 = arith.constant dense<0.000000e+00> : vector<50x32xf32>
    %170 = tpu.matmul %169, %168, %cst_87 {dimension_numbers = #tpu.dot_dimension_numbers<[1], [0], [0], [1], [0, 0, 1, 1], [], []>} : vector<50x32xbf16>, vector<32x32xbf16>, vector<50x32xf32> -> vector<50x32xf32>
    %171 = arith.addf %158, %170 : vector<50x32xf32>
    %c7_i32 = arith.constant 7 : i32
    %172 = vector.broadcast %c7_i32 : i32 to vector<50x98xi32>
    %173 = arith.cmpi eq, %131, %172 : vector<50x98xi32>
    %cst_88 = arith.constant 1.000000e+00 : f32
    %cst_89 = arith.constant 0.000000e+00 : f32
    %174 = vector.broadcast %cst_88 : f32 to vector<50x98xf32>
    %175 = vector.broadcast %cst_89 : f32 to vector<50x98xf32>
    %176 = arith.select %173, %174, %175 : vector<50x98xi1>, vector<50x98xf32>
    %177 = arith.truncf %176 : vector<50x98xf32> to vector<50x98xbf16>
    %178 = arith.truncf %127 : vector<98x32xf32> to vector<98x32xbf16>
    %cst_90 = arith.constant dense<0.000000e+00> : vector<50x32xf32>
    %179 = tpu.matmul %177, %178, %cst_90 {dimension_numbers = #tpu.dot_dimension_numbers<[1], [0], [0], [1], [0, 0, 1, 1], [], []>} : vector<50x98xbf16>, vector<98x32xbf16>, vector<50x32xf32> -> vector<50x32xf32>
    %c3_91 = arith.constant 3 : index
    %c0_92 = arith.constant 0 : index
    %c0_93 = arith.constant 0 : index
    %180 = vector.load %arg8[%c3_91, %c0_92, %c0_93] : memref<9x32x32xbf16, #tpu.memory_space<vmem>>, vector<1x32x32xbf16>
    %181 = vector.shape_cast %180 : vector<1x32x32xbf16> to vector<32x32xbf16>
    %182 = arith.truncf %179 : vector<50x32xf32> to vector<50x32xbf16>
    %cst_94 = arith.constant dense<0.000000e+00> : vector<50x32xf32>
    %183 = tpu.matmul %182, %181, %cst_94 {dimension_numbers = #tpu.dot_dimension_numbers<[1], [0], [0], [1], [0, 0, 1, 1], [], []>} : vector<50x32xbf16>, vector<32x32xbf16>, vector<50x32xf32> -> vector<50x32xf32>
    %184 = arith.addf %171, %183 : vector<50x32xf32>
    %c8_i32 = arith.constant 8 : i32
    %185 = vector.broadcast %c8_i32 : i32 to vector<50x98xi32>
    %186 = arith.cmpi eq, %131, %185 : vector<50x98xi32>
    %cst_95 = arith.constant 1.000000e+00 : f32
    %cst_96 = arith.constant 0.000000e+00 : f32
    %187 = vector.broadcast %cst_95 : f32 to vector<50x98xf32>
    %188 = vector.broadcast %cst_96 : f32 to vector<50x98xf32>
    %189 = arith.select %186, %187, %188 : vector<50x98xi1>, vector<50x98xf32>
    %190 = arith.truncf %189 : vector<50x98xf32> to vector<50x98xbf16>
    %191 = arith.truncf %127 : vector<98x32xf32> to vector<98x32xbf16>
    %cst_97 = arith.constant dense<0.000000e+00> : vector<50x32xf32>
    %192 = tpu.matmul %190, %191, %cst_97 {dimension_numbers = #tpu.dot_dimension_numbers<[1], [0], [0], [1], [0, 0, 1, 1], [], []>} : vector<50x98xbf16>, vector<98x32xbf16>, vector<50x32xf32> -> vector<50x32xf32>
    %c4_98 = arith.constant 4 : index
    %c0_99 = arith.constant 0 : index
    %c0_100 = arith.constant 0 : index
    %193 = vector.load %arg8[%c4_98, %c0_99, %c0_100] : memref<9x32x32xbf16, #tpu.memory_space<vmem>>, vector<1x32x32xbf16>
    %194 = vector.shape_cast %193 : vector<1x32x32xbf16> to vector<32x32xbf16>
    %195 = arith.truncf %192 : vector<50x32xf32> to vector<50x32xbf16>
    %cst_101 = arith.constant dense<0.000000e+00> : vector<50x32xf32>
    %196 = tpu.matmul %195, %194, %cst_101 {dimension_numbers = #tpu.dot_dimension_numbers<[1], [0], [0], [1], [0, 0, 1, 1], [], []>} : vector<50x32xbf16>, vector<32x32xbf16>, vector<50x32xf32> -> vector<50x32xf32>
    %197 = arith.addf %184, %196 : vector<50x32xf32>
    %c9_i32 = arith.constant 9 : i32
    %198 = vector.broadcast %c9_i32 : i32 to vector<50x98xi32>
    %199 = arith.cmpi eq, %131, %198 : vector<50x98xi32>
    %cst_102 = arith.constant 1.000000e+00 : f32
    %cst_103 = arith.constant 0.000000e+00 : f32
    %200 = vector.broadcast %cst_102 : f32 to vector<50x98xf32>
    %201 = vector.broadcast %cst_103 : f32 to vector<50x98xf32>
    %202 = arith.select %199, %200, %201 : vector<50x98xi1>, vector<50x98xf32>
    %203 = arith.truncf %202 : vector<50x98xf32> to vector<50x98xbf16>
    %204 = arith.truncf %127 : vector<98x32xf32> to vector<98x32xbf16>
    %cst_104 = arith.constant dense<0.000000e+00> : vector<50x32xf32>
    %205 = tpu.matmul %203, %204, %cst_104 {dimension_numbers = #tpu.dot_dimension_numbers<[1], [0], [0], [1], [0, 0, 1, 1], [], []>} : vector<50x98xbf16>, vector<98x32xbf16>, vector<50x32xf32> -> vector<50x32xf32>
    %c5_105 = arith.constant 5 : index
    %c0_106 = arith.constant 0 : index
    %c0_107 = arith.constant 0 : index
    %206 = vector.load %arg8[%c5_105, %c0_106, %c0_107] : memref<9x32x32xbf16, #tpu.memory_space<vmem>>, vector<1x32x32xbf16>
    %207 = vector.shape_cast %206 : vector<1x32x32xbf16> to vector<32x32xbf16>
    %208 = arith.truncf %205 : vector<50x32xf32> to vector<50x32xbf16>
    %cst_108 = arith.constant dense<0.000000e+00> : vector<50x32xf32>
    %209 = tpu.matmul %208, %207, %cst_108 {dimension_numbers = #tpu.dot_dimension_numbers<[1], [0], [0], [1], [0, 0, 1, 1], [], []>} : vector<50x32xbf16>, vector<32x32xbf16>, vector<50x32xf32> -> vector<50x32xf32>
    %210 = arith.addf %197, %209 : vector<50x32xf32>
    %c14_i32 = arith.constant 14 : i32
    %211 = vector.broadcast %c14_i32 : i32 to vector<50x98xi32>
    %212 = arith.cmpi eq, %131, %211 : vector<50x98xi32>
    %cst_109 = arith.constant 1.000000e+00 : f32
    %cst_110 = arith.constant 0.000000e+00 : f32
    %213 = vector.broadcast %cst_109 : f32 to vector<50x98xf32>
    %214 = vector.broadcast %cst_110 : f32 to vector<50x98xf32>
    %215 = arith.select %212, %213, %214 : vector<50x98xi1>, vector<50x98xf32>
    %216 = arith.truncf %215 : vector<50x98xf32> to vector<50x98xbf16>
    %217 = arith.truncf %127 : vector<98x32xf32> to vector<98x32xbf16>
    %cst_111 = arith.constant dense<0.000000e+00> : vector<50x32xf32>
    %218 = tpu.matmul %216, %217, %cst_111 {dimension_numbers = #tpu.dot_dimension_numbers<[1], [0], [0], [1], [0, 0, 1, 1], [], []>} : vector<50x98xbf16>, vector<98x32xbf16>, vector<50x32xf32> -> vector<50x32xf32>
    %c6_112 = arith.constant 6 : index
    %c0_113 = arith.constant 0 : index
    %c0_114 = arith.constant 0 : index
    %219 = vector.load %arg8[%c6_112, %c0_113, %c0_114] : memref<9x32x32xbf16, #tpu.memory_space<vmem>>, vector<1x32x32xbf16>
    %220 = vector.shape_cast %219 : vector<1x32x32xbf16> to vector<32x32xbf16>
    %221 = arith.truncf %218 : vector<50x32xf32> to vector<50x32xbf16>
    %cst_115 = arith.constant dense<0.000000e+00> : vector<50x32xf32>
    %222 = tpu.matmul %221, %220, %cst_115 {dimension_numbers = #tpu.dot_dimension_numbers<[1], [0], [0], [1], [0, 0, 1, 1], [], []>} : vector<50x32xbf16>, vector<32x32xbf16>, vector<50x32xf32> -> vector<50x32xf32>
    %223 = arith.addf %210, %222 : vector<50x32xf32>
    %c15_i32 = arith.constant 15 : i32
    %224 = vector.broadcast %c15_i32 : i32 to vector<50x98xi32>
    %225 = arith.cmpi eq, %131, %224 : vector<50x98xi32>
    %cst_116 = arith.constant 1.000000e+00 : f32
    %cst_117 = arith.constant 0.000000e+00 : f32
    %226 = vector.broadcast %cst_116 : f32 to vector<50x98xf32>
    %227 = vector.broadcast %cst_117 : f32 to vector<50x98xf32>
    %228 = arith.select %225, %226, %227 : vector<50x98xi1>, vector<50x98xf32>
    %229 = arith.truncf %228 : vector<50x98xf32> to vector<50x98xbf16>
    %230 = arith.truncf %127 : vector<98x32xf32> to vector<98x32xbf16>
    %cst_118 = arith.constant dense<0.000000e+00> : vector<50x32xf32>
    %231 = tpu.matmul %229, %230, %cst_118 {dimension_numbers = #tpu.dot_dimension_numbers<[1], [0], [0], [1], [0, 0, 1, 1], [], []>} : vector<50x98xbf16>, vector<98x32xbf16>, vector<50x32xf32> -> vector<50x32xf32>
    %c7_119 = arith.constant 7 : index
    %c0_120 = arith.constant 0 : index
    %c0_121 = arith.constant 0 : index
    %232 = vector.load %arg8[%c7_119, %c0_120, %c0_121] : memref<9x32x32xbf16, #tpu.memory_space<vmem>>, vector<1x32x32xbf16>
    %233 = vector.shape_cast %232 : vector<1x32x32xbf16> to vector<32x32xbf16>
    %234 = arith.truncf %231 : vector<50x32xf32> to vector<50x32xbf16>
    %cst_122 = arith.constant dense<0.000000e+00> : vector<50x32xf32>
    %235 = tpu.matmul %234, %233, %cst_122 {dimension_numbers = #tpu.dot_dimension_numbers<[1], [0], [0], [1], [0, 0, 1, 1], [], []>} : vector<50x32xbf16>, vector<32x32xbf16>, vector<50x32xf32> -> vector<50x32xf32>
    %236 = arith.addf %223, %235 : vector<50x32xf32>
    %c16_i32_123 = arith.constant 16 : i32
    %237 = vector.broadcast %c16_i32_123 : i32 to vector<50x98xi32>
    %238 = arith.cmpi eq, %131, %237 : vector<50x98xi32>
    %cst_124 = arith.constant 1.000000e+00 : f32
    %cst_125 = arith.constant 0.000000e+00 : f32
    %239 = vector.broadcast %cst_124 : f32 to vector<50x98xf32>
    %240 = vector.broadcast %cst_125 : f32 to vector<50x98xf32>
    %241 = arith.select %238, %239, %240 : vector<50x98xi1>, vector<50x98xf32>
    %242 = arith.truncf %241 : vector<50x98xf32> to vector<50x98xbf16>
    %243 = arith.truncf %127 : vector<98x32xf32> to vector<98x32xbf16>
    %cst_126 = arith.constant dense<0.000000e+00> : vector<50x32xf32>
    %244 = tpu.matmul %242, %243, %cst_126 {dimension_numbers = #tpu.dot_dimension_numbers<[1], [0], [0], [1], [0, 0, 1, 1], [], []>} : vector<50x98xbf16>, vector<98x32xbf16>, vector<50x32xf32> -> vector<50x32xf32>
    %c8_127 = arith.constant 8 : index
    %c0_128 = arith.constant 0 : index
    %c0_129 = arith.constant 0 : index
    %245 = vector.load %arg8[%c8_127, %c0_128, %c0_129] : memref<9x32x32xbf16, #tpu.memory_space<vmem>>, vector<1x32x32xbf16>
    %246 = vector.shape_cast %245 : vector<1x32x32xbf16> to vector<32x32xbf16>
    %247 = arith.truncf %244 : vector<50x32xf32> to vector<50x32xbf16>
    %cst_130 = arith.constant dense<0.000000e+00> : vector<50x32xf32>
    %248 = tpu.matmul %247, %246, %cst_130 {dimension_numbers = #tpu.dot_dimension_numbers<[1], [0], [0], [1], [0, 0, 1, 1], [], []>} : vector<50x32xbf16>, vector<32x32xbf16>, vector<50x32xf32> -> vector<50x32xf32>
    %249 = arith.addf %236, %248 : vector<50x32xf32>
    %c0_131 = arith.constant 0 : index
    %c0_132 = arith.constant 0 : index
    %250 = vector.load %arg9[%c0_131, %c0_132] : memref<1x32xf32, #tpu.memory_space<vmem>>, vector<1x32xf32>
    %251 = vector.broadcast %250 : vector<1x32xf32> to vector<50x32xf32>
    %252 = arith.addf %249, %251 : vector<50x32xf32>
    %cst_133 = arith.constant 0.000000e+00 : f32
    %253 = vector.broadcast %cst_133 : f32 to vector<50x32xf32>
    %254 = arith.maximumf %252, %253 : vector<50x32xf32>
    %255 = tpu.iota {dimensions = array<i32: 1>} : vector<18x50xi32>
    %c0_134 = arith.constant 0 : index
    %c0_135 = arith.constant 0 : index
    %256 = vector.load %arg4[%c0_134, %c0_135] : memref<18x1xi32, #tpu.memory_space<vmem>>, vector<18x1xi32>
    %257 = vector.broadcast %256 : vector<18x1xi32> to vector<18x50xi32>
    %258 = arith.subi %255, %257 : vector<18x50xi32>
    %cst_136 = arith.constant 0.000000e+00 : f32
    %259 = vector.broadcast %cst_136 : f32 to vector<18x32xf32>
    %c0_i32_137 = arith.constant 0 : i32
    %260 = vector.broadcast %c0_i32_137 : i32 to vector<18x50xi32>
    %261 = arith.cmpi eq, %258, %260 : vector<18x50xi32>
    %cst_138 = arith.constant 1.000000e+00 : f32
    %cst_139 = arith.constant 0.000000e+00 : f32
    %262 = vector.broadcast %cst_138 : f32 to vector<18x50xf32>
    %263 = vector.broadcast %cst_139 : f32 to vector<18x50xf32>
    %264 = arith.select %261, %262, %263 : vector<18x50xi1>, vector<18x50xf32>
    %265 = arith.truncf %264 : vector<18x50xf32> to vector<18x50xbf16>
    %266 = arith.truncf %254 : vector<50x32xf32> to vector<50x32xbf16>
    %cst_140 = arith.constant dense<0.000000e+00> : vector<18x32xf32>
    %267 = tpu.matmul %265, %266, %cst_140 {dimension_numbers = #tpu.dot_dimension_numbers<[1], [0], [0], [1], [0, 0, 1, 1], [], []>} : vector<18x50xbf16>, vector<50x32xbf16>, vector<18x32xf32> -> vector<18x32xf32>
    %c0_141 = arith.constant 0 : index
    %c0_142 = arith.constant 0 : index
    %c0_143 = arith.constant 0 : index
    %268 = vector.load %arg10[%c0_141, %c0_142, %c0_143] : memref<9x32x32xbf16, #tpu.memory_space<vmem>>, vector<1x32x32xbf16>
    %269 = vector.shape_cast %268 : vector<1x32x32xbf16> to vector<32x32xbf16>
    %270 = arith.truncf %267 : vector<18x32xf32> to vector<18x32xbf16>
    %cst_144 = arith.constant dense<0.000000e+00> : vector<18x32xf32>
    %271 = tpu.matmul %270, %269, %cst_144 {dimension_numbers = #tpu.dot_dimension_numbers<[1], [0], [0], [1], [0, 0, 1, 1], [], []>} : vector<18x32xbf16>, vector<32x32xbf16>, vector<18x32xf32> -> vector<18x32xf32>
    %272 = arith.addf %259, %271 : vector<18x32xf32>
    %c1_i32_145 = arith.constant 1 : i32
    %273 = vector.broadcast %c1_i32_145 : i32 to vector<18x50xi32>
    %274 = arith.cmpi eq, %258, %273 : vector<18x50xi32>
    %cst_146 = arith.constant 1.000000e+00 : f32
    %cst_147 = arith.constant 0.000000e+00 : f32
    %275 = vector.broadcast %cst_146 : f32 to vector<18x50xf32>
    %276 = vector.broadcast %cst_147 : f32 to vector<18x50xf32>
    %277 = arith.select %274, %275, %276 : vector<18x50xi1>, vector<18x50xf32>
    %278 = arith.truncf %277 : vector<18x50xf32> to vector<18x50xbf16>
    %279 = arith.truncf %254 : vector<50x32xf32> to vector<50x32xbf16>
    %cst_148 = arith.constant dense<0.000000e+00> : vector<18x32xf32>
    %280 = tpu.matmul %278, %279, %cst_148 {dimension_numbers = #tpu.dot_dimension_numbers<[1], [0], [0], [1], [0, 0, 1, 1], [], []>} : vector<18x50xbf16>, vector<50x32xbf16>, vector<18x32xf32> -> vector<18x32xf32>
    %c1_149 = arith.constant 1 : index
    %c0_150 = arith.constant 0 : index
    %c0_151 = arith.constant 0 : index
    %281 = vector.load %arg10[%c1_149, %c0_150, %c0_151] : memref<9x32x32xbf16, #tpu.memory_space<vmem>>, vector<1x32x32xbf16>
    %282 = vector.shape_cast %281 : vector<1x32x32xbf16> to vector<32x32xbf16>
    %283 = arith.truncf %280 : vector<18x32xf32> to vector<18x32xbf16>
    %cst_152 = arith.constant dense<0.000000e+00> : vector<18x32xf32>
    %284 = tpu.matmul %283, %282, %cst_152 {dimension_numbers = #tpu.dot_dimension_numbers<[1], [0], [0], [1], [0, 0, 1, 1], [], []>} : vector<18x32xbf16>, vector<32x32xbf16>, vector<18x32xf32> -> vector<18x32xf32>
    %285 = arith.addf %272, %284 : vector<18x32xf32>
    %c2_i32_153 = arith.constant 2 : i32
    %286 = vector.broadcast %c2_i32_153 : i32 to vector<18x50xi32>
    %287 = arith.cmpi eq, %258, %286 : vector<18x50xi32>
    %cst_154 = arith.constant 1.000000e+00 : f32
    %cst_155 = arith.constant 0.000000e+00 : f32
    %288 = vector.broadcast %cst_154 : f32 to vector<18x50xf32>
    %289 = vector.broadcast %cst_155 : f32 to vector<18x50xf32>
    %290 = arith.select %287, %288, %289 : vector<18x50xi1>, vector<18x50xf32>
    %291 = arith.truncf %290 : vector<18x50xf32> to vector<18x50xbf16>
    %292 = arith.truncf %254 : vector<50x32xf32> to vector<50x32xbf16>
    %cst_156 = arith.constant dense<0.000000e+00> : vector<18x32xf32>
    %293 = tpu.matmul %291, %292, %cst_156 {dimension_numbers = #tpu.dot_dimension_numbers<[1], [0], [0], [1], [0, 0, 1, 1], [], []>} : vector<18x50xbf16>, vector<50x32xbf16>, vector<18x32xf32> -> vector<18x32xf32>
    %c2_157 = arith.constant 2 : index
    %c0_158 = arith.constant 0 : index
    %c0_159 = arith.constant 0 : index
    %294 = vector.load %arg10[%c2_157, %c0_158, %c0_159] : memref<9x32x32xbf16, #tpu.memory_space<vmem>>, vector<1x32x32xbf16>
    %295 = vector.shape_cast %294 : vector<1x32x32xbf16> to vector<32x32xbf16>
    %296 = arith.truncf %293 : vector<18x32xf32> to vector<18x32xbf16>
    %cst_160 = arith.constant dense<0.000000e+00> : vector<18x32xf32>
    %297 = tpu.matmul %296, %295, %cst_160 {dimension_numbers = #tpu.dot_dimension_numbers<[1], [0], [0], [1], [0, 0, 1, 1], [], []>} : vector<18x32xbf16>, vector<32x32xbf16>, vector<18x32xf32> -> vector<18x32xf32>
    %298 = arith.addf %285, %297 : vector<18x32xf32>
    %c5_i32 = arith.constant 5 : i32
    %299 = vector.broadcast %c5_i32 : i32 to vector<18x50xi32>
    %300 = arith.cmpi eq, %258, %299 : vector<18x50xi32>
    %cst_161 = arith.constant 1.000000e+00 : f32
    %cst_162 = arith.constant 0.000000e+00 : f32
    %301 = vector.broadcast %cst_161 : f32 to vector<18x50xf32>
    %302 = vector.broadcast %cst_162 : f32 to vector<18x50xf32>
    %303 = arith.select %300, %301, %302 : vector<18x50xi1>, vector<18x50xf32>
    %304 = arith.truncf %303 : vector<18x50xf32> to vector<18x50xbf16>
    %305 = arith.truncf %254 : vector<50x32xf32> to vector<50x32xbf16>
    %cst_163 = arith.constant dense<0.000000e+00> : vector<18x32xf32>
    %306 = tpu.matmul %304, %305, %cst_163 {dimension_numbers = #tpu.dot_dimension_numbers<[1], [0], [0], [1], [0, 0, 1, 1], [], []>} : vector<18x50xbf16>, vector<50x32xbf16>, vector<18x32xf32> -> vector<18x32xf32>
    %c3_164 = arith.constant 3 : index
    %c0_165 = arith.constant 0 : index
    %c0_166 = arith.constant 0 : index
    %307 = vector.load %arg10[%c3_164, %c0_165, %c0_166] : memref<9x32x32xbf16, #tpu.memory_space<vmem>>, vector<1x32x32xbf16>
    %308 = vector.shape_cast %307 : vector<1x32x32xbf16> to vector<32x32xbf16>
    %309 = arith.truncf %306 : vector<18x32xf32> to vector<18x32xbf16>
    %cst_167 = arith.constant dense<0.000000e+00> : vector<18x32xf32>
    %310 = tpu.matmul %309, %308, %cst_167 {dimension_numbers = #tpu.dot_dimension_numbers<[1], [0], [0], [1], [0, 0, 1, 1], [], []>} : vector<18x32xbf16>, vector<32x32xbf16>, vector<18x32xf32> -> vector<18x32xf32>
    %311 = arith.addf %298, %310 : vector<18x32xf32>
    %c6_i32 = arith.constant 6 : i32
    %312 = vector.broadcast %c6_i32 : i32 to vector<18x50xi32>
    %313 = arith.cmpi eq, %258, %312 : vector<18x50xi32>
    %cst_168 = arith.constant 1.000000e+00 : f32
    %cst_169 = arith.constant 0.000000e+00 : f32
    %314 = vector.broadcast %cst_168 : f32 to vector<18x50xf32>
    %315 = vector.broadcast %cst_169 : f32 to vector<18x50xf32>
    %316 = arith.select %313, %314, %315 : vector<18x50xi1>, vector<18x50xf32>
    %317 = arith.truncf %316 : vector<18x50xf32> to vector<18x50xbf16>
    %318 = arith.truncf %254 : vector<50x32xf32> to vector<50x32xbf16>
    %cst_170 = arith.constant dense<0.000000e+00> : vector<18x32xf32>
    %319 = tpu.matmul %317, %318, %cst_170 {dimension_numbers = #tpu.dot_dimension_numbers<[1], [0], [0], [1], [0, 0, 1, 1], [], []>} : vector<18x50xbf16>, vector<50x32xbf16>, vector<18x32xf32> -> vector<18x32xf32>
    %c4_171 = arith.constant 4 : index
    %c0_172 = arith.constant 0 : index
    %c0_173 = arith.constant 0 : index
    %320 = vector.load %arg10[%c4_171, %c0_172, %c0_173] : memref<9x32x32xbf16, #tpu.memory_space<vmem>>, vector<1x32x32xbf16>
    %321 = vector.shape_cast %320 : vector<1x32x32xbf16> to vector<32x32xbf16>
    %322 = arith.truncf %319 : vector<18x32xf32> to vector<18x32xbf16>
    %cst_174 = arith.constant dense<0.000000e+00> : vector<18x32xf32>
    %323 = tpu.matmul %322, %321, %cst_174 {dimension_numbers = #tpu.dot_dimension_numbers<[1], [0], [0], [1], [0, 0, 1, 1], [], []>} : vector<18x32xbf16>, vector<32x32xbf16>, vector<18x32xf32> -> vector<18x32xf32>
    %324 = arith.addf %311, %323 : vector<18x32xf32>
    %c7_i32_175 = arith.constant 7 : i32
    %325 = vector.broadcast %c7_i32_175 : i32 to vector<18x50xi32>
    %326 = arith.cmpi eq, %258, %325 : vector<18x50xi32>
    %cst_176 = arith.constant 1.000000e+00 : f32
    %cst_177 = arith.constant 0.000000e+00 : f32
    %327 = vector.broadcast %cst_176 : f32 to vector<18x50xf32>
    %328 = vector.broadcast %cst_177 : f32 to vector<18x50xf32>
    %329 = arith.select %326, %327, %328 : vector<18x50xi1>, vector<18x50xf32>
    %330 = arith.truncf %329 : vector<18x50xf32> to vector<18x50xbf16>
    %331 = arith.truncf %254 : vector<50x32xf32> to vector<50x32xbf16>
    %cst_178 = arith.constant dense<0.000000e+00> : vector<18x32xf32>
    %332 = tpu.matmul %330, %331, %cst_178 {dimension_numbers = #tpu.dot_dimension_numbers<[1], [0], [0], [1], [0, 0, 1, 1], [], []>} : vector<18x50xbf16>, vector<50x32xbf16>, vector<18x32xf32> -> vector<18x32xf32>
    %c5_179 = arith.constant 5 : index
    %c0_180 = arith.constant 0 : index
    %c0_181 = arith.constant 0 : index
    %333 = vector.load %arg10[%c5_179, %c0_180, %c0_181] : memref<9x32x32xbf16, #tpu.memory_space<vmem>>, vector<1x32x32xbf16>
    %334 = vector.shape_cast %333 : vector<1x32x32xbf16> to vector<32x32xbf16>
    %335 = arith.truncf %332 : vector<18x32xf32> to vector<18x32xbf16>
    %cst_182 = arith.constant dense<0.000000e+00> : vector<18x32xf32>
    %336 = tpu.matmul %335, %334, %cst_182 {dimension_numbers = #tpu.dot_dimension_numbers<[1], [0], [0], [1], [0, 0, 1, 1], [], []>} : vector<18x32xbf16>, vector<32x32xbf16>, vector<18x32xf32> -> vector<18x32xf32>
    %337 = arith.addf %324, %336 : vector<18x32xf32>
    %c10_i32 = arith.constant 10 : i32
    %338 = vector.broadcast %c10_i32 : i32 to vector<18x50xi32>
    %339 = arith.cmpi eq, %258, %338 : vector<18x50xi32>
    %cst_183 = arith.constant 1.000000e+00 : f32
    %cst_184 = arith.constant 0.000000e+00 : f32
    %340 = vector.broadcast %cst_183 : f32 to vector<18x50xf32>
    %341 = vector.broadcast %cst_184 : f32 to vector<18x50xf32>
    %342 = arith.select %339, %340, %341 : vector<18x50xi1>, vector<18x50xf32>
    %343 = arith.truncf %342 : vector<18x50xf32> to vector<18x50xbf16>
    %344 = arith.truncf %254 : vector<50x32xf32> to vector<50x32xbf16>
    %cst_185 = arith.constant dense<0.000000e+00> : vector<18x32xf32>
    %345 = tpu.matmul %343, %344, %cst_185 {dimension_numbers = #tpu.dot_dimension_numbers<[1], [0], [0], [1], [0, 0, 1, 1], [], []>} : vector<18x50xbf16>, vector<50x32xbf16>, vector<18x32xf32> -> vector<18x32xf32>
    %c6_186 = arith.constant 6 : index
    %c0_187 = arith.constant 0 : index
    %c0_188 = arith.constant 0 : index
    %346 = vector.load %arg10[%c6_186, %c0_187, %c0_188] : memref<9x32x32xbf16, #tpu.memory_space<vmem>>, vector<1x32x32xbf16>
    %347 = vector.shape_cast %346 : vector<1x32x32xbf16> to vector<32x32xbf16>
    %348 = arith.truncf %345 : vector<18x32xf32> to vector<18x32xbf16>
    %cst_189 = arith.constant dense<0.000000e+00> : vector<18x32xf32>
    %349 = tpu.matmul %348, %347, %cst_189 {dimension_numbers = #tpu.dot_dimension_numbers<[1], [0], [0], [1], [0, 0, 1, 1], [], []>} : vector<18x32xbf16>, vector<32x32xbf16>, vector<18x32xf32> -> vector<18x32xf32>
    %350 = arith.addf %337, %349 : vector<18x32xf32>
    %c11_i32 = arith.constant 11 : i32
    %351 = vector.broadcast %c11_i32 : i32 to vector<18x50xi32>
    %352 = arith.cmpi eq, %258, %351 : vector<18x50xi32>
    %cst_190 = arith.constant 1.000000e+00 : f32
    %cst_191 = arith.constant 0.000000e+00 : f32
    %353 = vector.broadcast %cst_190 : f32 to vector<18x50xf32>
    %354 = vector.broadcast %cst_191 : f32 to vector<18x50xf32>
    %355 = arith.select %352, %353, %354 : vector<18x50xi1>, vector<18x50xf32>
    %356 = arith.truncf %355 : vector<18x50xf32> to vector<18x50xbf16>
    %357 = arith.truncf %254 : vector<50x32xf32> to vector<50x32xbf16>
    %cst_192 = arith.constant dense<0.000000e+00> : vector<18x32xf32>
    %358 = tpu.matmul %356, %357, %cst_192 {dimension_numbers = #tpu.dot_dimension_numbers<[1], [0], [0], [1], [0, 0, 1, 1], [], []>} : vector<18x50xbf16>, vector<50x32xbf16>, vector<18x32xf32> -> vector<18x32xf32>
    %c7_193 = arith.constant 7 : index
    %c0_194 = arith.constant 0 : index
    %c0_195 = arith.constant 0 : index
    %359 = vector.load %arg10[%c7_193, %c0_194, %c0_195] : memref<9x32x32xbf16, #tpu.memory_space<vmem>>, vector<1x32x32xbf16>
    %360 = vector.shape_cast %359 : vector<1x32x32xbf16> to vector<32x32xbf16>
    %361 = arith.truncf %358 : vector<18x32xf32> to vector<18x32xbf16>
    %cst_196 = arith.constant dense<0.000000e+00> : vector<18x32xf32>
    %362 = tpu.matmul %361, %360, %cst_196 {dimension_numbers = #tpu.dot_dimension_numbers<[1], [0], [0], [1], [0, 0, 1, 1], [], []>} : vector<18x32xbf16>, vector<32x32xbf16>, vector<18x32xf32> -> vector<18x32xf32>
    %363 = arith.addf %350, %362 : vector<18x32xf32>
    %c12_i32 = arith.constant 12 : i32
    %364 = vector.broadcast %c12_i32 : i32 to vector<18x50xi32>
    %365 = arith.cmpi eq, %258, %364 : vector<18x50xi32>
    %cst_197 = arith.constant 1.000000e+00 : f32
    %cst_198 = arith.constant 0.000000e+00 : f32
    %366 = vector.broadcast %cst_197 : f32 to vector<18x50xf32>
    %367 = vector.broadcast %cst_198 : f32 to vector<18x50xf32>
    %368 = arith.select %365, %366, %367 : vector<18x50xi1>, vector<18x50xf32>
    %369 = arith.truncf %368 : vector<18x50xf32> to vector<18x50xbf16>
    %370 = arith.truncf %254 : vector<50x32xf32> to vector<50x32xbf16>
    %cst_199 = arith.constant dense<0.000000e+00> : vector<18x32xf32>
    %371 = tpu.matmul %369, %370, %cst_199 {dimension_numbers = #tpu.dot_dimension_numbers<[1], [0], [0], [1], [0, 0, 1, 1], [], []>} : vector<18x50xbf16>, vector<50x32xbf16>, vector<18x32xf32> -> vector<18x32xf32>
    %c8_200 = arith.constant 8 : index
    %c0_201 = arith.constant 0 : index
    %c0_202 = arith.constant 0 : index
    %372 = vector.load %arg10[%c8_200, %c0_201, %c0_202] : memref<9x32x32xbf16, #tpu.memory_space<vmem>>, vector<1x32x32xbf16>
    %373 = vector.shape_cast %372 : vector<1x32x32xbf16> to vector<32x32xbf16>
    %374 = arith.truncf %371 : vector<18x32xf32> to vector<18x32xbf16>
    %cst_203 = arith.constant dense<0.000000e+00> : vector<18x32xf32>
    %375 = tpu.matmul %374, %373, %cst_203 {dimension_numbers = #tpu.dot_dimension_numbers<[1], [0], [0], [1], [0, 0, 1, 1], [], []>} : vector<18x32xbf16>, vector<32x32xbf16>, vector<18x32xf32> -> vector<18x32xf32>
    %376 = arith.addf %363, %375 : vector<18x32xf32>
    %c0_204 = arith.constant 0 : index
    %c0_205 = arith.constant 0 : index
    %377 = vector.load %arg11[%c0_204, %c0_205] : memref<1x32xf32, #tpu.memory_space<vmem>>, vector<1x32xf32>
    %378 = vector.broadcast %377 : vector<1x32xf32> to vector<18x32xf32>
    %379 = arith.addf %376, %378 : vector<18x32xf32>
    %cst_206 = arith.constant 0.000000e+00 : f32
    %380 = vector.broadcast %cst_206 : f32 to vector<18x32xf32>
    %381 = arith.maximumf %379, %380 : vector<18x32xf32>
    %382 = tpu.iota {dimensions = array<i32: 1>} : vector<2x18xi32>
    %c0_207 = arith.constant 0 : index
    %c0_208 = arith.constant 0 : index
    %383 = vector.load %arg5[%c0_207, %c0_208] : memref<2x1xi32, #tpu.memory_space<vmem>>, vector<2x1xi32>
    %384 = vector.broadcast %383 : vector<2x1xi32> to vector<2x18xi32>
    %385 = arith.subi %382, %384 : vector<2x18xi32>
    %cst_209 = arith.constant 0.000000e+00 : f32
    %386 = vector.broadcast %cst_209 : f32 to vector<2x32xf32>
    %c0_i32_210 = arith.constant 0 : i32
    %387 = vector.broadcast %c0_i32_210 : i32 to vector<2x18xi32>
    %388 = arith.cmpi eq, %385, %387 : vector<2x18xi32>
    %cst_211 = arith.constant 1.000000e+00 : f32
    %cst_212 = arith.constant 0.000000e+00 : f32
    %389 = vector.broadcast %cst_211 : f32 to vector<2x18xf32>
    %390 = vector.broadcast %cst_212 : f32 to vector<2x18xf32>
    %391 = arith.select %388, %389, %390 : vector<2x18xi1>, vector<2x18xf32>
    %392 = arith.truncf %391 : vector<2x18xf32> to vector<2x18xbf16>
    %393 = arith.truncf %381 : vector<18x32xf32> to vector<18x32xbf16>
    %cst_213 = arith.constant dense<0.000000e+00> : vector<2x32xf32>
    %394 = tpu.matmul %392, %393, %cst_213 {dimension_numbers = #tpu.dot_dimension_numbers<[1], [0], [0], [1], [0, 0, 1, 1], [], []>} : vector<2x18xbf16>, vector<18x32xbf16>, vector<2x32xf32> -> vector<2x32xf32>
    %c0_214 = arith.constant 0 : index
    %c0_215 = arith.constant 0 : index
    %c0_216 = arith.constant 0 : index
    %395 = vector.load %arg12[%c0_214, %c0_215, %c0_216] : memref<9x32x32xbf16, #tpu.memory_space<vmem>>, vector<1x32x32xbf16>
    %396 = vector.shape_cast %395 : vector<1x32x32xbf16> to vector<32x32xbf16>
    %397 = arith.truncf %394 : vector<2x32xf32> to vector<2x32xbf16>
    %cst_217 = arith.constant dense<0.000000e+00> : vector<2x32xf32>
    %398 = tpu.matmul %397, %396, %cst_217 {dimension_numbers = #tpu.dot_dimension_numbers<[1], [0], [0], [1], [0, 0, 1, 1], [], []>} : vector<2x32xbf16>, vector<32x32xbf16>, vector<2x32xf32> -> vector<2x32xf32>
    %399 = arith.addf %386, %398 : vector<2x32xf32>
    %c1_i32_218 = arith.constant 1 : i32
    %400 = vector.broadcast %c1_i32_218 : i32 to vector<2x18xi32>
    %401 = arith.cmpi eq, %385, %400 : vector<2x18xi32>
    %cst_219 = arith.constant 1.000000e+00 : f32
    %cst_220 = arith.constant 0.000000e+00 : f32
    %402 = vector.broadcast %cst_219 : f32 to vector<2x18xf32>
    %403 = vector.broadcast %cst_220 : f32 to vector<2x18xf32>
    %404 = arith.select %401, %402, %403 : vector<2x18xi1>, vector<2x18xf32>
    %405 = arith.truncf %404 : vector<2x18xf32> to vector<2x18xbf16>
    %406 = arith.truncf %381 : vector<18x32xf32> to vector<18x32xbf16>
    %cst_221 = arith.constant dense<0.000000e+00> : vector<2x32xf32>
    %407 = tpu.matmul %405, %406, %cst_221 {dimension_numbers = #tpu.dot_dimension_numbers<[1], [0], [0], [1], [0, 0, 1, 1], [], []>} : vector<2x18xbf16>, vector<18x32xbf16>, vector<2x32xf32> -> vector<2x32xf32>
    %c1_222 = arith.constant 1 : index
    %c0_223 = arith.constant 0 : index
    %c0_224 = arith.constant 0 : index
    %408 = vector.load %arg12[%c1_222, %c0_223, %c0_224] : memref<9x32x32xbf16, #tpu.memory_space<vmem>>, vector<1x32x32xbf16>
    %409 = vector.shape_cast %408 : vector<1x32x32xbf16> to vector<32x32xbf16>
    %410 = arith.truncf %407 : vector<2x32xf32> to vector<2x32xbf16>
    %cst_225 = arith.constant dense<0.000000e+00> : vector<2x32xf32>
    %411 = tpu.matmul %410, %409, %cst_225 {dimension_numbers = #tpu.dot_dimension_numbers<[1], [0], [0], [1], [0, 0, 1, 1], [], []>} : vector<2x32xbf16>, vector<32x32xbf16>, vector<2x32xf32> -> vector<2x32xf32>
    %412 = arith.addf %399, %411 : vector<2x32xf32>
    %c2_i32_226 = arith.constant 2 : i32
    %413 = vector.broadcast %c2_i32_226 : i32 to vector<2x18xi32>
    %414 = arith.cmpi eq, %385, %413 : vector<2x18xi32>
    %cst_227 = arith.constant 1.000000e+00 : f32
    %cst_228 = arith.constant 0.000000e+00 : f32
    %415 = vector.broadcast %cst_227 : f32 to vector<2x18xf32>
    %416 = vector.broadcast %cst_228 : f32 to vector<2x18xf32>
    %417 = arith.select %414, %415, %416 : vector<2x18xi1>, vector<2x18xf32>
    %418 = arith.truncf %417 : vector<2x18xf32> to vector<2x18xbf16>
    %419 = arith.truncf %381 : vector<18x32xf32> to vector<18x32xbf16>
    %cst_229 = arith.constant dense<0.000000e+00> : vector<2x32xf32>
    %420 = tpu.matmul %418, %419, %cst_229 {dimension_numbers = #tpu.dot_dimension_numbers<[1], [0], [0], [1], [0, 0, 1, 1], [], []>} : vector<2x18xbf16>, vector<18x32xbf16>, vector<2x32xf32> -> vector<2x32xf32>
    %c2_230 = arith.constant 2 : index
    %c0_231 = arith.constant 0 : index
    %c0_232 = arith.constant 0 : index
    %421 = vector.load %arg12[%c2_230, %c0_231, %c0_232] : memref<9x32x32xbf16, #tpu.memory_space<vmem>>, vector<1x32x32xbf16>
    %422 = vector.shape_cast %421 : vector<1x32x32xbf16> to vector<32x32xbf16>
    %423 = arith.truncf %420 : vector<2x32xf32> to vector<2x32xbf16>
    %cst_233 = arith.constant dense<0.000000e+00> : vector<2x32xf32>
    %424 = tpu.matmul %423, %422, %cst_233 {dimension_numbers = #tpu.dot_dimension_numbers<[1], [0], [0], [1], [0, 0, 1, 1], [], []>} : vector<2x32xbf16>, vector<32x32xbf16>, vector<2x32xf32> -> vector<2x32xf32>
    %425 = arith.addf %412, %424 : vector<2x32xf32>
    %c3_i32 = arith.constant 3 : i32
    %426 = vector.broadcast %c3_i32 : i32 to vector<2x18xi32>
    %427 = arith.cmpi eq, %385, %426 : vector<2x18xi32>
    %cst_234 = arith.constant 1.000000e+00 : f32
    %cst_235 = arith.constant 0.000000e+00 : f32
    %428 = vector.broadcast %cst_234 : f32 to vector<2x18xf32>
    %429 = vector.broadcast %cst_235 : f32 to vector<2x18xf32>
    %430 = arith.select %427, %428, %429 : vector<2x18xi1>, vector<2x18xf32>
    %431 = arith.truncf %430 : vector<2x18xf32> to vector<2x18xbf16>
    %432 = arith.truncf %381 : vector<18x32xf32> to vector<18x32xbf16>
    %cst_236 = arith.constant dense<0.000000e+00> : vector<2x32xf32>
    %433 = tpu.matmul %431, %432, %cst_236 {dimension_numbers = #tpu.dot_dimension_numbers<[1], [0], [0], [1], [0, 0, 1, 1], [], []>} : vector<2x18xbf16>, vector<18x32xbf16>, vector<2x32xf32> -> vector<2x32xf32>
    %c3_237 = arith.constant 3 : index
    %c0_238 = arith.constant 0 : index
    %c0_239 = arith.constant 0 : index
    %434 = vector.load %arg12[%c3_237, %c0_238, %c0_239] : memref<9x32x32xbf16, #tpu.memory_space<vmem>>, vector<1x32x32xbf16>
    %435 = vector.shape_cast %434 : vector<1x32x32xbf16> to vector<32x32xbf16>
    %436 = arith.truncf %433 : vector<2x32xf32> to vector<2x32xbf16>
    %cst_240 = arith.constant dense<0.000000e+00> : vector<2x32xf32>
    %437 = tpu.matmul %436, %435, %cst_240 {dimension_numbers = #tpu.dot_dimension_numbers<[1], [0], [0], [1], [0, 0, 1, 1], [], []>} : vector<2x32xbf16>, vector<32x32xbf16>, vector<2x32xf32> -> vector<2x32xf32>
    %438 = arith.addf %425, %437 : vector<2x32xf32>
    %c4_i32 = arith.constant 4 : i32
    %439 = vector.broadcast %c4_i32 : i32 to vector<2x18xi32>
    %440 = arith.cmpi eq, %385, %439 : vector<2x18xi32>
    %cst_241 = arith.constant 1.000000e+00 : f32
    %cst_242 = arith.constant 0.000000e+00 : f32
    %441 = vector.broadcast %cst_241 : f32 to vector<2x18xf32>
    %442 = vector.broadcast %cst_242 : f32 to vector<2x18xf32>
    %443 = arith.select %440, %441, %442 : vector<2x18xi1>, vector<2x18xf32>
    %444 = arith.truncf %443 : vector<2x18xf32> to vector<2x18xbf16>
    %445 = arith.truncf %381 : vector<18x32xf32> to vector<18x32xbf16>
    %cst_243 = arith.constant dense<0.000000e+00> : vector<2x32xf32>
    %446 = tpu.matmul %444, %445, %cst_243 {dimension_numbers = #tpu.dot_dimension_numbers<[1], [0], [0], [1], [0, 0, 1, 1], [], []>} : vector<2x18xbf16>, vector<18x32xbf16>, vector<2x32xf32> -> vector<2x32xf32>
    %c4_244 = arith.constant 4 : index
    %c0_245 = arith.constant 0 : index
    %c0_246 = arith.constant 0 : index
    %447 = vector.load %arg12[%c4_244, %c0_245, %c0_246] : memref<9x32x32xbf16, #tpu.memory_space<vmem>>, vector<1x32x32xbf16>
    %448 = vector.shape_cast %447 : vector<1x32x32xbf16> to vector<32x32xbf16>
    %449 = arith.truncf %446 : vector<2x32xf32> to vector<2x32xbf16>
    %cst_247 = arith.constant dense<0.000000e+00> : vector<2x32xf32>
    %450 = tpu.matmul %449, %448, %cst_247 {dimension_numbers = #tpu.dot_dimension_numbers<[1], [0], [0], [1], [0, 0, 1, 1], [], []>} : vector<2x32xbf16>, vector<32x32xbf16>, vector<2x32xf32> -> vector<2x32xf32>
    %451 = arith.addf %438, %450 : vector<2x32xf32>
    %c5_i32_248 = arith.constant 5 : i32
    %452 = vector.broadcast %c5_i32_248 : i32 to vector<2x18xi32>
    %453 = arith.cmpi eq, %385, %452 : vector<2x18xi32>
    %cst_249 = arith.constant 1.000000e+00 : f32
    %cst_250 = arith.constant 0.000000e+00 : f32
    %454 = vector.broadcast %cst_249 : f32 to vector<2x18xf32>
    %455 = vector.broadcast %cst_250 : f32 to vector<2x18xf32>
    %456 = arith.select %453, %454, %455 : vector<2x18xi1>, vector<2x18xf32>
    %457 = arith.truncf %456 : vector<2x18xf32> to vector<2x18xbf16>
    %458 = arith.truncf %381 : vector<18x32xf32> to vector<18x32xbf16>
    %cst_251 = arith.constant dense<0.000000e+00> : vector<2x32xf32>
    %459 = tpu.matmul %457, %458, %cst_251 {dimension_numbers = #tpu.dot_dimension_numbers<[1], [0], [0], [1], [0, 0, 1, 1], [], []>} : vector<2x18xbf16>, vector<18x32xbf16>, vector<2x32xf32> -> vector<2x32xf32>
    %c5_252 = arith.constant 5 : index
    %c0_253 = arith.constant 0 : index
    %c0_254 = arith.constant 0 : index
    %460 = vector.load %arg12[%c5_252, %c0_253, %c0_254] : memref<9x32x32xbf16, #tpu.memory_space<vmem>>, vector<1x32x32xbf16>
    %461 = vector.shape_cast %460 : vector<1x32x32xbf16> to vector<32x32xbf16>
    %462 = arith.truncf %459 : vector<2x32xf32> to vector<2x32xbf16>
    %cst_255 = arith.constant dense<0.000000e+00> : vector<2x32xf32>
    %463 = tpu.matmul %462, %461, %cst_255 {dimension_numbers = #tpu.dot_dimension_numbers<[1], [0], [0], [1], [0, 0, 1, 1], [], []>} : vector<2x32xbf16>, vector<32x32xbf16>, vector<2x32xf32> -> vector<2x32xf32>
    %464 = arith.addf %451, %463 : vector<2x32xf32>
    %c6_i32_256 = arith.constant 6 : i32
    %465 = vector.broadcast %c6_i32_256 : i32 to vector<2x18xi32>
    %466 = arith.cmpi eq, %385, %465 : vector<2x18xi32>
    %cst_257 = arith.constant 1.000000e+00 : f32
    %cst_258 = arith.constant 0.000000e+00 : f32
    %467 = vector.broadcast %cst_257 : f32 to vector<2x18xf32>
    %468 = vector.broadcast %cst_258 : f32 to vector<2x18xf32>
    %469 = arith.select %466, %467, %468 : vector<2x18xi1>, vector<2x18xf32>
    %470 = arith.truncf %469 : vector<2x18xf32> to vector<2x18xbf16>
    %471 = arith.truncf %381 : vector<18x32xf32> to vector<18x32xbf16>
    %cst_259 = arith.constant dense<0.000000e+00> : vector<2x32xf32>
    %472 = tpu.matmul %470, %471, %cst_259 {dimension_numbers = #tpu.dot_dimension_numbers<[1], [0], [0], [1], [0, 0, 1, 1], [], []>} : vector<2x18xbf16>, vector<18x32xbf16>, vector<2x32xf32> -> vector<2x32xf32>
    %c6_260 = arith.constant 6 : index
    %c0_261 = arith.constant 0 : index
    %c0_262 = arith.constant 0 : index
    %473 = vector.load %arg12[%c6_260, %c0_261, %c0_262] : memref<9x32x32xbf16, #tpu.memory_space<vmem>>, vector<1x32x32xbf16>
    %474 = vector.shape_cast %473 : vector<1x32x32xbf16> to vector<32x32xbf16>
    %475 = arith.truncf %472 : vector<2x32xf32> to vector<2x32xbf16>
    %cst_263 = arith.constant dense<0.000000e+00> : vector<2x32xf32>
    %476 = tpu.matmul %475, %474, %cst_263 {dimension_numbers = #tpu.dot_dimension_numbers<[1], [0], [0], [1], [0, 0, 1, 1], [], []>} : vector<2x32xbf16>, vector<32x32xbf16>, vector<2x32xf32> -> vector<2x32xf32>
    %477 = arith.addf %464, %476 : vector<2x32xf32>
    %c7_i32_264 = arith.constant 7 : i32
    %478 = vector.broadcast %c7_i32_264 : i32 to vector<2x18xi32>
    %479 = arith.cmpi eq, %385, %478 : vector<2x18xi32>
    %cst_265 = arith.constant 1.000000e+00 : f32
    %cst_266 = arith.constant 0.000000e+00 : f32
    %480 = vector.broadcast %cst_265 : f32 to vector<2x18xf32>
    %481 = vector.broadcast %cst_266 : f32 to vector<2x18xf32>
    %482 = arith.select %479, %480, %481 : vector<2x18xi1>, vector<2x18xf32>
    %483 = arith.truncf %482 : vector<2x18xf32> to vector<2x18xbf16>
    %484 = arith.truncf %381 : vector<18x32xf32> to vector<18x32xbf16>
    %cst_267 = arith.constant dense<0.000000e+00> : vector<2x32xf32>
    %485 = tpu.matmul %483, %484, %cst_267 {dimension_numbers = #tpu.dot_dimension_numbers<[1], [0], [0], [1], [0, 0, 1, 1], [], []>} : vector<2x18xbf16>, vector<18x32xbf16>, vector<2x32xf32> -> vector<2x32xf32>
    %c7_268 = arith.constant 7 : index
    %c0_269 = arith.constant 0 : index
    %c0_270 = arith.constant 0 : index
    %486 = vector.load %arg12[%c7_268, %c0_269, %c0_270] : memref<9x32x32xbf16, #tpu.memory_space<vmem>>, vector<1x32x32xbf16>
    %487 = vector.shape_cast %486 : vector<1x32x32xbf16> to vector<32x32xbf16>
    %488 = arith.truncf %485 : vector<2x32xf32> to vector<2x32xbf16>
    %cst_271 = arith.constant dense<0.000000e+00> : vector<2x32xf32>
    %489 = tpu.matmul %488, %487, %cst_271 {dimension_numbers = #tpu.dot_dimension_numbers<[1], [0], [0], [1], [0, 0, 1, 1], [], []>} : vector<2x32xbf16>, vector<32x32xbf16>, vector<2x32xf32> -> vector<2x32xf32>
    %490 = arith.addf %477, %489 : vector<2x32xf32>
    %c8_i32_272 = arith.constant 8 : i32
    %491 = vector.broadcast %c8_i32_272 : i32 to vector<2x18xi32>
    %492 = arith.cmpi eq, %385, %491 : vector<2x18xi32>
    %cst_273 = arith.constant 1.000000e+00 : f32
    %cst_274 = arith.constant 0.000000e+00 : f32
    %493 = vector.broadcast %cst_273 : f32 to vector<2x18xf32>
    %494 = vector.broadcast %cst_274 : f32 to vector<2x18xf32>
    %495 = arith.select %492, %493, %494 : vector<2x18xi1>, vector<2x18xf32>
    %496 = arith.truncf %495 : vector<2x18xf32> to vector<2x18xbf16>
    %497 = arith.truncf %381 : vector<18x32xf32> to vector<18x32xbf16>
    %cst_275 = arith.constant dense<0.000000e+00> : vector<2x32xf32>
    %498 = tpu.matmul %496, %497, %cst_275 {dimension_numbers = #tpu.dot_dimension_numbers<[1], [0], [0], [1], [0, 0, 1, 1], [], []>} : vector<2x18xbf16>, vector<18x32xbf16>, vector<2x32xf32> -> vector<2x32xf32>
    %c8_276 = arith.constant 8 : index
    %c0_277 = arith.constant 0 : index
    %c0_278 = arith.constant 0 : index
    %499 = vector.load %arg12[%c8_276, %c0_277, %c0_278] : memref<9x32x32xbf16, #tpu.memory_space<vmem>>, vector<1x32x32xbf16>
    %500 = vector.shape_cast %499 : vector<1x32x32xbf16> to vector<32x32xbf16>
    %501 = arith.truncf %498 : vector<2x32xf32> to vector<2x32xbf16>
    %cst_279 = arith.constant dense<0.000000e+00> : vector<2x32xf32>
    %502 = tpu.matmul %501, %500, %cst_279 {dimension_numbers = #tpu.dot_dimension_numbers<[1], [0], [0], [1], [0, 0, 1, 1], [], []>} : vector<2x32xbf16>, vector<32x32xbf16>, vector<2x32xf32> -> vector<2x32xf32>
    %503 = arith.addf %490, %502 : vector<2x32xf32>
    %c0_280 = arith.constant 0 : index
    %c0_281 = arith.constant 0 : index
    %504 = vector.load %arg13[%c0_280, %c0_281] : memref<1x32xf32, #tpu.memory_space<vmem>>, vector<1x32xf32>
    %505 = vector.broadcast %504 : vector<1x32xf32> to vector<2x32xf32>
    %506 = arith.addf %503, %505 : vector<2x32xf32>
    %cst_282 = arith.constant 0.000000e+00 : f32
    %507 = vector.broadcast %cst_282 : f32 to vector<2x32xf32>
    %508 = arith.maximumf %506, %507 : vector<2x32xf32>
    %c0_283 = arith.constant 0 : index
    %c0_284 = arith.constant 0 : index
    %509 = vector.load %arg14[%c0_283, %c0_284] : memref<32x50xbf16, #tpu.memory_space<vmem>>, vector<32x50xbf16>
    %510 = arith.truncf %508 : vector<2x32xf32> to vector<2x32xbf16>
    %cst_285 = arith.constant dense<0.000000e+00> : vector<2x50xf32>
    %511 = tpu.matmul %510, %509, %cst_285 {dimension_numbers = #tpu.dot_dimension_numbers<[1], [0], [0], [1], [0, 0, 1, 1], [], []>} : vector<2x32xbf16>, vector<32x50xbf16>, vector<2x50xf32> -> vector<2x50xf32>
    %c0_286 = arith.constant 0 : index
    %c0_287 = arith.constant 0 : index
    %512 = vector.load %arg15[%c0_286, %c0_287] : memref<1x50xf32, #tpu.memory_space<vmem>>, vector<1x50xf32>
    %513 = vector.broadcast %512 : vector<1x50xf32> to vector<2x50xf32>
    %514 = arith.addf %511, %513 : vector<2x50xf32>
    %cst_288 = arith.constant dense<0.000000e+00> : vector<2xf32>
    %515 = vector.multi_reduction <add>, %514, %cst_288 [1] : vector<2x50xf32> to vector<2xf32>
    %516 = vector.shape_cast %515 : vector<2xf32> to vector<2x1xf32>
    %cst_289 = arith.constant 5.000000e+01 : f32
    %517 = vector.broadcast %cst_289 : f32 to vector<2x1xf32>
    %518 = arith.divf %516, %517 : vector<2x1xf32>
    %519 = vector.broadcast %518 : vector<2x1xf32> to vector<2x50xf32>
    %520 = arith.subf %514, %519 : vector<2x50xf32>
    %521 = arith.mulf %520, %520 : vector<2x50xf32>
    %cst_290 = arith.constant dense<0.000000e+00> : vector<2xf32>
    %522 = vector.multi_reduction <add>, %521, %cst_290 [1] : vector<2x50xf32> to vector<2xf32>
    %523 = vector.shape_cast %522 : vector<2xf32> to vector<2x1xf32>
    %cst_291 = arith.constant 5.000000e+01 : f32
    %524 = vector.broadcast %cst_291 : f32 to vector<2x1xf32>
    %525 = arith.divf %523, %524 : vector<2x1xf32>
    %526 = vector.broadcast %518 : vector<2x1xf32> to vector<2x50xf32>
    %527 = arith.subf %514, %526 : vector<2x50xf32>
    %cst_292 = arith.constant 9.99999974E-6 : f32
    %528 = vector.broadcast %cst_292 : f32 to vector<2x1xf32>
    %529 = arith.addf %525, %528 : vector<2x1xf32>
    %530 = math.rsqrt %529 : vector<2x1xf32>
    %531 = vector.broadcast %530 : vector<2x1xf32> to vector<2x50xf32>
    %532 = arith.mulf %527, %531 : vector<2x50xf32>
    %c0_293 = arith.constant 0 : index
    %c0_294 = arith.constant 0 : index
    %533 = vector.load %arg16[%c0_293, %c0_294] : memref<1x50xf32, #tpu.memory_space<vmem>>, vector<1x50xf32>
    %534 = vector.broadcast %533 : vector<1x50xf32> to vector<2x50xf32>
    %535 = arith.mulf %532, %534 : vector<2x50xf32>
    %c0_295 = arith.constant 0 : index
    %c0_296 = arith.constant 0 : index
    %536 = vector.load %arg17[%c0_295, %c0_296] : memref<1x50xf32, #tpu.memory_space<vmem>>, vector<1x50xf32>
    %537 = vector.broadcast %536 : vector<1x50xf32> to vector<2x50xf32>
    %538 = arith.addf %535, %537 : vector<2x50xf32>
    %539 = math.tanh %538 : vector<2x50xf32>
    %c0_297 = arith.constant 0 : index
    %c0_298 = arith.constant 0 : index
    %540 = vector.load %arg18[%c0_297, %c0_298] : memref<50x512xbf16, #tpu.memory_space<vmem>>, vector<50x512xbf16>
    %541 = arith.truncf %539 : vector<2x50xf32> to vector<2x50xbf16>
    %cst_299 = arith.constant dense<0.000000e+00> : vector<2x512xf32>
    %542 = tpu.matmul %541, %540, %cst_299 {dimension_numbers = #tpu.dot_dimension_numbers<[1], [0], [0], [1], [0, 0, 1, 1], [], []>} : vector<2x50xbf16>, vector<50x512xbf16>, vector<2x512xf32> -> vector<2x512xf32>
    %c0_300 = arith.constant 0 : index
    %c0_301 = arith.constant 0 : index
    %543 = vector.load %arg1[%c0_300, %c0_301] : memref<2x6xf32, #tpu.memory_space<vmem>>, vector<2x6xf32>
    %c0_302 = arith.constant 0 : index
    %c0_303 = arith.constant 0 : index
    %544 = vector.load %arg19[%c0_302, %c0_303] : memref<6x512xbf16, #tpu.memory_space<vmem>>, vector<6x512xbf16>
    %545 = arith.truncf %543 : vector<2x6xf32> to vector<2x6xbf16>
    %cst_304 = arith.constant dense<0.000000e+00> : vector<2x512xf32>
    %546 = tpu.matmul %545, %544, %cst_304 {dimension_numbers = #tpu.dot_dimension_numbers<[1], [0], [0], [1], [0, 0, 1, 1], [], []>} : vector<2x6xbf16>, vector<6x512xbf16>, vector<2x512xf32> -> vector<2x512xf32>
    %547 = arith.addf %542, %546 : vector<2x512xf32>
    %c0_305 = arith.constant 0 : index
    %c0_306 = arith.constant 0 : index
    %548 = vector.load %arg20[%c0_305, %c0_306] : memref<1x512xf32, #tpu.memory_space<vmem>>, vector<1x512xf32>
    %549 = vector.broadcast %548 : vector<1x512xf32> to vector<2x512xf32>
    %550 = arith.addf %547, %549 : vector<2x512xf32>
    %cst_307 = arith.constant 0.000000e+00 : f32
    %551 = vector.broadcast %cst_307 : f32 to vector<2x512xf32>
    %552 = arith.maximumf %550, %551 : vector<2x512xf32>
    %c0_308 = arith.constant 0 : index
    %c0_309 = arith.constant 0 : index
    %553 = vector.load %arg21[%c0_308, %c0_309] : memref<512x512xbf16, #tpu.memory_space<vmem>>, vector<512x512xbf16>
    %554 = arith.truncf %552 : vector<2x512xf32> to vector<2x512xbf16>
    %cst_310 = arith.constant dense<0.000000e+00> : vector<2x512xf32>
    %555 = tpu.matmul %554, %553, %cst_310 {dimension_numbers = #tpu.dot_dimension_numbers<[1], [0], [0], [1], [0, 0, 1, 1], [], []>} : vector<2x512xbf16>, vector<512x512xbf16>, vector<2x512xf32> -> vector<2x512xf32>
    %c0_311 = arith.constant 0 : index
    %c0_312 = arith.constant 0 : index
    %556 = vector.load %arg22[%c0_311, %c0_312] : memref<1x512xf32, #tpu.memory_space<vmem>>, vector<1x512xf32>
    %557 = vector.broadcast %556 : vector<1x512xf32> to vector<2x512xf32>
    %558 = arith.addf %555, %557 : vector<2x512xf32>
    %cst_313 = arith.constant 0.000000e+00 : f32
    %559 = vector.broadcast %cst_313 : f32 to vector<2x512xf32>
    %560 = arith.maximumf %558, %559 : vector<2x512xf32>
    %c0_314 = arith.constant 0 : index
    %c0_315 = arith.constant 0 : index
    %561 = vector.load %arg23[%c0_314, %c0_315] : memref<512x128xbf16, #tpu.memory_space<vmem>>, vector<512x128xbf16>
    %562 = arith.truncf %560 : vector<2x512xf32> to vector<2x512xbf16>
    %cst_316 = arith.constant dense<0.000000e+00> : vector<2x128xf32>
    %563 = tpu.matmul %562, %561, %cst_316 {dimension_numbers = #tpu.dot_dimension_numbers<[1], [0], [0], [1], [0, 0, 1, 1], [], []>} : vector<2x512xbf16>, vector<512x128xbf16>, vector<2x128xf32> -> vector<2x128xf32>
    %c0_317 = arith.constant 0 : index
    %c0_318 = arith.constant 0 : index
    %564 = vector.load %arg24[%c0_317, %c0_318] : memref<1x128xf32, #tpu.memory_space<vmem>>, vector<1x128xf32>
    %565 = vector.broadcast %564 : vector<1x128xf32> to vector<2x128xf32>
    %566 = arith.addf %563, %565 : vector<2x128xf32>
    %c0_319 = arith.constant 0 : index
    %c0_320 = arith.constant 0 : index
    %567 = vector.load %arg25[%c0_319, %c0_320] : memref<2x128xf32, #tpu.memory_space<vmem>>, vector<2x128xf32>
    tpu.vector_store %arg25[%c0_319, %c0_320], %566 {strides = array<i32>} : memref<2x128xf32, #tpu.memory_space<vmem>>, vector<2x128xf32>,
    return
  }
}

</mosaic_0001>

<llo_original>
// kernel: forward.1
$region0: #{forward.1}
  #allocation0 [shape = 'u32[]', space=smem, size = 0x4, offset = 0x4, fixed_abs, tag = 'smem constant byte address 0x4 - core index']
  #allocation1 [shape = 'u32[72,128]{1,0:T(1,128)}', space=vmem, size = 0x9000, scoped, tag = 'internal scratch']
  %s0 = inlined_call_operand.vmem [shape: f32[512,6], index: 0, kind: input, shape index: {}]
  %s1 = inlined_call_operand.hbm [shape: f32[2,6], index: 1, kind: input, shape index: {}]
  %s2 = inlined_call_operand.hbm [shape: s32[98,1], index: 2, kind: input, shape index: {}]
  %s3 = inlined_call_operand.vmem [shape: s32[50,1], index: 3, kind: input, shape index: {}]
  %s4 = inlined_call_operand.vmem [shape: s32[18,1], index: 4, kind: input, shape index: {}]
  %s5 = inlined_call_operand.vmem [shape: s32[2,1], index: 5, kind: input, shape index: {}]
  %s6 = inlined_call_operand.hbm [shape: bf16[9,6,32], index: 6, kind: input, shape index: {}]
  %s7 = inlined_call_operand.vmem [shape: f32[1,32], index: 7, kind: input, shape index: {}]
  %s8 = inlined_call_operand.hbm [shape: bf16[9,32,32], index: 8, kind: input, shape index: {}]
  %s9 = inlined_call_operand.hbm [shape: f32[1,32], index: 9, kind: input, shape index: {}]
  %s10 = inlined_call_operand.hbm [shape: bf16[9,32,32], index: 10, kind: input, shape index: {}]
  %s11 = inlined_call_operand.hbm [shape: f32[1,32], index: 11, kind: input, shape index: {}]
  %s12 = inlined_call_operand.hbm [shape: bf16[9,32,32], index: 12, kind: input, shape index: {}]
  %s13 = inlined_call_operand.hbm [shape: f32[1,32], index: 13, kind: input, shape index: {}]
  %s14 = inlined_call_operand.hbm [shape: bf16[32,50], index: 14, kind: input, shape index: {}]
  %s15 = inlined_call_operand.hbm [shape: f32[1,50], index: 15, kind: input, shape index: {}]
  %s16 = inlined_call_operand.hbm [shape: f32[1,50], index: 16, kind: input, shape index: {}]
  %s17 = inlined_call_operand.hbm [shape: f32[1,50], index: 17, kind: input, shape index: {}]
  %s18 = inlined_call_operand.hbm [shape: bf16[50,512], index: 18, kind: input, shape index: {}]
  %s19 = inlined_call_operand.hbm [shape: bf16[6,512], index: 19, kind: input, shape index: {}]
  %s20 = inlined_call_operand.hbm [shape: f32[1,512], index: 20, kind: input, shape index: {}]
  %s21 = inlined_call_operand.vmem [shape: bf16[512,512], index: 21, kind: input, shape index: {}]
  %s22 = inlined_call_operand.hbm [shape: f32[1,512], index: 22, kind: input, shape index: {}]
  %s23 = inlined_call_operand.hbm [shape: bf16[512,128], index: 23, kind: input, shape index: {}]
  %s24 = inlined_call_operand.hbm [shape: f32[1,128], index: 24, kind: input, shape index: {}]
  %s25 = inlined_call_operand.vmem [shape: f32[2,128], index: 25, kind: output, shape index: {}]
  %s26 = sld [smem:[#allocation0]]
  $region186: #{forward.1} parent=0
    _
  %s28 = ssub.s32 1, %s26
  %s29 = scalar_select 0, %s28, %s26
  $region1: #{forward.1} parent=0
    #allocation2 [shape = 'u8[1024]{0}', space=vmem, size = 0x400, scoped, tag = 'input window, operand 1, single buffered']
    #allocation3 [shape = 's32[1]{0}', space=sflag, size = 0x4, scoped, tag = 'scoped memory for forward.1']
    #allocation4 [shape = 'u8[53248]{0}', space=vmem, size = 0xd000, scoped, tag = 'input window, operand 2, single buffered']
    #allocation5 [shape = 's32[1]{0}', space=sflag, size = 0x4, scoped, tag = 'scoped memory for forward.1']
    #allocation6 [shape = 'u8[18432]{0}', space=vmem, size = 0x4800, scoped, tag = 'input window, operand 6, single buffered']
    #allocation7 [shape = 'u8[73728]{0}', space=vmem, size = 0x12000, scoped, tag = 'input window, operand 8, single buffered']
    #allocation8 [shape = 's32[1]{0}', space=sflag, size = 0x4, scoped, tag = 'scoped memory for forward.1']
    #allocation9 [shape = 'u8[512]{0}', space=vmem, size = 0x400, scoped, tag = 'input window, operand 9, single buffered']
    #allocation10 [shape = 'u8[73728]{0}', space=vmem, size = 0x12000, scoped, tag = 'input window, operand 10, single buffered']
    #allocation11 [shape = 's32[1]{0}', space=sflag, size = 0x4, scoped, tag = 'scoped memory for forward.1']
    #allocation12 [shape = 'u8[512]{0}', space=vmem, size = 0x400, scoped, tag = 'input window, operand 11, single buffered']
    #allocation13 [shape = 'u8[73728]{0}', space=vmem, size = 0x12000, scoped, tag = 'input window, operand 12, single buffered']
    #allocation14 [shape = 's32[1]{0}', space=sflag, size = 0x4, scoped, tag = 'scoped memory for forward.1']
    #allocation15 [shape = 'u8[512]{0}', space=vmem, size = 0x400, scoped, tag = 'input window, operand 13, single buffered']
    #allocation16 [shape = 'u8[8192]{0}', space=vmem, size = 0x2000, scoped, tag = 'input window, operand 14, single buffered']
    #allocation17 [shape = 's32[1]{0}', space=sflag, size = 0x4, scoped, tag = 'scoped memory for forward.1']
    #allocation18 [shape = 'u8[512]{0}', space=vmem, size = 0x400, scoped, tag = 'input window, operand 15, single buffered']
    #allocation19 [shape = 'u8[512]{0}', space=vmem, size = 0x400, scoped, tag = 'input window, operand 16, single buffered']
    #allocation20 [shape = 's32[1]{0}', space=sflag, size = 0x4, scoped, tag = 'scoped memory for forward.1']
    #allocation21 [shape = 'u8[512]{0}', space=vmem, size = 0x400, scoped, tag = 'input window, operand 17, single buffered']
    #allocation22 [shape = 'u8[57344]{0}', space=vmem, size = 0xe000, scoped, tag = 'input window, operand 18, single buffered']
    #allocation23 [shape = 's32[1]{0}', space=sflag, size = 0x4, scoped, tag = 'scoped memory for forward.1']
    #allocation24 [shape = 'u8[8192]{0}', space=vmem, size = 0x2000, scoped, tag = 'input window, operand 19, single buffered']
    #allocation25 [shape = 'u8[2048]{0}', space=vmem, size = 0x800, scoped, tag = 'input window, operand 20, single buffered']
    #allocation26 [shape = 's32[1]{0}', space=sflag, size = 0x4, scoped, tag = 'scoped memory for forward.1']
    #allocation27 [shape = 'u8[2048]{0}', space=vmem, size = 0x800, scoped, tag = 'input window, operand 22, single buffered']
    #allocation28 [shape = 'u8[131072]{0}', space=vmem, size = 0x20000, scoped, tag = 'input window, operand 23, single buffered']
    #allocation29 [shape = 's32[1]{0}', space=sflag, size = 0x4, scoped, tag = 'scoped memory for forward.1']
    #allocation30 [shape = 'u8[512]{0}', space=vmem, size = 0x400, scoped, tag = 'input window, operand 24, single buffered']
    %30 = vsyncpa [#allocation3], 0
    %31 = vsyncpa [#allocation5], 0
    %32 = vsyncpa [#allocation8], 0
    %33 = vsyncpa [#allocation11], 0
    %34 = vsyncpa [#allocation14], 0
    %35 = vsyncpa [#allocation17], 0
    %36 = vsyncpa [#allocation20], 0
    %37 = vsyncpa [#allocation23], 0
    %38 = vsyncpa [#allocation26], 0
    %39 = vsyncpa [#allocation29], 0
    // Predicated region
    $region2: #{forward.1} parent=1 // pred_check
      _
    $region3: #{forward.1} parent=1 // pred_check_branch
      %41 = sbr.rel (0) target = $region5
    $region4: #{forward.1} parent=1 // pred_region
      _
    $region5: #{forward.1} parent=1 // pred_fallthru
      _
    // Predicated region
    $region6: #{forward.1} parent=1 // pred_check
      _
    $region7: #{forward.1} parent=1 // pred_check_branch
      %43 = sbr.rel (0) target = $region9
    $region8: #{forward.1} parent=1 // pred_region
      %45 = vsyncadd [#allocation3], 0
      %s47 = sshll.u32 %s1, 4
      %s48 = int_to_ptr.hbm [resolvable:$true] %s47
      %s49 = sshll.u32 [#allocation2], 4
      %s50 = int_to_ptr.vmem [resolvable:$true] %s49
      %52 = dma.hbm_to_vmem [thread:$0]  %s48, 32, %s50, [#allocation3]
    $region9: #{forward.1} parent=1 // pred_fallthru
      _
    // Predicated region
    $region10: #{forward.1} parent=1 // pred_check
      _
    $region11: #{forward.1} parent=1 // pred_check_branch
      %54 = sbr.rel (0) target = $region13
    $region12: #{forward.1} parent=1 // pred_region
      %56 = vsyncadd [#allocation5], 0
      %s57 = sshll.u32 %s2, 4
      %s58 = int_to_ptr.hbm [resolvable:$true] %s57
      %s59 = sshll.u32 [#allocation4], 4
      %s60 = int_to_ptr.vmem [resolvable:$true] %s59
      %65 = dma.hbm_to_vmem [thread:$0]  %s58, 1664, %s60, [#allocation5], 128, 128, 8
    $region13: #{forward.1} parent=1 // pred_fallthru
      _
    // Predicated region
    $region14: #{forward.1} parent=1 // pred_check
      _
    $region15: #{forward.1} parent=1 // pred_check_branch
      %67 = sbr.rel (0) target = $region17
    $region16: #{forward.1} parent=1 // pred_region
      _
    $region17: #{forward.1} parent=1 // pred_fallthru
      _
    // Predicated region
    $region18: #{forward.1} parent=1 // pred_check
      _
    $region19: #{forward.1} parent=1 // pred_check_branch
      %69 = sbr.rel (0) target = $region21
    $region20: #{forward.1} parent=1 // pred_region
      _
    $region21: #{forward.1} parent=1 // pred_fallthru
      _
    // Predicated region
    $region22: #{forward.1} parent=1 // pred_check
      _
    $region23: #{forward.1} parent=1 // pred_check_branch
      %71 = sbr.rel (0) target = $region25
    $region24: #{forward.1} parent=1 // pred_region
      _
    $region25: #{forward.1} parent=1 // pred_fallthru
      _
    // Predicated region
    $region26: #{forward.1} parent=1 // pred_check
      _
    $region27: #{forward.1} parent=1 // pred_check_branch
      %73 = sbr.rel (0) target = $region29
    $region28: #{forward.1} parent=1 // pred_region
      %75 = vsyncadd [#allocation5], 0
      %s76 = sshll.u32 %s6, 4
      %s77 = int_to_ptr.hbm [resolvable:$true] %s76
      %s78 = sshll.u32 [#allocation6], 4
      %s79 = int_to_ptr.vmem [resolvable:$true] %s78
      %84 = dma.hbm_to_vmem [thread:$0]  %s77, 576, %s79, [#allocation5], 64, 64, 4
    $region29: #{forward.1} parent=1 // pred_fallthru
      _
    // Predicated region
    $region30: #{forward.1} parent=1 // pred_check
      _
    $region31: #{forward.1} parent=1 // pred_check_branch
      %86 = sbr.rel (0) target = $region33
    $region32: #{forward.1} parent=1 // pred_region
      _
    $region33: #{forward.1} parent=1 // pred_fallthru
      _
    // Predicated region
    $region34: #{forward.1} parent=1 // pred_check
      _
    $region35: #{forward.1} parent=1 // pred_check_branch
      %88 = sbr.rel (0) target = $region37
    $region36: #{forward.1} parent=1 // pred_region
      %90 = vsyncadd [#allocation8], 0
      %s91 = sshll.u32 %s8, 4
      %s92 = int_to_ptr.hbm [resolvable:$true] %s91
      %s93 = sshll.u32 [#allocation7], 4
      %s94 = int_to_ptr.vmem [resolvable:$true] %s93
      %99 = dma.hbm_to_vmem [thread:$0]  %s92, 2304, %s94, [#allocation8], 64, 64, 4
    $region37: #{forward.1} parent=1 // pred_fallthru
      _
    // Predicated region
    $region38: #{forward.1} parent=1 // pred_check
      _
    $region39: #{forward.1} parent=1 // pred_check_branch
      %101 = sbr.rel (0) target = $region41
    $region40: #{forward.1} parent=1 // pred_region
      %103 = vsyncadd [#allocation8], 0
      %s105 = sshll.u32 %s9, 4
      %s106 = int_to_ptr.hbm [resolvable:$true] %s105
      %s107 = sshll.u32 [#allocation9], 4
      %s108 = int_to_ptr.vmem [resolvable:$true] %s107
      %110 = dma.hbm_to_vmem [thread:$0]  %s106, 16, %s108, [#allocation8]
    $region41: #{forward.1} parent=1 // pred_fallthru
      _
    // Predicated region
    $region42: #{forward.1} parent=1 // pred_check
      _
    $region43: #{forward.1} parent=1 // pred_check_branch
      %112 = sbr.rel (0) target = $region45
    $region44: #{forward.1} parent=1 // pred_region
      %114 = vsyncadd [#allocation11], 0
      %s115 = sshll.u32 %s10, 4
      %s116 = int_to_ptr.hbm [resolvable:$true] %s115
      %s117 = sshll.u32 [#allocation10], 4
      %s118 = int_to_ptr.vmem [resolvable:$true] %s117
      %123 = dma.hbm_to_vmem [thread:$0]  %s116, 2304, %s118, [#allocation11], 64, 64, 4
    $region45: #{forward.1} parent=1 // pred_fallthru
      _
    // Predicated region
    $region46: #{forward.1} parent=1 // pred_check
      _
    $region47: #{forward.1} parent=1 // pred_check_branch
      %125 = sbr.rel (0) target = $region49
    $region48: #{forward.1} parent=1 // pred_region
      %127 = vsyncadd [#allocation11], 0
      %s129 = sshll.u32 %s11, 4
      %s130 = int_to_ptr.hbm [resolvable:$true] %s129
      %s131 = sshll.u32 [#allocation12], 4
      %s132 = int_to_ptr.vmem [resolvable:$true] %s131
      %134 = dma.hbm_to_vmem [thread:$0]  %s130, 16, %s132, [#allocation11]
    $region49: #{forward.1} parent=1 // pred_fallthru
      _
    // Predicated region
    $region50: #{forward.1} parent=1 // pred_check
      _
    $region51: #{forward.1} parent=1 // pred_check_branch
      %136 = sbr.rel (0) target = $region53
    $region52: #{forward.1} parent=1 // pred_region
      %138 = vsyncadd [#allocation14], 0
      %s139 = sshll.u32 %s12, 4
      %s140 = int_to_ptr.hbm [resolvable:$true] %s139
      %s141 = sshll.u32 [#allocation13], 4
      %s142 = int_to_ptr.vmem [resolvable:$true] %s141
      %147 = dma.hbm_to_vmem [thread:$0]  %s140, 2304, %s142, [#allocation14], 64, 64, 4
    $region53: #{forward.1} parent=1 // pred_fallthru
      _
    // Predicated region
    $region54: #{forward.1} parent=1 // pred_check
      _
    $region55: #{forward.1} parent=1 // pred_check_branch
      %149 = sbr.rel (0) target = $region57
    $region56: #{forward.1} parent=1 // pred_region
      %151 = vsyncadd [#allocation14], 0
      %s153 = sshll.u32 %s13, 4
      %s154 = int_to_ptr.hbm [resolvable:$true] %s153
      %s155 = sshll.u32 [#allocation15], 4
      %s156 = int_to_ptr.vmem [resolvable:$true] %s155
      %158 = dma.hbm_to_vmem [thread:$0]  %s154, 16, %s156, [#allocation14]
    $region57: #{forward.1} parent=1 // pred_fallthru
      _
    // Predicated region
    $region58: #{forward.1} parent=1 // pred_check
      _
    $region59: #{forward.1} parent=1 // pred_check_branch
      %160 = sbr.rel (0) target = $region61
    $region60: #{forward.1} parent=1 // pred_region
      %162 = vsyncadd [#allocation17], 0
      %s163 = sshll.u32 %s14, 4
      %s164 = int_to_ptr.hbm [resolvable:$true] %s163
      %s165 = sshll.u32 [#allocation16], 4
      %s166 = int_to_ptr.vmem [resolvable:$true] %s165
      %171 = dma.hbm_to_vmem [thread:$0]  %s164, 256, %s166, [#allocation17], 64, 64, 4
    $region61: #{forward.1} parent=1 // pred_fallthru
      _
    // Predicated region
    $region62: #{forward.1} parent=1 // pred_check
      _
    $region63: #{forward.1} parent=1 // pred_check_branch
      %173 = sbr.rel (0) target = $region65
    $region64: #{forward.1} parent=1 // pred_region
      %175 = vsyncadd [#allocation17], 0
      %s177 = sshll.u32 %s15, 4
      %s178 = int_to_ptr.hbm [resolvable:$true] %s177
      %s179 = sshll.u32 [#allocation18], 4
      %s180 = int_to_ptr.vmem [resolvable:$true] %s179
      %182 = dma.hbm_to_vmem [thread:$0]  %s178, 16, %s180, [#allocation17]
    $region65: #{forward.1} parent=1 // pred_fallthru
      _
    // Predicated region
    $region66: #{forward.1} parent=1 // pred_check
      _
    $region67: #{forward.1} parent=1 // pred_check_branch
      %184 = sbr.rel (0) target = $region69
    $region68: #{forward.1} parent=1 // pred_region
      %186 = vsyncadd [#allocation20], 0
      %s188 = sshll.u32 %s16, 4
      %s189 = int_to_ptr.hbm [resolvable:$true] %s188
      %s190 = sshll.u32 [#allocation19], 4
      %s191 = int_to_ptr.vmem [resolvable:$true] %s190
      %193 = dma.hbm_to_vmem [thread:$0]  %s189, 16, %s191, [#allocation20]
    $region69: #{forward.1} parent=1 // pred_fallthru
      _
    // Predicated region
    $region70: #{forward.1} parent=1 // pred_check
      _
    $region71: #{forward.1} parent=1 // pred_check_branch
      %195 = sbr.rel (0) target = $region73
    $region72: #{forward.1} parent=1 // pred_region
      %197 = vsyncadd [#allocation20], 0
      %s199 = sshll.u32 %s17, 4
      %s200 = int_to_ptr.hbm [resolvable:$true] %s199
      %s201 = sshll.u32 [#allocation21], 4
      %s202 = int_to_ptr.vmem [resolvable:$true] %s201
      %204 = dma.hbm_to_vmem [thread:$0]  %s200, 16, %s202, [#allocation20]
    $region73: #{forward.1} parent=1 // pred_fallthru
      _
    // Predicated region
    $region74: #{forward.1} parent=1 // pred_check
      _
    $region75: #{forward.1} parent=1 // pred_check_branch
      %206 = sbr.rel (0) target = $region77
    $region76: #{forward.1} parent=1 // pred_region
      %208 = vsyncadd [#allocation23], 0
      %s209 = sshll.u32 %s18, 4
      %s210 = int_to_ptr.hbm [resolvable:$true] %s209
      %s211 = sshll.u32 [#allocation22], 4
      %s212 = int_to_ptr.vmem [resolvable:$true] %s211
      %217 = dma.hbm_to_vmem [thread:$0]  %s210, 1792, %s212, [#allocation23], 256, 256, 16
    $region77: #{forward.1} parent=1 // pred_fallthru
      _
    // Predicated region
    $region78: #{forward.1} parent=1 // pred_check
      _
    $region79: #{forward.1} parent=1 // pred_check_branch
      %219 = sbr.rel (0) target = $region81
    $region80: #{forward.1} parent=1 // pred_region
      %221 = vsyncadd [#allocation23], 0
      %s223 = sshll.u32 %s19, 4
      %s224 = int_to_ptr.hbm [resolvable:$true] %s223
      %s225 = sshll.u32 [#allocation24], 4
      %s226 = int_to_ptr.vmem [resolvable:$true] %s225
      %228 = dma.hbm_to_vmem [thread:$0]  %s224, 256, %s226, [#allocation23]
    $region81: #{forward.1} parent=1 // pred_fallthru
      _
    // Predicated region
    $region82: #{forward.1} parent=1 // pred_check
      _
    $region83: #{forward.1} parent=1 // pred_check_branch
      %230 = sbr.rel (0) target = $region85
    $region84: #{forward.1} parent=1 // pred_region
      %232 = vsyncadd [#allocation26], 0
      %s234 = sshll.u32 %s20, 4
      %s235 = int_to_ptr.hbm [resolvable:$true] %s234
      %s236 = sshll.u32 [#allocation25], 4
      %s237 = int_to_ptr.vmem [resolvable:$true] %s236
      %239 = dma.hbm_to_vmem [thread:$0]  %s235, 64, %s237, [#allocation26]
    $region85: #{forward.1} parent=1 // pred_fallthru
      _
    // Predicated region
    $region86: #{forward.1} parent=1 // pred_check
      _
    $region87: #{forward.1} parent=1 // pred_check_branch
      %241 = sbr.rel (0) target = $region89
    $region88: #{forward.1} parent=1 // pred_region
      _
    $region89: #{forward.1} parent=1 // pred_fallthru
      _
    // Predicated region
    $region90: #{forward.1} parent=1 // pred_check
      _
    $region91: #{forward.1} parent=1 // pred_check_branch
      %243 = sbr.rel (0) target = $region93
    $region92: #{forward.1} parent=1 // pred_region
      %245 = vsyncadd [#allocation26], 0
      %s247 = sshll.u32 %s22, 4
      %s248 = int_to_ptr.hbm [resolvable:$true] %s247
      %s249 = sshll.u32 [#allocation27], 4
      %s250 = int_to_ptr.vmem [resolvable:$true] %s249
      %252 = dma.hbm_to_vmem [thread:$0]  %s248, 64, %s250, [#allocation26]
    $region93: #{forward.1} parent=1 // pred_fallthru
      _
    // Predicated region
    $region94: #{forward.1} parent=1 // pred_check
      _
    $region95: #{forward.1} parent=1 // pred_check_branch
      %254 = sbr.rel (0) target = $region97
    $region96: #{forward.1} parent=1 // pred_region
      %256 = vsyncadd [#allocation29], 0
      %s257 = sshll.u32 %s23, 4
      %s258 = int_to_ptr.hbm [resolvable:$true] %s257
      %s259 = sshll.u32 [#allocation28], 4
      %s260 = int_to_ptr.vmem [resolvable:$true] %s259
      %265 = dma.hbm_to_vmem [thread:$0]  %s258, 4096, %s260, [#allocation29], 64, 64, 4
    $region97: #{forward.1} parent=1 // pred_fallthru
      _
    // Predicated region
    $region98: #{forward.1} parent=1 // pred_check
      _
    $region99: #{forward.1} parent=1 // pred_check_branch
      %267 = sbr.rel (0) target = $region101
    $region100: #{forward.1} parent=1 // pred_region
      %269 = vsyncadd [#allocation29], 0
      %s271 = sshll.u32 %s24, 4
      %s272 = int_to_ptr.hbm [resolvable:$true] %s271
      %s273 = sshll.u32 [#allocation30], 4
      %s274 = int_to_ptr.vmem [resolvable:$true] %s273
      %276 = dma.hbm_to_vmem [thread:$0]  %s272, 16, %s274, [#allocation29]
    $region101: #{forward.1} parent=1 // pred_fallthru
      _
    // Predicated region
    $region102: #{forward.1} parent=1 // pred_check
      _
    $region103: #{forward.1} parent=1 // pred_check_branch
      %278 = sbr.rel (0) target = $region105
    $region104: #{forward.1} parent=1 // pred_region
      %280 = dma.done [#allocation3], 32
    $region105: #{forward.1} parent=1 // pred_fallthru
      _
    // Predicated region
    $region106: #{forward.1} parent=1 // pred_check
      _
    $region107: #{forward.1} parent=1 // pred_check_branch
      %282 = sbr.rel (0) target = $region109
    $region108: #{forward.1} parent=1 // pred_region
      %284 = dma.done [#allocation5], 1664
    $region109: #{forward.1} parent=1 // pred_fallthru
      _
    // Predicated region
    $region110: #{forward.1} parent=1 // pred_check
      _
    $region111: #{forward.1} parent=1 // pred_check_branch
      %286 = sbr.rel (0) target = $region113
    $region112: #{forward.1} parent=1 // pred_region
      %288 = dma.done [#allocation5], 576
    $region113: #{forward.1} parent=1 // pred_fallthru
      _
    // Predicated region
    $region114: #{forward.1} parent=1 // pred_check
      _
    $region115: #{forward.1} parent=1 // pred_check_branch
      %290 = sbr.rel (0) target = $region117
    $region116: #{forward.1} parent=1 // pred_region
      %292 = dma.done [#allocation8], 2304
    $region117: #{forward.1} parent=1 // pred_fallthru
      _
    // Predicated region
    $region118: #{forward.1} parent=1 // pred_check
      _
    $region119: #{forward.1} parent=1 // pred_check_branch
      %294 = sbr.rel (0) target = $region121
    $region120: #{forward.1} parent=1 // pred_region
      %296 = dma.done [#allocation8], 16
    $region121: #{forward.1} parent=1 // pred_fallthru
      _
    // Predicated region
    $region122: #{forward.1} parent=1 // pred_check
      _
    $region123: #{forward.1} parent=1 // pred_check_branch
      %298 = sbr.rel (0) target = $region125
    $region124: #{forward.1} parent=1 // pred_region
      %300 = dma.done [#allocation11], 2304
    $region125: #{forward.1} parent=1 // pred_fallthru
      _
    // Predicated region
    $region126: #{forward.1} parent=1 // pred_check
      _
    $region127: #{forward.1} parent=1 // pred_check_branch
      %302 = sbr.rel (0) target = $region129
    $region128: #{forward.1} parent=1 // pred_region
      %304 = dma.done [#allocation11], 16
    $region129: #{forward.1} parent=1 // pred_fallthru
      _
    // Predicated region
    $region130: #{forward.1} parent=1 // pred_check
      _
    $region131: #{forward.1} parent=1 // pred_check_branch
      %306 = sbr.rel (0) target = $region133
    $region132: #{forward.1} parent=1 // pred_region
      %308 = dma.done [#allocation14], 2304
    $region133: #{forward.1} parent=1 // pred_fallthru
      _
    // Predicated region
    $region134: #{forward.1} parent=1 // pred_check
      _
    $region135: #{forward.1} parent=1 // pred_check_branch
      %310 = sbr.rel (0) target = $region137
    $region136: #{forward.1} parent=1 // pred_region
      %312 = dma.done [#allocation14], 16
    $region137: #{forward.1} parent=1 // pred_fallthru
      _
    // Predicated region
    $region138: #{forward.1} parent=1 // pred_check
      _
    $region139: #{forward.1} parent=1 // pred_check_branch
      %314 = sbr.rel (0) target = $region141
    $region140: #{forward.1} parent=1 // pred_region
      %316 = dma.done [#allocation17], 256
    $region141: #{forward.1} parent=1 // pred_fallthru
      _
    // Predicated region
    $region142: #{forward.1} parent=1 // pred_check
      _
    $region143: #{forward.1} parent=1 // pred_check_branch
      %318 = sbr.rel (0) target = $region145
    $region144: #{forward.1} parent=1 // pred_region
      %320 = dma.done [#allocation17], 16
    $region145: #{forward.1} parent=1 // pred_fallthru
      _
    // Predicated region
    $region146: #{forward.1} parent=1 // pred_check
      _
    $region147: #{forward.1} parent=1 // pred_check_branch
      %322 = sbr.rel (0) target = $region149
    $region148: #{forward.1} parent=1 // pred_region
      %324 = dma.done [#allocation20], 16
    $region149: #{forward.1} parent=1 // pred_fallthru
      _
    // Predicated region
    $region150: #{forward.1} parent=1 // pred_check
      _
    $region151: #{forward.1} parent=1 // pred_check_branch
      %326 = sbr.rel (0) target = $region153
    $region152: #{forward.1} parent=1 // pred_region
      %328 = dma.done [#allocation20], 16
    $region153: #{forward.1} parent=1 // pred_fallthru
      _
    // Predicated region
    $region154: #{forward.1} parent=1 // pred_check
      _
    $region155: #{forward.1} parent=1 // pred_check_branch
      %330 = sbr.rel (0) target = $region157
    $region156: #{forward.1} parent=1 // pred_region
      %332 = dma.done [#allocation23], 1792
    $region157: #{forward.1} parent=1 // pred_fallthru
      _
    // Predicated region
    $region158: #{forward.1} parent=1 // pred_check
      _
    $region159: #{forward.1} parent=1 // pred_check_branch
      %334 = sbr.rel (0) target = $region161
    $region160: #{forward.1} parent=1 // pred_region
      %336 = dma.done [#allocation23], 256
    $region161: #{forward.1} parent=1 // pred_fallthru
      _
    // Predicated region
    $region162: #{forward.1} parent=1 // pred_check
      _
    $region163: #{forward.1} parent=1 // pred_check_branch
      %338 = sbr.rel (0) target = $region165
    $region164: #{forward.1} parent=1 // pred_region
      %340 = dma.done [#allocation26], 64
    $region165: #{forward.1} parent=1 // pred_fallthru
      _
    // Predicated region
    $region166: #{forward.1} parent=1 // pred_check
      _
    $region167: #{forward.1} parent=1 // pred_check_branch
      %342 = sbr.rel (0) target = $region169
    $region168: #{forward.1} parent=1 // pred_region
      %344 = dma.done [#allocation26], 64
    $region169: #{forward.1} parent=1 // pred_fallthru
      _
    // Predicated region
    $region170: #{forward.1} parent=1 // pred_check
      _
    $region171: #{forward.1} parent=1 // pred_check_branch
      %346 = sbr.rel (0) target = $region173
    $region172: #{forward.1} parent=1 // pred_region
      %348 = dma.done [#allocation29], 4096
    $region173: #{forward.1} parent=1 // pred_fallthru
      _
    // Predicated region
    $region174: #{forward.1} parent=1 // pred_check
      _
    $region175: #{forward.1} parent=1 // pred_check_branch
      %350 = sbr.rel (0) target = $region177
    $region176: #{forward.1} parent=1 // pred_region
      %352 = dma.done [#allocation29], 16
    $region177: #{forward.1} parent=1 // pred_fallthru
      _
    %v354 = vld [vmem:[%s0] sm:$0xff]
    %v355 = vld [vmem:[%s0 + $0x8] sm:$0xff]
    %v356 = vld [vmem:[%s0 + $0x10] sm:$0xff]
    %v357 = vld [vmem:[%s0 + $0x18] sm:$0xff]
    %v358 = vld [vmem:[%s0 + $0x20] sm:$0xff]
    %v359 = vld [vmem:[%s0 + $0x28] sm:$0xff]
    %v360 = vld [vmem:[%s0 + $0x30] sm:$0xff]
    %v361 = vld [vmem:[%s0 + $0x38] sm:$0xff]
    %v362 = vld [vmem:[%s0 + $0x40] sm:$0xff]
    %v363 = vld [vmem:[%s0 + $0x48] sm:$0xff]
    %v364 = vld [vmem:[%s0 + $0x50] sm:$0xff]
    %v365 = vld [vmem:[%s0 + $0x58] sm:$0xff]
    %v366 = vld [vmem:[%s0 + $0x60] sm:$0xff]
    %v367 = vld [vmem:[%s0 + $0x68] sm:$0xff]
    %v368 = vld [vmem:[%s0 + $0x70] sm:$0xff]
    %v369 = vld [vmem:[%s0 + $0x78] sm:$0xff]
    %v370 = vld [vmem:[%s0 + $0x80] sm:$0xff]
    %v371 = vld [vmem:[%s0 + $0x88] sm:$0xff]
    %v372 = vld [vmem:[%s0 + $0x90] sm:$0xff]
    %v373 = vld [vmem:[%s0 + $0x98] sm:$0xff]
    %v374 = vld [vmem:[%s0 + $0xa0] sm:$0xff]
    %v375 = vld [vmem:[%s0 + $0xa8] sm:$0xff]
    %v376 = vld [vmem:[%s0 + $0xb0] sm:$0xff]
    %v377 = vld [vmem:[%s0 + $0xb8] sm:$0xff]
    %v378 = vld [vmem:[%s0 + $0xc0] sm:$0xff]
    %v379 = vld [vmem:[%s0 + $0xc8] sm:$0xff]
    %v380 = vld [vmem:[%s0 + $0xd0] sm:$0xff]
    %v381 = vld [vmem:[%s0 + $0xd8] sm:$0xff]
    %v382 = vld [vmem:[%s0 + $0xe0] sm:$0xff]
    %v383 = vld [vmem:[%s0 + $0xe8] sm:$0xff]
    %v384 = vld [vmem:[%s0 + $0xf0] sm:$0xff]
    %v385 = vld [vmem:[%s0 + $0xf8] sm:$0xff]
    %v386 = vld [vmem:[%s0 + $0x100] sm:$0xff]
    %v387 = vld [vmem:[%s0 + $0x108] sm:$0xff]
    %v388 = vld [vmem:[%s0 + $0x110] sm:$0xff]
    %v389 = vld [vmem:[%s0 + $0x118] sm:$0xff]
    %v390 = vld [vmem:[%s0 + $0x120] sm:$0xff]
    %v391 = vld [vmem:[%s0 + $0x128] sm:$0xff]
    %v392 = vld [vmem:[%s0 + $0x130] sm:$0xff]
    %v393 = vld [vmem:[%s0 + $0x138] sm:$0xff]
    %v394 = vld [vmem:[%s0 + $0x140] sm:$0xff]
    %v395 = vld [vmem:[%s0 + $0x148] sm:$0xff]
    %v396 = vld [vmem:[%s0 + $0x150] sm:$0xff]
    %v397 = vld [vmem:[%s0 + $0x158] sm:$0xff]
    %v398 = vld [vmem:[%s0 + $0x160] sm:$0xff]
    %v399 = vld [vmem:[%s0 + $0x168] sm:$0xff]
    %v400 = vld [vmem:[%s0 + $0x170] sm:$0xff]
    %v401 = vld [vmem:[%s0 + $0x178] sm:$0xff]
    %v402 = vld [vmem:[%s0 + $0x180] sm:$0xff]
    %v403 = vld [vmem:[%s0 + $0x188] sm:$0xff]
    %v404 = vld [vmem:[%s0 + $0x190] sm:$0xff]
    %v405 = vld [vmem:[%s0 + $0x198] sm:$0xff]
    %v406 = vld [vmem:[%s0 + $0x1a0] sm:$0xff]
    %v407 = vld [vmem:[%s0 + $0x1a8] sm:$0xff]
    %v408 = vld [vmem:[%s0 + $0x1b0] sm:$0xff]
    %v409 = vld [vmem:[%s0 + $0x1b8] sm:$0xff]
    %v410 = vld [vmem:[%s0 + $0x1c0] sm:$0xff]
    %v411 = vld [vmem:[%s0 + $0x1c8] sm:$0xff]
    %v412 = vld [vmem:[%s0 + $0x1d0] sm:$0xff]
    %v413 = vld [vmem:[%s0 + $0x1d8] sm:$0xff]
    %v414 = vld [vmem:[%s0 + $0x1e0] sm:$0xff]
    %v415 = vld [vmem:[%s0 + $0x1e8] sm:$0xff]
    %v416 = vld [vmem:[%s0 + $0x1f0] sm:$0xff]
    %v417 = vld [vmem:[%s0 + $0x1f8] sm:$0xff]
    %v418 = vlaneseq
    %v419 = vand.u32 %v418, 127
    %v420 = vadd.s32 %v419, 128
    %v421 = vadd.s32 %v419, 256
    %v422 = vadd.s32 %v419, 384
    %v423 = vld [vmem:[#allocation4] sm:$0xff]
    %v424 = vld [vmem:[#allocation4 + $0x8] sm:$0xff]
    %v425 = vld [vmem:[#allocation4 + $0x10] sm:$0xff]
    %v426 = vld [vmem:[#allocation4 + $0x18] sm:$0xff]
    %v427 = vld [vmem:[#allocation4 + $0x20] sm:$0xff]
    %v428 = vld [vmem:[#allocation4 + $0x28] sm:$0xff]
    %v429 = vld [vmem:[#allocation4 + $0x30] sm:$0xff]
    %v430 = vld [vmem:[#allocation4 + $0x38] sm:$0xff]
    %v431 = vld [vmem:[#allocation4 + $0x40] sm:$0xff]
    %v432 = vld [vmem:[#allocation4 + $0x48] sm:$0xff]
    %v433 = vld [vmem:[#allocation4 + $0x50] sm:$0xff]
    %v434 = vld [vmem:[#allocation4 + $0x58] sm:$0xff]
    %v435 = vld [vmem:[#allocation4 + $0x60] sm:$0x3]
    %436 = vset.pattern.permute.xlu0 0
    %437 = vperm.xlu0 %436, %v423
    %v438 = vpop.permute.xlu0 %437
    %439 = vset.pattern.permute.xlu0 0
    %440 = vperm.xlu0 %439, %v424
    %v441 = vpop.permute.xlu0 %440
    %442 = vset.pattern.permute.xlu0 0
    %443 = vperm.xlu0 %442, %v425
    %v444 = vpop.permute.xlu0 %443
    %445 = vset.pattern.permute.xlu0 0
    %446 = vperm.xlu0 %445, %v426
    %v447 = vpop.permute.xlu0 %446
    %448 = vset.pattern.permute.xlu0 0
    %449 = vperm.xlu0 %448, %v427
    %v450 = vpop.permute.xlu0 %449
    %451 = vset.pattern.permute.xlu0 0
    %452 = vperm.xlu0 %451, %v428
    %v453 = vpop.permute.xlu0 %452
    %454 = vset.pattern.permute.xlu0 0
    %455 = vperm.xlu0 %454, %v429
    %v456 = vpop.permute.xlu0 %455
    %457 = vset.pattern.permute.xlu0 0
    %458 = vperm.xlu0 %457, %v430
    %v459 = vpop.permute.xlu0 %458
    %460 = vset.pattern.permute.xlu0 0
    %461 = vperm.xlu0 %460, %v431
    %v462 = vpop.permute.xlu0 %461
    %463 = vset.pattern.permute.xlu0 0
    %464 = vperm.xlu0 %463, %v432
    %v465 = vpop.permute.xlu0 %464
    %466 = vset.pattern.permute.xlu0 0
    %467 = vperm.xlu0 %466, %v433
    %v468 = vpop.permute.xlu0 %467
    %469 = vset.pattern.permute.xlu0 0
    %470 = vperm.xlu0 %469, %v434
    %v471 = vpop.permute.xlu0 %470
    %472 = vset.pattern.permute.xlu0 0
    %473 = vperm.xlu0 %472, %v435
    %v474 = vpop.permute.xlu0 %473
    %v475 = vsub.s32 %v419, %v438
    %v476 = vsub.s32 %v420, %v438
    %v477 = vsub.s32 %v421, %v438
    %v478 = vsub.s32 %v422, %v438
    %v479 = vsub.s32 %v419, %v441
    %v480 = vsub.s32 %v420, %v441
    %v481 = vsub.s32 %v421, %v441
    %v482 = vsub.s32 %v422, %v441
    %v483 = vsub.s32 %v419, %v444
    %v484 = vsub.s32 %v420, %v444
    %v485 = vsub.s32 %v421, %v444
    %v486 = vsub.s32 %v422, %v444
    %v487 = vsub.s32 %v419, %v447
    %v488 = vsub.s32 %v420, %v447
    %v489 = vsub.s32 %v421, %v447
    %v490 = vsub.s32 %v422, %v447
    %v491 = vsub.s32 %v419, %v450
    %v492 = vsub.s32 %v420, %v450
    %v493 = vsub.s32 %v421, %v450
    %v494 = vsub.s32 %v422, %v450
    %v495 = vsub.s32 %v419, %v453
    %v496 = vsub.s32 %v420, %v453
    %v497 = vsub.s32 %v421, %v453
    %v498 = vsub.s32 %v422, %v453
    %v499 = vsub.s32 %v419, %v456
    %v500 = vsub.s32 %v420, %v456
    %v501 = vsub.s32 %v421, %v456
    %v502 = vsub.s32 %v422, %v456
    %v503 = vsub.s32 %v419, %v459
    %v504 = vsub.s32 %v420, %v459
    %v505 = vsub.s32 %v421, %v459
    %v506 = vsub.s32 %v422, %v459
    %v507 = vsub.s32 %v419, %v462
    %v508 = vsub.s32 %v420, %v462
    %v509 = vsub.s32 %v421, %v462
    %v510 = vsub.s32 %v422, %v462
    %v511 = vsub.s32 %v419, %v465
    %v512 = vsub.s32 %v420, %v465
    %v513 = vsub.s32 %v421, %v465
    %v514 = vsub.s32 %v422, %v465
    %v515 = vsub.s32 %v419, %v468
    %v516 = vsub.s32 %v420, %v468
    %v517 = vsub.s32 %v421, %v468
    %v518 = vsub.s32 %v422, %v468
    %v519 = vsub.s32 %v419, %v471
    %v520 = vsub.s32 %v420, %v471
    %v521 = vsub.s32 %v421, %v471
    %v522 = vsub.s32 %v422, %v471
    %v523 = vsub.s32 %v419, %v474
    %v524 = vsub.s32 %v420, %v474
    %v525 = vsub.s32 %v421, %v474
    %v526 = vsub.s32 %v422, %v474
    %vm527 = vcmp.eq.s32.totalorder %v475, 0
    %vm528 = vcmp.eq.s32.totalorder %v476, 0
    %vm529 = vcmp.eq.s32.totalorder %v477, 0
    %vm530 = vcmp.eq.s32.totalorder %v478, 0
    %vm531 = vcmp.eq.s32.totalorder %v479, 0
    %vm532 = vcmp.eq.s32.totalorder %v480, 0
    %vm533 = vcmp.eq.s32.totalorder %v481, 0
    %vm534 = vcmp.eq.s32.totalorder %v482, 0
    %vm535 = vcmp.eq.s32.totalorder %v483, 0
    %vm536 = vcmp.eq.s32.totalorder %v484, 0
    %vm537 = vcmp.eq.s32.totalorder %v485, 0
    %vm538 = vcmp.eq.s32.totalorder %v486, 0
    %vm539 = vcmp.eq.s32.totalorder %v487, 0
    %vm540 = vcmp.eq.s32.totalorder %v488, 0
    %vm541 = vcmp.eq.s32.totalorder %v489, 0
    %vm542 = vcmp.eq.s32.totalorder %v490, 0
    %vm543 = vcmp.eq.s32.totalorder %v491, 0
    %vm544 = vcmp.eq.s32.totalorder %v492, 0
    %vm545 = vcmp.eq.s32.totalorder %v493, 0
    %vm546 = vcmp.eq.s32.totalorder %v494, 0
    %vm547 = vcmp.eq.s32.totalorder %v495, 0
    %vm548 = vcmp.eq.s32.totalorder %v496, 0
    %vm549 = vcmp.eq.s32.totalorder %v497, 0
    %vm550 = vcmp.eq.s32.totalorder %v498, 0
    %vm551 = vcmp.eq.s32.totalorder %v499, 0
    %vm552 = vcmp.eq.s32.totalorder %v500, 0
    %vm553 = vcmp.eq.s32.totalorder %v501, 0
    %vm554 = vcmp.eq.s32.totalorder %v502, 0
    %vm555 = vcmp.eq.s32.totalorder %v503, 0
    %vm556 = vcmp.eq.s32.totalorder %v504, 0
    %vm557 = vcmp.eq.s32.totalorder %v505, 0
    %vm558 = vcmp.eq.s32.totalorder %v506, 0
    %vm559 = vcmp.eq.s32.totalorder %v507, 0
    %vm560 = vcmp.eq.s32.totalorder %v508, 0
    %vm561 = vcmp.eq.s32.totalorder %v509, 0
    %vm562 = vcmp.eq.s32.totalorder %v510, 0
    %vm563 = vcmp.eq.s32.totalorder %v511, 0
    %vm564 = vcmp.eq.s32.totalorder %v512, 0
    %vm565 = vcmp.eq.s32.totalorder %v513, 0
    %vm566 = vcmp.eq.s32.totalorder %v514, 0
    %vm567 = vcmp.eq.s32.totalorder %v515, 0
    %vm568 = vcmp.eq.s32.totalorder %v516, 0
    %vm569 = vcmp.eq.s32.totalorder %v517, 0
    %vm570 = vcmp.eq.s32.totalorder %v518, 0
    %vm571 = vcmp.eq.s32.totalorder %v519, 0
    %vm572 = vcmp.eq.s32.totalorder %v520, 0
    %vm573 = vcmp.eq.s32.totalorder %v521, 0
    %vm574 = vcmp.eq.s32.totalorder %v522, 0
    %vm575 = vcmp.eq.s32.totalorder %v523, 0
    %vm576 = vcmp.eq.s32.totalorder %v524, 0
    %vm577 = vcmp.eq.s32.totalorder %v525, 0
    %vm578 = vcmp.eq.s32.totalorder %v526, 0
    %v579 = vsel %vm527, 1.0, 0.0
    %v580 = vsel %vm528, 1.0, 0.0
    %v581 = vsel %vm529, 1.0, 0.0
    %v582 = vsel %vm530, 1.0, 0.0
    %v583 = vsel %vm531, 1.0, 0.0
    %v584 = vsel %vm532, 1.0, 0.0
    %v585 = vsel %vm533, 1.0, 0.0
    %v586 = vsel %vm534, 1.0, 0.0
    %v587 = vsel %vm535, 1.0, 0.0
    %v588 = vsel %vm536, 1.0, 0.0
    %v589 = vsel %vm537, 1.0, 0.0
    %v590 = vsel %vm538, 1.0, 0.0
    %v591 = vsel %vm539, 1.0, 0.0
    %v592 = vsel %vm540, 1.0, 0.0
    %v593 = vsel %vm541, 1.0, 0.0
    %v594 = vsel %vm542, 1.0, 0.0
    %v595 = vsel %vm543, 1.0, 0.0
    %v596 = vsel %vm544, 1.0, 0.0
    %v597 = vsel %vm545, 1.0, 0.0
    %v598 = vsel %vm546, 1.0, 0.0
    %v599 = vsel %vm547, 1.0, 0.0
    %v600 = vsel %vm548, 1.0, 0.0
    %v601 = vsel %vm549, 1.0, 0.0
    %v602 = vsel %vm550, 1.0, 0.0
    %v603 = vsel %vm551, 1.0, 0.0
    %v604 = vsel %vm552, 1.0, 0.0
    %v605 = vsel %vm553, 1.0, 0.0
    %v606 = vsel %vm554, 1.0, 0.0
    %v607 = vsel %vm555, 1.0, 0.0
    %v608 = vsel %vm556, 1.0, 0.0
    %v609 = vsel %vm557, 1.0, 0.0
    %v610 = vsel %vm558, 1.0, 0.0
    %v611 = vsel %vm559, 1.0, 0.0
    %v612 = vsel %vm560, 1.0, 0.0
    %v613 = vsel %vm561, 1.0, 0.0
    %v614 = vsel %vm562, 1.0, 0.0
    %v615 = vsel %vm563, 1.0, 0.0
    %v616 = vsel %vm564, 1.0, 0.0
    %v617 = vsel %vm565, 1.0, 0.0
    %v618 = vsel %vm566, 1.0, 0.0
    %v619 = vsel %vm567, 1.0, 0.0
    %v620 = vsel %vm568, 1.0, 0.0
    %v621 = vsel %vm569, 1.0, 0.0
    %v622 = vsel %vm570, 1.0, 0.0
    %v623 = vsel %vm571, 1.0, 0.0
    %v624 = vsel %vm572, 1.0, 0.0
    %v625 = vsel %vm573, 1.0, 0.0
    %v626 = vsel %vm574, 1.0, 0.0
    %v627 = vsel %vm575, 1.0, 0.0
    %v628 = vsel %vm576, 1.0, 0.0
    %v629 = vsel %vm577, 1.0, 0.0
    %v630 = vsel %vm578, 1.0, 0.0
    %v631 = vpack.c.bf16 %v583, %v579
    %v632 = vpack.c.bf16 %v584, %v580
    %v633 = vpack.c.bf16 %v585, %v581
    %v634 = vpack.c.bf16 %v586, %v582
    %v635 = vpack.c.bf16 %v591, %v587
    %v636 = vpack.c.bf16 %v592, %v588
    %v637 = vpack.c.bf16 %v593, %v589
    %v638 = vpack.c.bf16 %v594, %v590
    %v639 = vpack.c.bf16 %v599, %v595
    %v640 = vpack.c.bf16 %v600, %v596
    %v641 = vpack.c.bf16 %v601, %v597
    %v642 = vpack.c.bf16 %v602, %v598
    %v643 = vpack.c.bf16 %v607, %v603
    %v644 = vpack.c.bf16 %v608, %v604
    %v645 = vpack.c.bf16 %v609, %v605
    %v646 = vpack.c.bf16 %v610, %v606
    %v647 = vpack.c.bf16 %v615, %v611
    %v648 = vpack.c.bf16 %v616, %v612
    %v649 = vpack.c.bf16 %v617, %v613
    %v650 = vpack.c.bf16 %v618, %v614
    %v651 = vpack.c.bf16 %v623, %v619
    %v652 = vpack.c.bf16 %v624, %v620
    %v653 = vpack.c.bf16 %v625, %v621
    %v654 = vpack.c.bf16 %v626, %v622
    %v655 = vpack.c.bf16 %v627, %v627
    %v656 = vpack.c.bf16 %v628, %v628
    %v657 = vpack.c.bf16 %v629, %v629
    %v658 = vpack.c.bf16 %v630, %v630
    %v659 = vpack.c.bf16 %v355, %v354
    %v660 = vpack.c.bf16 %v357, %v356
    %v661 = vpack.c.bf16 %v359, %v358
    %v662 = vpack.c.bf16 %v361, %v360
    %v663 = vpack.c.bf16 %v363, %v362
    %v664 = vpack.c.bf16 %v365, %v364
    %v665 = vpack.c.bf16 %v367, %v366
    %v666 = vpack.c.bf16 %v369, %v368
    %v667 = vpack.c.bf16 %v371, %v370
    %v668 = vpack.c.bf16 %v373, %v372
    %v669 = vpack.c.bf16 %v375, %v374
    %v670 = vpack.c.bf16 %v377, %v376
    %v671 = vpack.c.bf16 %v379, %v378
    %v672 = vpack.c.bf16 %v381, %v380
    %v673 = vpack.c.bf16 %v383, %v382
    %v674 = vpack.c.bf16 %v385, %v384
    %v675 = vpack.c.bf16 %v387, %v386
    %v676 = vpack.c.bf16 %v389, %v388
    %v677 = vpack.c.bf16 %v391, %v390
    %v678 = vpack.c.bf16 %v393, %v392
    %v679 = vpack.c.bf16 %v395, %v394
    %v680 = vpack.c.bf16 %v397, %v396
    %v681 = vpack.c.bf16 %v399, %v398
    %v682 = vpack.c.bf16 %v401, %v400
    %v683 = vpack.c.bf16 %v403, %v402
    %v684 = vpack.c.bf16 %v405, %v404
    %v685 = vpack.c.bf16 %v407, %v406
    %v686 = vpack.c.bf16 %v409, %v408
    %v687 = vpack.c.bf16 %v411, %v410
    %v688 = vpack.c.bf16 %v413, %v412
    %v689 = vpack.c.bf16 %v415, %v414
    %v690 = vpack.c.bf16 %v417, %v416
    %691 = vmatpush.bf16.msra.mxu0 %v666
    %692 = vmatpush.bf16.msra.mxu0 %v665
    %693 = vmatpush.bf16.msra.mxu0 %v664
    %694 = vmatpush.bf16.msra.mxu0 %v663
    %695 = vmatpush.bf16.msra.mxu0 %v662
    %696 = vmatpush.bf16.msra.mxu0 %v661
    %697 = vmatpush.bf16.msra.mxu0 %v660
    %698 = vmatpush.bf16.msra.mxu0 %v659
    %699 = vmatmul.bf16.gmra.mxu0 %v631
    %v700 = vpop.f32.mrf.mxu0
    %v701 = vadd.f32 0.0, %v700
    %v702 = vpop.f32.mrf.mxu0
    %v703 = vadd.f32 0.0, %v702
    %704 = vmatmul.bf16.gmra.mxu0 %v635
    %v705 = vpop.f32.mrf.mxu0
    %v706 = vadd.f32 0.0, %v705
    %v707 = vpop.f32.mrf.mxu0
    %v708 = vadd.f32 0.0, %v707
    %709 = vmatmul.bf16.gmra.mxu0 %v639
    %v710 = vpop.f32.mrf.mxu0
    %v711 = vadd.f32 0.0, %v710
    %v712 = vpop.f32.mrf.mxu0
    %v713 = vadd.f32 0.0, %v712
    %714 = vmatmul.bf16.gmra.mxu0 %v643
    %v715 = vpop.f32.mrf.mxu0
    %v716 = vadd.f32 0.0, %v715
    %v717 = vpop.f32.mrf.mxu0
    %v718 = vadd.f32 0.0, %v717
    %719 = vmatmul.bf16.gmra.mxu0 %v647
    %v720 = vpop.f32.mrf.mxu0
    %v721 = vadd.f32 0.0, %v720
    %v722 = vpop.f32.mrf.mxu0
    %v723 = vadd.f32 0.0, %v722
    %724 = vmatmul.bf16.gmra.mxu0 %v651
    %v725 = vpop.f32.mrf.mxu0
    %v726 = vadd.f32 0.0, %v725
    %v727 = vpop.f32.mrf.mxu0
    %v728 = vadd.f32 0.0, %v727
    %729 = vmatmul.bf16.gmra.mxu0 %v655
    %v730 = vpop.f32.mrf.mxu0
    %v731 = vadd.f32 0.0, %v730
    %v732 = vpop.f32.mrf.mxu0
    %733 = vdwg.mxu0
    %734 = vmatpush.bf16.msra.mxu0 %v674
    %735 = vmatpush.bf16.msra.mxu0 %v673
    %736 = vmatpush.bf16.msra.mxu0 %v672
    %737 = vmatpush.bf16.msra.mxu0 %v671
    %738 = vmatpush.bf16.msra.mxu0 %v670
    %739 = vmatpush.bf16.msra.mxu0 %v669
    %740 = vmatpush.bf16.msra.mxu0 %v668
    %741 = vmatpush.bf16.msra.mxu0 %v667
    %742 = vmatmul.bf16.gmra.mxu0 %v632
    %v743 = vpop.f32.mrf.mxu0
    %v744 = vadd.f32 %v701, %v743
    %v745 = vpop.f32.mrf.mxu0
    %v746 = vadd.f32 %v703, %v745
    %747 = vmatmul.bf16.gmra.mxu0 %v636
    %v748 = vpop.f32.mrf.mxu0
    %v749 = vadd.f32 %v706, %v748
    %v750 = vpop.f32.mrf.mxu0
    %v751 = vadd.f32 %v708, %v750
    %752 = vmatmul.bf16.gmra.mxu0 %v640
    %v753 = vpop.f32.mrf.mxu0
    %v754 = vadd.f32 %v711, %v753
    %v755 = vpop.f32.mrf.mxu0
    %v756 = vadd.f32 %v713, %v755
    %757 = vmatmul.bf16.gmra.mxu0 %v644
    %v758 = vpop.f32.mrf.mxu0
    %v759 = vadd.f32 %v716, %v758
    %v760 = vpop.f32.mrf.mxu0
    %v761 = vadd.f32 %v718, %v760
    %762 = vmatmul.bf16.gmra.mxu0 %v648
    %v763 = vpop.f32.mrf.mxu0
    %v764 = vadd.f32 %v721, %v763
    %v765 = vpop.f32.mrf.mxu0
    %v766 = vadd.f32 %v723, %v765
    %767 = vmatmul.bf16.gmra.mxu0 %v652
    %v768 = vpop.f32.mrf.mxu0
    %v769 = vadd.f32 %v726, %v768
    %v770 = vpop.f32.mrf.mxu0
    %v771 = vadd.f32 %v728, %v770
    %772 = vmatmul.bf16.gmra.mxu0 %v656
    %v773 = vpop.f32.mrf.mxu0
    %v774 = vadd.f32 %v731, %v773
    %v775 = vpop.f32.mrf.mxu0
    %776 = vdwg.mxu0
    %777 = vmatpush.bf16.msra.mxu0 %v682
    %778 = vmatpush.bf16.msra.mxu0 %v681
    %779 = vmatpush.bf16.msra.mxu0 %v680
    %780 = vmatpush.bf16.msra.mxu0 %v679
    %781 = vmatpush.bf16.msra.mxu0 %v678
    %782 = vmatpush.bf16.msra.mxu0 %v677
    %783 = vmatpush.bf16.msra.mxu0 %v676
    %784 = vmatpush.bf16.msra.mxu0 %v675
    %785 = vmatmul.bf16.gmra.mxu0 %v633
    %v786 = vpop.f32.mrf.mxu0
    %v787 = vadd.f32 %v744, %v786
    %v788 = vpop.f32.mrf.mxu0
    %v789 = vadd.f32 %v746, %v788
    %790 = vmatmul.bf16.gmra.mxu0 %v637
    %v791 = vpop.f32.mrf.mxu0
    %v792 = vadd.f32 %v749, %v791
    %v793 = vpop.f32.mrf.mxu0
    %v794 = vadd.f32 %v751, %v793
    %795 = vmatmul.bf16.gmra.mxu0 %v641
    %v796 = vpop.f32.mrf.mxu0
    %v797 = vadd.f32 %v754, %v796
    %v798 = vpop.f32.mrf.mxu0
    %v799 = vadd.f32 %v756, %v798
    %800 = vmatmul.bf16.gmra.mxu0 %v645
    %v801 = vpop.f32.mrf.mxu0
    %v802 = vadd.f32 %v759, %v801
    %v803 = vpop.f32.mrf.mxu0
    %v804 = vadd.f32 %v761, %v803
    %805 = vmatmul.bf16.gmra.mxu0 %v649
    %v806 = vpop.f32.mrf.mxu0
    %v807 = vadd.f32 %v764, %v806
    %v808 = vpop.f32.mrf.mxu0
    %v809 = vadd.f32 %v766, %v808
    %810 = vmatmul.bf16.gmra.mxu0 %v653
    %v811 = vpop.f32.mrf.mxu0
    %v812 = vadd.f32 %v769, %v811
    %v813 = vpop.f32.mrf.mxu0
    %v814 = vadd.f32 %v771, %v813
    %815 = vmatmul.bf16.gmra.mxu0 %v657
    %v816 = vpop.f32.mrf.mxu0
    %v817 = vadd.f32 %v774, %v816
    %v818 = vpop.f32.mrf.mxu0
    %819 = vdwg.mxu0
    %820 = vmatpush.bf16.msra.mxu0 %v690
    %821 = vmatpush.bf16.msra.mxu0 %v689
    %822 = vmatpush.bf16.msra.mxu0 %v688
    %823 = vmatpush.bf16.msra.mxu0 %v687
    %824 = vmatpush.bf16.msra.mxu0 %v686
    %825 = vmatpush.bf16.msra.mxu0 %v685
    %826 = vmatpush.bf16.msra.mxu0 %v684
    %827 = vmatpush.bf16.msra.mxu0 %v683
    %828 = vmatmul.bf16.gmra.mxu0 %v634
    %v829 = vpop.f32.mrf.mxu0
    %v830 = vadd.f32 %v787, %v829
    %v831 = vpop.f32.mrf.mxu0
    %v832 = vadd.f32 %v789, %v831
    %833 = vmatmul.bf16.gmra.mxu0 %v638
    %v834 = vpop.f32.mrf.mxu0
    %v835 = vadd.f32 %v792, %v834
    %v836 = vpop.f32.mrf.mxu0
    %v837 = vadd.f32 %v794, %v836
    %838 = vmatmul.bf16.gmra.mxu0 %v642
    %v839 = vpop.f32.mrf.mxu0
    %v840 = vadd.f32 %v797, %v839
    %v841 = vpop.f32.mrf.mxu0
    %v842 = vadd.f32 %v799, %v841
    %843 = vmatmul.bf16.gmra.mxu0 %v646
    %v844 = vpop.f32.mrf.mxu0
    %v845 = vadd.f32 %v802, %v844
    %v846 = vpop.f32.mrf.mxu0
    %v847 = vadd.f32 %v804, %v846
    %848 = vmatmul.bf16.gmra.mxu0 %v650
    %v849 = vpop.f32.mrf.mxu0
    %v850 = vadd.f32 %v807, %v849
    %v851 = vpop.f32.mrf.mxu0
    %v852 = vadd.f32 %v809, %v851
    %853 = vmatmul.bf16.gmra.mxu0 %v654
    %v854 = vpop.f32.mrf.mxu0
    %v855 = vadd.f32 %v812, %v854
    %v856 = vpop.f32.mrf.mxu0
    %v857 = vadd.f32 %v814, %v856
    %858 = vmatmul.bf16.gmra.mxu0 %v658
    %v859 = vpop.f32.mrf.mxu0
    %v860 = vadd.f32 %v817, %v859
    %v861 = vpop.f32.mrf.mxu0
    %862 = vdwg.mxu0
    %v863 = vld [vmem:[#allocation6] sm:$0x7]
    %v864 = vpack.c.bf16 %v832, %v830
    %v865 = vpack.c.bf16 %v837, %v835
    %v866 = vpack.c.bf16 %v842, %v840
    %v867 = vpack.c.bf16 %v847, %v845
    %v868 = vpack.c.bf16 %v852, %v850
    %v869 = vpack.c.bf16 %v857, %v855
    %v870 = vpack.c.bf16 %v860, %v860
    %vm871 = vcmp.eq.s32.totalorder %v475, 1
    %vm872 = vcmp.eq.s32.totalorder %v476, 1
    %vm873 = vcmp.eq.s32.totalorder %v477, 1
    %vm874 = vcmp.eq.s32.totalorder %v478, 1
    %vm875 = vcmp.eq.s32.totalorder %v479, 1
    %vm876 = vcmp.eq.s32.totalorder %v480, 1
    %vm877 = vcmp.eq.s32.totalorder %v481, 1
    %vm878 = vcmp.eq.s32.totalorder %v482, 1
    %vm879 = vcmp.eq.s32.totalorder %v483, 1
    %vm880 = vcmp.eq.s32.totalorder %v484, 1
    %vm881 = vcmp.eq.s32.totalorder %v485, 1
    %vm882 = vcmp.eq.s32.totalorder %v486, 1
    %vm883 = vcmp.eq.s32.totalorder %v487, 1
    %vm884 = vcmp.eq.s32.totalorder %v488, 1
    %vm885 = vcmp.eq.s32.totalorder %v489, 1
    %vm886 = vcmp.eq.s32.totalorder %v490, 1
    %vm887 = vcmp.eq.s32.totalorder %v491, 1
    %vm888 = vcmp.eq.s32.totalorder %v492, 1
    %vm889 = vcmp.eq.s32.totalorder %v493, 1
    %vm890 = vcmp.eq.s32.totalorder %v494, 1
    %vm891 = vcmp.eq.s32.totalorder %v495, 1
    %vm892 = vcmp.eq.s32.totalorder %v496, 1
    %vm893 = vcmp.eq.s32.totalorder %v497, 1
    %vm894 = vcmp.eq.s32.totalorder %v498, 1
    %vm895 = vcmp.eq.s32.totalorder %v499, 1
    %vm896 = vcmp.eq.s32.totalorder %v500, 1
    %vm897 = vcmp.eq.s32.totalorder %v501, 1
    %vm898 = vcmp.eq.s32.totalorder %v502, 1
    %vm899 = vcmp.eq.s32.totalorder %v503, 1
    %vm900 = vcmp.eq.s32.totalorder %v504, 1
    %vm901 = vcmp.eq.s32.totalorder %v505, 1
    %vm902 = vcmp.eq.s32.totalorder %v506, 1
    %vm903 = vcmp.eq.s32.totalorder %v507, 1
    %vm904 = vcmp.eq.s32.totalorder %v508, 1
    %vm905 = vcmp.eq.s32.totalorder %v509, 1
    %vm906 = vcmp.eq.s32.totalorder %v510, 1
    %vm907 = vcmp.eq.s32.totalorder %v511, 1
    %vm908 = vcmp.eq.s32.totalorder %v512, 1
    %vm909 = vcmp.eq.s32.totalorder %v513, 1
    %vm910 = vcmp.eq.s32.totalorder %v514, 1
    %vm911 = vcmp.eq.s32.totalorder %v515, 1
    %vm912 = vcmp.eq.s32.totalorder %v516, 1
    %vm913 = vcmp.eq.s32.totalorder %v517, 1
    %vm914 = vcmp.eq.s32.totalorder %v518, 1
    %vm915 = vcmp.eq.s32.totalorder %v519, 1
    %vm916 = vcmp.eq.s32.totalorder %v520, 1
    %vm917 = vcmp.eq.s32.totalorder %v521, 1
    %vm918 = vcmp.eq.s32.totalorder %v522, 1
    %vm919 = vcmp.eq.s32.totalorder %v523, 1
    %vm920 = vcmp.eq.s32.totalorder %v524, 1
    %vm921 = vcmp.eq.s32.totalorder %v525, 1
    %vm922 = vcmp.eq.s32.totalorder %v526, 1
    %v923 = vsel %vm871, 1.0, 0.0
    %v924 = vsel %vm872, 1.0, 0.0
    %v925 = vsel %vm873, 1.0, 0.0
    %v926 = vsel %vm874, 1.0, 0.0
    %v927 = vsel %vm875, 1.0, 0.0
    %v928 = vsel %vm876, 1.0, 0.0
    %v929 = vsel %vm877, 1.0, 0.0
    %v930 = vsel %vm878, 1.0, 0.0
    %v931 = vsel %vm879, 1.0, 0.0
    %v932 = vsel %vm880, 1.0, 0.0
    %v933 = vsel %vm881, 1.0, 0.0
    %v934 = vsel %vm882, 1.0, 0.0
    %v935 = vsel %vm883, 1.0, 0.0
    %v936 = vsel %vm884, 1.0, 0.0
    %v937 = vsel %vm885, 1.0, 0.0
    %v938 = vsel %vm886, 1.0, 0.0
    %v939 = vsel %vm887, 1.0, 0.0
    %v940 = vsel %vm888, 1.0, 0.0
    %v941 = vsel %vm889, 1.0, 0.0
    %v942 = vsel %vm890, 1.0, 0.0
    %v943 = vsel %vm891, 1.0, 0.0
    %v944 = vsel %vm892, 1.0, 0.0
    %v945 = vsel %vm893, 1.0, 0.0
    %v946 = vsel %vm894, 1.0, 0.0
    %v947 = vsel %vm895, 1.0, 0.0
    %v948 = vsel %vm896, 1.0, 0.0
    %v949 = vsel %vm897, 1.0, 0.0
    %v950 = vsel %vm898, 1.0, 0.0
    %v951 = vsel %vm899, 1.0, 0.0
    %v952 = vsel %vm900, 1.0, 0.0
    %v953 = vsel %vm901, 1.0, 0.0
    %v954 = vsel %vm902, 1.0, 0.0
    %v955 = vsel %vm903, 1.0, 0.0
    %v956 = vsel %vm904, 1.0, 0.0
    %v957 = vsel %vm905, 1.0, 0.0
    %v958 = vsel %vm906, 1.0, 0.0
    %v959 = vsel %vm907, 1.0, 0.0
    %v960 = vsel %vm908, 1.0, 0.0
    %v961 = vsel %vm909, 1.0, 0.0
    %v962 = vsel %vm910, 1.0, 0.0
    %v963 = vsel %vm911, 1.0, 0.0
    %v964 = vsel %vm912, 1.0, 0.0
    %v965 = vsel %vm913, 1.0, 0.0
    %v966 = vsel %vm914, 1.0, 0.0
    %v967 = vsel %vm915, 1.0, 0.0
    %v968 = vsel %vm916, 1.0, 0.0
    %v969 = vsel %vm917, 1.0, 0.0
    %v970 = vsel %vm918, 1.0, 0.0
    %v971 = vsel %vm919, 1.0, 0.0
    %v972 = vsel %vm920, 1.0, 0.0
    %v973 = vsel %vm921, 1.0, 0.0
    %v974 = vsel %vm922, 1.0, 0.0
    %v975 = vpack.c.bf16 %v927, %v923
    %v976 = vpack.c.bf16 %v928, %v924
    %v977 = vpack.c.bf16 %v929, %v925
    %v978 = vpack.c.bf16 %v930, %v926
    %v979 = vpack.c.bf16 %v935, %v931
    %v980 = vpack.c.bf16 %v936, %v932
    %v981 = vpack.c.bf16 %v937, %v933
    %v982 = vpack.c.bf16 %v938, %v934
    %v983 = vpack.c.bf16 %v943, %v939
    %v984 = vpack.c.bf16 %v944, %v940
    %v985 = vpack.c.bf16 %v945, %v941
    %v986 = vpack.c.bf16 %v946, %v942
    %v987 = vpack.c.bf16 %v951, %v947
    %v988 = vpack.c.bf16 %v952, %v948
    %v989 = vpack.c.bf16 %v953, %v949
    %v990 = vpack.c.bf16 %v954, %v950
    %v991 = vpack.c.bf16 %v959, %v955
    %v992 = vpack.c.bf16 %v960, %v956
    %v993 = vpack.c.bf16 %v961, %v957
    %v994 = vpack.c.bf16 %v962, %v958
    %v995 = vpack.c.bf16 %v967, %v963
    %v996 = vpack.c.bf16 %v968, %v964
    %v997 = vpack.c.bf16 %v969, %v965
    %v998 = vpack.c.bf16 %v970, %v966
    %v999 = vpack.c.bf16 %v971, %v971
    %v1000 = vpack.c.bf16 %v972, %v972
    %v1001 = vpack.c.bf16 %v973, %v973
    %v1002 = vpack.c.bf16 %v974, %v974
    %1003 = vmatpush.bf16.msra.mxu0 %v666
    %1004 = vmatpush.bf16.msra.mxu0 %v665
    %1005 = vmatpush.bf16.msra.mxu0 %v664
    %1006 = vmatpush.bf16.msra.mxu0 %v663
    %1007 = vmatpush.bf16.msra.mxu0 %v662
    %1008 = vmatpush.bf16.msra.mxu0 %v661
    %1009 = vmatpush.bf16.msra.mxu0 %v660
    %1010 = vmatpush.bf16.msra.mxu0 %v659
    %1011 = vmatmul.bf16.gmra.mxu0 %v975
    %v1012 = vpop.f32.mrf.mxu0
    %v1013 = vadd.f32 0.0, %v1012
    %v1014 = vpop.f32.mrf.mxu0
    %v1015 = vadd.f32 0.0, %v1014
    %1016 = vmatmul.bf16.gmra.mxu0 %v979
    %v1017 = vpop.f32.mrf.mxu0
    %v1018 = vadd.f32 0.0, %v1017
    %v1019 = vpop.f32.mrf.mxu0
    %v1020 = vadd.f32 0.0, %v1019
    %1021 = vmatmul.bf16.gmra.mxu0 %v983
    %v1022 = vpop.f32.mrf.mxu0
    %v1023 = vadd.f32 0.0, %v1022
    %v1024 = vpop.f32.mrf.mxu0
    %v1025 = vadd.f32 0.0, %v1024
    %1026 = vmatmul.bf16.gmra.mxu0 %v987
    %v1027 = vpop.f32.mrf.mxu0
    %v1028 = vadd.f32 0.0, %v1027
    %v1029 = vpop.f32.mrf.mxu0
    %v1030 = vadd.f32 0.0, %v1029
    %1031 = vmatmul.bf16.gmra.mxu0 %v991
    %v1032 = vpop.f32.mrf.mxu0
    %v1033 = vadd.f32 0.0, %v1032
    %v1034 = vpop.f32.mrf.mxu0
    %v1035 = vadd.f32 0.0, %v1034
    %1036 = vmatmul.bf16.gmra.mxu0 %v995
    %v1037 = vpop.f32.mrf.mxu0
    %v1038 = vadd.f32 0.0, %v1037
    %v1039 = vpop.f32.mrf.mxu0
    %v1040 = vadd.f32 0.0, %v1039
    %1041 = vmatmul.bf16.gmra.mxu0 %v999
    %v1042 = vpop.f32.mrf.mxu0
    %v1043 = vadd.f32 0.0, %v1042
    %v1044 = vpop.f32.mrf.mxu0
    %1045 = vdwg.mxu0
    %1046 = vmatpush.bf16.msra.mxu0 %v674
    %1047 = vmatpush.bf16.msra.mxu0 %v673
    %1048 = vmatpush.bf16.msra.mxu0 %v672
    %1049 = vmatpush.bf16.msra.mxu0 %v671
    %1050 = vmatpush.bf16.msra.mxu0 %v670
    %1051 = vmatpush.bf16.msra.mxu0 %v669
    %1052 = vmatpush.bf16.msra.mxu0 %v668
    %1053 = vmatpush.bf16.msra.mxu0 %v667
    %1054 = vmatmul.bf16.gmra.mxu0 %v976
    %v1055 = vpop.f32.mrf.mxu0
    %v1056 = vadd.f32 %v1013, %v1055
    %v1057 = vpop.f32.mrf.mxu0
    %v1058 = vadd.f32 %v1015, %v1057
    %1059 = vmatmul.bf16.gmra.mxu0 %v980
    %v1060 = vpop.f32.mrf.mxu0
    %v1061 = vadd.f32 %v1018, %v1060
    %v1062 = vpop.f32.mrf.mxu0
    %v1063 = vadd.f32 %v1020, %v1062
    %1064 = vmatmul.bf16.gmra.mxu0 %v984
    %v1065 = vpop.f32.mrf.mxu0
    %v1066 = vadd.f32 %v1023, %v1065
    %v1067 = vpop.f32.mrf.mxu0
    %v1068 = vadd.f32 %v1025, %v1067
    %1069 = vmatmul.bf16.gmra.mxu0 %v988
    %v1070 = vpop.f32.mrf.mxu0
    %v1071 = vadd.f32 %v1028, %v1070
    %v1072 = vpop.f32.mrf.mxu0
    %v1073 = vadd.f32 %v1030, %v1072
    %1074 = vmatmul.bf16.gmra.mxu0 %v992
    %v1075 = vpop.f32.mrf.mxu0
    %v1076 = vadd.f32 %v1033, %v1075
    %v1077 = vpop.f32.mrf.mxu0
    %v1078 = vadd.f32 %v1035, %v1077
    %1079 = vmatmul.bf16.gmra.mxu0 %v996
    %v1080 = vpop.f32.mrf.mxu0
    %v1081 = vadd.f32 %v1038, %v1080
    %v1082 = vpop.f32.mrf.mxu0
    %v1083 = vadd.f32 %v1040, %v1082
    %1084 = vmatmul.bf16.gmra.mxu0 %v1000
    %v1085 = vpop.f32.mrf.mxu0
    %v1086 = vadd.f32 %v1043, %v1085
    %v1087 = vpop.f32.mrf.mxu0
    %1088 = vdwg.mxu0
    %1089 = vmatpush.bf16.msra.mxu0 %v682
    %1090 = vmatpush.bf16.msra.mxu0 %v681
    %1091 = vmatpush.bf16.msra.mxu0 %v680
    %1092 = vmatpush.bf16.msra.mxu0 %v679
    %1093 = vmatpush.bf16.msra.mxu0 %v678
    %1094 = vmatpush.bf16.msra.mxu0 %v677
    %1095 = vmatpush.bf16.msra.mxu0 %v676
    %1096 = vmatpush.bf16.msra.mxu0 %v675
    %1097 = vmatmul.bf16.gmra.mxu0 %v977
    %v1098 = vpop.f32.mrf.mxu0
    %v1099 = vadd.f32 %v1056, %v1098
    %v1100 = vpop.f32.mrf.mxu0
    %v1101 = vadd.f32 %v1058, %v1100
    %1102 = vmatmul.bf16.gmra.mxu0 %v981
    %v1103 = vpop.f32.mrf.mxu0
    %v1104 = vadd.f32 %v1061, %v1103
    %v1105 = vpop.f32.mrf.mxu0
    %v1106 = vadd.f32 %v1063, %v1105
    %1107 = vmatmul.bf16.gmra.mxu0 %v985
    %v1108 = vpop.f32.mrf.mxu0
    %v1109 = vadd.f32 %v1066, %v1108
    %v1110 = vpop.f32.mrf.mxu0
    %v1111 = vadd.f32 %v1068, %v1110
    %1112 = vmatmul.bf16.gmra.mxu0 %v989
    %v1113 = vpop.f32.mrf.mxu0
    %v1114 = vadd.f32 %v1071, %v1113
    %v1115 = vpop.f32.mrf.mxu0
    %v1116 = vadd.f32 %v1073, %v1115
    %1117 = vmatmul.bf16.gmra.mxu0 %v993
    %v1118 = vpop.f32.mrf.mxu0
    %v1119 = vadd.f32 %v1076, %v1118
    %v1120 = vpop.f32.mrf.mxu0
    %v1121 = vadd.f32 %v1078, %v1120
    %1122 = vmatmul.bf16.gmra.mxu0 %v997
    %v1123 = vpop.f32.mrf.mxu0
    %v1124 = vadd.f32 %v1081, %v1123
    %v1125 = vpop.f32.mrf.mxu0
    %v1126 = vadd.f32 %v1083, %v1125
    %1127 = vmatmul.bf16.gmra.mxu0 %v1001
    %v1128 = vpop.f32.mrf.mxu0
    %v1129 = vadd.f32 %v1086, %v1128
    %v1130 = vpop.f32.mrf.mxu0
    %1131 = vdwg.mxu0
    %1132 = vmatpush.bf16.msra.mxu0 %v690
    %1133 = vmatpush.bf16.msra.mxu0 %v689
    %1134 = vmatpush.bf16.msra.mxu0 %v688
    %1135 = vmatpush.bf16.msra.mxu0 %v687
    %1136 = vmatpush.bf16.msra.mxu0 %v686
    %1137 = vmatpush.bf16.msra.mxu0 %v685
    %1138 = vmatpush.bf16.msra.mxu0 %v684
    %1139 = vmatpush.bf16.msra.mxu0 %v683
    %1140 = vmatmul.bf16.gmra.mxu0 %v978
    %v1141 = vpop.f32.mrf.mxu0
    %v1142 = vadd.f32 %v1099, %v1141
    %v1143 = vpop.f32.mrf.mxu0
    %v1144 = vadd.f32 %v1101, %v1143
    %1145 = vmatmul.bf16.gmra.mxu0 %v982
    %v1146 = vpop.f32.mrf.mxu0
    %v1147 = vadd.f32 %v1104, %v1146
    %v1148 = vpop.f32.mrf.mxu0
    %v1149 = vadd.f32 %v1106, %v1148
    %1150 = vmatmul.bf16.gmra.mxu0 %v986
    %v1151 = vpop.f32.mrf.mxu0
    %v1152 = vadd.f32 %v1109, %v1151
    %v1153 = vpop.f32.mrf.mxu0
    %v1154 = vadd.f32 %v1111, %v1153
    %1155 = vmatmul.bf16.gmra.mxu0 %v990
    %v1156 = vpop.f32.mrf.mxu0
    %v1157 = vadd.f32 %v1114, %v1156
    %v1158 = vpop.f32.mrf.mxu0
    %v1159 = vadd.f32 %v1116, %v1158
    %1160 = vmatmul.bf16.gmra.mxu0 %v994
    %v1161 = vpop.f32.mrf.mxu0
    %v1162 = vadd.f32 %v1119, %v1161
    %v1163 = vpop.f32.mrf.mxu0
    %v1164 = vadd.f32 %v1121, %v1163
    %1165 = vmatmul.bf16.gmra.mxu0 %v998
    %v1166 = vpop.f32.mrf.mxu0
    %v1167 = vadd.f32 %v1124, %v1166
    %v1168 = vpop.f32.mrf.mxu0
    %v1169 = vadd.f32 %v1126, %v1168
    %1170 = vmatmul.bf16.gmra.mxu0 %v1002
    %v1171 = vpop.f32.mrf.mxu0
    %v1172 = vadd.f32 %v1129, %v1171
    %v1173 = vpop.f32.mrf.mxu0
    %1174 = vdwg.mxu0
    %s1175 = scalar_lea.vmem [#allocation6], 4
    %v1176 = vld [vmem:[%s1175] sm:$0x7]
    %v1177 = vpack.c.bf16 %v1144, %v1142
    %v1178 = vpack.c.bf16 %v1149, %v1147
    %v1179 = vpack.c.bf16 %v1154, %v1152
    %v1180 = vpack.c.bf16 %v1159, %v1157
    %v1181 = vpack.c.bf16 %v1164, %v1162
    %v1182 = vpack.c.bf16 %v1169, %v1167
    %v1183 = vpack.c.bf16 %v1172, %v1172
    %vm1184 = vcmask 48128
    %v1186 = vsel %vm1184, %v1177, 0
    %v1189 = vsel %vm1184, %v1178, 0
    %v1192 = vsel %vm1184, %v1179, 0
    %v1195 = vsel %vm1184, %v1180, 0
    %v1198 = vsel %vm1184, %v1181, 0
    %v1201 = vsel %vm1184, %v1182, 0
    %v1204 = vsel %vm1184, %v1183, 0
    %vm1206 = vcmask 1042432
    %v1208 = vsel %vm1206, %v1176, 0
    %1210 = vmatpush.bf16.msra.mxu0 0
    %1211 = vmatpush.bf16.msra.mxu0 0
    %1212 = vmatpush.bf16.msra.mxu0 0
    %1213 = vmatpush.bf16.msra.mxu0 0
    %1214 = vmatpush.bf16.msra.mxu0 0
    %1215 = vmatpush.bf16.msra.mxu0 0
    %1216 = vmatpush.bf16.msra.mxu0 0
    %1217 = vmatpush.bf16.msra.mxu0 %v1208
    %1218 = vmatmul.bf16.gmra.mxu0 %v1186
    %v1219 = vpop.f32.mrf.mxu0
    %v1220 = vadd.f32 0.0, %v1219
    %v1221 = vpop.f32.mrf.mxu0
    %v1222 = vadd.f32 0.0, %v1221
    %1223 = vmatmul.bf16.gmra.mxu0 %v1189
    %v1224 = vpop.f32.mrf.mxu0
    %v1225 = vadd.f32 0.0, %v1224
    %v1226 = vpop.f32.mrf.mxu0
    %v1227 = vadd.f32 0.0, %v1226
    %1228 = vmatmul.bf16.gmra.mxu0 %v1192
    %v1229 = vpop.f32.mrf.mxu0
    %v1230 = vadd.f32 0.0, %v1229
    %v1231 = vpop.f32.mrf.mxu0
    %v1232 = vadd.f32 0.0, %v1231
    %1233 = vmatmul.bf16.gmra.mxu0 %v1195
    %v1234 = vpop.f32.mrf.mxu0
    %v1235 = vadd.f32 0.0, %v1234
    %v1236 = vpop.f32.mrf.mxu0
    %v1237 = vadd.f32 0.0, %v1236
    %1238 = vmatmul.bf16.gmra.mxu0 %v1198
    %v1239 = vpop.f32.mrf.mxu0
    %v1240 = vadd.f32 0.0, %v1239
    %v1241 = vpop.f32.mrf.mxu0
    %v1242 = vadd.f32 0.0, %v1241
    %1243 = vmatmul.bf16.gmra.mxu0 %v1201
    %v1244 = vpop.f32.mrf.mxu0
    %v1245 = vadd.f32 0.0, %v1244
    %v1246 = vpop.f32.mrf.mxu0
    %v1247 = vadd.f32 0.0, %v1246
    %1248 = vmatmul.bf16.gmra.mxu0 %v1204
    %v1249 = vpop.f32.mrf.mxu0
    %v1250 = vadd.f32 0.0, %v1249
    %v1251 = vpop.f32.mrf.mxu0
    %1252 = vdwg.mxu0
    %v1254 = vsel %vm1184, %v864, 0
    %v1257 = vsel %vm1184, %v865, 0
    %v1260 = vsel %vm1184, %v866, 0
    %v1263 = vsel %vm1184, %v867, 0
    %v1266 = vsel %vm1184, %v868, 0
    %v1269 = vsel %vm1184, %v869, 0
    %v1272 = vsel %vm1184, %v870, 0
    %v1275 = vsel %vm1206, %v863, 0
    %1277 = vmatpush.bf16.msra.mxu0 0
    %1278 = vmatpush.bf16.msra.mxu0 0
    %1279 = vmatpush.bf16.msra.mxu0 0
    %1280 = vmatpush.bf16.msra.mxu0 0
    %1281 = vmatpush.bf16.msra.mxu0 0
    %1282 = vmatpush.bf16.msra.mxu0 0
    %1283 = vmatpush.bf16.msra.mxu0 0
    %1284 = vmatpush.bf16.msra.mxu0 %v1275
    %1285 = vmatmul.bf16.gmra.mxu0 %v1254
    %v1286 = vpop.f32.mrf.mxu0
    %v1287 = vadd.f32 %v1220, %v1286
    %v1288 = vpop.f32.mrf.mxu0
    %v1289 = vadd.f32 %v1222, %v1288
    %1290 = vmatmul.bf16.gmra.mxu0 %v1257
    %v1291 = vpop.f32.mrf.mxu0
    %v1292 = vadd.f32 %v1225, %v1291
    %v1293 = vpop.f32.mrf.mxu0
    %v1294 = vadd.f32 %v1227, %v1293
    %1295 = vmatmul.bf16.gmra.mxu0 %v1260
    %v1296 = vpop.f32.mrf.mxu0
    %v1297 = vadd.f32 %v1230, %v1296
    %v1298 = vpop.f32.mrf.mxu0
    %v1299 = vadd.f32 %v1232, %v1298
    %1300 = vmatmul.bf16.gmra.mxu0 %v1263
    %v1301 = vpop.f32.mrf.mxu0
    %v1302 = vadd.f32 %v1235, %v1301
    %v1303 = vpop.f32.mrf.mxu0
    %v1304 = vadd.f32 %v1237, %v1303
    %1305 = vmatmul.bf16.gmra.mxu0 %v1266
    %v1306 = vpop.f32.mrf.mxu0
    %v1307 = vadd.f32 %v1240, %v1306
    %v1308 = vpop.f32.mrf.mxu0
    %v1309 = vadd.f32 %v1242, %v1308
    %1310 = vmatmul.bf16.gmra.mxu0 %v1269
    %v1311 = vpop.f32.mrf.mxu0
    %v1312 = vadd.f32 %v1245, %v1311
    %v1313 = vpop.f32.mrf.mxu0
    %v1314 = vadd.f32 %v1247, %v1313
    %1315 = vmatmul.bf16.gmra.mxu0 %v1272
    %v1316 = vpop.f32.mrf.mxu0
    %v1317 = vadd.f32 %v1250, %v1316
    %v1318 = vpop.f32.mrf.mxu0
    %1319 = vdwg.mxu0
    %vm1320 = vcmp.eq.s32.totalorder %v475, 2
    %vm1321 = vcmp.eq.s32.totalorder %v476, 2
    %vm1322 = vcmp.eq.s32.totalorder %v477, 2
    %vm1323 = vcmp.eq.s32.totalorder %v478, 2
    %vm1324 = vcmp.eq.s32.totalorder %v479, 2
    %vm1325 = vcmp.eq.s32.totalorder %v480, 2
    %vm1326 = vcmp.eq.s32.totalorder %v481, 2
    %vm1327 = vcmp.eq.s32.totalorder %v482, 2
    %vm1328 = vcmp.eq.s32.totalorder %v483, 2
    %vm1329 = vcmp.eq.s32.totalorder %v484, 2
    %vm1330 = vcmp.eq.s32.totalorder %v485, 2
    %vm1331 = vcmp.eq.s32.totalorder %v486, 2
    %vm1332 = vcmp.eq.s32.totalorder %v487, 2
    %vm1333 = vcmp.eq.s32.totalorder %v488, 2
    %vm1334 = vcmp.eq.s32.totalorder %v489, 2
    %vm1335 = vcmp.eq.s32.totalorder %v490, 2
    %vm1336 = vcmp.eq.s32.totalorder %v491, 2
    %vm1337 = vcmp.eq.s32.totalorder %v492, 2
    %vm1338 = vcmp.eq.s32.totalorder %v493, 2
    %vm1339 = vcmp.eq.s32.totalorder %v494, 2
    %vm1340 = vcmp.eq.s32.totalorder %v495, 2
    %vm1341 = vcmp.eq.s32.totalorder %v496, 2
    %vm1342 = vcmp.eq.s32.totalorder %v497, 2
    %vm1343 = vcmp.eq.s32.totalorder %v498, 2
    %vm1344 = vcmp.eq.s32.totalorder %v499, 2
    %vm1345 = vcmp.eq.s32.totalorder %v500, 2
    %vm1346 = vcmp.eq.s32.totalorder %v501, 2
    %vm1347 = vcmp.eq.s32.totalorder %v502, 2
    %vm1348 = vcmp.eq.s32.totalorder %v503, 2
    %vm1349 = vcmp.eq.s32.totalorder %v504, 2
    %vm1350 = vcmp.eq.s32.totalorder %v505, 2
    %vm1351 = vcmp.eq.s32.totalorder %v506, 2
    %vm1352 = vcmp.eq.s32.totalorder %v507, 2
    %vm1353 = vcmp.eq.s32.totalorder %v508, 2
    %vm1354 = vcmp.eq.s32.totalorder %v509, 2
    %vm1355 = vcmp.eq.s32.totalorder %v510, 2
    %vm1356 = vcmp.eq.s32.totalorder %v511, 2
    %vm1357 = vcmp.eq.s32.totalorder %v512, 2
    %vm1358 = vcmp.eq.s32.totalorder %v513, 2
    %vm1359 = vcmp.eq.s32.totalorder %v514, 2
    %vm1360 = vcmp.eq.s32.totalorder %v515, 2
    %vm1361 = vcmp.eq.s32.totalorder %v516, 2
    %vm1362 = vcmp.eq.s32.totalorder %v517, 2
    %vm1363 = vcmp.eq.s32.totalorder %v518, 2
    %vm1364 = vcmp.eq.s32.totalorder %v519, 2
    %vm1365 = vcmp.eq.s32.totalorder %v520, 2
    %vm1366 = vcmp.eq.s32.totalorder %v521, 2
    %vm1367 = vcmp.eq.s32.totalorder %v522, 2
    %vm1368 = vcmp.eq.s32.totalorder %v523, 2
    %vm1369 = vcmp.eq.s32.totalorder %v524, 2
    %vm1370 = vcmp.eq.s32.totalorder %v525, 2
    %vm1371 = vcmp.eq.s32.totalorder %v526, 2
    %v1372 = vsel %vm1320, 1.0, 0.0
    %v1373 = vsel %vm1321, 1.0, 0.0
    %v1374 = vsel %vm1322, 1.0, 0.0
    %v1375 = vsel %vm1323, 1.0, 0.0
    %v1376 = vsel %vm1324, 1.0, 0.0
    %v1377 = vsel %vm1325, 1.0, 0.0
    %v1378 = vsel %vm1326, 1.0, 0.0
    %v1379 = vsel %vm1327, 1.0, 0.0
    %v1380 = vsel %vm1328, 1.0, 0.0
    %v1381 = vsel %vm1329, 1.0, 0.0
    %v1382 = vsel %vm1330, 1.0, 0.0
    %v1383 = vsel %vm1331, 1.0, 0.0
    %v1384 = vsel %vm1332, 1.0, 0.0
    %v1385 = vsel %vm1333, 1.0, 0.0
    %v1386 = vsel %vm1334, 1.0, 0.0
    %v1387 = vsel %vm1335, 1.0, 0.0
    %v1388 = vsel %vm1336, 1.0, 0.0
    %v1389 = vsel %vm1337, 1.0, 0.0
    %v1390 = vsel %vm1338, 1.0, 0.0
    %v1391 = vsel %vm1339, 1.0, 0.0
    %v1392 = vsel %vm1340, 1.0, 0.0
    %v1393 = vsel %vm1341, 1.0, 0.0
    %v1394 = vsel %vm1342, 1.0, 0.0
    %v1395 = vsel %vm1343, 1.0, 0.0
    %v1396 = vsel %vm1344, 1.0, 0.0
    %v1397 = vsel %vm1345, 1.0, 0.0
    %v1398 = vsel %vm1346, 1.0, 0.0
    %v1399 = vsel %vm1347, 1.0, 0.0
    %v1400 = vsel %vm1348, 1.0, 0.0
    %v1401 = vsel %vm1349, 1.0, 0.0
    %v1402 = vsel %vm1350, 1.0, 0.0
    %v1403 = vsel %vm1351, 1.0, 0.0
    %v1404 = vsel %vm1352, 1.0, 0.0
    %v1405 = vsel %vm1353, 1.0, 0.0
    %v1406 = vsel %vm1354, 1.0, 0.0
    %v1407 = vsel %vm1355, 1.0, 0.0
    %v1408 = vsel %vm1356, 1.0, 0.0
    %v1409 = vsel %vm1357, 1.0, 0.0
    %v1410 = vsel %vm1358, 1.0, 0.0
    %v1411 = vsel %vm1359, 1.0, 0.0
    %v1412 = vsel %vm1360, 1.0, 0.0
    %v1413 = vsel %vm1361, 1.0, 0.0
    %v1414 = vsel %vm1362, 1.0, 0.0
    %v1415 = vsel %vm1363, 1.0, 0.0
    %v1416 = vsel %vm1364, 1.0, 0.0
    %v1417 = vsel %vm1365, 1.0, 0.0
    %v1418 = vsel %vm1366, 1.0, 0.0
    %v1419 = vsel %vm1367, 1.0, 0.0
    %v1420 = vsel %vm1368, 1.0, 0.0
    %v1421 = vsel %vm1369, 1.0, 0.0
    %v1422 = vsel %vm1370, 1.0, 0.0
    %v1423 = vsel %vm1371, 1.0, 0.0
    %v1424 = vpack.c.bf16 %v1376, %v1372
    %v1425 = vpack.c.bf16 %v1377, %v1373
    %v1426 = vpack.c.bf16 %v1378, %v1374
    %v1427 = vpack.c.bf16 %v1379, %v1375
    %v1428 = vpack.c.bf16 %v1384, %v1380
    %v1429 = vpack.c.bf16 %v1385, %v1381
    %v1430 = vpack.c.bf16 %v1386, %v1382
    %v1431 = vpack.c.bf16 %v1387, %v1383
    %v1432 = vpack.c.bf16 %v1392, %v1388
    %v1433 = vpack.c.bf16 %v1393, %v1389
    %v1434 = vpack.c.bf16 %v1394, %v1390
    %v1435 = vpack.c.bf16 %v1395, %v1391
    %v1436 = vpack.c.bf16 %v1400, %v1396
    %v1437 = vpack.c.bf16 %v1401, %v1397
    %v1438 = vpack.c.bf16 %v1402, %v1398
    %v1439 = vpack.c.bf16 %v1403, %v1399
    %v1440 = vpack.c.bf16 %v1408, %v1404
    %v1441 = vpack.c.bf16 %v1409, %v1405
    %v1442 = vpack.c.bf16 %v1410, %v1406
    %v1443 = vpack.c.bf16 %v1411, %v1407
    %v1444 = vpack.c.bf16 %v1416, %v1412
    %v1445 = vpack.c.bf16 %v1417, %v1413
    %v1446 = vpack.c.bf16 %v1418, %v1414
    %v1447 = vpack.c.bf16 %v1419, %v1415
    %v1448 = vpack.c.bf16 %v1420, %v1420
    %v1449 = vpack.c.bf16 %v1421, %v1421
    %v1450 = vpack.c.bf16 %v1422, %v1422
    %v1451 = vpack.c.bf16 %v1423, %v1423
    %1452 = vmatpush.bf16.msra.mxu0 %v666
    %1453 = vmatpush.bf16.msra.mxu0 %v665
    %1454 = vmatpush.bf16.msra.mxu0 %v664
    %1455 = vmatpush.bf16.msra.mxu0 %v663
    %1456 = vmatpush.bf16.msra.mxu0 %v662
    %1457 = vmatpush.bf16.msra.mxu0 %v661
    %1458 = vmatpush.bf16.msra.mxu0 %v660
    %1459 = vmatpush.bf16.msra.mxu0 %v659
    %1460 = vmatmul.bf16.gmra.mxu0 %v1424
    %v1461 = vpop.f32.mrf.mxu0
    %v1462 = vadd.f32 0.0, %v1461
    %v1463 = vpop.f32.mrf.mxu0
    %v1464 = vadd.f32 0.0, %v1463
    %1465 = vmatmul.bf16.gmra.mxu0 %v1428
    %v1466 = vpop.f32.mrf.mxu0
    %v1467 = vadd.f32 0.0, %v1466
    %v1468 = vpop.f32.mrf.mxu0
    %v1469 = vadd.f32 0.0, %v1468
    %1470 = vmatmul.bf16.gmra.mxu0 %v1432
    %v1471 = vpop.f32.mrf.mxu0
    %v1472 = vadd.f32 0.0, %v1471
    %v1473 = vpop.f32.mrf.mxu0
    %v1474 = vadd.f32 0.0, %v1473
    %1475 = vmatmul.bf16.gmra.mxu0 %v1436
    %v1476 = vpop.f32.mrf.mxu0
    %v1477 = vadd.f32 0.0, %v1476
    %v1478 = vpop.f32.mrf.mxu0
    %v1479 = vadd.f32 0.0, %v1478
    %1480 = vmatmul.bf16.gmra.mxu0 %v1440
    %v1481 = vpop.f32.mrf.mxu0
    %v1482 = vadd.f32 0.0, %v1481
    %v1483 = vpop.f32.mrf.mxu0
    %v1484 = vadd.f32 0.0, %v1483
    %1485 = vmatmul.bf16.gmra.mxu0 %v1444
    %v1486 = vpop.f32.mrf.mxu0
    %v1487 = vadd.f32 0.0, %v1486
    %v1488 = vpop.f32.mrf.mxu0
    %v1489 = vadd.f32 0.0, %v1488
    %1490 = vmatmul.bf16.gmra.mxu0 %v1448
    %v1491 = vpop.f32.mrf.mxu0
    %v1492 = vadd.f32 0.0, %v1491
    %v1493 = vpop.f32.mrf.mxu0
    %1494 = vdwg.mxu0
    %1495 = vmatpush.bf16.msra.mxu0 %v674
    %1496 = vmatpush.bf16.msra.mxu0 %v673
    %1497 = vmatpush.bf16.msra.mxu0 %v672
    %1498 = vmatpush.bf16.msra.mxu0 %v671
    %1499 = vmatpush.bf16.msra.mxu0 %v670
    %1500 = vmatpush.bf16.msra.mxu0 %v669
    %1501 = vmatpush.bf16.msra.mxu0 %v668
    %1502 = vmatpush.bf16.msra.mxu0 %v667
    %1503 = vmatmul.bf16.gmra.mxu0 %v1425
    %v1504 = vpop.f32.mrf.mxu0
    %v1505 = vadd.f32 %v1462, %v1504
    %v1506 = vpop.f32.mrf.mxu0
    %v1507 = vadd.f32 %v1464, %v1506
    %1508 = vmatmul.bf16.gmra.mxu0 %v1429
    %v1509 = vpop.f32.mrf.mxu0
    %v1510 = vadd.f32 %v1467, %v1509
    %v1511 = vpop.f32.mrf.mxu0
    %v1512 = vadd.f32 %v1469, %v1511
    %1513 = vmatmul.bf16.gmra.mxu0 %v1433
    %v1514 = vpop.f32.mrf.mxu0
    %v1515 = vadd.f32 %v1472, %v1514
    %v1516 = vpop.f32.mrf.mxu0
    %v1517 = vadd.f32 %v1474, %v1516
    %1518 = vmatmul.bf16.gmra.mxu0 %v1437
    %v1519 = vpop.f32.mrf.mxu0
    %v1520 = vadd.f32 %v1477, %v1519
    %v1521 = vpop.f32.mrf.mxu0
    %v1522 = vadd.f32 %v1479, %v1521
    %1523 = vmatmul.bf16.gmra.mxu0 %v1441
    %v1524 = vpop.f32.mrf.mxu0
    %v1525 = vadd.f32 %v1482, %v1524
    %v1526 = vpop.f32.mrf.mxu0
    %v1527 = vadd.f32 %v1484, %v1526
    %1528 = vmatmul.bf16.gmra.mxu0 %v1445
    %v1529 = vpop.f32.mrf.mxu0
    %v1530 = vadd.f32 %v1487, %v1529
    %v1531 = vpop.f32.mrf.mxu0
    %v1532 = vadd.f32 %v1489, %v1531
    %1533 = vmatmul.bf16.gmra.mxu0 %v1449
    %v1534 = vpop.f32.mrf.mxu0
    %v1535 = vadd.f32 %v1492, %v1534
    %v1536 = vpop.f32.mrf.mxu0
    %1537 = vdwg.mxu0
    %1538 = vmatpush.bf16.msra.mxu0 %v682
    %1539 = vmatpush.bf16.msra.mxu0 %v681
    %1540 = vmatpush.bf16.msra.mxu0 %v680
    %1541 = vmatpush.bf16.msra.mxu0 %v679
    %1542 = vmatpush.bf16.msra.mxu0 %v678
    %1543 = vmatpush.bf16.msra.mxu0 %v677
    %1544 = vmatpush.bf16.msra.mxu0 %v676
    %1545 = vmatpush.bf16.msra.mxu0 %v675
    %1546 = vmatmul.bf16.gmra.mxu0 %v1426
    %v1547 = vpop.f32.mrf.mxu0
    %v1548 = vadd.f32 %v1505, %v1547
    %v1549 = vpop.f32.mrf.mxu0
    %v1550 = vadd.f32 %v1507, %v1549
    %1551 = vmatmul.bf16.gmra.mxu0 %v1430
    %v1552 = vpop.f32.mrf.mxu0
    %v1553 = vadd.f32 %v1510, %v1552
    %v1554 = vpop.f32.mrf.mxu0
    %v1555 = vadd.f32 %v1512, %v1554
    %1556 = vmatmul.bf16.gmra.mxu0 %v1434
    %v1557 = vpop.f32.mrf.mxu0
    %v1558 = vadd.f32 %v1515, %v1557
    %v1559 = vpop.f32.mrf.mxu0
    %v1560 = vadd.f32 %v1517, %v1559
    %1561 = vmatmul.bf16.gmra.mxu0 %v1438
    %v1562 = vpop.f32.mrf.mxu0
    %v1563 = vadd.f32 %v1520, %v1562
    %v1564 = vpop.f32.mrf.mxu0
    %v1565 = vadd.f32 %v1522, %v1564
    %1566 = vmatmul.bf16.gmra.mxu0 %v1442
    %v1567 = vpop.f32.mrf.mxu0
    %v1568 = vadd.f32 %v1525, %v1567
    %v1569 = vpop.f32.mrf.mxu0
    %v1570 = vadd.f32 %v1527, %v1569
    %1571 = vmatmul.bf16.gmra.mxu0 %v1446
    %v1572 = vpop.f32.mrf.mxu0
    %v1573 = vadd.f32 %v1530, %v1572
    %v1574 = vpop.f32.mrf.mxu0
    %v1575 = vadd.f32 %v1532, %v1574
    %1576 = vmatmul.bf16.gmra.mxu0 %v1450
    %v1577 = vpop.f32.mrf.mxu0
    %v1578 = vadd.f32 %v1535, %v1577
    %v1579 = vpop.f32.mrf.mxu0
    %1580 = vdwg.mxu0
    %1581 = vmatpush.bf16.msra.mxu0 %v690
    %1582 = vmatpush.bf16.msra.mxu0 %v689
    %1583 = vmatpush.bf16.msra.mxu0 %v688
    %1584 = vmatpush.bf16.msra.mxu0 %v687
    %1585 = vmatpush.bf16.msra.mxu0 %v686
    %1586 = vmatpush.bf16.msra.mxu0 %v685
    %1587 = vmatpush.bf16.msra.mxu0 %v684
    %1588 = vmatpush.bf16.msra.mxu0 %v683
    %1589 = vmatmul.bf16.gmra.mxu0 %v1427
    %v1590 = vpop.f32.mrf.mxu0
    %v1591 = vadd.f32 %v1548, %v1590
    %v1592 = vpop.f32.mrf.mxu0
    %v1593 = vadd.f32 %v1550, %v1592
    %1594 = vmatmul.bf16.gmra.mxu0 %v1431
    %v1595 = vpop.f32.mrf.mxu0
    %v1596 = vadd.f32 %v1553, %v1595
    %v1597 = vpop.f32.mrf.mxu0
    %v1598 = vadd.f32 %v1555, %v1597
    %1599 = vmatmul.bf16.gmra.mxu0 %v1435
    %v1600 = vpop.f32.mrf.mxu0
    %v1601 = vadd.f32 %v1558, %v1600
    %v1602 = vpop.f32.mrf.mxu0
    %v1603 = vadd.f32 %v1560, %v1602
    %1604 = vmatmul.bf16.gmra.mxu0 %v1439
    %v1605 = vpop.f32.mrf.mxu0
    %v1606 = vadd.f32 %v1563, %v1605
    %v1607 = vpop.f32.mrf.mxu0
    %v1608 = vadd.f32 %v1565, %v1607
    %1609 = vmatmul.bf16.gmra.mxu0 %v1443
    %v1610 = vpop.f32.mrf.mxu0
    %v1611 = vadd.f32 %v1568, %v1610
    %v1612 = vpop.f32.mrf.mxu0
    %v1613 = vadd.f32 %v1570, %v1612
    %1614 = vmatmul.bf16.gmra.mxu0 %v1447
    %v1615 = vpop.f32.mrf.mxu0
    %v1616 = vadd.f32 %v1573, %v1615
    %v1617 = vpop.f32.mrf.mxu0
    %v1618 = vadd.f32 %v1575, %v1617
    %1619 = vmatmul.bf16.gmra.mxu0 %v1451
    %v1620 = vpop.f32.mrf.mxu0
    %v1621 = vadd.f32 %v1578, %v1620
    %v1622 = vpop.f32.mrf.mxu0
    %1623 = vdwg.mxu0
    %s1624 = scalar_lea.vmem [#allocation6], 8
    %v1625 = vld [vmem:[%s1624] sm:$0x7]
    %v1626 = vpack.c.bf16 %v1593, %v1591
    %v1627 = vpack.c.bf16 %v1598, %v1596
    %v1628 = vpack.c.bf16 %v1603, %v1601
    %v1629 = vpack.c.bf16 %v1608, %v1606
    %v1630 = vpack.c.bf16 %v1613, %v1611
    %v1631 = vpack.c.bf16 %v1618, %v1616
    %v1632 = vpack.c.bf16 %v1621, %v1621
    %v1634 = vsel %vm1184, %v1626, 0
    %v1637 = vsel %vm1184, %v1627, 0
    %v1640 = vsel %vm1184, %v1628, 0
    %v1643 = vsel %vm1184, %v1629, 0
    %v1646 = vsel %vm1184, %v1630, 0
    %v1649 = vsel %vm1184, %v1631, 0
    %v1652 = vsel %vm1184, %v1632, 0
    %v1655 = vsel %vm1206, %v1625, 0
    %1657 = vmatpush.bf16.msra.mxu0 0
    %1658 = vmatpush.bf16.msra.mxu0 0
    %1659 = vmatpush.bf16.msra.mxu0 0
    %1660 = vmatpush.bf16.msra.mxu0 0
    %1661 = vmatpush.bf16.msra.mxu0 0
    %1662 = vmatpush.bf16.msra.mxu0 0
    %1663 = vmatpush.bf16.msra.mxu0 0
    %1664 = vmatpush.bf16.msra.mxu0 %v1655
    %1665 = vmatmul.bf16.gmra.mxu0 %v1634
    %v1666 = vpop.f32.mrf.mxu0
    %v1667 = vadd.f32 0.0, %v1666
    %v1668 = vpop.f32.mrf.mxu0
    %v1669 = vadd.f32 0.0, %v1668
    %1670 = vmatmul.bf16.gmra.mxu0 %v1637
    %v1671 = vpop.f32.mrf.mxu0
    %v1672 = vadd.f32 0.0, %v1671
    %v1673 = vpop.f32.mrf.mxu0
    %v1674 = vadd.f32 0.0, %v1673
    %1675 = vmatmul.bf16.gmra.mxu0 %v1640
    %v1676 = vpop.f32.mrf.mxu0
    %v1677 = vadd.f32 0.0, %v1676
    %v1678 = vpop.f32.mrf.mxu0
    %v1679 = vadd.f32 0.0, %v1678
    %1680 = vmatmul.bf16.gmra.mxu0 %v1643
    %v1681 = vpop.f32.mrf.mxu0
    %v1682 = vadd.f32 0.0, %v1681
    %v1683 = vpop.f32.mrf.mxu0
    %v1684 = vadd.f32 0.0, %v1683
    %1685 = vmatmul.bf16.gmra.mxu0 %v1646
    %v1686 = vpop.f32.mrf.mxu0
    %v1687 = vadd.f32 0.0, %v1686
    %v1688 = vpop.f32.mrf.mxu0
    %v1689 = vadd.f32 0.0, %v1688
    %1690 = vmatmul.bf16.gmra.mxu0 %v1649
    %v1691 = vpop.f32.mrf.mxu0
    %v1692 = vadd.f32 0.0, %v1691
    %v1693 = vpop.f32.mrf.mxu0
    %v1694 = vadd.f32 0.0, %v1693
    %1695 = vmatmul.bf16.gmra.mxu0 %v1652
    %v1696 = vpop.f32.mrf.mxu0
    %v1697 = vadd.f32 0.0, %v1696
    %v1698 = vpop.f32.mrf.mxu0
    %1699 = vdwg.mxu0
    %v1700 = vadd.f32 %v1287, %v1667
    %v1701 = vadd.f32 %v1289, %v1669
    %v1702 = vadd.f32 %v1292, %v1672
    %v1703 = vadd.f32 %v1294, %v1674
    %v1704 = vadd.f32 %v1297, %v1677
    %v1705 = vadd.f32 %v1299, %v1679
    %v1706 = vadd.f32 %v1302, %v1682
    %v1707 = vadd.f32 %v1304, %v1684
    %v1708 = vadd.f32 %v1307, %v1687
    %v1709 = vadd.f32 %v1309, %v1689
    %v1710 = vadd.f32 %v1312, %v1692
    %v1711 = vadd.f32 %v1314, %v1694
    %v1712 = vadd.f32 %v1317, %v1697
    %vm1713 = vcmp.eq.s32.totalorder %v475, 16
    %vm1714 = vcmp.eq.s32.totalorder %v476, 16
    %vm1715 = vcmp.eq.s32.totalorder %v477, 16
    %vm1716 = vcmp.eq.s32.totalorder %v478, 16
    %vm1717 = vcmp.eq.s32.totalorder %v479, 16
    %vm1718 = vcmp.eq.s32.totalorder %v480, 16
    %vm1719 = vcmp.eq.s32.totalorder %v481, 16
    %vm1720 = vcmp.eq.s32.totalorder %v482, 16
    %vm1721 = vcmp.eq.s32.totalorder %v483, 16
    %vm1722 = vcmp.eq.s32.totalorder %v484, 16
    %vm1723 = vcmp.eq.s32.totalorder %v485, 16
    %vm1724 = vcmp.eq.s32.totalorder %v486, 16
    %vm1725 = vcmp.eq.s32.totalorder %v487, 16
    %vm1726 = vcmp.eq.s32.totalorder %v488, 16
    %vm1727 = vcmp.eq.s32.totalorder %v489, 16
    %vm1728 = vcmp.eq.s32.totalorder %v490, 16
    %vm1729 = vcmp.eq.s32.totalorder %v491, 16
    %vm1730 = vcmp.eq.s32.totalorder %v492, 16
    %vm1731 = vcmp.eq.s32.totalorder %v493, 16
    %vm1732 = vcmp.eq.s32.totalorder %v494, 16
    %vm1733 = vcmp.eq.s32.totalorder %v495, 16
    %vm1734 = vcmp.eq.s32.totalorder %v496, 16
    %vm1735 = vcmp.eq.s32.totalorder %v497, 16
    %vm1736 = vcmp.eq.s32.totalorder %v498, 16
    %vm1737 = vcmp.eq.s32.totalorder %v499, 16
    %vm1738 = vcmp.eq.s32.totalorder %v500, 16
    %vm1739 = vcmp.eq.s32.totalorder %v501, 16
    %vm1740 = vcmp.eq.s32.totalorder %v502, 16
    %vm1741 = vcmp.eq.s32.totalorder %v503, 16
    %vm1742 = vcmp.eq.s32.totalorder %v504, 16
    %vm1743 = vcmp.eq.s32.totalorder %v505, 16
    %vm1744 = vcmp.eq.s32.totalorder %v506, 16
    %vm1745 = vcmp.eq.s32.totalorder %v507, 16
    %vm1746 = vcmp.eq.s32.totalorder %v508, 16
    %vm1747 = vcmp.eq.s32.totalorder %v509, 16
    %vm1748 = vcmp.eq.s32.totalorder %v510, 16
    %vm1749 = vcmp.eq.s32.totalorder %v511, 16
    %vm1750 = vcmp.eq.s32.totalorder %v512, 16
    %vm1751 = vcmp.eq.s32.totalorder %v513, 16
    %vm1752 = vcmp.eq.s32.totalorder %v514, 16
    %vm1753 = vcmp.eq.s32.totalorder %v515, 16
    %vm1754 = vcmp.eq.s32.totalorder %v516, 16
    %vm1755 = vcmp.eq.s32.totalorder %v517, 16
    %vm1756 = vcmp.eq.s32.totalorder %v518, 16
    %vm1757 = vcmp.eq.s32.totalorder %v519, 16
    %vm1758 = vcmp.eq.s32.totalorder %v520, 16
    %vm1759 = vcmp.eq.s32.totalorder %v521, 16
    %vm1760 = vcmp.eq.s32.totalorder %v522, 16
    %vm1761 = vcmp.eq.s32.totalorder %v523, 16
    %vm1762 = vcmp.eq.s32.totalorder %v524, 16
    %vm1763 = vcmp.eq.s32.totalorder %v525, 16
    %vm1764 = vcmp.eq.s32.totalorder %v526, 16
    %v1765 = vsel %vm1713, 1.0, 0.0
    %v1766 = vsel %vm1714, 1.0, 0.0
    %v1767 = vsel %vm1715, 1.0, 0.0
    %v1768 = vsel %vm1716, 1.0, 0.0
    %v1769 = vsel %vm1717, 1.0, 0.0
    %v1770 = vsel %vm1718, 1.0, 0.0
    %v1771 = vsel %vm1719, 1.0, 0.0
    %v1772 = vsel %vm1720, 1.0, 0.0
    %v1773 = vsel %vm1721, 1.0, 0.0
    %v1774 = vsel %vm1722, 1.0, 0.0
    %v1775 = vsel %vm1723, 1.0, 0.0
    %v1776 = vsel %vm1724, 1.0, 0.0
    %v1777 = vsel %vm1725, 1.0, 0.0
    %v1778 = vsel %vm1726, 1.0, 0.0
    %v1779 = vsel %vm1727, 1.0, 0.0
    %v1780 = vsel %vm1728, 1.0, 0.0
    %v1781 = vsel %vm1729, 1.0, 0.0
    %v1782 = vsel %vm1730, 1.0, 0.0
    %v1783 = vsel %vm1731, 1.0, 0.0
    %v1784 = vsel %vm1732, 1.0, 0.0
    %v1785 = vsel %vm1733, 1.0, 0.0
    %v1786 = vsel %vm1734, 1.0, 0.0
    %v1787 = vsel %vm1735, 1.0, 0.0
    %v1788 = vsel %vm1736, 1.0, 0.0
    %v1789 = vsel %vm1737, 1.0, 0.0
    %v1790 = vsel %vm1738, 1.0, 0.0
    %v1791 = vsel %vm1739, 1.0, 0.0
    %v1792 = vsel %vm1740, 1.0, 0.0
    %v1793 = vsel %vm1741, 1.0, 0.0
    %v1794 = vsel %vm1742, 1.0, 0.0
    %v1795 = vsel %vm1743, 1.0, 0.0
    %v1796 = vsel %vm1744, 1.0, 0.0
    %v1797 = vsel %vm1745, 1.0, 0.0
    %v1798 = vsel %vm1746, 1.0, 0.0
    %v1799 = vsel %vm1747, 1.0, 0.0
    %v1800 = vsel %vm1748, 1.0, 0.0
    %v1801 = vsel %vm1749, 1.0, 0.0
    %v1802 = vsel %vm1750, 1.0, 0.0
    %v1803 = vsel %vm1751, 1.0, 0.0
    %v1804 = vsel %vm1752, 1.0, 0.0
    %v1805 = vsel %vm1753, 1.0, 0.0
    %v1806 = vsel %vm1754, 1.0, 0.0
    %v1807 = vsel %vm1755, 1.0, 0.0
    %v1808 = vsel %vm1756, 1.0, 0.0
    %v1809 = vsel %vm1757, 1.0, 0.0
    %v1810 = vsel %vm1758, 1.0, 0.0
    %v1811 = vsel %vm1759, 1.0, 0.0
    %v1812 = vsel %vm1760, 1.0, 0.0
    %v1813 = vsel %vm1761, 1.0, 0.0
    %v1814 = vsel %vm1762, 1.0, 0.0
    %v1815 = vsel %vm1763, 1.0, 0.0
    %v1816 = vsel %vm1764, 1.0, 0.0
    %v1817 = vpack.c.bf16 %v1769, %v1765
    %v1818 = vpack.c.bf16 %v1770, %v1766
    %v1819 = vpack.c.bf16 %v1771, %v1767
    %v1820 = vpack.c.bf16 %v1772, %v1768
    %v1821 = vpack.c.bf16 %v1777, %v1773
    %v1822 = vpack.c.bf16 %v1778, %v1774
    %v1823 = vpack.c.bf16 %v1779, %v1775
    %v1824 = vpack.c.bf16 %v1780, %v1776
    %v1825 = vpack.c.bf16 %v1785, %v1781
    %v1826 = vpack.c.bf16 %v1786, %v1782
    %v1827 = vpack.c.bf16 %v1787, %v1783
    %v1828 = vpack.c.bf16 %v1788, %v1784
    %v1829 = vpack.c.bf16 %v1793, %v1789
    %v1830 = vpack.c.bf16 %v1794, %v1790
    %v1831 = vpack.c.bf16 %v1795, %v1791
    %v1832 = vpack.c.bf16 %v1796, %v1792
    %v1833 = vpack.c.bf16 %v1801, %v1797
    %v1834 = vpack.c.bf16 %v1802, %v1798
    %v1835 = vpack.c.bf16 %v1803, %v1799
    %v1836 = vpack.c.bf16 %v1804, %v1800
    %v1837 = vpack.c.bf16 %v1809, %v1805
    %v1838 = vpack.c.bf16 %v1810, %v1806
    %v1839 = vpack.c.bf16 %v1811, %v1807
    %v1840 = vpack.c.bf16 %v1812, %v1808
    %v1841 = vpack.c.bf16 %v1813, %v1813
    %v1842 = vpack.c.bf16 %v1814, %v1814
    %v1843 = vpack.c.bf16 %v1815, %v1815
    %v1844 = vpack.c.bf16 %v1816, %v1816
    %1845 = vmatpush.bf16.msra.mxu0 %v666
    %1846 = vmatpush.bf16.msra.mxu0 %v665
    %1847 = vmatpush.bf16.msra.mxu0 %v664
    %1848 = vmatpush.bf16.msra.mxu0 %v663
    %1849 = vmatpush.bf16.msra.mxu0 %v662
    %1850 = vmatpush.bf16.msra.mxu0 %v661
    %1851 = vmatpush.bf16.msra.mxu0 %v660
    %1852 = vmatpush.bf16.msra.mxu0 %v659
    %1853 = vmatmul.bf16.gmra.mxu0 %v1817
    %v1854 = vpop.f32.mrf.mxu0
    %v1855 = vadd.f32 0.0, %v1854
    %v1856 = vpop.f32.mrf.mxu0
    %v1857 = vadd.f32 0.0, %v1856
    %1858 = vmatmul.bf16.gmra.mxu0 %v1821
    %v1859 = vpop.f32.mrf.mxu0
    %v1860 = vadd.f32 0.0, %v1859
    %v1861 = vpop.f32.mrf.mxu0
    %v1862 = vadd.f32 0.0, %v1861
    %1863 = vmatmul.bf16.gmra.mxu0 %v1825
    %v1864 = vpop.f32.mrf.mxu0
    %v1865 = vadd.f32 0.0, %v1864
    %v1866 = vpop.f32.mrf.mxu0
    %v1867 = vadd.f32 0.0, %v1866
    %1868 = vmatmul.bf16.gmra.mxu0 %v1829
    %v1869 = vpop.f32.mrf.mxu0
    %v1870 = vadd.f32 0.0, %v1869
    %v1871 = vpop.f32.mrf.mxu0
    %v1872 = vadd.f32 0.0, %v1871
    %1873 = vmatmul.bf16.gmra.mxu0 %v1833
    %v1874 = vpop.f32.mrf.mxu0
    %v1875 = vadd.f32 0.0, %v1874
    %v1876 = vpop.f32.mrf.mxu0
    %v1877 = vadd.f32 0.0, %v1876
    %1878 = vmatmul.bf16.gmra.mxu0 %v1837
    %v1879 = vpop.f32.mrf.mxu0
    %v1880 = vadd.f32 0.0, %v1879
    %v1881 = vpop.f32.mrf.mxu0
    %v1882 = vadd.f32 0.0, %v1881
    %1883 = vmatmul.bf16.gmra.mxu0 %v1841
    %v1884 = vpop.f32.mrf.mxu0
    %v1885 = vadd.f32 0.0, %v1884
    %v1886 = vpop.f32.mrf.mxu0
    %1887 = vdwg.mxu0
    %1888 = vmatpush.bf16.msra.mxu0 %v674
    %1889 = vmatpush.bf16.msra.mxu0 %v673
    %1890 = vmatpush.bf16.msra.mxu0 %v672
    %1891 = vmatpush.bf16.msra.mxu0 %v671
    %1892 = vmatpush.bf16.msra.mxu0 %v670
    %1893 = vmatpush.bf16.msra.mxu0 %v669
    %1894 = vmatpush.bf16.msra.mxu0 %v668
    %1895 = vmatpush.bf16.msra.mxu0 %v667
    %1896 = vmatmul.bf16.gmra.mxu0 %v1818
    %v1897 = vpop.f32.mrf.mxu0
    %v1898 = vadd.f32 %v1855, %v1897
    %v1899 = vpop.f32.mrf.mxu0
    %v1900 = vadd.f32 %v1857, %v1899
    %1901 = vmatmul.bf16.gmra.mxu0 %v1822
    %v1902 = vpop.f32.mrf.mxu0
    %v1903 = vadd.f32 %v1860, %v1902
    %v1904 = vpop.f32.mrf.mxu0
    %v1905 = vadd.f32 %v1862, %v1904
    %1906 = vmatmul.bf16.gmra.mxu0 %v1826
    %v1907 = vpop.f32.mrf.mxu0
    %v1908 = vadd.f32 %v1865, %v1907
    %v1909 = vpop.f32.mrf.mxu0
    %v1910 = vadd.f32 %v1867, %v1909
    %1911 = vmatmul.bf16.gmra.mxu0 %v1830
    %v1912 = vpop.f32.mrf.mxu0
    %v1913 = vadd.f32 %v1870, %v1912
    %v1914 = vpop.f32.mrf.mxu0
    %v1915 = vadd.f32 %v1872, %v1914
    %1916 = vmatmul.bf16.gmra.mxu0 %v1834
    %v1917 = vpop.f32.mrf.mxu0
    %v1918 = vadd.f32 %v1875, %v1917
    %v1919 = vpop.f32.mrf.mxu0
    %v1920 = vadd.f32 %v1877, %v1919
    %1921 = vmatmul.bf16.gmra.mxu0 %v1838
    %v1922 = vpop.f32.mrf.mxu0
    %v1923 = vadd.f32 %v1880, %v1922
    %v1924 = vpop.f32.mrf.mxu0
    %v1925 = vadd.f32 %v1882, %v1924
    %1926 = vmatmul.bf16.gmra.mxu0 %v1842
    %v1927 = vpop.f32.mrf.mxu0
    %v1928 = vadd.f32 %v1885, %v1927
    %v1929 = vpop.f32.mrf.mxu0
    %1930 = vdwg.mxu0
    %1931 = vmatpush.bf16.msra.mxu0 %v682
    %1932 = vmatpush.bf16.msra.mxu0 %v681
    %1933 = vmatpush.bf16.msra.mxu0 %v680
    %1934 = vmatpush.bf16.msra.mxu0 %v679
    %1935 = vmatpush.bf16.msra.mxu0 %v678
    %1936 = vmatpush.bf16.msra.mxu0 %v677
    %1937 = vmatpush.bf16.msra.mxu0 %v676
    %1938 = vmatpush.bf16.msra.mxu0 %v675
    %1939 = vmatmul.bf16.gmra.mxu0 %v1819
    %v1940 = vpop.f32.mrf.mxu0
    %v1941 = vadd.f32 %v1898, %v1940
    %v1942 = vpop.f32.mrf.mxu0
    %v1943 = vadd.f32 %v1900, %v1942
    %1944 = vmatmul.bf16.gmra.mxu0 %v1823
    %v1945 = vpop.f32.mrf.mxu0
    %v1946 = vadd.f32 %v1903, %v1945
    %v1947 = vpop.f32.mrf.mxu0
    %v1948 = vadd.f32 %v1905, %v1947
    %1949 = vmatmul.bf16.gmra.mxu0 %v1827
    %v1950 = vpop.f32.mrf.mxu0
    %v1951 = vadd.f32 %v1908, %v1950
    %v1952 = vpop.f32.mrf.mxu0
    %v1953 = vadd.f32 %v1910, %v1952
    %1954 = vmatmul.bf16.gmra.mxu0 %v1831
    %v1955 = vpop.f32.mrf.mxu0
    %v1956 = vadd.f32 %v1913, %v1955
    %v1957 = vpop.f32.mrf.mxu0
    %v1958 = vadd.f32 %v1915, %v1957
    %1959 = vmatmul.bf16.gmra.mxu0 %v1835
    %v1960 = vpop.f32.mrf.mxu0
    %v1961 = vadd.f32 %v1918, %v1960
    %v1962 = vpop.f32.mrf.mxu0
    %v1963 = vadd.f32 %v1920, %v1962
    %1964 = vmatmul.bf16.gmra.mxu0 %v1839
    %v1965 = vpop.f32.mrf.mxu0
    %v1966 = vadd.f32 %v1923, %v1965
    %v1967 = vpop.f32.mrf.mxu0
    %v1968 = vadd.f32 %v1925, %v1967
    %1969 = vmatmul.bf16.gmra.mxu0 %v1843
    %v1970 = vpop.f32.mrf.mxu0
    %v1971 = vadd.f32 %v1928, %v1970
    %v1972 = vpop.f32.mrf.mxu0
    %1973 = vdwg.mxu0
    %1974 = vmatpush.bf16.msra.mxu0 %v690
    %1975 = vmatpush.bf16.msra.mxu0 %v689
    %1976 = vmatpush.bf16.msra.mxu0 %v688
    %1977 = vmatpush.bf16.msra.mxu0 %v687
    %1978 = vmatpush.bf16.msra.mxu0 %v686
    %1979 = vmatpush.bf16.msra.mxu0 %v685
    %1980 = vmatpush.bf16.msra.mxu0 %v684
    %1981 = vmatpush.bf16.msra.mxu0 %v683
    %1982 = vmatmul.bf16.gmra.mxu0 %v1820
    %v1983 = vpop.f32.mrf.mxu0
    %v1984 = vadd.f32 %v1941, %v1983
    %v1985 = vpop.f32.mrf.mxu0
    %v1986 = vadd.f32 %v1943, %v1985
    %1987 = vmatmul.bf16.gmra.mxu0 %v1824
    %v1988 = vpop.f32.mrf.mxu0
    %v1989 = vadd.f32 %v1946, %v1988
    %v1990 = vpop.f32.mrf.mxu0
    %v1991 = vadd.f32 %v1948, %v1990
    %1992 = vmatmul.bf16.gmra.mxu0 %v1828
    %v1993 = vpop.f32.mrf.mxu0
    %v1994 = vadd.f32 %v1951, %v1993
    %v1995 = vpop.f32.mrf.mxu0
    %v1996 = vadd.f32 %v1953, %v1995
    %1997 = vmatmul.bf16.gmra.mxu0 %v1832
    %v1998 = vpop.f32.mrf.mxu0
    %v1999 = vadd.f32 %v1956, %v1998
    %v2000 = vpop.f32.mrf.mxu0
    %v2001 = vadd.f32 %v1958, %v2000
    %2002 = vmatmul.bf16.gmra.mxu0 %v1836
    %v2003 = vpop.f32.mrf.mxu0
    %v2004 = vadd.f32 %v1961, %v2003
    %v2005 = vpop.f32.mrf.mxu0
    %v2006 = vadd.f32 %v1963, %v2005
    %2007 = vmatmul.bf16.gmra.mxu0 %v1840
    %v2008 = vpop.f32.mrf.mxu0
    %v2009 = vadd.f32 %v1966, %v2008
    %v2010 = vpop.f32.mrf.mxu0
    %v2011 = vadd.f32 %v1968, %v2010
    %2012 = vmatmul.bf16.gmra.mxu0 %v1844
    %v2013 = vpop.f32.mrf.mxu0
    %v2014 = vadd.f32 %v1971, %v2013
    %v2015 = vpop.f32.mrf.mxu0
    %2016 = vdwg.mxu0
    %s2017 = scalar_lea.vmem [#allocation6], 12
    %v2018 = vld [vmem:[%s2017] sm:$0x7]
    %v2019 = vpack.c.bf16 %v1986, %v1984
    %v2020 = vpack.c.bf16 %v1991, %v1989
    %v2021 = vpack.c.bf16 %v1996, %v1994
    %v2022 = vpack.c.bf16 %v2001, %v1999
    %v2023 = vpack.c.bf16 %v2006, %v2004
    %v2024 = vpack.c.bf16 %v2011, %v2009
    %v2025 = vpack.c.bf16 %v2014, %v2014
    %v2027 = vsel %vm1184, %v2019, 0
    %v2030 = vsel %vm1184, %v2020, 0
    %v2033 = vsel %vm1184, %v2021, 0
    %v2036 = vsel %vm1184, %v2022, 0
    %v2039 = vsel %vm1184, %v2023, 0
    %v2042 = vsel %vm1184, %v2024, 0
    %v2045 = vsel %vm1184, %v2025, 0
    %v2048 = vsel %vm1206, %v2018, 0
    %2050 = vmatpush.bf16.msra.mxu0 0
    %2051 = vmatpush.bf16.msra.mxu0 0
    %2052 = vmatpush.bf16.msra.mxu0 0
    %2053 = vmatpush.bf16.msra.mxu0 0
    %2054 = vmatpush.bf16.msra.mxu0 0
    %2055 = vmatpush.bf16.msra.mxu0 0
    %2056 = vmatpush.bf16.msra.mxu0 0
    %2057 = vmatpush.bf16.msra.mxu0 %v2048
    %2058 = vmatmul.bf16.gmra.mxu0 %v2027
    %v2059 = vpop.f32.mrf.mxu0
    %v2060 = vadd.f32 0.0, %v2059
    %v2061 = vpop.f32.mrf.mxu0
    %v2062 = vadd.f32 0.0, %v2061
    %2063 = vmatmul.bf16.gmra.mxu0 %v2030
    %v2064 = vpop.f32.mrf.mxu0
    %v2065 = vadd.f32 0.0, %v2064
    %v2066 = vpop.f32.mrf.mxu0
    %v2067 = vadd.f32 0.0, %v2066
    %2068 = vmatmul.bf16.gmra.mxu0 %v2033
    %v2069 = vpop.f32.mrf.mxu0
    %v2070 = vadd.f32 0.0, %v2069
    %v2071 = vpop.f32.mrf.mxu0
    %v2072 = vadd.f32 0.0, %v2071
    %2073 = vmatmul.bf16.gmra.mxu0 %v2036
    %v2074 = vpop.f32.mrf.mxu0
    %v2075 = vadd.f32 0.0, %v2074
    %v2076 = vpop.f32.mrf.mxu0
    %v2077 = vadd.f32 0.0, %v2076
    %2078 = vmatmul.bf16.gmra.mxu0 %v2039
    %v2079 = vpop.f32.mrf.mxu0
    %v2080 = vadd.f32 0.0, %v2079
    %v2081 = vpop.f32.mrf.mxu0
    %v2082 = vadd.f32 0.0, %v2081
    %2083 = vmatmul.bf16.gmra.mxu0 %v2042
    %v2084 = vpop.f32.mrf.mxu0
    %v2085 = vadd.f32 0.0, %v2084
    %v2086 = vpop.f32.mrf.mxu0
    %v2087 = vadd.f32 0.0, %v2086
    %2088 = vmatmul.bf16.gmra.mxu0 %v2045
    %v2089 = vpop.f32.mrf.mxu0
    %v2090 = vadd.f32 0.0, %v2089
    %v2091 = vpop.f32.mrf.mxu0
    %2092 = vdwg.mxu0
    %v2093 = vadd.f32 %v1700, %v2060
    %v2094 = vadd.f32 %v1701, %v2062
    %v2095 = vadd.f32 %v1702, %v2065
    %v2096 = vadd.f32 %v1703, %v2067
    %v2097 = vadd.f32 %v1704, %v2070
    %v2098 = vadd.f32 %v1705, %v2072
    %v2099 = vadd.f32 %v1706, %v2075
    %v2100 = vadd.f32 %v1707, %v2077
    %v2101 = vadd.f32 %v1708, %v2080
    %v2102 = vadd.f32 %v1709, %v2082
    %v2103 = vadd.f32 %v1710, %v2085
    %v2104 = vadd.f32 %v1711, %v2087
    %v2105 = vadd.f32 %v1712, %v2090
    %vm2106 = vcmp.eq.s32.totalorder %v475, 17
    %vm2107 = vcmp.eq.s32.totalorder %v476, 17
    %vm2108 = vcmp.eq.s32.totalorder %v477, 17
    %vm2109 = vcmp.eq.s32.totalorder %v478, 17
    %vm2110 = vcmp.eq.s32.totalorder %v479, 17
    %vm2111 = vcmp.eq.s32.totalorder %v480, 17
    %vm2112 = vcmp.eq.s32.totalorder %v481, 17
    %vm2113 = vcmp.eq.s32.totalorder %v482, 17
    %vm2114 = vcmp.eq.s32.totalorder %v483, 17
    %vm2115 = vcmp.eq.s32.totalorder %v484, 17
    %vm2116 = vcmp.eq.s32.totalorder %v485, 17
    %vm2117 = vcmp.eq.s32.totalorder %v486, 17
    %vm2118 = vcmp.eq.s32.totalorder %v487, 17
    %vm2119 = vcmp.eq.s32.totalorder %v488, 17
    %vm2120 = vcmp.eq.s32.totalorder %v489, 17
    %vm2121 = vcmp.eq.s32.totalorder %v490, 17
    %vm2122 = vcmp.eq.s32.totalorder %v491, 17
    %vm2123 = vcmp.eq.s32.totalorder %v492, 17
    %vm2124 = vcmp.eq.s32.totalorder %v493, 17
    %vm2125 = vcmp.eq.s32.totalorder %v494, 17
    %vm2126 = vcmp.eq.s32.totalorder %v495, 17
    %vm2127 = vcmp.eq.s32.totalorder %v496, 17
    %vm2128 = vcmp.eq.s32.totalorder %v497, 17
    %vm2129 = vcmp.eq.s32.totalorder %v498, 17
    %vm2130 = vcmp.eq.s32.totalorder %v499, 17
    %vm2131 = vcmp.eq.s32.totalorder %v500, 17
    %vm2132 = vcmp.eq.s32.totalorder %v501, 17
    %vm2133 = vcmp.eq.s32.totalorder %v502, 17
    %vm2134 = vcmp.eq.s32.totalorder %v503, 17
    %vm2135 = vcmp.eq.s32.totalorder %v504, 17
    %vm2136 = vcmp.eq.s32.totalorder %v505, 17
    %vm2137 = vcmp.eq.s32.totalorder %v506, 17
    %vm2138 = vcmp.eq.s32.totalorder %v507, 17
    %vm2139 = vcmp.eq.s32.totalorder %v508, 17
    %vm2140 = vcmp.eq.s32.totalorder %v509, 17
    %vm2141 = vcmp.eq.s32.totalorder %v510, 17
    %vm2142 = vcmp.eq.s32.totalorder %v511, 17
    %vm2143 = vcmp.eq.s32.totalorder %v512, 17
    %vm2144 = vcmp.eq.s32.totalorder %v513, 17
    %vm2145 = vcmp.eq.s32.totalorder %v514, 17
    %vm2146 = vcmp.eq.s32.totalorder %v515, 17
    %vm2147 = vcmp.eq.s32.totalorder %v516, 17
    %vm2148 = vcmp.eq.s32.totalorder %v517, 17
    %vm2149 = vcmp.eq.s32.totalorder %v518, 17
    %vm2150 = vcmp.eq.s32.totalorder %v519, 17
    %vm2151 = vcmp.eq.s32.totalorder %v520, 17
    %vm2152 = vcmp.eq.s32.totalorder %v521, 17
    %vm2153 = vcmp.eq.s32.totalorder %v522, 17
    %vm2154 = vcmp.eq.s32.totalorder %v523, 17
    %vm2155 = vcmp.eq.s32.totalorder %v524, 17
    %vm2156 = vcmp.eq.s32.totalorder %v525, 17
    %vm2157 = vcmp.eq.s32.totalorder %v526, 17
    %v2158 = vsel %vm2106, 1.0, 0.0
    %v2159 = vsel %vm2107, 1.0, 0.0
    %v2160 = vsel %vm2108, 1.0, 0.0
    %v2161 = vsel %vm2109, 1.0, 0.0
    %v2162 = vsel %vm2110, 1.0, 0.0
    %v2163 = vsel %vm2111, 1.0, 0.0
    %v2164 = vsel %vm2112, 1.0, 0.0
    %v2165 = vsel %vm2113, 1.0, 0.0
    %v2166 = vsel %vm2114, 1.0, 0.0
    %v2167 = vsel %vm2115, 1.0, 0.0
    %v2168 = vsel %vm2116, 1.0, 0.0
    %v2169 = vsel %vm2117, 1.0, 0.0
    %v2170 = vsel %vm2118, 1.0, 0.0
    %v2171 = vsel %vm2119, 1.0, 0.0
    %v2172 = vsel %vm2120, 1.0, 0.0
    %v2173 = vsel %vm2121, 1.0, 0.0
    %v2174 = vsel %vm2122, 1.0, 0.0
    %v2175 = vsel %vm2123, 1.0, 0.0
    %v2176 = vsel %vm2124, 1.0, 0.0
    %v2177 = vsel %vm2125, 1.0, 0.0
    %v2178 = vsel %vm2126, 1.0, 0.0
    %v2179 = vsel %vm2127, 1.0, 0.0
    %v2180 = vsel %vm2128, 1.0, 0.0
    %v2181 = vsel %vm2129, 1.0, 0.0
    %v2182 = vsel %vm2130, 1.0, 0.0
    %v2183 = vsel %vm2131, 1.0, 0.0
    %v2184 = vsel %vm2132, 1.0, 0.0
    %v2185 = vsel %vm2133, 1.0, 0.0
    %v2186 = vsel %vm2134, 1.0, 0.0
    %v2187 = vsel %vm2135, 1.0, 0.0
    %v2188 = vsel %vm2136, 1.0, 0.0
    %v2189 = vsel %vm2137, 1.0, 0.0
    %v2190 = vsel %vm2138, 1.0, 0.0
    %v2191 = vsel %vm2139, 1.0, 0.0
    %v2192 = vsel %vm2140, 1.0, 0.0
    %v2193 = vsel %vm2141, 1.0, 0.0
    %v2194 = vsel %vm2142, 1.0, 0.0
    %v2195 = vsel %vm2143, 1.0, 0.0
    %v2196 = vsel %vm2144, 1.0, 0.0
    %v2197 = vsel %vm2145, 1.0, 0.0
    %v2198 = vsel %vm2146, 1.0, 0.0
    %v2199 = vsel %vm2147, 1.0, 0.0
    %v2200 = vsel %vm2148, 1.0, 0.0
    %v2201 = vsel %vm2149, 1.0, 0.0
    %v2202 = vsel %vm2150, 1.0, 0.0
    %v2203 = vsel %vm2151, 1.0, 0.0
    %v2204 = vsel %vm2152, 1.0, 0.0
    %v2205 = vsel %vm2153, 1.0, 0.0
    %v2206 = vsel %vm2154, 1.0, 0.0
    %v2207 = vsel %vm2155, 1.0, 0.0
    %v2208 = vsel %vm2156, 1.0, 0.0
    %v2209 = vsel %vm2157, 1.0, 0.0
    %v2210 = vpack.c.bf16 %v2162, %v2158
    %v2211 = vpack.c.bf16 %v2163, %v2159
    %v2212 = vpack.c.bf16 %v2164, %v2160
    %v2213 = vpack.c.bf16 %v2165, %v2161
    %v2214 = vpack.c.bf16 %v2170, %v2166
    %v2215 = vpack.c.bf16 %v2171, %v2167
    %v2216 = vpack.c.bf16 %v2172, %v2168
    %v2217 = vpack.c.bf16 %v2173, %v2169
    %v2218 = vpack.c.bf16 %v2178, %v2174
    %v2219 = vpack.c.bf16 %v2179, %v2175
    %v2220 = vpack.c.bf16 %v2180, %v2176
    %v2221 = vpack.c.bf16 %v2181, %v2177
    %v2222 = vpack.c.bf16 %v2186, %v2182
    %v2223 = vpack.c.bf16 %v2187, %v2183
    %v2224 = vpack.c.bf16 %v2188, %v2184
    %v2225 = vpack.c.bf16 %v2189, %v2185
    %v2226 = vpack.c.bf16 %v2194, %v2190
    %v2227 = vpack.c.bf16 %v2195, %v2191
    %v2228 = vpack.c.bf16 %v2196, %v2192
    %v2229 = vpack.c.bf16 %v2197, %v2193
    %v2230 = vpack.c.bf16 %v2202, %v2198
    %v2231 = vpack.c.bf16 %v2203, %v2199
    %v2232 = vpack.c.bf16 %v2204, %v2200
    %v2233 = vpack.c.bf16 %v2205, %v2201
    %v2234 = vpack.c.bf16 %v2206, %v2206
    %v2235 = vpack.c.bf16 %v2207, %v2207
    %v2236 = vpack.c.bf16 %v2208, %v2208
    %v2237 = vpack.c.bf16 %v2209, %v2209
    %2238 = vmatpush.bf16.msra.mxu0 %v666
    %2239 = vmatpush.bf16.msra.mxu0 %v665
    %2240 = vmatpush.bf16.msra.mxu0 %v664
    %2241 = vmatpush.bf16.msra.mxu0 %v663
    %2242 = vmatpush.bf16.msra.mxu0 %v662
    %2243 = vmatpush.bf16.msra.mxu0 %v661
    %2244 = vmatpush.bf16.msra.mxu0 %v660
    %2245 = vmatpush.bf16.msra.mxu0 %v659
    %2246 = vmatmul.bf16.gmra.mxu0 %v2210
    %v2247 = vpop.f32.mrf.mxu0
    %v2248 = vadd.f32 0.0, %v2247
    %v2249 = vpop.f32.mrf.mxu0
    %v2250 = vadd.f32 0.0, %v2249
    %2251 = vmatmul.bf16.gmra.mxu0 %v2214
    %v2252 = vpop.f32.mrf.mxu0
    %v2253 = vadd.f32 0.0, %v2252
    %v2254 = vpop.f32.mrf.mxu0
    %v2255 = vadd.f32 0.0, %v2254
    %2256 = vmatmul.bf16.gmra.mxu0 %v2218
    %v2257 = vpop.f32.mrf.mxu0
    %v2258 = vadd.f32 0.0, %v2257
    %v2259 = vpop.f32.mrf.mxu0
    %v2260 = vadd.f32 0.0, %v2259
    %2261 = vmatmul.bf16.gmra.mxu0 %v2222
    %v2262 = vpop.f32.mrf.mxu0
    %v2263 = vadd.f32 0.0, %v2262
    %v2264 = vpop.f32.mrf.mxu0
    %v2265 = vadd.f32 0.0, %v2264
    %2266 = vmatmul.bf16.gmra.mxu0 %v2226
    %v2267 = vpop.f32.mrf.mxu0
    %v2268 = vadd.f32 0.0, %v2267
    %v2269 = vpop.f32.mrf.mxu0
    %v2270 = vadd.f32 0.0, %v2269
    %2271 = vmatmul.bf16.gmra.mxu0 %v2230
    %v2272 = vpop.f32.mrf.mxu0
    %v2273 = vadd.f32 0.0, %v2272
    %v2274 = vpop.f32.mrf.mxu0
    %v2275 = vadd.f32 0.0, %v2274
    %2276 = vmatmul.bf16.gmra.mxu0 %v2234
    %v2277 = vpop.f32.mrf.mxu0
    %v2278 = vadd.f32 0.0, %v2277
    %v2279 = vpop.f32.mrf.mxu0
    %2280 = vdwg.mxu0
    %2281 = vmatpush.bf16.msra.mxu0 %v674
    %2282 = vmatpush.bf16.msra.mxu0 %v673
    %2283 = vmatpush.bf16.msra.mxu0 %v672
    %2284 = vmatpush.bf16.msra.mxu0 %v671
    %2285 = vmatpush.bf16.msra.mxu0 %v670
    %2286 = vmatpush.bf16.msra.mxu0 %v669
    %2287 = vmatpush.bf16.msra.mxu0 %v668
    %2288 = vmatpush.bf16.msra.mxu0 %v667
    %2289 = vmatmul.bf16.gmra.mxu0 %v2211
    %v2290 = vpop.f32.mrf.mxu0
    %v2291 = vadd.f32 %v2248, %v2290
    %v2292 = vpop.f32.mrf.mxu0
    %v2293 = vadd.f32 %v2250, %v2292
    %2294 = vmatmul.bf16.gmra.mxu0 %v2215
    %v2295 = vpop.f32.mrf.mxu0
    %v2296 = vadd.f32 %v2253, %v2295
    %v2297 = vpop.f32.mrf.mxu0
    %v2298 = vadd.f32 %v2255, %v2297
    %2299 = vmatmul.bf16.gmra.mxu0 %v2219
    %v2300 = vpop.f32.mrf.mxu0
    %v2301 = vadd.f32 %v2258, %v2300
    %v2302 = vpop.f32.mrf.mxu0
    %v2303 = vadd.f32 %v2260, %v2302
    %2304 = vmatmul.bf16.gmra.mxu0 %v2223
    %v2305 = vpop.f32.mrf.mxu0
    %v2306 = vadd.f32 %v2263, %v2305
    %v2307 = vpop.f32.mrf.mxu0
    %v2308 = vadd.f32 %v2265, %v2307
    %2309 = vmatmul.bf16.gmra.mxu0 %v2227
    %v2310 = vpop.f32.mrf.mxu0
    %v2311 = vadd.f32 %v2268, %v2310
    %v2312 = vpop.f32.mrf.mxu0
    %v2313 = vadd.f32 %v2270, %v2312
    %2314 = vmatmul.bf16.gmra.mxu0 %v2231
    %v2315 = vpop.f32.mrf.mxu0
    %v2316 = vadd.f32 %v2273, %v2315
    %v2317 = vpop.f32.mrf.mxu0
    %v2318 = vadd.f32 %v2275, %v2317
    %2319 = vmatmul.bf16.gmra.mxu0 %v2235
    %v2320 = vpop.f32.mrf.mxu0
    %v2321 = vadd.f32 %v2278, %v2320
    %v2322 = vpop.f32.mrf.mxu0
    %2323 = vdwg.mxu0
    %2324 = vmatpush.bf16.msra.mxu0 %v682
    %2325 = vmatpush.bf16.msra.mxu0 %v681
    %2326 = vmatpush.bf16.msra.mxu0 %v680
    %2327 = vmatpush.bf16.msra.mxu0 %v679
    %2328 = vmatpush.bf16.msra.mxu0 %v678
    %2329 = vmatpush.bf16.msra.mxu0 %v677
    %2330 = vmatpush.bf16.msra.mxu0 %v676
    %2331 = vmatpush.bf16.msra.mxu0 %v675
    %2332 = vmatmul.bf16.gmra.mxu0 %v2212
    %v2333 = vpop.f32.mrf.mxu0
    %v2334 = vadd.f32 %v2291, %v2333
    %v2335 = vpop.f32.mrf.mxu0
    %v2336 = vadd.f32 %v2293, %v2335
    %2337 = vmatmul.bf16.gmra.mxu0 %v2216
    %v2338 = vpop.f32.mrf.mxu0
    %v2339 = vadd.f32 %v2296, %v2338
    %v2340 = vpop.f32.mrf.mxu0
    %v2341 = vadd.f32 %v2298, %v2340
    %2342 = vmatmul.bf16.gmra.mxu0 %v2220
    %v2343 = vpop.f32.mrf.mxu0
    %v2344 = vadd.f32 %v2301, %v2343
    %v2345 = vpop.f32.mrf.mxu0
    %v2346 = vadd.f32 %v2303, %v2345
    %2347 = vmatmul.bf16.gmra.mxu0 %v2224
    %v2348 = vpop.f32.mrf.mxu0
    %v2349 = vadd.f32 %v2306, %v2348
    %v2350 = vpop.f32.mrf.mxu0
    %v2351 = vadd.f32 %v2308, %v2350
    %2352 = vmatmul.bf16.gmra.mxu0 %v2228
    %v2353 = vpop.f32.mrf.mxu0
    %v2354 = vadd.f32 %v2311, %v2353
    %v2355 = vpop.f32.mrf.mxu0
    %v2356 = vadd.f32 %v2313, %v2355
    %2357 = vmatmul.bf16.gmra.mxu0 %v2232
    %v2358 = vpop.f32.mrf.mxu0
    %v2359 = vadd.f32 %v2316, %v2358
    %v2360 = vpop.f32.mrf.mxu0
    %v2361 = vadd.f32 %v2318, %v2360
    %2362 = vmatmul.bf16.gmra.mxu0 %v2236
    %v2363 = vpop.f32.mrf.mxu0
    %v2364 = vadd.f32 %v2321, %v2363
    %v2365 = vpop.f32.mrf.mxu0
    %2366 = vdwg.mxu0
    %2367 = vmatpush.bf16.msra.mxu0 %v690
    %2368 = vmatpush.bf16.msra.mxu0 %v689
    %2369 = vmatpush.bf16.msra.mxu0 %v688
    %2370 = vmatpush.bf16.msra.mxu0 %v687
    %2371 = vmatpush.bf16.msra.mxu0 %v686
    %2372 = vmatpush.bf16.msra.mxu0 %v685
    %2373 = vmatpush.bf16.msra.mxu0 %v684
    %2374 = vmatpush.bf16.msra.mxu0 %v683
    %2375 = vmatmul.bf16.gmra.mxu0 %v2213
    %v2376 = vpop.f32.mrf.mxu0
    %v2377 = vadd.f32 %v2334, %v2376
    %v2378 = vpop.f32.mrf.mxu0
    %v2379 = vadd.f32 %v2336, %v2378
    %2380 = vmatmul.bf16.gmra.mxu0 %v2217
    %v2381 = vpop.f32.mrf.mxu0
    %v2382 = vadd.f32 %v2339, %v2381
    %v2383 = vpop.f32.mrf.mxu0
    %v2384 = vadd.f32 %v2341, %v2383
    %2385 = vmatmul.bf16.gmra.mxu0 %v2221
    %v2386 = vpop.f32.mrf.mxu0
    %v2387 = vadd.f32 %v2344, %v2386
    %v2388 = vpop.f32.mrf.mxu0
    %v2389 = vadd.f32 %v2346, %v2388
    %2390 = vmatmul.bf16.gmra.mxu0 %v2225
    %v2391 = vpop.f32.mrf.mxu0
    %v2392 = vadd.f32 %v2349, %v2391
    %v2393 = vpop.f32.mrf.mxu0
    %v2394 = vadd.f32 %v2351, %v2393
    %2395 = vmatmul.bf16.gmra.mxu0 %v2229
    %v2396 = vpop.f32.mrf.mxu0
    %v2397 = vadd.f32 %v2354, %v2396
    %v2398 = vpop.f32.mrf.mxu0
    %v2399 = vadd.f32 %v2356, %v2398
    %2400 = vmatmul.bf16.gmra.mxu0 %v2233
    %v2401 = vpop.f32.mrf.mxu0
    %v2402 = vadd.f32 %v2359, %v2401
    %v2403 = vpop.f32.mrf.mxu0
    %v2404 = vadd.f32 %v2361, %v2403
    %2405 = vmatmul.bf16.gmra.mxu0 %v2237
    %v2406 = vpop.f32.mrf.mxu0
    %v2407 = vadd.f32 %v2364, %v2406
    %v2408 = vpop.f32.mrf.mxu0
    %2409 = vdwg.mxu0
    %s2410 = scalar_lea.vmem [#allocation6], 16
    %v2411 = vld [vmem:[%s2410] sm:$0x7]
    %v2412 = vpack.c.bf16 %v2379, %v2377
    %v2413 = vpack.c.bf16 %v2384, %v2382
    %v2414 = vpack.c.bf16 %v2389, %v2387
    %v2415 = vpack.c.bf16 %v2394, %v2392
    %v2416 = vpack.c.bf16 %v2399, %v2397
    %v2417 = vpack.c.bf16 %v2404, %v2402
    %v2418 = vpack.c.bf16 %v2407, %v2407
    %v2420 = vsel %vm1184, %v2412, 0
    %v2423 = vsel %vm1184, %v2413, 0
    %v2426 = vsel %vm1184, %v2414, 0
    %v2429 = vsel %vm1184, %v2415, 0
    %v2432 = vsel %vm1184, %v2416, 0
    %v2435 = vsel %vm1184, %v2417, 0
    %v2438 = vsel %vm1184, %v2418, 0
    %v2441 = vsel %vm1206, %v2411, 0
    %2443 = vmatpush.bf16.msra.mxu0 0
    %2444 = vmatpush.bf16.msra.mxu0 0
    %2445 = vmatpush.bf16.msra.mxu0 0
    %2446 = vmatpush.bf16.msra.mxu0 0
    %2447 = vmatpush.bf16.msra.mxu0 0
    %2448 = vmatpush.bf16.msra.mxu0 0
    %2449 = vmatpush.bf16.msra.mxu0 0
    %2450 = vmatpush.bf16.msra.mxu0 %v2441
    %2451 = vmatmul.bf16.gmra.mxu0 %v2420
    %v2452 = vpop.f32.mrf.mxu0
    %v2453 = vadd.f32 0.0, %v2452
    %v2454 = vpop.f32.mrf.mxu0
    %v2455 = vadd.f32 0.0, %v2454
    %2456 = vmatmul.bf16.gmra.mxu0 %v2423
    %v2457 = vpop.f32.mrf.mxu0
    %v2458 = vadd.f32 0.0, %v2457
    %v2459 = vpop.f32.mrf.mxu0
    %v2460 = vadd.f32 0.0, %v2459
    %2461 = vmatmul.bf16.gmra.mxu0 %v2426
    %v2462 = vpop.f32.mrf.mxu0
    %v2463 = vadd.f32 0.0, %v2462
    %v2464 = vpop.f32.mrf.mxu0
    %v2465 = vadd.f32 0.0, %v2464
    %2466 = vmatmul.bf16.gmra.mxu0 %v2429
    %v2467 = vpop.f32.mrf.mxu0
    %v2468 = vadd.f32 0.0, %v2467
    %v2469 = vpop.f32.mrf.mxu0
    %v2470 = vadd.f32 0.0, %v2469
    %2471 = vmatmul.bf16.gmra.mxu0 %v2432
    %v2472 = vpop.f32.mrf.mxu0
    %v2473 = vadd.f32 0.0, %v2472
    %v2474 = vpop.f32.mrf.mxu0
    %v2475 = vadd.f32 0.0, %v2474
    %2476 = vmatmul.bf16.gmra.mxu0 %v2435
    %v2477 = vpop.f32.mrf.mxu0
    %v2478 = vadd.f32 0.0, %v2477
    %v2479 = vpop.f32.mrf.mxu0
    %v2480 = vadd.f32 0.0, %v2479
    %2481 = vmatmul.bf16.gmra.mxu0 %v2438
    %v2482 = vpop.f32.mrf.mxu0
    %v2483 = vadd.f32 0.0, %v2482
    %v2484 = vpop.f32.mrf.mxu0
    %2485 = vdwg.mxu0
    %v2486 = vadd.f32 %v2093, %v2453
    %v2487 = vadd.f32 %v2094, %v2455
    %v2488 = vadd.f32 %v2095, %v2458
    %v2489 = vadd.f32 %v2096, %v2460
    %v2490 = vadd.f32 %v2097, %v2463
    %v2491 = vadd.f32 %v2098, %v2465
    %v2492 = vadd.f32 %v2099, %v2468
    %v2493 = vadd.f32 %v2100, %v2470
    %v2494 = vadd.f32 %v2101, %v2473
    %v2495 = vadd.f32 %v2102, %v2475
    %v2496 = vadd.f32 %v2103, %v2478
    %v2497 = vadd.f32 %v2104, %v2480
    %v2498 = vadd.f32 %v2105, %v2483
    %vm2499 = vcmp.eq.s32.totalorder %v475, 18
    %vm2500 = vcmp.eq.s32.totalorder %v476, 18
    %vm2501 = vcmp.eq.s32.totalorder %v477, 18
    %vm2502 = vcmp.eq.s32.totalorder %v478, 18
    %vm2503 = vcmp.eq.s32.totalorder %v479, 18
    %vm2504 = vcmp.eq.s32.totalorder %v480, 18
    %vm2505 = vcmp.eq.s32.totalorder %v481, 18
    %vm2506 = vcmp.eq.s32.totalorder %v482, 18
    %vm2507 = vcmp.eq.s32.totalorder %v483, 18
    %vm2508 = vcmp.eq.s32.totalorder %v484, 18
    %vm2509 = vcmp.eq.s32.totalorder %v485, 18
    %vm2510 = vcmp.eq.s32.totalorder %v486, 18
    %vm2511 = vcmp.eq.s32.totalorder %v487, 18
    %vm2512 = vcmp.eq.s32.totalorder %v488, 18
    %vm2513 = vcmp.eq.s32.totalorder %v489, 18
    %vm2514 = vcmp.eq.s32.totalorder %v490, 18
    %vm2515 = vcmp.eq.s32.totalorder %v491, 18
    %vm2516 = vcmp.eq.s32.totalorder %v492, 18
    %vm2517 = vcmp.eq.s32.totalorder %v493, 18
    %vm2518 = vcmp.eq.s32.totalorder %v494, 18
    %vm2519 = vcmp.eq.s32.totalorder %v495, 18
    %vm2520 = vcmp.eq.s32.totalorder %v496, 18
    %vm2521 = vcmp.eq.s32.totalorder %v497, 18
    %vm2522 = vcmp.eq.s32.totalorder %v498, 18
    %vm2523 = vcmp.eq.s32.totalorder %v499, 18
    %vm2524 = vcmp.eq.s32.totalorder %v500, 18
    %vm2525 = vcmp.eq.s32.totalorder %v501, 18
    %vm2526 = vcmp.eq.s32.totalorder %v502, 18
    %vm2527 = vcmp.eq.s32.totalorder %v503, 18
    %vm2528 = vcmp.eq.s32.totalorder %v504, 18
    %vm2529 = vcmp.eq.s32.totalorder %v505, 18
    %vm2530 = vcmp.eq.s32.totalorder %v506, 18
    %vm2531 = vcmp.eq.s32.totalorder %v507, 18
    %vm2532 = vcmp.eq.s32.totalorder %v508, 18
    %vm2533 = vcmp.eq.s32.totalorder %v509, 18
    %vm2534 = vcmp.eq.s32.totalorder %v510, 18
    %vm2535 = vcmp.eq.s32.totalorder %v511, 18
    %vm2536 = vcmp.eq.s32.totalorder %v512, 18
    %vm2537 = vcmp.eq.s32.totalorder %v513, 18
    %vm2538 = vcmp.eq.s32.totalorder %v514, 18
    %vm2539 = vcmp.eq.s32.totalorder %v515, 18
    %vm2540 = vcmp.eq.s32.totalorder %v516, 18
    %vm2541 = vcmp.eq.s32.totalorder %v517, 18
    %vm2542 = vcmp.eq.s32.totalorder %v518, 18
    %vm2543 = vcmp.eq.s32.totalorder %v519, 18
    %vm2544 = vcmp.eq.s32.totalorder %v520, 18
    %vm2545 = vcmp.eq.s32.totalorder %v521, 18
    %vm2546 = vcmp.eq.s32.totalorder %v522, 18
    %vm2547 = vcmp.eq.s32.totalorder %v523, 18
    %vm2548 = vcmp.eq.s32.totalorder %v524, 18
    %vm2549 = vcmp.eq.s32.totalorder %v525, 18
    %vm2550 = vcmp.eq.s32.totalorder %v526, 18
    %v2551 = vsel %vm2499, 1.0, 0.0
    %v2552 = vsel %vm2500, 1.0, 0.0
    %v2553 = vsel %vm2501, 1.0, 0.0
    %v2554 = vsel %vm2502, 1.0, 0.0
    %v2555 = vsel %vm2503, 1.0, 0.0
    %v2556 = vsel %vm2504, 1.0, 0.0
    %v2557 = vsel %vm2505, 1.0, 0.0
    %v2558 = vsel %vm2506, 1.0, 0.0
    %v2559 = vsel %vm2507, 1.0, 0.0
    %v2560 = vsel %vm2508, 1.0, 0.0
    %v2561 = vsel %vm2509, 1.0, 0.0
    %v2562 = vsel %vm2510, 1.0, 0.0
    %v2563 = vsel %vm2511, 1.0, 0.0
    %v2564 = vsel %vm2512, 1.0, 0.0
    %v2565 = vsel %vm2513, 1.0, 0.0
    %v2566 = vsel %vm2514, 1.0, 0.0
    %v2567 = vsel %vm2515, 1.0, 0.0
    %v2568 = vsel %vm2516, 1.0, 0.0
    %v2569 = vsel %vm2517, 1.0, 0.0
    %v2570 = vsel %vm2518, 1.0, 0.0
    %v2571 = vsel %vm2519, 1.0, 0.0
    %v2572 = vsel %vm2520, 1.0, 0.0
    %v2573 = vsel %vm2521, 1.0, 0.0
    %v2574 = vsel %vm2522, 1.0, 0.0
    %v2575 = vsel %vm2523, 1.0, 0.0
    %v2576 = vsel %vm2524, 1.0, 0.0
    %v2577 = vsel %vm2525, 1.0, 0.0
    %v2578 = vsel %vm2526, 1.0, 0.0
    %v2579 = vsel %vm2527, 1.0, 0.0
    %v2580 = vsel %vm2528, 1.0, 0.0
    %v2581 = vsel %vm2529, 1.0, 0.0
    %v2582 = vsel %vm2530, 1.0, 0.0
    %v2583 = vsel %vm2531, 1.0, 0.0
    %v2584 = vsel %vm2532, 1.0, 0.0
    %v2585 = vsel %vm2533, 1.0, 0.0
    %v2586 = vsel %vm2534, 1.0, 0.0
    %v2587 = vsel %vm2535, 1.0, 0.0
    %v2588 = vsel %vm2536, 1.0, 0.0
    %v2589 = vsel %vm2537, 1.0, 0.0
    %v2590 = vsel %vm2538, 1.0, 0.0
    %v2591 = vsel %vm2539, 1.0, 0.0
    %v2592 = vsel %vm2540, 1.0, 0.0
    %v2593 = vsel %vm2541, 1.0, 0.0
    %v2594 = vsel %vm2542, 1.0, 0.0
    %v2595 = vsel %vm2543, 1.0, 0.0
    %v2596 = vsel %vm2544, 1.0, 0.0
    %v2597 = vsel %vm2545, 1.0, 0.0
    %v2598 = vsel %vm2546, 1.0, 0.0
    %v2599 = vsel %vm2547, 1.0, 0.0
    %v2600 = vsel %vm2548, 1.0, 0.0
    %v2601 = vsel %vm2549, 1.0, 0.0
    %v2602 = vsel %vm2550, 1.0, 0.0
    %v2603 = vpack.c.bf16 %v2555, %v2551
    %v2604 = vpack.c.bf16 %v2556, %v2552
    %v2605 = vpack.c.bf16 %v2557, %v2553
    %v2606 = vpack.c.bf16 %v2558, %v2554
    %v2607 = vpack.c.bf16 %v2563, %v2559
    %v2608 = vpack.c.bf16 %v2564, %v2560
    %v2609 = vpack.c.bf16 %v2565, %v2561
    %v2610 = vpack.c.bf16 %v2566, %v2562
    %v2611 = vpack.c.bf16 %v2571, %v2567
    %v2612 = vpack.c.bf16 %v2572, %v2568
    %v2613 = vpack.c.bf16 %v2573, %v2569
    %v2614 = vpack.c.bf16 %v2574, %v2570
    %v2615 = vpack.c.bf16 %v2579, %v2575
    %v2616 = vpack.c.bf16 %v2580, %v2576
    %v2617 = vpack.c.bf16 %v2581, %v2577
    %v2618 = vpack.c.bf16 %v2582, %v2578
    %v2619 = vpack.c.bf16 %v2587, %v2583
    %v2620 = vpack.c.bf16 %v2588, %v2584
    %v2621 = vpack.c.bf16 %v2589, %v2585
    %v2622 = vpack.c.bf16 %v2590, %v2586
    %v2623 = vpack.c.bf16 %v2595, %v2591
    %v2624 = vpack.c.bf16 %v2596, %v2592
    %v2625 = vpack.c.bf16 %v2597, %v2593
    %v2626 = vpack.c.bf16 %v2598, %v2594
    %v2627 = vpack.c.bf16 %v2599, %v2599
    %v2628 = vpack.c.bf16 %v2600, %v2600
    %v2629 = vpack.c.bf16 %v2601, %v2601
    %v2630 = vpack.c.bf16 %v2602, %v2602
    %2631 = vmatpush.bf16.msra.mxu0 %v666
    %2632 = vmatpush.bf16.msra.mxu0 %v665
    %2633 = vmatpush.bf16.msra.mxu0 %v664
    %2634 = vmatpush.bf16.msra.mxu0 %v663
    %2635 = vmatpush.bf16.msra.mxu0 %v662
    %2636 = vmatpush.bf16.msra.mxu0 %v661
    %2637 = vmatpush.bf16.msra.mxu0 %v660
    %2638 = vmatpush.bf16.msra.mxu0 %v659
    %2639 = vmatmul.bf16.gmra.mxu0 %v2603
    %v2640 = vpop.f32.mrf.mxu0
    %v2641 = vadd.f32 0.0, %v2640
    %v2642 = vpop.f32.mrf.mxu0
    %v2643 = vadd.f32 0.0, %v2642
    %2644 = vmatmul.bf16.gmra.mxu0 %v2607
    %v2645 = vpop.f32.mrf.mxu0
    %v2646 = vadd.f32 0.0, %v2645
    %v2647 = vpop.f32.mrf.mxu0
    %v2648 = vadd.f32 0.0, %v2647
    %2649 = vmatmul.bf16.gmra.mxu0 %v2611
    %v2650 = vpop.f32.mrf.mxu0
    %v2651 = vadd.f32 0.0, %v2650
    %v2652 = vpop.f32.mrf.mxu0
    %v2653 = vadd.f32 0.0, %v2652
    %2654 = vmatmul.bf16.gmra.mxu0 %v2615
    %v2655 = vpop.f32.mrf.mxu0
    %v2656 = vadd.f32 0.0, %v2655
    %v2657 = vpop.f32.mrf.mxu0
    %v2658 = vadd.f32 0.0, %v2657
    %2659 = vmatmul.bf16.gmra.mxu0 %v2619
    %v2660 = vpop.f32.mrf.mxu0
    %v2661 = vadd.f32 0.0, %v2660
    %v2662 = vpop.f32.mrf.mxu0
    %v2663 = vadd.f32 0.0, %v2662
    %2664 = vmatmul.bf16.gmra.mxu0 %v2623
    %v2665 = vpop.f32.mrf.mxu0
    %v2666 = vadd.f32 0.0, %v2665
    %v2667 = vpop.f32.mrf.mxu0
    %v2668 = vadd.f32 0.0, %v2667
    %2669 = vmatmul.bf16.gmra.mxu0 %v2627
    %v2670 = vpop.f32.mrf.mxu0
    %v2671 = vadd.f32 0.0, %v2670
    %v2672 = vpop.f32.mrf.mxu0
    %2673 = vdwg.mxu0
    %2674 = vmatpush.bf16.msra.mxu0 %v674
    %2675 = vmatpush.bf16.msra.mxu0 %v673
    %2676 = vmatpush.bf16.msra.mxu0 %v672
    %2677 = vmatpush.bf16.msra.mxu0 %v671
    %2678 = vmatpush.bf16.msra.mxu0 %v670
    %2679 = vmatpush.bf16.msra.mxu0 %v669
    %2680 = vmatpush.bf16.msra.mxu0 %v668
    %2681 = vmatpush.bf16.msra.mxu0 %v667
    %2682 = vmatmul.bf16.gmra.mxu0 %v2604
    %v2683 = vpop.f32.mrf.mxu0
    %v2684 = vadd.f32 %v2641, %v2683
    %v2685 = vpop.f32.mrf.mxu0
    %v2686 = vadd.f32 %v2643, %v2685
    %2687 = vmatmul.bf16.gmra.mxu0 %v2608
    %v2688 = vpop.f32.mrf.mxu0
    %v2689 = vadd.f32 %v2646, %v2688
    %v2690 = vpop.f32.mrf.mxu0
    %v2691 = vadd.f32 %v2648, %v2690
    %2692 = vmatmul.bf16.gmra.mxu0 %v2612
    %v2693 = vpop.f32.mrf.mxu0
    %v2694 = vadd.f32 %v2651, %v2693
    %v2695 = vpop.f32.mrf.mxu0
    %v2696 = vadd.f32 %v2653, %v2695
    %2697 = vmatmul.bf16.gmra.mxu0 %v2616
    %v2698 = vpop.f32.mrf.mxu0
    %v2699 = vadd.f32 %v2656, %v2698
    %v2700 = vpop.f32.mrf.mxu0
    %v2701 = vadd.f32 %v2658, %v2700
    %2702 = vmatmul.bf16.gmra.mxu0 %v2620
    %v2703 = vpop.f32.mrf.mxu0
    %v2704 = vadd.f32 %v2661, %v2703
    %v2705 = vpop.f32.mrf.mxu0
    %v2706 = vadd.f32 %v2663, %v2705
    %2707 = vmatmul.bf16.gmra.mxu0 %v2624
    %v2708 = vpop.f32.mrf.mxu0
    %v2709 = vadd.f32 %v2666, %v2708
    %v2710 = vpop.f32.mrf.mxu0
    %v2711 = vadd.f32 %v2668, %v2710
    %2712 = vmatmul.bf16.gmra.mxu0 %v2628
    %v2713 = vpop.f32.mrf.mxu0
    %v2714 = vadd.f32 %v2671, %v2713
    %v2715 = vpop.f32.mrf.mxu0
    %2716 = vdwg.mxu0
    %2717 = vmatpush.bf16.msra.mxu0 %v682
    %2718 = vmatpush.bf16.msra.mxu0 %v681
    %2719 = vmatpush.bf16.msra.mxu0 %v680
    %2720 = vmatpush.bf16.msra.mxu0 %v679
    %2721 = vmatpush.bf16.msra.mxu0 %v678
    %2722 = vmatpush.bf16.msra.mxu0 %v677
    %2723 = vmatpush.bf16.msra.mxu0 %v676
    %2724 = vmatpush.bf16.msra.mxu0 %v675
    %2725 = vmatmul.bf16.gmra.mxu0 %v2605
    %v2726 = vpop.f32.mrf.mxu0
    %v2727 = vadd.f32 %v2684, %v2726
    %v2728 = vpop.f32.mrf.mxu0
    %v2729 = vadd.f32 %v2686, %v2728
    %2730 = vmatmul.bf16.gmra.mxu0 %v2609
    %v2731 = vpop.f32.mrf.mxu0
    %v2732 = vadd.f32 %v2689, %v2731
    %v2733 = vpop.f32.mrf.mxu0
    %v2734 = vadd.f32 %v2691, %v2733
    %2735 = vmatmul.bf16.gmra.mxu0 %v2613
    %v2736 = vpop.f32.mrf.mxu0
    %v2737 = vadd.f32 %v2694, %v2736
    %v2738 = vpop.f32.mrf.mxu0
    %v2739 = vadd.f32 %v2696, %v2738
    %2740 = vmatmul.bf16.gmra.mxu0 %v2617
    %v2741 = vpop.f32.mrf.mxu0
    %v2742 = vadd.f32 %v2699, %v2741
    %v2743 = vpop.f32.mrf.mxu0
    %v2744 = vadd.f32 %v2701, %v2743
    %2745 = vmatmul.bf16.gmra.mxu0 %v2621
    %v2746 = vpop.f32.mrf.mxu0
    %v2747 = vadd.f32 %v2704, %v2746
    %v2748 = vpop.f32.mrf.mxu0
    %v2749 = vadd.f32 %v2706, %v2748
    %2750 = vmatmul.bf16.gmra.mxu0 %v2625
    %v2751 = vpop.f32.mrf.mxu0
    %v2752 = vadd.f32 %v2709, %v2751
    %v2753 = vpop.f32.mrf.mxu0
    %v2754 = vadd.f32 %v2711, %v2753
    %2755 = vmatmul.bf16.gmra.mxu0 %v2629
    %v2756 = vpop.f32.mrf.mxu0
    %v2757 = vadd.f32 %v2714, %v2756
    %v2758 = vpop.f32.mrf.mxu0
    %2759 = vdwg.mxu0
    %2760 = vmatpush.bf16.msra.mxu0 %v690
    %2761 = vmatpush.bf16.msra.mxu0 %v689
    %2762 = vmatpush.bf16.msra.mxu0 %v688
    %2763 = vmatpush.bf16.msra.mxu0 %v687
    %2764 = vmatpush.bf16.msra.mxu0 %v686
    %2765 = vmatpush.bf16.msra.mxu0 %v685
    %2766 = vmatpush.bf16.msra.mxu0 %v684
    %2767 = vmatpush.bf16.msra.mxu0 %v683
    %2768 = vmatmul.bf16.gmra.mxu0 %v2606
    %v2769 = vpop.f32.mrf.mxu0
    %v2770 = vadd.f32 %v2727, %v2769
    %v2771 = vpop.f32.mrf.mxu0
    %v2772 = vadd.f32 %v2729, %v2771
    %2773 = vmatmul.bf16.gmra.mxu0 %v2610
    %v2774 = vpop.f32.mrf.mxu0
    %v2775 = vadd.f32 %v2732, %v2774
    %v2776 = vpop.f32.mrf.mxu0
    %v2777 = vadd.f32 %v2734, %v2776
    %2778 = vmatmul.bf16.gmra.mxu0 %v2614
    %v2779 = vpop.f32.mrf.mxu0
    %v2780 = vadd.f32 %v2737, %v2779
    %v2781 = vpop.f32.mrf.mxu0
    %v2782 = vadd.f32 %v2739, %v2781
    %2783 = vmatmul.bf16.gmra.mxu0 %v2618
    %v2784 = vpop.f32.mrf.mxu0
    %v2785 = vadd.f32 %v2742, %v2784
    %v2786 = vpop.f32.mrf.mxu0
    %v2787 = vadd.f32 %v2744, %v2786
    %2788 = vmatmul.bf16.gmra.mxu0 %v2622
    %v2789 = vpop.f32.mrf.mxu0
    %v2790 = vadd.f32 %v2747, %v2789
    %v2791 = vpop.f32.mrf.mxu0
    %v2792 = vadd.f32 %v2749, %v2791
    %2793 = vmatmul.bf16.gmra.mxu0 %v2626
    %v2794 = vpop.f32.mrf.mxu0
    %v2795 = vadd.f32 %v2752, %v2794
    %v2796 = vpop.f32.mrf.mxu0
    %v2797 = vadd.f32 %v2754, %v2796
    %2798 = vmatmul.bf16.gmra.mxu0 %v2630
    %v2799 = vpop.f32.mrf.mxu0
    %v2800 = vadd.f32 %v2757, %v2799
    %v2801 = vpop.f32.mrf.mxu0
    %2802 = vdwg.mxu0
    %s2803 = scalar_lea.vmem [#allocation6], 20
    %v2804 = vld [vmem:[%s2803] sm:$0x7]
    %v2805 = vpack.c.bf16 %v2772, %v2770
    %v2806 = vpack.c.bf16 %v2777, %v2775
    %v2807 = vpack.c.bf16 %v2782, %v2780
    %v2808 = vpack.c.bf16 %v2787, %v2785
    %v2809 = vpack.c.bf16 %v2792, %v2790
    %v2810 = vpack.c.bf16 %v2797, %v2795
    %v2811 = vpack.c.bf16 %v2800, %v2800
    %v2813 = vsel %vm1184, %v2805, 0
    %v2816 = vsel %vm1184, %v2806, 0
    %v2819 = vsel %vm1184, %v2807, 0
    %v2822 = vsel %vm1184, %v2808, 0
    %v2825 = vsel %vm1184, %v2809, 0
    %v2828 = vsel %vm1184, %v2810, 0
    %v2831 = vsel %vm1184, %v2811, 0
    %v2834 = vsel %vm1206, %v2804, 0
    %2836 = vmatpush.bf16.msra.mxu0 0
    %2837 = vmatpush.bf16.msra.mxu0 0
    %2838 = vmatpush.bf16.msra.mxu0 0
    %2839 = vmatpush.bf16.msra.mxu0 0
    %2840 = vmatpush.bf16.msra.mxu0 0
    %2841 = vmatpush.bf16.msra.mxu0 0
    %2842 = vmatpush.bf16.msra.mxu0 0
    %2843 = vmatpush.bf16.msra.mxu0 %v2834
    %2844 = vmatmul.bf16.gmra.mxu0 %v2813
    %v2845 = vpop.f32.mrf.mxu0
    %v2846 = vadd.f32 0.0, %v2845
    %v2847 = vpop.f32.mrf.mxu0
    %v2848 = vadd.f32 0.0, %v2847
    %2849 = vmatmul.bf16.gmra.mxu0 %v2816
    %v2850 = vpop.f32.mrf.mxu0
    %v2851 = vadd.f32 0.0, %v2850
    %v2852 = vpop.f32.mrf.mxu0
    %v2853 = vadd.f32 0.0, %v2852
    %2854 = vmatmul.bf16.gmra.mxu0 %v2819
    %v2855 = vpop.f32.mrf.mxu0
    %v2856 = vadd.f32 0.0, %v2855
    %v2857 = vpop.f32.mrf.mxu0
    %v2858 = vadd.f32 0.0, %v2857
    %2859 = vmatmul.bf16.gmra.mxu0 %v2822
    %v2860 = vpop.f32.mrf.mxu0
    %v2861 = vadd.f32 0.0, %v2860
    %v2862 = vpop.f32.mrf.mxu0
    %v2863 = vadd.f32 0.0, %v2862
    %2864 = vmatmul.bf16.gmra.mxu0 %v2825
    %v2865 = vpop.f32.mrf.mxu0
    %v2866 = vadd.f32 0.0, %v2865
    %v2867 = vpop.f32.mrf.mxu0
    %v2868 = vadd.f32 0.0, %v2867
    %2869 = vmatmul.bf16.gmra.mxu0 %v2828
    %v2870 = vpop.f32.mrf.mxu0
    %v2871 = vadd.f32 0.0, %v2870
    %v2872 = vpop.f32.mrf.mxu0
    %v2873 = vadd.f32 0.0, %v2872
    %2874 = vmatmul.bf16.gmra.mxu0 %v2831
    %v2875 = vpop.f32.mrf.mxu0
    %v2876 = vadd.f32 0.0, %v2875
    %v2877 = vpop.f32.mrf.mxu0
    %2878 = vdwg.mxu0
    %v2879 = vadd.f32 %v2486, %v2846
    %v2880 = vadd.f32 %v2487, %v2848
    %v2881 = vadd.f32 %v2488, %v2851
    %v2882 = vadd.f32 %v2489, %v2853
    %v2883 = vadd.f32 %v2490, %v2856
    %v2884 = vadd.f32 %v2491, %v2858
    %v2885 = vadd.f32 %v2492, %v2861
    %v2886 = vadd.f32 %v2493, %v2863
    %v2887 = vadd.f32 %v2494, %v2866
    %v2888 = vadd.f32 %v2495, %v2868
    %v2889 = vadd.f32 %v2496, %v2871
    %v2890 = vadd.f32 %v2497, %v2873
    %v2891 = vadd.f32 %v2498, %v2876
    %vm2892 = vcmp.eq.s32.totalorder %v475, 32
    %vm2893 = vcmp.eq.s32.totalorder %v476, 32
    %vm2894 = vcmp.eq.s32.totalorder %v477, 32
    %vm2895 = vcmp.eq.s32.totalorder %v478, 32
    %vm2896 = vcmp.eq.s32.totalorder %v479, 32
    %vm2897 = vcmp.eq.s32.totalorder %v480, 32
    %vm2898 = vcmp.eq.s32.totalorder %v481, 32
    %vm2899 = vcmp.eq.s32.totalorder %v482, 32
    %vm2900 = vcmp.eq.s32.totalorder %v483, 32
    %vm2901 = vcmp.eq.s32.totalorder %v484, 32
    %vm2902 = vcmp.eq.s32.totalorder %v485, 32
    %vm2903 = vcmp.eq.s32.totalorder %v486, 32
    %vm2904 = vcmp.eq.s32.totalorder %v487, 32
    %vm2905 = vcmp.eq.s32.totalorder %v488, 32
    %vm2906 = vcmp.eq.s32.totalorder %v489, 32
    %vm2907 = vcmp.eq.s32.totalorder %v490, 32
    %vm2908 = vcmp.eq.s32.totalorder %v491, 32
    %vm2909 = vcmp.eq.s32.totalorder %v492, 32
    %vm2910 = vcmp.eq.s32.totalorder %v493, 32
    %vm2911 = vcmp.eq.s32.totalorder %v494, 32
    %vm2912 = vcmp.eq.s32.totalorder %v495, 32
    %vm2913 = vcmp.eq.s32.totalorder %v496, 32
    %vm2914 = vcmp.eq.s32.totalorder %v497, 32
    %vm2915 = vcmp.eq.s32.totalorder %v498, 32
    %vm2916 = vcmp.eq.s32.totalorder %v499, 32
    %vm2917 = vcmp.eq.s32.totalorder %v500, 32
    %vm2918 = vcmp.eq.s32.totalorder %v501, 32
    %vm2919 = vcmp.eq.s32.totalorder %v502, 32
    %vm2920 = vcmp.eq.s32.totalorder %v503, 32
    %vm2921 = vcmp.eq.s32.totalorder %v504, 32
    %vm2922 = vcmp.eq.s32.totalorder %v505, 32
    %vm2923 = vcmp.eq.s32.totalorder %v506, 32
    %vm2924 = vcmp.eq.s32.totalorder %v507, 32
    %vm2925 = vcmp.eq.s32.totalorder %v508, 32
    %vm2926 = vcmp.eq.s32.totalorder %v509, 32
    %vm2927 = vcmp.eq.s32.totalorder %v510, 32
    %vm2928 = vcmp.eq.s32.totalorder %v511, 32
    %vm2929 = vcmp.eq.s32.totalorder %v512, 32
    %vm2930 = vcmp.eq.s32.totalorder %v513, 32
    %vm2931 = vcmp.eq.s32.totalorder %v514, 32
    %vm2932 = vcmp.eq.s32.totalorder %v515, 32
    %vm2933 = vcmp.eq.s32.totalorder %v516, 32
    %vm2934 = vcmp.eq.s32.totalorder %v517, 32
    %vm2935 = vcmp.eq.s32.totalorder %v518, 32
    %vm2936 = vcmp.eq.s32.totalorder %v519, 32
    %vm2937 = vcmp.eq.s32.totalorder %v520, 32
    %vm2938 = vcmp.eq.s32.totalorder %v521, 32
    %vm2939 = vcmp.eq.s32.totalorder %v522, 32
    %vm2940 = vcmp.eq.s32.totalorder %v523, 32
    %vm2941 = vcmp.eq.s32.totalorder %v524, 32
    %vm2942 = vcmp.eq.s32.totalorder %v525, 32
    %vm2943 = vcmp.eq.s32.totalorder %v526, 32
    %v2944 = vsel %vm2892, 1.0, 0.0
    %v2945 = vsel %vm2893, 1.0, 0.0
    %v2946 = vsel %vm2894, 1.0, 0.0
    %v2947 = vsel %vm2895, 1.0, 0.0
    %v2948 = vsel %vm2896, 1.0, 0.0
    %v2949 = vsel %vm2897, 1.0, 0.0
    %v2950 = vsel %vm2898, 1.0, 0.0
    %v2951 = vsel %vm2899, 1.0, 0.0
    %v2952 = vsel %vm2900, 1.0, 0.0
    %v2953 = vsel %vm2901, 1.0, 0.0
    %v2954 = vsel %vm2902, 1.0, 0.0
    %v2955 = vsel %vm2903, 1.0, 0.0
    %v2956 = vsel %vm2904, 1.0, 0.0
    %v2957 = vsel %vm2905, 1.0, 0.0
    %v2958 = vsel %vm2906, 1.0, 0.0
    %v2959 = vsel %vm2907, 1.0, 0.0
    %v2960 = vsel %vm2908, 1.0, 0.0
    %v2961 = vsel %vm2909, 1.0, 0.0
    %v2962 = vsel %vm2910, 1.0, 0.0
    %v2963 = vsel %vm2911, 1.0, 0.0
    %v2964 = vsel %vm2912, 1.0, 0.0
    %v2965 = vsel %vm2913, 1.0, 0.0
    %v2966 = vsel %vm2914, 1.0, 0.0
    %v2967 = vsel %vm2915, 1.0, 0.0
    %v2968 = vsel %vm2916, 1.0, 0.0
    %v2969 = vsel %vm2917, 1.0, 0.0
    %v2970 = vsel %vm2918, 1.0, 0.0
    %v2971 = vsel %vm2919, 1.0, 0.0
    %v2972 = vsel %vm2920, 1.0, 0.0
    %v2973 = vsel %vm2921, 1.0, 0.0
    %v2974 = vsel %vm2922, 1.0, 0.0
    %v2975 = vsel %vm2923, 1.0, 0.0
    %v2976 = vsel %vm2924, 1.0, 0.0
    %v2977 = vsel %vm2925, 1.0, 0.0
    %v2978 = vsel %vm2926, 1.0, 0.0
    %v2979 = vsel %vm2927, 1.0, 0.0
    %v2980 = vsel %vm2928, 1.0, 0.0
    %v2981 = vsel %vm2929, 1.0, 0.0
    %v2982 = vsel %vm2930, 1.0, 0.0
    %v2983 = vsel %vm2931, 1.0, 0.0
    %v2984 = vsel %vm2932, 1.0, 0.0
    %v2985 = vsel %vm2933, 1.0, 0.0
    %v2986 = vsel %vm2934, 1.0, 0.0
    %v2987 = vsel %vm2935, 1.0, 0.0
    %v2988 = vsel %vm2936, 1.0, 0.0
    %v2989 = vsel %vm2937, 1.0, 0.0
    %v2990 = vsel %vm2938, 1.0, 0.0
    %v2991 = vsel %vm2939, 1.0, 0.0
    %v2992 = vsel %vm2940, 1.0, 0.0
    %v2993 = vsel %vm2941, 1.0, 0.0
    %v2994 = vsel %vm2942, 1.0, 0.0
    %v2995 = vsel %vm2943, 1.0, 0.0
    %v2996 = vpack.c.bf16 %v2948, %v2944
    %v2997 = vpack.c.bf16 %v2949, %v2945
    %v2998 = vpack.c.bf16 %v2950, %v2946
    %v2999 = vpack.c.bf16 %v2951, %v2947
    %v3000 = vpack.c.bf16 %v2956, %v2952
    %v3001 = vpack.c.bf16 %v2957, %v2953
    %v3002 = vpack.c.bf16 %v2958, %v2954
    %v3003 = vpack.c.bf16 %v2959, %v2955
    %v3004 = vpack.c.bf16 %v2964, %v2960
    %v3005 = vpack.c.bf16 %v2965, %v2961
    %v3006 = vpack.c.bf16 %v2966, %v2962
    %v3007 = vpack.c.bf16 %v2967, %v2963
    %v3008 = vpack.c.bf16 %v2972, %v2968
    %v3009 = vpack.c.bf16 %v2973, %v2969
    %v3010 = vpack.c.bf16 %v2974, %v2970
    %v3011 = vpack.c.bf16 %v2975, %v2971
    %v3012 = vpack.c.bf16 %v2980, %v2976
    %v3013 = vpack.c.bf16 %v2981, %v2977
    %v3014 = vpack.c.bf16 %v2982, %v2978
    %v3015 = vpack.c.bf16 %v2983, %v2979
    %v3016 = vpack.c.bf16 %v2988, %v2984
    %v3017 = vpack.c.bf16 %v2989, %v2985
    %v3018 = vpack.c.bf16 %v2990, %v2986
    %v3019 = vpack.c.bf16 %v2991, %v2987
    %v3020 = vpack.c.bf16 %v2992, %v2992
    %v3021 = vpack.c.bf16 %v2993, %v2993
    %v3022 = vpack.c.bf16 %v2994, %v2994
    %v3023 = vpack.c.bf16 %v2995, %v2995
    %3024 = vmatpush.bf16.msra.mxu0 %v666
    %3025 = vmatpush.bf16.msra.mxu0 %v665
    %3026 = vmatpush.bf16.msra.mxu0 %v664
    %3027 = vmatpush.bf16.msra.mxu0 %v663
    %3028 = vmatpush.bf16.msra.mxu0 %v662
    %3029 = vmatpush.bf16.msra.mxu0 %v661
    %3030 = vmatpush.bf16.msra.mxu0 %v660
    %3031 = vmatpush.bf16.msra.mxu0 %v659
    %3032 = vmatmul.bf16.gmra.mxu0 %v2996
    %v3033 = vpop.f32.mrf.mxu0
    %v3034 = vadd.f32 0.0, %v3033
    %v3035 = vpop.f32.mrf.mxu0
    %v3036 = vadd.f32 0.0, %v3035
    %3037 = vmatmul.bf16.gmra.mxu0 %v3000
    %v3038 = vpop.f32.mrf.mxu0
    %v3039 = vadd.f32 0.0, %v3038
    %v3040 = vpop.f32.mrf.mxu0
    %v3041 = vadd.f32 0.0, %v3040
    %3042 = vmatmul.bf16.gmra.mxu0 %v3004
    %v3043 = vpop.f32.mrf.mxu0
    %v3044 = vadd.f32 0.0, %v3043
    %v3045 = vpop.f32.mrf.mxu0
    %v3046 = vadd.f32 0.0, %v3045
    %3047 = vmatmul.bf16.gmra.mxu0 %v3008
    %v3048 = vpop.f32.mrf.mxu0
    %v3049 = vadd.f32 0.0, %v3048
    %v3050 = vpop.f32.mrf.mxu0
    %v3051 = vadd.f32 0.0, %v3050
    %3052 = vmatmul.bf16.gmra.mxu0 %v3012
    %v3053 = vpop.f32.mrf.mxu0
    %v3054 = vadd.f32 0.0, %v3053
    %v3055 = vpop.f32.mrf.mxu0
    %v3056 = vadd.f32 0.0, %v3055
    %3057 = vmatmul.bf16.gmra.mxu0 %v3016
    %v3058 = vpop.f32.mrf.mxu0
    %v3059 = vadd.f32 0.0, %v3058
    %v3060 = vpop.f32.mrf.mxu0
    %v3061 = vadd.f32 0.0, %v3060
    %3062 = vmatmul.bf16.gmra.mxu0 %v3020
    %v3063 = vpop.f32.mrf.mxu0
    %v3064 = vadd.f32 0.0, %v3063
    %v3065 = vpop.f32.mrf.mxu0
    %3066 = vdwg.mxu0
    %3067 = vmatpush.bf16.msra.mxu0 %v674
    %3068 = vmatpush.bf16.msra.mxu0 %v673
    %3069 = vmatpush.bf16.msra.mxu0 %v672
    %3070 = vmatpush.bf16.msra.mxu0 %v671
    %3071 = vmatpush.bf16.msra.mxu0 %v670
    %3072 = vmatpush.bf16.msra.mxu0 %v669
    %3073 = vmatpush.bf16.msra.mxu0 %v668
    %3074 = vmatpush.bf16.msra.mxu0 %v667
    %3075 = vmatmul.bf16.gmra.mxu0 %v2997
    %v3076 = vpop.f32.mrf.mxu0
    %v3077 = vadd.f32 %v3034, %v3076
    %v3078 = vpop.f32.mrf.mxu0
    %v3079 = vadd.f32 %v3036, %v3078
    %3080 = vmatmul.bf16.gmra.mxu0 %v3001
    %v3081 = vpop.f32.mrf.mxu0
    %v3082 = vadd.f32 %v3039, %v3081
    %v3083 = vpop.f32.mrf.mxu0
    %v3084 = vadd.f32 %v3041, %v3083
    %3085 = vmatmul.bf16.gmra.mxu0 %v3005
    %v3086 = vpop.f32.mrf.mxu0
    %v3087 = vadd.f32 %v3044, %v3086
    %v3088 = vpop.f32.mrf.mxu0
    %v3089 = vadd.f32 %v3046, %v3088
    %3090 = vmatmul.bf16.gmra.mxu0 %v3009
    %v3091 = vpop.f32.mrf.mxu0
    %v3092 = vadd.f32 %v3049, %v3091
    %v3093 = vpop.f32.mrf.mxu0
    %v3094 = vadd.f32 %v3051, %v3093
    %3095 = vmatmul.bf16.gmra.mxu0 %v3013
    %v3096 = vpop.f32.mrf.mxu0
    %v3097 = vadd.f32 %v3054, %v3096
    %v3098 = vpop.f32.mrf.mxu0
    %v3099 = vadd.f32 %v3056, %v3098
    %3100 = vmatmul.bf16.gmra.mxu0 %v3017
    %v3101 = vpop.f32.mrf.mxu0
    %v3102 = vadd.f32 %v3059, %v3101
    %v3103 = vpop.f32.mrf.mxu0
    %v3104 = vadd.f32 %v3061, %v3103
    %3105 = vmatmul.bf16.gmra.mxu0 %v3021
    %v3106 = vpop.f32.mrf.mxu0
    %v3107 = vadd.f32 %v3064, %v3106
    %v3108 = vpop.f32.mrf.mxu0
    %3109 = vdwg.mxu0
    %3110 = vmatpush.bf16.msra.mxu0 %v682
    %3111 = vmatpush.bf16.msra.mxu0 %v681
    %3112 = vmatpush.bf16.msra.mxu0 %v680
    %3113 = vmatpush.bf16.msra.mxu0 %v679
    %3114 = vmatpush.bf16.msra.mxu0 %v678
    %3115 = vmatpush.bf16.msra.mxu0 %v677
    %3116 = vmatpush.bf16.msra.mxu0 %v676
    %3117 = vmatpush.bf16.msra.mxu0 %v675
    %3118 = vmatmul.bf16.gmra.mxu0 %v2998
    %v3119 = vpop.f32.mrf.mxu0
    %v3120 = vadd.f32 %v3077, %v3119
    %v3121 = vpop.f32.mrf.mxu0
    %v3122 = vadd.f32 %v3079, %v3121
    %3123 = vmatmul.bf16.gmra.mxu0 %v3002
    %v3124 = vpop.f32.mrf.mxu0
    %v3125 = vadd.f32 %v3082, %v3124
    %v3126 = vpop.f32.mrf.mxu0
    %v3127 = vadd.f32 %v3084, %v3126
    %3128 = vmatmul.bf16.gmra.mxu0 %v3006
    %v3129 = vpop.f32.mrf.mxu0
    %v3130 = vadd.f32 %v3087, %v3129
    %v3131 = vpop.f32.mrf.mxu0
    %v3132 = vadd.f32 %v3089, %v3131
    %3133 = vmatmul.bf16.gmra.mxu0 %v3010
    %v3134 = vpop.f32.mrf.mxu0
    %v3135 = vadd.f32 %v3092, %v3134
    %v3136 = vpop.f32.mrf.mxu0
    %v3137 = vadd.f32 %v3094, %v3136
    %3138 = vmatmul.bf16.gmra.mxu0 %v3014
    %v3139 = vpop.f32.mrf.mxu0
    %v3140 = vadd.f32 %v3097, %v3139
    %v3141 = vpop.f32.mrf.mxu0
    %v3142 = vadd.f32 %v3099, %v3141
    %3143 = vmatmul.bf16.gmra.mxu0 %v3018
    %v3144 = vpop.f32.mrf.mxu0
    %v3145 = vadd.f32 %v3102, %v3144
    %v3146 = vpop.f32.mrf.mxu0
    %v3147 = vadd.f32 %v3104, %v3146
    %3148 = vmatmul.bf16.gmra.mxu0 %v3022
    %v3149 = vpop.f32.mrf.mxu0
    %v3150 = vadd.f32 %v3107, %v3149
    %v3151 = vpop.f32.mrf.mxu0
    %3152 = vdwg.mxu0
    %3153 = vmatpush.bf16.msra.mxu0 %v690
    %3154 = vmatpush.bf16.msra.mxu0 %v689
    %3155 = vmatpush.bf16.msra.mxu0 %v688
    %3156 = vmatpush.bf16.msra.mxu0 %v687
    %3157 = vmatpush.bf16.msra.mxu0 %v686
    %3158 = vmatpush.bf16.msra.mxu0 %v685
    %3159 = vmatpush.bf16.msra.mxu0 %v684
    %3160 = vmatpush.bf16.msra.mxu0 %v683
    %3161 = vmatmul.bf16.gmra.mxu0 %v2999
    %v3162 = vpop.f32.mrf.mxu0
    %v3163 = vadd.f32 %v3120, %v3162
    %v3164 = vpop.f32.mrf.mxu0
    %v3165 = vadd.f32 %v3122, %v3164
    %3166 = vmatmul.bf16.gmra.mxu0 %v3003
    %v3167 = vpop.f32.mrf.mxu0
    %v3168 = vadd.f32 %v3125, %v3167
    %v3169 = vpop.f32.mrf.mxu0
    %v3170 = vadd.f32 %v3127, %v3169
    %3171 = vmatmul.bf16.gmra.mxu0 %v3007
    %v3172 = vpop.f32.mrf.mxu0
    %v3173 = vadd.f32 %v3130, %v3172
    %v3174 = vpop.f32.mrf.mxu0
    %v3175 = vadd.f32 %v3132, %v3174
    %3176 = vmatmul.bf16.gmra.mxu0 %v3011
    %v3177 = vpop.f32.mrf.mxu0
    %v3178 = vadd.f32 %v3135, %v3177
    %v3179 = vpop.f32.mrf.mxu0
    %v3180 = vadd.f32 %v3137, %v3179
    %3181 = vmatmul.bf16.gmra.mxu0 %v3015
    %v3182 = vpop.f32.mrf.mxu0
    %v3183 = vadd.f32 %v3140, %v3182
    %v3184 = vpop.f32.mrf.mxu0
    %v3185 = vadd.f32 %v3142, %v3184
    %3186 = vmatmul.bf16.gmra.mxu0 %v3019
    %v3187 = vpop.f32.mrf.mxu0
    %v3188 = vadd.f32 %v3145, %v3187
    %v3189 = vpop.f32.mrf.mxu0
    %v3190 = vadd.f32 %v3147, %v3189
    %3191 = vmatmul.bf16.gmra.mxu0 %v3023
    %v3192 = vpop.f32.mrf.mxu0
    %v3193 = vadd.f32 %v3150, %v3192
    %v3194 = vpop.f32.mrf.mxu0
    %3195 = vdwg.mxu0
    %s3196 = scalar_lea.vmem [#allocation6], 24
    %v3197 = vld [vmem:[%s3196] sm:$0x7]
    %v3198 = vpack.c.bf16 %v3165, %v3163
    %v3199 = vpack.c.bf16 %v3170, %v3168
    %v3200 = vpack.c.bf16 %v3175, %v3173
    %v3201 = vpack.c.bf16 %v3180, %v3178
    %v3202 = vpack.c.bf16 %v3185, %v3183
    %v3203 = vpack.c.bf16 %v3190, %v3188
    %v3204 = vpack.c.bf16 %v3193, %v3193
    %v3206 = vsel %vm1184, %v3198, 0
    %v3209 = vsel %vm1184, %v3199, 0
    %v3212 = vsel %vm1184, %v3200, 0
    %v3215 = vsel %vm1184, %v3201, 0
    %v3218 = vsel %vm1184, %v3202, 0
    %v3221 = vsel %vm1184, %v3203, 0
    %v3224 = vsel %vm1184, %v3204, 0
    %v3227 = vsel %vm1206, %v3197, 0
    %3229 = vmatpush.bf16.msra.mxu0 0
    %3230 = vmatpush.bf16.msra.mxu0 0
    %3231 = vmatpush.bf16.msra.mxu0 0
    %3232 = vmatpush.bf16.msra.mxu0 0
    %3233 = vmatpush.bf16.msra.mxu0 0
    %3234 = vmatpush.bf16.msra.mxu0 0
    %3235 = vmatpush.bf16.msra.mxu0 0
    %3236 = vmatpush.bf16.msra.mxu0 %v3227
    %3237 = vmatmul.bf16.gmra.mxu0 %v3206
    %v3238 = vpop.f32.mrf.mxu0
    %v3239 = vadd.f32 0.0, %v3238
    %v3240 = vpop.f32.mrf.mxu0
    %v3241 = vadd.f32 0.0, %v3240
    %3242 = vmatmul.bf16.gmra.mxu0 %v3209
    %v3243 = vpop.f32.mrf.mxu0
    %v3244 = vadd.f32 0.0, %v3243
    %v3245 = vpop.f32.mrf.mxu0
    %v3246 = vadd.f32 0.0, %v3245
    %3247 = vmatmul.bf16.gmra.mxu0 %v3212
    %v3248 = vpop.f32.mrf.mxu0
    %v3249 = vadd.f32 0.0, %v3248
    %v3250 = vpop.f32.mrf.mxu0
    %v3251 = vadd.f32 0.0, %v3250
    %3252 = vmatmul.bf16.gmra.mxu0 %v3215
    %v3253 = vpop.f32.mrf.mxu0
    %v3254 = vadd.f32 0.0, %v3253
    %v3255 = vpop.f32.mrf.mxu0
    %v3256 = vadd.f32 0.0, %v3255
    %3257 = vmatmul.bf16.gmra.mxu0 %v3218
    %v3258 = vpop.f32.mrf.mxu0
    %v3259 = vadd.f32 0.0, %v3258
    %v3260 = vpop.f32.mrf.mxu0
    %v3261 = vadd.f32 0.0, %v3260
    %3262 = vmatmul.bf16.gmra.mxu0 %v3221
    %v3263 = vpop.f32.mrf.mxu0
    %v3264 = vadd.f32 0.0, %v3263
    %v3265 = vpop.f32.mrf.mxu0
    %v3266 = vadd.f32 0.0, %v3265
    %3267 = vmatmul.bf16.gmra.mxu0 %v3224
    %v3268 = vpop.f32.mrf.mxu0
    %v3269 = vadd.f32 0.0, %v3268
    %v3270 = vpop.f32.mrf.mxu0
    %3271 = vdwg.mxu0
    %v3272 = vadd.f32 %v2879, %v3239
    %v3273 = vadd.f32 %v2880, %v3241
    %v3274 = vadd.f32 %v2881, %v3244
    %v3275 = vadd.f32 %v2882, %v3246
    %v3276 = vadd.f32 %v2883, %v3249
    %v3277 = vadd.f32 %v2884, %v3251
    %v3278 = vadd.f32 %v2885, %v3254
    %v3279 = vadd.f32 %v2886, %v3256
    %v3280 = vadd.f32 %v2887, %v3259
    %v3281 = vadd.f32 %v2888, %v3261
    %v3282 = vadd.f32 %v2889, %v3264
    %v3283 = vadd.f32 %v2890, %v3266
    %v3284 = vadd.f32 %v2891, %v3269
    %vm3285 = vcmp.eq.s32.totalorder %v475, 33
    %vm3286 = vcmp.eq.s32.totalorder %v476, 33
    %vm3287 = vcmp.eq.s32.totalorder %v477, 33
    %vm3288 = vcmp.eq.s32.totalorder %v478, 33
    %vm3289 = vcmp.eq.s32.totalorder %v479, 33
    %vm3290 = vcmp.eq.s32.totalorder %v480, 33
    %vm3291 = vcmp.eq.s32.totalorder %v481, 33
    %vm3292 = vcmp.eq.s32.totalorder %v482, 33
    %vm3293 = vcmp.eq.s32.totalorder %v483, 33
    %vm3294 = vcmp.eq.s32.totalorder %v484, 33
    %vm3295 = vcmp.eq.s32.totalorder %v485, 33
    %vm3296 = vcmp.eq.s32.totalorder %v486, 33
    %vm3297 = vcmp.eq.s32.totalorder %v487, 33
    %vm3298 = vcmp.eq.s32.totalorder %v488, 33
    %vm3299 = vcmp.eq.s32.totalorder %v489, 33
    %vm3300 = vcmp.eq.s32.totalorder %v490, 33
    %vm3301 = vcmp.eq.s32.totalorder %v491, 33
    %vm3302 = vcmp.eq.s32.totalorder %v492, 33
    %vm3303 = vcmp.eq.s32.totalorder %v493, 33
    %vm3304 = vcmp.eq.s32.totalorder %v494, 33
    %vm3305 = vcmp.eq.s32.totalorder %v495, 33
    %vm3306 = vcmp.eq.s32.totalorder %v496, 33
    %vm3307 = vcmp.eq.s32.totalorder %v497, 33
    %vm3308 = vcmp.eq.s32.totalorder %v498, 33
    %vm3309 = vcmp.eq.s32.totalorder %v499, 33
    %vm3310 = vcmp.eq.s32.totalorder %v500, 33
    %vm3311 = vcmp.eq.s32.totalorder %v501, 33
    %vm3312 = vcmp.eq.s32.totalorder %v502, 33
    %vm3313 = vcmp.eq.s32.totalorder %v503, 33
    %vm3314 = vcmp.eq.s32.totalorder %v504, 33
    %vm3315 = vcmp.eq.s32.totalorder %v505, 33
    %vm3316 = vcmp.eq.s32.totalorder %v506, 33
    %vm3317 = vcmp.eq.s32.totalorder %v507, 33
    %vm3318 = vcmp.eq.s32.totalorder %v508, 33
    %vm3319 = vcmp.eq.s32.totalorder %v509, 33
    %vm3320 = vcmp.eq.s32.totalorder %v510, 33
    %vm3321 = vcmp.eq.s32.totalorder %v511, 33
    %vm3322 = vcmp.eq.s32.totalorder %v512, 33
    %vm3323 = vcmp.eq.s32.totalorder %v513, 33
    %vm3324 = vcmp.eq.s32.totalorder %v514, 33
    %vm3325 = vcmp.eq.s32.totalorder %v515, 33
    %vm3326 = vcmp.eq.s32.totalorder %v516, 33
    %vm3327 = vcmp.eq.s32.totalorder %v517, 33
    %vm3328 = vcmp.eq.s32.totalorder %v518, 33
    %vm3329 = vcmp.eq.s32.totalorder %v519, 33
    %vm3330 = vcmp.eq.s32.totalorder %v520, 33
    %vm3331 = vcmp.eq.s32.totalorder %v521, 33
    %vm3332 = vcmp.eq.s32.totalorder %v522, 33
    %vm3333 = vcmp.eq.s32.totalorder %v523, 33
    %vm3334 = vcmp.eq.s32.totalorder %v524, 33
    %vm3335 = vcmp.eq.s32.totalorder %v525, 33
    %vm3336 = vcmp.eq.s32.totalorder %v526, 33
    %v3337 = vsel %vm3285, 1.0, 0.0
    %v3338 = vsel %vm3286, 1.0, 0.0
    %v3339 = vsel %vm3287, 1.0, 0.0
    %v3340 = vsel %vm3288, 1.0, 0.0
    %v3341 = vsel %vm3289, 1.0, 0.0
    %v3342 = vsel %vm3290, 1.0, 0.0
    %v3343 = vsel %vm3291, 1.0, 0.0
    %v3344 = vsel %vm3292, 1.0, 0.0
    %v3345 = vsel %vm3293, 1.0, 0.0
    %v3346 = vsel %vm3294, 1.0, 0.0
    %v3347 = vsel %vm3295, 1.0, 0.0
    %v3348 = vsel %vm3296, 1.0, 0.0
    %v3349 = vsel %vm3297, 1.0, 0.0
    %v3350 = vsel %vm3298, 1.0, 0.0
    %v3351 = vsel %vm3299, 1.0, 0.0
    %v3352 = vsel %vm3300, 1.0, 0.0
    %v3353 = vsel %vm3301, 1.0, 0.0
    %v3354 = vsel %vm3302, 1.0, 0.0
    %v3355 = vsel %vm3303, 1.0, 0.0
    %v3356 = vsel %vm3304, 1.0, 0.0
    %v3357 = vsel %vm3305, 1.0, 0.0
    %v3358 = vsel %vm3306, 1.0, 0.0
    %v3359 = vsel %vm3307, 1.0, 0.0
    %v3360 = vsel %vm3308, 1.0, 0.0
    %v3361 = vsel %vm3309, 1.0, 0.0
    %v3362 = vsel %vm3310, 1.0, 0.0
    %v3363 = vsel %vm3311, 1.0, 0.0
    %v3364 = vsel %vm3312, 1.0, 0.0
    %v3365 = vsel %vm3313, 1.0, 0.0
    %v3366 = vsel %vm3314, 1.0, 0.0
    %v3367 = vsel %vm3315, 1.0, 0.0
    %v3368 = vsel %vm3316, 1.0, 0.0
    %v3369 = vsel %vm3317, 1.0, 0.0
    %v3370 = vsel %vm3318, 1.0, 0.0
    %v3371 = vsel %vm3319, 1.0, 0.0
    %v3372 = vsel %vm3320, 1.0, 0.0
    %v3373 = vsel %vm3321, 1.0, 0.0
    %v3374 = vsel %vm3322, 1.0, 0.0
    %v3375 = vsel %vm3323, 1.0, 0.0
    %v3376 = vsel %vm3324, 1.0, 0.0
    %v3377 = vsel %vm3325, 1.0, 0.0
    %v3378 = vsel %vm3326, 1.0, 0.0
    %v3379 = vsel %vm3327, 1.0, 0.0
    %v3380 = vsel %vm3328, 1.0, 0.0
    %v3381 = vsel %vm3329, 1.0, 0.0
    %v3382 = vsel %vm3330, 1.0, 0.0
    %v3383 = vsel %vm3331, 1.0, 0.0
    %v3384 = vsel %vm3332, 1.0, 0.0
    %v3385 = vsel %vm3333, 1.0, 0.0
    %v3386 = vsel %vm3334, 1.0, 0.0
    %v3387 = vsel %vm3335, 1.0, 0.0
    %v3388 = vsel %vm3336, 1.0, 0.0
    %v3389 = vpack.c.bf16 %v3341, %v3337
    %v3390 = vpack.c.bf16 %v3342, %v3338
    %v3391 = vpack.c.bf16 %v3343, %v3339
    %v3392 = vpack.c.bf16 %v3344, %v3340
    %v3393 = vpack.c.bf16 %v3349, %v3345
    %v3394 = vpack.c.bf16 %v3350, %v3346
    %v3395 = vpack.c.bf16 %v3351, %v3347
    %v3396 = vpack.c.bf16 %v3352, %v3348
    %v3397 = vpack.c.bf16 %v3357, %v3353
    %v3398 = vpack.c.bf16 %v3358, %v3354
    %v3399 = vpack.c.bf16 %v3359, %v3355
    %v3400 = vpack.c.bf16 %v3360, %v3356
    %v3401 = vpack.c.bf16 %v3365, %v3361
    %v3402 = vpack.c.bf16 %v3366, %v3362
    %v3403 = vpack.c.bf16 %v3367, %v3363
    %v3404 = vpack.c.bf16 %v3368, %v3364
    %v3405 = vpack.c.bf16 %v3373, %v3369
    %v3406 = vpack.c.bf16 %v3374, %v3370
    %v3407 = vpack.c.bf16 %v3375, %v3371
    %v3408 = vpack.c.bf16 %v3376, %v3372
    %v3409 = vpack.c.bf16 %v3381, %v3377
    %v3410 = vpack.c.bf16 %v3382, %v3378
    %v3411 = vpack.c.bf16 %v3383, %v3379
    %v3412 = vpack.c.bf16 %v3384, %v3380
    %v3413 = vpack.c.bf16 %v3385, %v3385
    %v3414 = vpack.c.bf16 %v3386, %v3386
    %v3415 = vpack.c.bf16 %v3387, %v3387
    %v3416 = vpack.c.bf16 %v3388, %v3388
    %3417 = vmatpush.bf16.msra.mxu0 %v666
    %3418 = vmatpush.bf16.msra.mxu0 %v665
    %3419 = vmatpush.bf16.msra.mxu0 %v664
    %3420 = vmatpush.bf16.msra.mxu0 %v663
    %3421 = vmatpush.bf16.msra.mxu0 %v662
    %3422 = vmatpush.bf16.msra.mxu0 %v661
    %3423 = vmatpush.bf16.msra.mxu0 %v660
    %3424 = vmatpush.bf16.msra.mxu0 %v659
    %3425 = vmatmul.bf16.gmra.mxu0 %v3389
    %v3426 = vpop.f32.mrf.mxu0
    %v3427 = vadd.f32 0.0, %v3426
    %v3428 = vpop.f32.mrf.mxu0
    %v3429 = vadd.f32 0.0, %v3428
    %3430 = vmatmul.bf16.gmra.mxu0 %v3393
    %v3431 = vpop.f32.mrf.mxu0
    %v3432 = vadd.f32 0.0, %v3431
    %v3433 = vpop.f32.mrf.mxu0
    %v3434 = vadd.f32 0.0, %v3433
    %3435 = vmatmul.bf16.gmra.mxu0 %v3397
    %v3436 = vpop.f32.mrf.mxu0
    %v3437 = vadd.f32 0.0, %v3436
    %v3438 = vpop.f32.mrf.mxu0
    %v3439 = vadd.f32 0.0, %v3438
    %3440 = vmatmul.bf16.gmra.mxu0 %v3401
    %v3441 = vpop.f32.mrf.mxu0
    %v3442 = vadd.f32 0.0, %v3441
    %v3443 = vpop.f32.mrf.mxu0
    %v3444 = vadd.f32 0.0, %v3443
    %3445 = vmatmul.bf16.gmra.mxu0 %v3405
    %v3446 = vpop.f32.mrf.mxu0
    %v3447 = vadd.f32 0.0, %v3446
    %v3448 = vpop.f32.mrf.mxu0
    %v3449 = vadd.f32 0.0, %v3448
    %3450 = vmatmul.bf16.gmra.mxu0 %v3409
    %v3451 = vpop.f32.mrf.mxu0
    %v3452 = vadd.f32 0.0, %v3451
    %v3453 = vpop.f32.mrf.mxu0
    %v3454 = vadd.f32 0.0, %v3453
    %3455 = vmatmul.bf16.gmra.mxu0 %v3413
    %v3456 = vpop.f32.mrf.mxu0
    %v3457 = vadd.f32 0.0, %v3456
    %v3458 = vpop.f32.mrf.mxu0
    %3459 = vdwg.mxu0
    %3460 = vmatpush.bf16.msra.mxu0 %v674
    %3461 = vmatpush.bf16.msra.mxu0 %v673
    %3462 = vmatpush.bf16.msra.mxu0 %v672
    %3463 = vmatpush.bf16.msra.mxu0 %v671
    %3464 = vmatpush.bf16.msra.mxu0 %v670
    %3465 = vmatpush.bf16.msra.mxu0 %v669
    %3466 = vmatpush.bf16.msra.mxu0 %v668
    %3467 = vmatpush.bf16.msra.mxu0 %v667
    %3468 = vmatmul.bf16.gmra.mxu0 %v3390
    %v3469 = vpop.f32.mrf.mxu0
    %v3470 = vadd.f32 %v3427, %v3469
    %v3471 = vpop.f32.mrf.mxu0
    %v3472 = vadd.f32 %v3429, %v3471
    %3473 = vmatmul.bf16.gmra.mxu0 %v3394
    %v3474 = vpop.f32.mrf.mxu0
    %v3475 = vadd.f32 %v3432, %v3474
    %v3476 = vpop.f32.mrf.mxu0
    %v3477 = vadd.f32 %v3434, %v3476
    %3478 = vmatmul.bf16.gmra.mxu0 %v3398
    %v3479 = vpop.f32.mrf.mxu0
    %v3480 = vadd.f32 %v3437, %v3479
    %v3481 = vpop.f32.mrf.mxu0
    %v3482 = vadd.f32 %v3439, %v3481
    %3483 = vmatmul.bf16.gmra.mxu0 %v3402
    %v3484 = vpop.f32.mrf.mxu0
    %v3485 = vadd.f32 %v3442, %v3484
    %v3486 = vpop.f32.mrf.mxu0
    %v3487 = vadd.f32 %v3444, %v3486
    %3488 = vmatmul.bf16.gmra.mxu0 %v3406
    %v3489 = vpop.f32.mrf.mxu0
    %v3490 = vadd.f32 %v3447, %v3489
    %v3491 = vpop.f32.mrf.mxu0
    %v3492 = vadd.f32 %v3449, %v3491
    %3493 = vmatmul.bf16.gmra.mxu0 %v3410
    %v3494 = vpop.f32.mrf.mxu0
    %v3495 = vadd.f32 %v3452, %v3494
    %v3496 = vpop.f32.mrf.mxu0
    %v3497 = vadd.f32 %v3454, %v3496
    %3498 = vmatmul.bf16.gmra.mxu0 %v3414
    %v3499 = vpop.f32.mrf.mxu0
    %v3500 = vadd.f32 %v3457, %v3499
    %v3501 = vpop.f32.mrf.mxu0
    %3502 = vdwg.mxu0
    %3503 = vmatpush.bf16.msra.mxu0 %v682
    %3504 = vmatpush.bf16.msra.mxu0 %v681
    %3505 = vmatpush.bf16.msra.mxu0 %v680
    %3506 = vmatpush.bf16.msra.mxu0 %v679
    %3507 = vmatpush.bf16.msra.mxu0 %v678
    %3508 = vmatpush.bf16.msra.mxu0 %v677
    %3509 = vmatpush.bf16.msra.mxu0 %v676
    %3510 = vmatpush.bf16.msra.mxu0 %v675
    %3511 = vmatmul.bf16.gmra.mxu0 %v3391
    %v3512 = vpop.f32.mrf.mxu0
    %v3513 = vadd.f32 %v3470, %v3512
    %v3514 = vpop.f32.mrf.mxu0
    %v3515 = vadd.f32 %v3472, %v3514
    %3516 = vmatmul.bf16.gmra.mxu0 %v3395
    %v3517 = vpop.f32.mrf.mxu0
    %v3518 = vadd.f32 %v3475, %v3517
    %v3519 = vpop.f32.mrf.mxu0
    %v3520 = vadd.f32 %v3477, %v3519
    %3521 = vmatmul.bf16.gmra.mxu0 %v3399
    %v3522 = vpop.f32.mrf.mxu0
    %v3523 = vadd.f32 %v3480, %v3522
    %v3524 = vpop.f32.mrf.mxu0
    %v3525 = vadd.f32 %v3482, %v3524
    %3526 = vmatmul.bf16.gmra.mxu0 %v3403
    %v3527 = vpop.f32.mrf.mxu0
    %v3528 = vadd.f32 %v3485, %v3527
    %v3529 = vpop.f32.mrf.mxu0
    %v3530 = vadd.f32 %v3487, %v3529
    %3531 = vmatmul.bf16.gmra.mxu0 %v3407
    %v3532 = vpop.f32.mrf.mxu0
    %v3533 = vadd.f32 %v3490, %v3532
    %v3534 = vpop.f32.mrf.mxu0
    %v3535 = vadd.f32 %v3492, %v3534
    %3536 = vmatmul.bf16.gmra.mxu0 %v3411
    %v3537 = vpop.f32.mrf.mxu0
    %v3538 = vadd.f32 %v3495, %v3537
    %v3539 = vpop.f32.mrf.mxu0
    %v3540 = vadd.f32 %v3497, %v3539
    %3541 = vmatmul.bf16.gmra.mxu0 %v3415
    %v3542 = vpop.f32.mrf.mxu0
    %v3543 = vadd.f32 %v3500, %v3542
    %v3544 = vpop.f32.mrf.mxu0
    %3545 = vdwg.mxu0
    %3546 = vmatpush.bf16.msra.mxu0 %v690
    %3547 = vmatpush.bf16.msra.mxu0 %v689
    %3548 = vmatpush.bf16.msra.mxu0 %v688
    %3549 = vmatpush.bf16.msra.mxu0 %v687
    %3550 = vmatpush.bf16.msra.mxu0 %v686
    %3551 = vmatpush.bf16.msra.mxu0 %v685
    %3552 = vmatpush.bf16.msra.mxu0 %v684
    %3553 = vmatpush.bf16.msra.mxu0 %v683
    %3554 = vmatmul.bf16.gmra.mxu0 %v3392
    %v3555 = vpop.f32.mrf.mxu0
    %v3556 = vadd.f32 %v3513, %v3555
    %v3557 = vpop.f32.mrf.mxu0
    %v3558 = vadd.f32 %v3515, %v3557
    %3559 = vmatmul.bf16.gmra.mxu0 %v3396
    %v3560 = vpop.f32.mrf.mxu0
    %v3561 = vadd.f32 %v3518, %v3560
    %v3562 = vpop.f32.mrf.mxu0
    %v3563 = vadd.f32 %v3520, %v3562
    %3564 = vmatmul.bf16.gmra.mxu0 %v3400
    %v3565 = vpop.f32.mrf.mxu0
    %v3566 = vadd.f32 %v3523, %v3565
    %v3567 = vpop.f32.mrf.mxu0
    %v3568 = vadd.f32 %v3525, %v3567
    %3569 = vmatmul.bf16.gmra.mxu0 %v3404
    %v3570 = vpop.f32.mrf.mxu0
    %v3571 = vadd.f32 %v3528, %v3570
    %v3572 = vpop.f32.mrf.mxu0
    %v3573 = vadd.f32 %v3530, %v3572
    %3574 = vmatmul.bf16.gmra.mxu0 %v3408
    %v3575 = vpop.f32.mrf.mxu0
    %v3576 = vadd.f32 %v3533, %v3575
    %v3577 = vpop.f32.mrf.mxu0
    %v3578 = vadd.f32 %v3535, %v3577
    %3579 = vmatmul.bf16.gmra.mxu0 %v3412
    %v3580 = vpop.f32.mrf.mxu0
    %v3581 = vadd.f32 %v3538, %v3580
    %v3582 = vpop.f32.mrf.mxu0
    %v3583 = vadd.f32 %v3540, %v3582
    %3584 = vmatmul.bf16.gmra.mxu0 %v3416
    %v3585 = vpop.f32.mrf.mxu0
    %v3586 = vadd.f32 %v3543, %v3585
    %v3587 = vpop.f32.mrf.mxu0
    %3588 = vdwg.mxu0
    %s3589 = scalar_lea.vmem [#allocation6], 28
    %v3590 = vld [vmem:[%s3589] sm:$0x7]
    %v3591 = vpack.c.bf16 %v3558, %v3556
    %v3592 = vpack.c.bf16 %v3563, %v3561
    %v3593 = vpack.c.bf16 %v3568, %v3566
    %v3594 = vpack.c.bf16 %v3573, %v3571
    %v3595 = vpack.c.bf16 %v3578, %v3576
    %v3596 = vpack.c.bf16 %v3583, %v3581
    %v3597 = vpack.c.bf16 %v3586, %v3586
    %v3599 = vsel %vm1184, %v3591, 0
    %v3602 = vsel %vm1184, %v3592, 0
    %v3605 = vsel %vm1184, %v3593, 0
    %v3608 = vsel %vm1184, %v3594, 0
    %v3611 = vsel %vm1184, %v3595, 0
    %v3614 = vsel %vm1184, %v3596, 0
    %v3617 = vsel %vm1184, %v3597, 0
    %v3620 = vsel %vm1206, %v3590, 0
    %3622 = vmatpush.bf16.msra.mxu0 0
    %3623 = vmatpush.bf16.msra.mxu0 0
    %3624 = vmatpush.bf16.msra.mxu0 0
    %3625 = vmatpush.bf16.msra.mxu0 0
    %3626 = vmatpush.bf16.msra.mxu0 0
    %3627 = vmatpush.bf16.msra.mxu0 0
    %3628 = vmatpush.bf16.msra.mxu0 0
    %3629 = vmatpush.bf16.msra.mxu0 %v3620
    %3630 = vmatmul.bf16.gmra.mxu0 %v3599
    %v3631 = vpop.f32.mrf.mxu0
    %v3632 = vadd.f32 0.0, %v3631
    %v3633 = vpop.f32.mrf.mxu0
    %v3634 = vadd.f32 0.0, %v3633
    %3635 = vmatmul.bf16.gmra.mxu0 %v3602
    %v3636 = vpop.f32.mrf.mxu0
    %v3637 = vadd.f32 0.0, %v3636
    %v3638 = vpop.f32.mrf.mxu0
    %v3639 = vadd.f32 0.0, %v3638
    %3640 = vmatmul.bf16.gmra.mxu0 %v3605
    %v3641 = vpop.f32.mrf.mxu0
    %v3642 = vadd.f32 0.0, %v3641
    %v3643 = vpop.f32.mrf.mxu0
    %v3644 = vadd.f32 0.0, %v3643
    %3645 = vmatmul.bf16.gmra.mxu0 %v3608
    %v3646 = vpop.f32.mrf.mxu0
    %v3647 = vadd.f32 0.0, %v3646
    %v3648 = vpop.f32.mrf.mxu0
    %v3649 = vadd.f32 0.0, %v3648
    %3650 = vmatmul.bf16.gmra.mxu0 %v3611
    %v3651 = vpop.f32.mrf.mxu0
    %v3652 = vadd.f32 0.0, %v3651
    %v3653 = vpop.f32.mrf.mxu0
    %v3654 = vadd.f32 0.0, %v3653
    %3655 = vmatmul.bf16.gmra.mxu0 %v3614
    %v3656 = vpop.f32.mrf.mxu0
    %v3657 = vadd.f32 0.0, %v3656
    %v3658 = vpop.f32.mrf.mxu0
    %v3659 = vadd.f32 0.0, %v3658
    %3660 = vmatmul.bf16.gmra.mxu0 %v3617
    %v3661 = vpop.f32.mrf.mxu0
    %v3662 = vadd.f32 0.0, %v3661
    %v3663 = vpop.f32.mrf.mxu0
    %3664 = vdwg.mxu0
    %v3665 = vadd.f32 %v3272, %v3632
    %v3666 = vadd.f32 %v3273, %v3634
    %v3667 = vadd.f32 %v3274, %v3637
    %v3668 = vadd.f32 %v3275, %v3639
    %v3669 = vadd.f32 %v3276, %v3642
    %v3670 = vadd.f32 %v3277, %v3644
    %v3671 = vadd.f32 %v3278, %v3647
    %v3672 = vadd.f32 %v3279, %v3649
    %v3673 = vadd.f32 %v3280, %v3652
    %v3674 = vadd.f32 %v3281, %v3654
    %v3675 = vadd.f32 %v3282, %v3657
    %v3676 = vadd.f32 %v3283, %v3659
    %v3677 = vadd.f32 %v3284, %v3662
    %vm3678 = vcmp.eq.s32.totalorder %v475, 34
    %vm3679 = vcmp.eq.s32.totalorder %v476, 34
    %vm3680 = vcmp.eq.s32.totalorder %v477, 34
    %vm3681 = vcmp.eq.s32.totalorder %v478, 34
    %vm3682 = vcmp.eq.s32.totalorder %v479, 34
    %vm3683 = vcmp.eq.s32.totalorder %v480, 34
    %vm3684 = vcmp.eq.s32.totalorder %v481, 34
    %vm3685 = vcmp.eq.s32.totalorder %v482, 34
    %vm3686 = vcmp.eq.s32.totalorder %v483, 34
    %vm3687 = vcmp.eq.s32.totalorder %v484, 34
    %vm3688 = vcmp.eq.s32.totalorder %v485, 34
    %vm3689 = vcmp.eq.s32.totalorder %v486, 34
    %vm3690 = vcmp.eq.s32.totalorder %v487, 34
    %vm3691 = vcmp.eq.s32.totalorder %v488, 34
    %vm3692 = vcmp.eq.s32.totalorder %v489, 34
    %vm3693 = vcmp.eq.s32.totalorder %v490, 34
    %vm3694 = vcmp.eq.s32.totalorder %v491, 34
    %vm3695 = vcmp.eq.s32.totalorder %v492, 34
    %vm3696 = vcmp.eq.s32.totalorder %v493, 34
    %vm3697 = vcmp.eq.s32.totalorder %v494, 34
    %vm3698 = vcmp.eq.s32.totalorder %v495, 34
    %vm3699 = vcmp.eq.s32.totalorder %v496, 34
    %vm3700 = vcmp.eq.s32.totalorder %v497, 34
    %vm3701 = vcmp.eq.s32.totalorder %v498, 34
    %vm3702 = vcmp.eq.s32.totalorder %v499, 34
    %vm3703 = vcmp.eq.s32.totalorder %v500, 34
    %vm3704 = vcmp.eq.s32.totalorder %v501, 34
    %vm3705 = vcmp.eq.s32.totalorder %v502, 34
    %vm3706 = vcmp.eq.s32.totalorder %v503, 34
    %vm3707 = vcmp.eq.s32.totalorder %v504, 34
    %vm3708 = vcmp.eq.s32.totalorder %v505, 34
    %vm3709 = vcmp.eq.s32.totalorder %v506, 34
    %vm3710 = vcmp.eq.s32.totalorder %v507, 34
    %vm3711 = vcmp.eq.s32.totalorder %v508, 34
    %vm3712 = vcmp.eq.s32.totalorder %v509, 34
    %vm3713 = vcmp.eq.s32.totalorder %v510, 34
    %vm3714 = vcmp.eq.s32.totalorder %v511, 34
    %vm3715 = vcmp.eq.s32.totalorder %v512, 34
    %vm3716 = vcmp.eq.s32.totalorder %v513, 34
    %vm3717 = vcmp.eq.s32.totalorder %v514, 34
    %vm3718 = vcmp.eq.s32.totalorder %v515, 34
    %vm3719 = vcmp.eq.s32.totalorder %v516, 34
    %vm3720 = vcmp.eq.s32.totalorder %v517, 34
    %vm3721 = vcmp.eq.s32.totalorder %v518, 34
    %vm3722 = vcmp.eq.s32.totalorder %v519, 34
    %vm3723 = vcmp.eq.s32.totalorder %v520, 34
    %vm3724 = vcmp.eq.s32.totalorder %v521, 34
    %vm3725 = vcmp.eq.s32.totalorder %v522, 34
    %vm3726 = vcmp.eq.s32.totalorder %v523, 34
    %vm3727 = vcmp.eq.s32.totalorder %v524, 34
    %vm3728 = vcmp.eq.s32.totalorder %v525, 34
    %vm3729 = vcmp.eq.s32.totalorder %v526, 34
    %v3730 = vsel %vm3678, 1.0, 0.0
    %v3731 = vsel %vm3679, 1.0, 0.0
    %v3732 = vsel %vm3680, 1.0, 0.0
    %v3733 = vsel %vm3681, 1.0, 0.0
    %v3734 = vsel %vm3682, 1.0, 0.0
    %v3735 = vsel %vm3683, 1.0, 0.0
    %v3736 = vsel %vm3684, 1.0, 0.0
    %v3737 = vsel %vm3685, 1.0, 0.0
    %v3738 = vsel %vm3686, 1.0, 0.0
    %v3739 = vsel %vm3687, 1.0, 0.0
    %v3740 = vsel %vm3688, 1.0, 0.0
    %v3741 = vsel %vm3689, 1.0, 0.0
    %v3742 = vsel %vm3690, 1.0, 0.0
    %v3743 = vsel %vm3691, 1.0, 0.0
    %v3744 = vsel %vm3692, 1.0, 0.0
    %v3745 = vsel %vm3693, 1.0, 0.0
    %v3746 = vsel %vm3694, 1.0, 0.0
    %v3747 = vsel %vm3695, 1.0, 0.0
    %v3748 = vsel %vm3696, 1.0, 0.0
    %v3749 = vsel %vm3697, 1.0, 0.0
    %v3750 = vsel %vm3698, 1.0, 0.0
    %v3751 = vsel %vm3699, 1.0, 0.0
    %v3752 = vsel %vm3700, 1.0, 0.0
    %v3753 = vsel %vm3701, 1.0, 0.0
    %v3754 = vsel %vm3702, 1.0, 0.0
    %v3755 = vsel %vm3703, 1.0, 0.0
    %v3756 = vsel %vm3704, 1.0, 0.0
    %v3757 = vsel %vm3705, 1.0, 0.0
    %v3758 = vsel %vm3706, 1.0, 0.0
    %v3759 = vsel %vm3707, 1.0, 0.0
    %v3760 = vsel %vm3708, 1.0, 0.0
    %v3761 = vsel %vm3709, 1.0, 0.0
    %v3762 = vsel %vm3710, 1.0, 0.0
    %v3763 = vsel %vm3711, 1.0, 0.0
    %v3764 = vsel %vm3712, 1.0, 0.0
    %v3765 = vsel %vm3713, 1.0, 0.0
    %v3766 = vsel %vm3714, 1.0, 0.0
    %v3767 = vsel %vm3715, 1.0, 0.0
    %v3768 = vsel %vm3716, 1.0, 0.0
    %v3769 = vsel %vm3717, 1.0, 0.0
    %v3770 = vsel %vm3718, 1.0, 0.0
    %v3771 = vsel %vm3719, 1.0, 0.0
    %v3772 = vsel %vm3720, 1.0, 0.0
    %v3773 = vsel %vm3721, 1.0, 0.0
    %v3774 = vsel %vm3722, 1.0, 0.0
    %v3775 = vsel %vm3723, 1.0, 0.0
    %v3776 = vsel %vm3724, 1.0, 0.0
    %v3777 = vsel %vm3725, 1.0, 0.0
    %v3778 = vsel %vm3726, 1.0, 0.0
    %v3779 = vsel %vm3727, 1.0, 0.0
    %v3780 = vsel %vm3728, 1.0, 0.0
    %v3781 = vsel %vm3729, 1.0, 0.0
    %v3782 = vpack.c.bf16 %v3734, %v3730
    %v3783 = vpack.c.bf16 %v3735, %v3731
    %v3784 = vpack.c.bf16 %v3736, %v3732
    %v3785 = vpack.c.bf16 %v3737, %v3733
    %v3786 = vpack.c.bf16 %v3742, %v3738
    %v3787 = vpack.c.bf16 %v3743, %v3739
    %v3788 = vpack.c.bf16 %v3744, %v3740
    %v3789 = vpack.c.bf16 %v3745, %v3741
    %v3790 = vpack.c.bf16 %v3750, %v3746
    %v3791 = vpack.c.bf16 %v3751, %v3747
    %v3792 = vpack.c.bf16 %v3752, %v3748
    %v3793 = vpack.c.bf16 %v3753, %v3749
    %v3794 = vpack.c.bf16 %v3758, %v3754
    %v3795 = vpack.c.bf16 %v3759, %v3755
    %v3796 = vpack.c.bf16 %v3760, %v3756
    %v3797 = vpack.c.bf16 %v3761, %v3757
    %v3798 = vpack.c.bf16 %v3766, %v3762
    %v3799 = vpack.c.bf16 %v3767, %v3763
    %v3800 = vpack.c.bf16 %v3768, %v3764
    %v3801 = vpack.c.bf16 %v3769, %v3765
    %v3802 = vpack.c.bf16 %v3774, %v3770
    %v3803 = vpack.c.bf16 %v3775, %v3771
    %v3804 = vpack.c.bf16 %v3776, %v3772
    %v3805 = vpack.c.bf16 %v3777, %v3773
    %v3806 = vpack.c.bf16 %v3778, %v3778
    %v3807 = vpack.c.bf16 %v3779, %v3779
    %v3808 = vpack.c.bf16 %v3780, %v3780
    %v3809 = vpack.c.bf16 %v3781, %v3781
    %3810 = vmatpush.bf16.msra.mxu0 %v666
    %3811 = vmatpush.bf16.msra.mxu0 %v665
    %3812 = vmatpush.bf16.msra.mxu0 %v664
    %3813 = vmatpush.bf16.msra.mxu0 %v663
    %3814 = vmatpush.bf16.msra.mxu0 %v662
    %3815 = vmatpush.bf16.msra.mxu0 %v661
    %3816 = vmatpush.bf16.msra.mxu0 %v660
    %3817 = vmatpush.bf16.msra.mxu0 %v659
    %3818 = vmatmul.bf16.gmra.mxu0 %v3782
    %v3819 = vpop.f32.mrf.mxu0
    %v3820 = vadd.f32 0.0, %v3819
    %v3821 = vpop.f32.mrf.mxu0
    %v3822 = vadd.f32 0.0, %v3821
    %3823 = vmatmul.bf16.gmra.mxu0 %v3786
    %v3824 = vpop.f32.mrf.mxu0
    %v3825 = vadd.f32 0.0, %v3824
    %v3826 = vpop.f32.mrf.mxu0
    %v3827 = vadd.f32 0.0, %v3826
    %3828 = vmatmul.bf16.gmra.mxu0 %v3790
    %v3829 = vpop.f32.mrf.mxu0
    %v3830 = vadd.f32 0.0, %v3829
    %v3831 = vpop.f32.mrf.mxu0
    %v3832 = vadd.f32 0.0, %v3831
    %3833 = vmatmul.bf16.gmra.mxu0 %v3794
    %v3834 = vpop.f32.mrf.mxu0
    %v3835 = vadd.f32 0.0, %v3834
    %v3836 = vpop.f32.mrf.mxu0
    %v3837 = vadd.f32 0.0, %v3836
    %3838 = vmatmul.bf16.gmra.mxu0 %v3798
    %v3839 = vpop.f32.mrf.mxu0
    %v3840 = vadd.f32 0.0, %v3839
    %v3841 = vpop.f32.mrf.mxu0
    %v3842 = vadd.f32 0.0, %v3841
    %3843 = vmatmul.bf16.gmra.mxu0 %v3802
    %v3844 = vpop.f32.mrf.mxu0
    %v3845 = vadd.f32 0.0, %v3844
    %v3846 = vpop.f32.mrf.mxu0
    %v3847 = vadd.f32 0.0, %v3846
    %3848 = vmatmul.bf16.gmra.mxu0 %v3806
    %v3849 = vpop.f32.mrf.mxu0
    %v3850 = vadd.f32 0.0, %v3849
    %v3851 = vpop.f32.mrf.mxu0
    %3852 = vdwg.mxu0
    %3853 = vmatpush.bf16.msra.mxu0 %v674
    %3854 = vmatpush.bf16.msra.mxu0 %v673
    %3855 = vmatpush.bf16.msra.mxu0 %v672
    %3856 = vmatpush.bf16.msra.mxu0 %v671
    %3857 = vmatpush.bf16.msra.mxu0 %v670
    %3858 = vmatpush.bf16.msra.mxu0 %v669
    %3859 = vmatpush.bf16.msra.mxu0 %v668
    %3860 = vmatpush.bf16.msra.mxu0 %v667
    %3861 = vmatmul.bf16.gmra.mxu0 %v3783
    %v3862 = vpop.f32.mrf.mxu0
    %v3863 = vadd.f32 %v3820, %v3862
    %v3864 = vpop.f32.mrf.mxu0
    %v3865 = vadd.f32 %v3822, %v3864
    %3866 = vmatmul.bf16.gmra.mxu0 %v3787
    %v3867 = vpop.f32.mrf.mxu0
    %v3868 = vadd.f32 %v3825, %v3867
    %v3869 = vpop.f32.mrf.mxu0
    %v3870 = vadd.f32 %v3827, %v3869
    %3871 = vmatmul.bf16.gmra.mxu0 %v3791
    %v3872 = vpop.f32.mrf.mxu0
    %v3873 = vadd.f32 %v3830, %v3872
    %v3874 = vpop.f32.mrf.mxu0
    %v3875 = vadd.f32 %v3832, %v3874
    %3876 = vmatmul.bf16.gmra.mxu0 %v3795
    %v3877 = vpop.f32.mrf.mxu0
    %v3878 = vadd.f32 %v3835, %v3877
    %v3879 = vpop.f32.mrf.mxu0
    %v3880 = vadd.f32 %v3837, %v3879
    %3881 = vmatmul.bf16.gmra.mxu0 %v3799
    %v3882 = vpop.f32.mrf.mxu0
    %v3883 = vadd.f32 %v3840, %v3882
    %v3884 = vpop.f32.mrf.mxu0
    %v3885 = vadd.f32 %v3842, %v3884
    %3886 = vmatmul.bf16.gmra.mxu0 %v3803
    %v3887 = vpop.f32.mrf.mxu0
    %v3888 = vadd.f32 %v3845, %v3887
    %v3889 = vpop.f32.mrf.mxu0
    %v3890 = vadd.f32 %v3847, %v3889
    %3891 = vmatmul.bf16.gmra.mxu0 %v3807
    %v3892 = vpop.f32.mrf.mxu0
    %v3893 = vadd.f32 %v3850, %v3892
    %v3894 = vpop.f32.mrf.mxu0
    %3895 = vdwg.mxu0
    %3896 = vmatpush.bf16.msra.mxu0 %v682
    %3897 = vmatpush.bf16.msra.mxu0 %v681
    %3898 = vmatpush.bf16.msra.mxu0 %v680
    %3899 = vmatpush.bf16.msra.mxu0 %v679
    %3900 = vmatpush.bf16.msra.mxu0 %v678
    %3901 = vmatpush.bf16.msra.mxu0 %v677
    %3902 = vmatpush.bf16.msra.mxu0 %v676
    %3903 = vmatpush.bf16.msra.mxu0 %v675
    %3904 = vmatmul.bf16.gmra.mxu0 %v3784
    %v3905 = vpop.f32.mrf.mxu0
    %v3906 = vadd.f32 %v3863, %v3905
    %v3907 = vpop.f32.mrf.mxu0
    %v3908 = vadd.f32 %v3865, %v3907
    %3909 = vmatmul.bf16.gmra.mxu0 %v3788
    %v3910 = vpop.f32.mrf.mxu0
    %v3911 = vadd.f32 %v3868, %v3910
    %v3912 = vpop.f32.mrf.mxu0
    %v3913 = vadd.f32 %v3870, %v3912
    %3914 = vmatmul.bf16.gmra.mxu0 %v3792
    %v3915 = vpop.f32.mrf.mxu0
    %v3916 = vadd.f32 %v3873, %v3915
    %v3917 = vpop.f32.mrf.mxu0
    %v3918 = vadd.f32 %v3875, %v3917
    %3919 = vmatmul.bf16.gmra.mxu0 %v3796
    %v3920 = vpop.f32.mrf.mxu0
    %v3921 = vadd.f32 %v3878, %v3920
    %v3922 = vpop.f32.mrf.mxu0
    %v3923 = vadd.f32 %v3880, %v3922
    %3924 = vmatmul.bf16.gmra.mxu0 %v3800
    %v3925 = vpop.f32.mrf.mxu0
    %v3926 = vadd.f32 %v3883, %v3925
    %v3927 = vpop.f32.mrf.mxu0
    %v3928 = vadd.f32 %v3885, %v3927
    %3929 = vmatmul.bf16.gmra.mxu0 %v3804
    %v3930 = vpop.f32.mrf.mxu0
    %v3931 = vadd.f32 %v3888, %v3930
    %v3932 = vpop.f32.mrf.mxu0
    %v3933 = vadd.f32 %v3890, %v3932
    %3934 = vmatmul.bf16.gmra.mxu0 %v3808
    %v3935 = vpop.f32.mrf.mxu0
    %v3936 = vadd.f32 %v3893, %v3935
    %v3937 = vpop.f32.mrf.mxu0
    %3938 = vdwg.mxu0
    %3939 = vmatpush.bf16.msra.mxu0 %v690
    %3940 = vmatpush.bf16.msra.mxu0 %v689
    %3941 = vmatpush.bf16.msra.mxu0 %v688
    %3942 = vmatpush.bf16.msra.mxu0 %v687
    %3943 = vmatpush.bf16.msra.mxu0 %v686
    %3944 = vmatpush.bf16.msra.mxu0 %v685
    %3945 = vmatpush.bf16.msra.mxu0 %v684
    %3946 = vmatpush.bf16.msra.mxu0 %v683
    %3947 = vmatmul.bf16.gmra.mxu0 %v3785
    %v3948 = vpop.f32.mrf.mxu0
    %v3949 = vadd.f32 %v3906, %v3948
    %v3950 = vpop.f32.mrf.mxu0
    %v3951 = vadd.f32 %v3908, %v3950
    %3952 = vmatmul.bf16.gmra.mxu0 %v3789
    %v3953 = vpop.f32.mrf.mxu0
    %v3954 = vadd.f32 %v3911, %v3953
    %v3955 = vpop.f32.mrf.mxu0
    %v3956 = vadd.f32 %v3913, %v3955
    %3957 = vmatmul.bf16.gmra.mxu0 %v3793
    %v3958 = vpop.f32.mrf.mxu0
    %v3959 = vadd.f32 %v3916, %v3958
    %v3960 = vpop.f32.mrf.mxu0
    %v3961 = vadd.f32 %v3918, %v3960
    %3962 = vmatmul.bf16.gmra.mxu0 %v3797
    %v3963 = vpop.f32.mrf.mxu0
    %v3964 = vadd.f32 %v3921, %v3963
    %v3965 = vpop.f32.mrf.mxu0
    %v3966 = vadd.f32 %v3923, %v3965
    %3967 = vmatmul.bf16.gmra.mxu0 %v3801
    %v3968 = vpop.f32.mrf.mxu0
    %v3969 = vadd.f32 %v3926, %v3968
    %v3970 = vpop.f32.mrf.mxu0
    %v3971 = vadd.f32 %v3928, %v3970
    %3972 = vmatmul.bf16.gmra.mxu0 %v3805
    %v3973 = vpop.f32.mrf.mxu0
    %v3974 = vadd.f32 %v3931, %v3973
    %v3975 = vpop.f32.mrf.mxu0
    %v3976 = vadd.f32 %v3933, %v3975
    %3977 = vmatmul.bf16.gmra.mxu0 %v3809
    %v3978 = vpop.f32.mrf.mxu0
    %v3979 = vadd.f32 %v3936, %v3978
    %v3980 = vpop.f32.mrf.mxu0
    %3981 = vdwg.mxu0
    %s3982 = scalar_lea.vmem [#allocation6], 32
    %v3983 = vld [vmem:[%s3982] sm:$0x7]
    %v3984 = vpack.c.bf16 %v3951, %v3949
    %v3985 = vpack.c.bf16 %v3956, %v3954
    %v3986 = vpack.c.bf16 %v3961, %v3959
    %v3987 = vpack.c.bf16 %v3966, %v3964
    %v3988 = vpack.c.bf16 %v3971, %v3969
    %v3989 = vpack.c.bf16 %v3976, %v3974
    %v3990 = vpack.c.bf16 %v3979, %v3979
    %v3992 = vsel %vm1184, %v3984, 0
    %v3995 = vsel %vm1184, %v3985, 0
    %v3998 = vsel %vm1184, %v3986, 0
    %v4001 = vsel %vm1184, %v3987, 0
    %v4004 = vsel %vm1184, %v3988, 0
    %v4007 = vsel %vm1184, %v3989, 0
    %v4010 = vsel %vm1184, %v3990, 0
    %v4013 = vsel %vm1206, %v3983, 0
    %4015 = vmatpush.bf16.msra.mxu0 0
    %4016 = vmatpush.bf16.msra.mxu0 0
    %4017 = vmatpush.bf16.msra.mxu0 0
    %4018 = vmatpush.bf16.msra.mxu0 0
    %4019 = vmatpush.bf16.msra.mxu0 0
    %4020 = vmatpush.bf16.msra.mxu0 0
    %4021 = vmatpush.bf16.msra.mxu0 0
    %4022 = vmatpush.bf16.msra.mxu0 %v4013
    %4023 = vmatmul.bf16.gmra.mxu0 %v3992
    %v4024 = vpop.f32.mrf.mxu0
    %v4025 = vadd.f32 0.0, %v4024
    %v4026 = vpop.f32.mrf.mxu0
    %v4027 = vadd.f32 0.0, %v4026
    %4028 = vmatmul.bf16.gmra.mxu0 %v3995
    %v4029 = vpop.f32.mrf.mxu0
    %v4030 = vadd.f32 0.0, %v4029
    %v4031 = vpop.f32.mrf.mxu0
    %v4032 = vadd.f32 0.0, %v4031
    %4033 = vmatmul.bf16.gmra.mxu0 %v3998
    %v4034 = vpop.f32.mrf.mxu0
    %v4035 = vadd.f32 0.0, %v4034
    %v4036 = vpop.f32.mrf.mxu0
    %v4037 = vadd.f32 0.0, %v4036
    %4038 = vmatmul.bf16.gmra.mxu0 %v4001
    %v4039 = vpop.f32.mrf.mxu0
    %v4040 = vadd.f32 0.0, %v4039
    %v4041 = vpop.f32.mrf.mxu0
    %v4042 = vadd.f32 0.0, %v4041
    %4043 = vmatmul.bf16.gmra.mxu0 %v4004
    %v4044 = vpop.f32.mrf.mxu0
    %v4045 = vadd.f32 0.0, %v4044
    %v4046 = vpop.f32.mrf.mxu0
    %v4047 = vadd.f32 0.0, %v4046
    %4048 = vmatmul.bf16.gmra.mxu0 %v4007
    %v4049 = vpop.f32.mrf.mxu0
    %v4050 = vadd.f32 0.0, %v4049
    %v4051 = vpop.f32.mrf.mxu0
    %v4052 = vadd.f32 0.0, %v4051
    %4053 = vmatmul.bf16.gmra.mxu0 %v4010
    %v4054 = vpop.f32.mrf.mxu0
    %v4055 = vadd.f32 0.0, %v4054
    %v4056 = vpop.f32.mrf.mxu0
    %4057 = vdwg.mxu0
    %v4058 = vadd.f32 %v3665, %v4025
    %v4059 = vadd.f32 %v3666, %v4027
    %v4060 = vadd.f32 %v3667, %v4030
    %v4061 = vadd.f32 %v3668, %v4032
    %v4062 = vadd.f32 %v3669, %v4035
    %v4063 = vadd.f32 %v3670, %v4037
    %v4064 = vadd.f32 %v3671, %v4040
    %v4065 = vadd.f32 %v3672, %v4042
    %v4066 = vadd.f32 %v3673, %v4045
    %v4067 = vadd.f32 %v3674, %v4047
    %v4068 = vadd.f32 %v3675, %v4050
    %v4069 = vadd.f32 %v3676, %v4052
    %v4070 = vadd.f32 %v3677, %v4055
    %v4071 = vld [vmem:[%s7] sm:$0x1]
    %v4073 = vperm.slane %v4071, 0
    %v4075 = vadd.f32 %v4058, %v4073
    %v4076 = vadd.f32 %v4059, %v4073
    %v4077 = vadd.f32 %v4060, %v4073
    %v4078 = vadd.f32 %v4061, %v4073
    %v4079 = vadd.f32 %v4062, %v4073
    %v4080 = vadd.f32 %v4063, %v4073
    %v4081 = vadd.f32 %v4064, %v4073
    %v4082 = vadd.f32 %v4065, %v4073
    %v4083 = vadd.f32 %v4066, %v4073
    %v4084 = vadd.f32 %v4067, %v4073
    %v4085 = vadd.f32 %v4068, %v4073
    %v4086 = vadd.f32 %v4069, %v4073
    %v4087 = vadd.f32 %v4070, %v4073
    %v4088 = vmax.f32 %v4075, 0.0
    %v4089 = vmax.f32 %v4076, 0.0
    %v4090 = vmax.f32 %v4077, 0.0
    %v4091 = vmax.f32 %v4078, 0.0
    %v4092 = vmax.f32 %v4079, 0.0
    %v4093 = vmax.f32 %v4080, 0.0
    %v4094 = vmax.f32 %v4081, 0.0
    %v4095 = vmax.f32 %v4082, 0.0
    %v4096 = vmax.f32 %v4083, 0.0
    %v4097 = vmax.f32 %v4084, 0.0
    %v4098 = vmax.f32 %v4085, 0.0
    %v4099 = vmax.f32 %v4086, 0.0
    %v4100 = vmax.f32 %v4087, 0.0
    %v4101 = vld [vmem:[%s3] sm:$0xff]
    %v4102 = vld [vmem:[%s3 + $0x8] sm:$0xff]
    %v4103 = vld [vmem:[%s3 + $0x10] sm:$0xff]
    %v4104 = vld [vmem:[%s3 + $0x18] sm:$0xff]
    %v4105 = vld [vmem:[%s3 + $0x20] sm:$0xff]
    %v4106 = vld [vmem:[%s3 + $0x28] sm:$0xff]
    %v4107 = vld [vmem:[%s3 + $0x30] sm:$0x3]
    %4108 = vset.pattern.permute.xlu0 0
    %4109 = vperm.xlu0 %4108, %v4101
    %v4110 = vpop.permute.xlu0 %4109
    %4111 = vset.pattern.permute.xlu0 0
    %4112 = vperm.xlu0 %4111, %v4102
    %v4113 = vpop.permute.xlu0 %4112
    %4114 = vset.pattern.permute.xlu0 0
    %4115 = vperm.xlu0 %4114, %v4103
    %v4116 = vpop.permute.xlu0 %4115
    %4117 = vset.pattern.permute.xlu0 0
    %4118 = vperm.xlu0 %4117, %v4104
    %v4119 = vpop.permute.xlu0 %4118
    %4120 = vset.pattern.permute.xlu0 0
    %4121 = vperm.xlu0 %4120, %v4105
    %v4122 = vpop.permute.xlu0 %4121
    %4123 = vset.pattern.permute.xlu0 0
    %4124 = vperm.xlu0 %4123, %v4106
    %v4125 = vpop.permute.xlu0 %4124
    %4126 = vset.pattern.permute.xlu0 0
    %4127 = vperm.xlu0 %4126, %v4107
    %v4128 = vpop.permute.xlu0 %4127
    %v4129 = vsub.s32 %v419, %v4110
    %v4130 = vsub.s32 %v419, %v4113
    %v4131 = vsub.s32 %v419, %v4116
    %v4132 = vsub.s32 %v419, %v4119
    %v4133 = vsub.s32 %v419, %v4122
    %v4134 = vsub.s32 %v419, %v4125
    %v4135 = vsub.s32 %v419, %v4128
    %vm4136 = vcmp.eq.s32.totalorder %v4129, 0
    %vm4137 = vcmp.eq.s32.totalorder %v4130, 0
    %vm4138 = vcmp.eq.s32.totalorder %v4131, 0
    %vm4139 = vcmp.eq.s32.totalorder %v4132, 0
    %vm4140 = vcmp.eq.s32.totalorder %v4133, 0
    %vm4141 = vcmp.eq.s32.totalorder %v4134, 0
    %vm4142 = vcmp.eq.s32.totalorder %v4135, 0
    %v4143 = vsel %vm4136, 1.0, 0.0
    %v4144 = vsel %vm4137, 1.0, 0.0
    %v4145 = vsel %vm4138, 1.0, 0.0
    %v4146 = vsel %vm4139, 1.0, 0.0
    %v4147 = vsel %vm4140, 1.0, 0.0
    %v4148 = vsel %vm4141, 1.0, 0.0
    %v4149 = vsel %vm4142, 1.0, 0.0
    %v4150 = vpack.c.bf16 %v4144, %v4143
    %v4151 = vpack.c.bf16 %v4146, %v4145
    %v4152 = vpack.c.bf16 %v4148, %v4147
    %v4153 = vpack.c.bf16 %v4149, %v4149
    %v4154 = vpack.c.bf16 %v4089, %v4088
    %v4155 = vpack.c.bf16 %v4091, %v4090
    %v4156 = vpack.c.bf16 %v4093, %v4092
    %v4157 = vpack.c.bf16 %v4095, %v4094
    %v4158 = vpack.c.bf16 %v4097, %v4096
    %v4159 = vpack.c.bf16 %v4099, %v4098
    %v4160 = vpack.c.bf16 %v4100, %v4100
    %vm4161 = vcmask 801792
    %v4163 = vsel %vm4161, %v4150, 0
    %v4166 = vsel %vm4161, %v4151, 0
    %v4169 = vsel %vm4161, %v4152, 0
    %v4172 = vsel %vm4161, %v4153, 0
    %vm4174 = vcmask 1040384
    %v4176 = vsel %vm4174, %v4160, 0
    %4178 = vmatpush.bf16.msra.mxu0 0
    %4179 = vmatpush.bf16.msra.mxu0 %v4176
    %4180 = vmatpush.bf16.msra.mxu0 %v4159
    %4181 = vmatpush.bf16.msra.mxu0 %v4158
    %4182 = vmatpush.bf16.msra.mxu0 %v4157
    %4183 = vmatpush.bf16.msra.mxu0 %v4156
    %4184 = vmatpush.bf16.msra.mxu0 %v4155
    %4185 = vmatpush.bf16.msra.mxu0 %v4154
    %4186 = vmatmul.bf16.gmra.mxu0 %v4163
    %v4187 = vpop.f32.mrf.mxu0
    %v4188 = vadd.f32 0.0, %v4187
    %v4189 = vpop.f32.mrf.mxu0
    %v4190 = vadd.f32 0.0, %v4189
    %4191 = vmatmul.bf16.gmra.mxu0 %v4166
    %v4192 = vpop.f32.mrf.mxu0
    %v4193 = vadd.f32 0.0, %v4192
    %v4194 = vpop.f32.mrf.mxu0
    %v4195 = vadd.f32 0.0, %v4194
    %4196 = vmatmul.bf16.gmra.mxu0 %v4169
    %v4197 = vpop.f32.mrf.mxu0
    %v4198 = vadd.f32 0.0, %v4197
    %v4199 = vpop.f32.mrf.mxu0
    %v4200 = vadd.f32 0.0, %v4199
    %4201 = vmatmul.bf16.gmra.mxu0 %v4172
    %v4202 = vpop.f32.mrf.mxu0
    %v4203 = vadd.f32 0.0, %v4202
    %v4204 = vpop.f32.mrf.mxu0
    %4205 = vdwg.mxu0
    %v4206 = vld [vmem:[#allocation7] sm:$0xf]
    %v4207 = vld [vmem:[#allocation7 + $0x4] sm:$0xf]
    %v4208 = vld [vmem:[#allocation7 + $0x8] sm:$0xf]
    %v4209 = vld [vmem:[#allocation7 + $0xc] sm:$0xf]
    %v4210 = vpack.c.bf16 %v4190, %v4188
    %v4211 = vpack.c.bf16 %v4195, %v4193
    %v4212 = vpack.c.bf16 %v4200, %v4198
    %v4213 = vpack.c.bf16 %v4203, %v4203
    %vm4214 = vcmp.eq.s32.totalorder %v4129, 1
    %vm4215 = vcmp.eq.s32.totalorder %v4130, 1
    %vm4216 = vcmp.eq.s32.totalorder %v4131, 1
    %vm4217 = vcmp.eq.s32.totalorder %v4132, 1
    %vm4218 = vcmp.eq.s32.totalorder %v4133, 1
    %vm4219 = vcmp.eq.s32.totalorder %v4134, 1
    %vm4220 = vcmp.eq.s32.totalorder %v4135, 1
    %v4221 = vsel %vm4214, 1.0, 0.0
    %v4222 = vsel %vm4215, 1.0, 0.0
    %v4223 = vsel %vm4216, 1.0, 0.0
    %v4224 = vsel %vm4217, 1.0, 0.0
    %v4225 = vsel %vm4218, 1.0, 0.0
    %v4226 = vsel %vm4219, 1.0, 0.0
    %v4227 = vsel %vm4220, 1.0, 0.0
    %v4228 = vpack.c.bf16 %v4222, %v4221
    %v4229 = vpack.c.bf16 %v4224, %v4223
    %v4230 = vpack.c.bf16 %v4226, %v4225
    %v4231 = vpack.c.bf16 %v4227, %v4227
    %v4233 = vsel %vm4161, %v4228, 0
    %v4236 = vsel %vm4161, %v4229, 0
    %v4239 = vsel %vm4161, %v4230, 0
    %v4242 = vsel %vm4161, %v4231, 0
    %4244 = vmatpush.bf16.msra.mxu0 0
    %4245 = vmatpush.bf16.msra.mxu0 %v4176
    %4246 = vmatpush.bf16.msra.mxu0 %v4159
    %4247 = vmatpush.bf16.msra.mxu0 %v4158
    %4248 = vmatpush.bf16.msra.mxu0 %v4157
    %4249 = vmatpush.bf16.msra.mxu0 %v4156
    %4250 = vmatpush.bf16.msra.mxu0 %v4155
    %4251 = vmatpush.bf16.msra.mxu0 %v4154
    %4252 = vmatmul.bf16.gmra.mxu0 %v4233
    %v4253 = vpop.f32.mrf.mxu0
    %v4254 = vadd.f32 0.0, %v4253
    %v4255 = vpop.f32.mrf.mxu0
    %v4256 = vadd.f32 0.0, %v4255
    %4257 = vmatmul.bf16.gmra.mxu0 %v4236
    %v4258 = vpop.f32.mrf.mxu0
    %v4259 = vadd.f32 0.0, %v4258
    %v4260 = vpop.f32.mrf.mxu0
    %v4261 = vadd.f32 0.0, %v4260
    %4262 = vmatmul.bf16.gmra.mxu0 %v4239
    %v4263 = vpop.f32.mrf.mxu0
    %v4264 = vadd.f32 0.0, %v4263
    %v4265 = vpop.f32.mrf.mxu0
    %v4266 = vadd.f32 0.0, %v4265
    %4267 = vmatmul.bf16.gmra.mxu0 %v4242
    %v4268 = vpop.f32.mrf.mxu0
    %v4269 = vadd.f32 0.0, %v4268
    %v4270 = vpop.f32.mrf.mxu0
    %4271 = vdwg.mxu0
    %s4272 = scalar_lea.vmem [#allocation7], 16
    %v4273 = vld [vmem:[%s4272] sm:$0xf]
    %v4274 = vld [vmem:[%s4272 + $0x4] sm:$0xf]
    %v4275 = vld [vmem:[%s4272 + $0x8] sm:$0xf]
    %v4276 = vld [vmem:[%s4272 + $0xc] sm:$0xf]
    %v4277 = vpack.c.bf16 %v4256, %v4254
    %v4278 = vpack.c.bf16 %v4261, %v4259
    %v4279 = vpack.c.bf16 %v4266, %v4264
    %v4280 = vpack.c.bf16 %v4269, %v4269
    %v4285 = vunpack.c.l.b16 %v4273
    %v4286 = vunpack.c.l.b16 %v4274
    %v4287 = vunpack.c.l.b16 %v4275
    %v4288 = vunpack.c.l.b16 %v4276
    %v4289 = vpack.c.b16 %v4286, %v4285
    %v4290 = vpack.c.b16 %v4288, %v4287
    %vm4293 = vcmask 261120
    %v4295 = vsel %vm4293, %v4277, 0
    %v4298 = vsel %vm4293, %v4278, 0
    %v4301 = vsel %vm4293, %v4279, 0
    %v4304 = vsel %vm4293, %v4280, 0
    %4306 = vmatpush.bf16.msra.mxu0 0
    %4307 = vmatpush.bf16.msra.mxu0 0
    %4308 = vmatpush.bf16.msra.mxu0 0
    %4309 = vmatpush.bf16.msra.mxu0 0
    %4310 = vmatpush.bf16.msra.mxu0 0
    %4311 = vmatpush.bf16.msra.mxu0 0
    %4312 = vmatpush.bf16.msra.mxu0 %v4290
    %4313 = vmatpush.bf16.msra.mxu0 %v4289
    %4314 = vmatmul.bf16.gmra.mxu0 %v4295
    %v4315 = vpop.f32.mrf.mxu0
    %v4316 = vadd.f32 0.0, %v4315
    %v4317 = vpop.f32.mrf.mxu0
    %v4318 = vadd.f32 0.0, %v4317
    %4319 = vmatmul.bf16.gmra.mxu0 %v4298
    %v4320 = vpop.f32.mrf.mxu0
    %v4321 = vadd.f32 0.0, %v4320
    %v4322 = vpop.f32.mrf.mxu0
    %v4323 = vadd.f32 0.0, %v4322
    %4324 = vmatmul.bf16.gmra.mxu0 %v4301
    %v4325 = vpop.f32.mrf.mxu0
    %v4326 = vadd.f32 0.0, %v4325
    %v4327 = vpop.f32.mrf.mxu0
    %v4328 = vadd.f32 0.0, %v4327
    %4329 = vmatmul.bf16.gmra.mxu0 %v4304
    %v4330 = vpop.f32.mrf.mxu0
    %v4331 = vadd.f32 0.0, %v4330
    %v4332 = vpop.f32.mrf.mxu0
    %4333 = vdwg.mxu0
    %v4338 = vunpack.c.l.b16 %v4206
    %v4339 = vunpack.c.l.b16 %v4207
    %v4340 = vunpack.c.l.b16 %v4208
    %v4341 = vunpack.c.l.b16 %v4209
    %v4342 = vpack.c.b16 %v4339, %v4338
    %v4343 = vpack.c.b16 %v4341, %v4340
    %v4347 = vsel %vm4293, %v4210, 0
    %v4350 = vsel %vm4293, %v4211, 0
    %v4353 = vsel %vm4293, %v4212, 0
    %v4356 = vsel %vm4293, %v4213, 0
    %4358 = vmatpush.bf16.msra.mxu0 0
    %4359 = vmatpush.bf16.msra.mxu0 0
    %4360 = vmatpush.bf16.msra.mxu0 0
    %4361 = vmatpush.bf16.msra.mxu0 0
    %4362 = vmatpush.bf16.msra.mxu0 0
    %4363 = vmatpush.bf16.msra.mxu0 0
    %4364 = vmatpush.bf16.msra.mxu0 %v4343
    %4365 = vmatpush.bf16.msra.mxu0 %v4342
    %4366 = vmatmul.bf16.gmra.mxu0 %v4347
    %v4367 = vpop.f32.mrf.mxu0
    %v4368 = vadd.f32 %v4316, %v4367
    %v4369 = vpop.f32.mrf.mxu0
    %v4370 = vadd.f32 %v4318, %v4369
    %4371 = vmatmul.bf16.gmra.mxu0 %v4350
    %v4372 = vpop.f32.mrf.mxu0
    %v4373 = vadd.f32 %v4321, %v4372
    %v4374 = vpop.f32.mrf.mxu0
    %v4375 = vadd.f32 %v4323, %v4374
    %4376 = vmatmul.bf16.gmra.mxu0 %v4353
    %v4377 = vpop.f32.mrf.mxu0
    %v4378 = vadd.f32 %v4326, %v4377
    %v4379 = vpop.f32.mrf.mxu0
    %v4380 = vadd.f32 %v4328, %v4379
    %4381 = vmatmul.bf16.gmra.mxu0 %v4356
    %v4382 = vpop.f32.mrf.mxu0
    %v4383 = vadd.f32 %v4331, %v4382
    %v4384 = vpop.f32.mrf.mxu0
    %4385 = vdwg.mxu0
    %vm4386 = vcmp.eq.s32.totalorder %v4129, 2
    %vm4387 = vcmp.eq.s32.totalorder %v4130, 2
    %vm4388 = vcmp.eq.s32.totalorder %v4131, 2
    %vm4389 = vcmp.eq.s32.totalorder %v4132, 2
    %vm4390 = vcmp.eq.s32.totalorder %v4133, 2
    %vm4391 = vcmp.eq.s32.totalorder %v4134, 2
    %vm4392 = vcmp.eq.s32.totalorder %v4135, 2
    %v4393 = vsel %vm4386, 1.0, 0.0
    %v4394 = vsel %vm4387, 1.0, 0.0
    %v4395 = vsel %vm4388, 1.0, 0.0
    %v4396 = vsel %vm4389, 1.0, 0.0
    %v4397 = vsel %vm4390, 1.0, 0.0
    %v4398 = vsel %vm4391, 1.0, 0.0
    %v4399 = vsel %vm4392, 1.0, 0.0
    %v4400 = vpack.c.bf16 %v4394, %v4393
    %v4401 = vpack.c.bf16 %v4396, %v4395
    %v4402 = vpack.c.bf16 %v4398, %v4397
    %v4403 = vpack.c.bf16 %v4399, %v4399
    %v4405 = vsel %vm4161, %v4400, 0
    %v4408 = vsel %vm4161, %v4401, 0
    %v4411 = vsel %vm4161, %v4402, 0
    %v4414 = vsel %vm4161, %v4403, 0
    %4416 = vmatpush.bf16.msra.mxu0 0
    %4417 = vmatpush.bf16.msra.mxu0 %v4176
    %4418 = vmatpush.bf16.msra.mxu0 %v4159
    %4419 = vmatpush.bf16.msra.mxu0 %v4158
    %4420 = vmatpush.bf16.msra.mxu0 %v4157
    %4421 = vmatpush.bf16.msra.mxu0 %v4156
    %4422 = vmatpush.bf16.msra.mxu0 %v4155
    %4423 = vmatpush.bf16.msra.mxu0 %v4154
    %4424 = vmatmul.bf16.gmra.mxu0 %v4405
    %v4425 = vpop.f32.mrf.mxu0
    %v4426 = vadd.f32 0.0, %v4425
    %v4427 = vpop.f32.mrf.mxu0
    %v4428 = vadd.f32 0.0, %v4427
    %4429 = vmatmul.bf16.gmra.mxu0 %v4408
    %v4430 = vpop.f32.mrf.mxu0
    %v4431 = vadd.f32 0.0, %v4430
    %v4432 = vpop.f32.mrf.mxu0
    %v4433 = vadd.f32 0.0, %v4432
    %4434 = vmatmul.bf16.gmra.mxu0 %v4411
    %v4435 = vpop.f32.mrf.mxu0
    %v4436 = vadd.f32 0.0, %v4435
    %v4437 = vpop.f32.mrf.mxu0
    %v4438 = vadd.f32 0.0, %v4437
    %4439 = vmatmul.bf16.gmra.mxu0 %v4414
    %v4440 = vpop.f32.mrf.mxu0
    %v4441 = vadd.f32 0.0, %v4440
    %v4442 = vpop.f32.mrf.mxu0
    %4443 = vdwg.mxu0
    %s4444 = scalar_lea.vmem [#allocation7], 32
    %v4445 = vld [vmem:[%s4444] sm:$0xf]
    %v4446 = vld [vmem:[%s4444 + $0x4] sm:$0xf]
    %v4447 = vld [vmem:[%s4444 + $0x8] sm:$0xf]
    %v4448 = vld [vmem:[%s4444 + $0xc] sm:$0xf]
    %v4449 = vpack.c.bf16 %v4428, %v4426
    %v4450 = vpack.c.bf16 %v4433, %v4431
    %v4451 = vpack.c.bf16 %v4438, %v4436
    %v4452 = vpack.c.bf16 %v4441, %v4441
    %v4457 = vunpack.c.l.b16 %v4445
    %v4458 = vunpack.c.l.b16 %v4446
    %v4459 = vunpack.c.l.b16 %v4447
    %v4460 = vunpack.c.l.b16 %v4448
    %v4461 = vpack.c.b16 %v4458, %v4457
    %v4462 = vpack.c.b16 %v4460, %v4459
    %v4466 = vsel %vm4293, %v4449, 0
    %v4469 = vsel %vm4293, %v4450, 0
    %v4472 = vsel %vm4293, %v4451, 0
    %v4475 = vsel %vm4293, %v4452, 0
    %4477 = vmatpush.bf16.msra.mxu0 0
    %4478 = vmatpush.bf16.msra.mxu0 0
    %4479 = vmatpush.bf16.msra.mxu0 0
    %4480 = vmatpush.bf16.msra.mxu0 0
    %4481 = vmatpush.bf16.msra.mxu0 0
    %4482 = vmatpush.bf16.msra.mxu0 0
    %4483 = vmatpush.bf16.msra.mxu0 %v4462
    %4484 = vmatpush.bf16.msra.mxu0 %v4461
    %4485 = vmatmul.bf16.gmra.mxu0 %v4466
    %v4486 = vpop.f32.mrf.mxu0
    %v4487 = vadd.f32 0.0, %v4486
    %v4488 = vpop.f32.mrf.mxu0
    %v4489 = vadd.f32 0.0, %v4488
    %4490 = vmatmul.bf16.gmra.mxu0 %v4469
    %v4491 = vpop.f32.mrf.mxu0
    %v4492 = vadd.f32 0.0, %v4491
    %v4493 = vpop.f32.mrf.mxu0
    %v4494 = vadd.f32 0.0, %v4493
    %4495 = vmatmul.bf16.gmra.mxu0 %v4472
    %v4496 = vpop.f32.mrf.mxu0
    %v4497 = vadd.f32 0.0, %v4496
    %v4498 = vpop.f32.mrf.mxu0
    %v4499 = vadd.f32 0.0, %v4498
    %4500 = vmatmul.bf16.gmra.mxu0 %v4475
    %v4501 = vpop.f32.mrf.mxu0
    %v4502 = vadd.f32 0.0, %v4501
    %v4503 = vpop.f32.mrf.mxu0
    %4504 = vdwg.mxu0
    %v4505 = vadd.f32 %v4368, %v4487
    %v4506 = vadd.f32 %v4370, %v4489
    %v4507 = vadd.f32 %v4373, %v4492
    %v4508 = vadd.f32 %v4375, %v4494
    %v4509 = vadd.f32 %v4378, %v4497
    %v4510 = vadd.f32 %v4380, %v4499
    %v4511 = vadd.f32 %v4383, %v4502
    %vm4512 = vcmp.eq.s32.totalorder %v4129, 7
    %vm4513 = vcmp.eq.s32.totalorder %v4130, 7
    %vm4514 = vcmp.eq.s32.totalorder %v4131, 7
    %vm4515 = vcmp.eq.s32.totalorder %v4132, 7
    %vm4516 = vcmp.eq.s32.totalorder %v4133, 7
    %vm4517 = vcmp.eq.s32.totalorder %v4134, 7
    %vm4518 = vcmp.eq.s32.totalorder %v4135, 7
    %v4519 = vsel %vm4512, 1.0, 0.0
    %v4520 = vsel %vm4513, 1.0, 0.0
    %v4521 = vsel %vm4514, 1.0, 0.0
    %v4522 = vsel %vm4515, 1.0, 0.0
    %v4523 = vsel %vm4516, 1.0, 0.0
    %v4524 = vsel %vm4517, 1.0, 0.0
    %v4525 = vsel %vm4518, 1.0, 0.0
    %v4526 = vpack.c.bf16 %v4520, %v4519
    %v4527 = vpack.c.bf16 %v4522, %v4521
    %v4528 = vpack.c.bf16 %v4524, %v4523
    %v4529 = vpack.c.bf16 %v4525, %v4525
    %v4531 = vsel %vm4161, %v4526, 0
    %v4534 = vsel %vm4161, %v4527, 0
    %v4537 = vsel %vm4161, %v4528, 0
    %v4540 = vsel %vm4161, %v4529, 0
    %4542 = vmatpush.bf16.msra.mxu0 0
    %4543 = vmatpush.bf16.msra.mxu0 %v4176
    %4544 = vmatpush.bf16.msra.mxu0 %v4159
    %4545 = vmatpush.bf16.msra.mxu0 %v4158
    %4546 = vmatpush.bf16.msra.mxu0 %v4157
    %4547 = vmatpush.bf16.msra.mxu0 %v4156
    %4548 = vmatpush.bf16.msra.mxu0 %v4155
    %4549 = vmatpush.bf16.msra.mxu0 %v4154
    %4550 = vmatmul.bf16.gmra.mxu0 %v4531
    %v4551 = vpop.f32.mrf.mxu0
    %v4552 = vadd.f32 0.0, %v4551
    %v4553 = vpop.f32.mrf.mxu0
    %v4554 = vadd.f32 0.0, %v4553
    %4555 = vmatmul.bf16.gmra.mxu0 %v4534
    %v4556 = vpop.f32.mrf.mxu0
    %v4557 = vadd.f32 0.0, %v4556
    %v4558 = vpop.f32.mrf.mxu0
    %v4559 = vadd.f32 0.0, %v4558
    %4560 = vmatmul.bf16.gmra.mxu0 %v4537
    %v4561 = vpop.f32.mrf.mxu0
    %v4562 = vadd.f32 0.0, %v4561
    %v4563 = vpop.f32.mrf.mxu0
    %v4564 = vadd.f32 0.0, %v4563
    %4565 = vmatmul.bf16.gmra.mxu0 %v4540
    %v4566 = vpop.f32.mrf.mxu0
    %v4567 = vadd.f32 0.0, %v4566
    %v4568 = vpop.f32.mrf.mxu0
    %4569 = vdwg.mxu0
    %s4570 = scalar_lea.vmem [#allocation7], 48
    %v4571 = vld [vmem:[%s4570] sm:$0xf]
    %v4572 = vld [vmem:[%s4570 + $0x4] sm:$0xf]
    %v4573 = vld [vmem:[%s4570 + $0x8] sm:$0xf]
    %v4574 = vld [vmem:[%s4570 + $0xc] sm:$0xf]
    %v4575 = vpack.c.bf16 %v4554, %v4552
    %v4576 = vpack.c.bf16 %v4559, %v4557
    %v4577 = vpack.c.bf16 %v4564, %v4562
    %v4578 = vpack.c.bf16 %v4567, %v4567
    %v4583 = vunpack.c.l.b16 %v4571
    %v4584 = vunpack.c.l.b16 %v4572
    %v4585 = vunpack.c.l.b16 %v4573
    %v4586 = vunpack.c.l.b16 %v4574
    %v4587 = vpack.c.b16 %v4584, %v4583
    %v4588 = vpack.c.b16 %v4586, %v4585
    %v4592 = vsel %vm4293, %v4575, 0
    %v4595 = vsel %vm4293, %v4576, 0
    %v4598 = vsel %vm4293, %v4577, 0
    %v4601 = vsel %vm4293, %v4578, 0
    %4603 = vmatpush.bf16.msra.mxu0 0
    %4604 = vmatpush.bf16.msra.mxu0 0
    %4605 = vmatpush.bf16.msra.mxu0 0
    %4606 = vmatpush.bf16.msra.mxu0 0
    %4607 = vmatpush.bf16.msra.mxu0 0
    %4608 = vmatpush.bf16.msra.mxu0 0
    %4609 = vmatpush.bf16.msra.mxu0 %v4588
    %4610 = vmatpush.bf16.msra.mxu0 %v4587
    %4611 = vmatmul.bf16.gmra.mxu0 %v4592
    %v4612 = vpop.f32.mrf.mxu0
    %v4613 = vadd.f32 0.0, %v4612
    %v4614 = vpop.f32.mrf.mxu0
    %v4615 = vadd.f32 0.0, %v4614
    %4616 = vmatmul.bf16.gmra.mxu0 %v4595
    %v4617 = vpop.f32.mrf.mxu0
    %v4618 = vadd.f32 0.0, %v4617
    %v4619 = vpop.f32.mrf.mxu0
    %v4620 = vadd.f32 0.0, %v4619
    %4621 = vmatmul.bf16.gmra.mxu0 %v4598
    %v4622 = vpop.f32.mrf.mxu0
    %v4623 = vadd.f32 0.0, %v4622
    %v4624 = vpop.f32.mrf.mxu0
    %v4625 = vadd.f32 0.0, %v4624
    %4626 = vmatmul.bf16.gmra.mxu0 %v4601
    %v4627 = vpop.f32.mrf.mxu0
    %v4628 = vadd.f32 0.0, %v4627
    %v4629 = vpop.f32.mrf.mxu0
    %4630 = vdwg.mxu0
    %v4631 = vadd.f32 %v4505, %v4613
    %v4632 = vadd.f32 %v4506, %v4615
    %v4633 = vadd.f32 %v4507, %v4618
    %v4634 = vadd.f32 %v4508, %v4620
    %v4635 = vadd.f32 %v4509, %v4623
    %v4636 = vadd.f32 %v4510, %v4625
    %v4637 = vadd.f32 %v4511, %v4628
    %vm4638 = vcmp.eq.s32.totalorder %v4129, 8
    %vm4639 = vcmp.eq.s32.totalorder %v4130, 8
    %vm4640 = vcmp.eq.s32.totalorder %v4131, 8
    %vm4641 = vcmp.eq.s32.totalorder %v4132, 8
    %vm4642 = vcmp.eq.s32.totalorder %v4133, 8
    %vm4643 = vcmp.eq.s32.totalorder %v4134, 8
    %vm4644 = vcmp.eq.s32.totalorder %v4135, 8
    %v4645 = vsel %vm4638, 1.0, 0.0
    %v4646 = vsel %vm4639, 1.0, 0.0
    %v4647 = vsel %vm4640, 1.0, 0.0
    %v4648 = vsel %vm4641, 1.0, 0.0
    %v4649 = vsel %vm4642, 1.0, 0.0
    %v4650 = vsel %vm4643, 1.0, 0.0
    %v4651 = vsel %vm4644, 1.0, 0.0
    %v4652 = vpack.c.bf16 %v4646, %v4645
    %v4653 = vpack.c.bf16 %v4648, %v4647
    %v4654 = vpack.c.bf16 %v4650, %v4649
    %v4655 = vpack.c.bf16 %v4651, %v4651
    %v4657 = vsel %vm4161, %v4652, 0
    %v4660 = vsel %vm4161, %v4653, 0
    %v4663 = vsel %vm4161, %v4654, 0
    %v4666 = vsel %vm4161, %v4655, 0
    %4668 = vmatpush.bf16.msra.mxu0 0
    %4669 = vmatpush.bf16.msra.mxu0 %v4176
    %4670 = vmatpush.bf16.msra.mxu0 %v4159
    %4671 = vmatpush.bf16.msra.mxu0 %v4158
    %4672 = vmatpush.bf16.msra.mxu0 %v4157
    %4673 = vmatpush.bf16.msra.mxu0 %v4156
    %4674 = vmatpush.bf16.msra.mxu0 %v4155
    %4675 = vmatpush.bf16.msra.mxu0 %v4154
    %4676 = vmatmul.bf16.gmra.mxu0 %v4657
    %v4677 = vpop.f32.mrf.mxu0
    %v4678 = vadd.f32 0.0, %v4677
    %v4679 = vpop.f32.mrf.mxu0
    %v4680 = vadd.f32 0.0, %v4679
    %4681 = vmatmul.bf16.gmra.mxu0 %v4660
    %v4682 = vpop.f32.mrf.mxu0
    %v4683 = vadd.f32 0.0, %v4682
    %v4684 = vpop.f32.mrf.mxu0
    %v4685 = vadd.f32 0.0, %v4684
    %4686 = vmatmul.bf16.gmra.mxu0 %v4663
    %v4687 = vpop.f32.mrf.mxu0
    %v4688 = vadd.f32 0.0, %v4687
    %v4689 = vpop.f32.mrf.mxu0
    %v4690 = vadd.f32 0.0, %v4689
    %4691 = vmatmul.bf16.gmra.mxu0 %v4666
    %v4692 = vpop.f32.mrf.mxu0
    %v4693 = vadd.f32 0.0, %v4692
    %v4694 = vpop.f32.mrf.mxu0
    %4695 = vdwg.mxu0
    %s4696 = scalar_lea.vmem [#allocation7], 64
    %v4697 = vld [vmem:[%s4696] sm:$0xf]
    %v4698 = vld [vmem:[%s4696 + $0x4] sm:$0xf]
    %v4699 = vld [vmem:[%s4696 + $0x8] sm:$0xf]
    %v4700 = vld [vmem:[%s4696 + $0xc] sm:$0xf]
    %v4701 = vpack.c.bf16 %v4680, %v4678
    %v4702 = vpack.c.bf16 %v4685, %v4683
    %v4703 = vpack.c.bf16 %v4690, %v4688
    %v4704 = vpack.c.bf16 %v4693, %v4693
    %v4709 = vunpack.c.l.b16 %v4697
    %v4710 = vunpack.c.l.b16 %v4698
    %v4711 = vunpack.c.l.b16 %v4699
    %v4712 = vunpack.c.l.b16 %v4700
    %v4713 = vpack.c.b16 %v4710, %v4709
    %v4714 = vpack.c.b16 %v4712, %v4711
    %v4718 = vsel %vm4293, %v4701, 0
    %v4721 = vsel %vm4293, %v4702, 0
    %v4724 = vsel %vm4293, %v4703, 0
    %v4727 = vsel %vm4293, %v4704, 0
    %4729 = vmatpush.bf16.msra.mxu0 0
    %4730 = vmatpush.bf16.msra.mxu0 0
    %4731 = vmatpush.bf16.msra.mxu0 0
    %4732 = vmatpush.bf16.msra.mxu0 0
    %4733 = vmatpush.bf16.msra.mxu0 0
    %4734 = vmatpush.bf16.msra.mxu0 0
    %4735 = vmatpush.bf16.msra.mxu0 %v4714
    %4736 = vmatpush.bf16.msra.mxu0 %v4713
    %4737 = vmatmul.bf16.gmra.mxu0 %v4718
    %v4738 = vpop.f32.mrf.mxu0
    %v4739 = vadd.f32 0.0, %v4738
    %v4740 = vpop.f32.mrf.mxu0
    %v4741 = vadd.f32 0.0, %v4740
    %4742 = vmatmul.bf16.gmra.mxu0 %v4721
    %v4743 = vpop.f32.mrf.mxu0
    %v4744 = vadd.f32 0.0, %v4743
    %v4745 = vpop.f32.mrf.mxu0
    %v4746 = vadd.f32 0.0, %v4745
    %4747 = vmatmul.bf16.gmra.mxu0 %v4724
    %v4748 = vpop.f32.mrf.mxu0
    %v4749 = vadd.f32 0.0, %v4748
    %v4750 = vpop.f32.mrf.mxu0
    %v4751 = vadd.f32 0.0, %v4750
    %4752 = vmatmul.bf16.gmra.mxu0 %v4727
    %v4753 = vpop.f32.mrf.mxu0
    %v4754 = vadd.f32 0.0, %v4753
    %v4755 = vpop.f32.mrf.mxu0
    %4756 = vdwg.mxu0
    %v4757 = vadd.f32 %v4631, %v4739
    %v4758 = vadd.f32 %v4632, %v4741
    %v4759 = vadd.f32 %v4633, %v4744
    %v4760 = vadd.f32 %v4634, %v4746
    %v4761 = vadd.f32 %v4635, %v4749
    %v4762 = vadd.f32 %v4636, %v4751
    %v4763 = vadd.f32 %v4637, %v4754
    %vm4764 = vcmp.eq.s32.totalorder %v4129, 9
    %vm4765 = vcmp.eq.s32.totalorder %v4130, 9
    %vm4766 = vcmp.eq.s32.totalorder %v4131, 9
    %vm4767 = vcmp.eq.s32.totalorder %v4132, 9
    %vm4768 = vcmp.eq.s32.totalorder %v4133, 9
    %vm4769 = vcmp.eq.s32.totalorder %v4134, 9
    %vm4770 = vcmp.eq.s32.totalorder %v4135, 9
    %v4771 = vsel %vm4764, 1.0, 0.0
    %v4772 = vsel %vm4765, 1.0, 0.0
    %v4773 = vsel %vm4766, 1.0, 0.0
    %v4774 = vsel %vm4767, 1.0, 0.0
    %v4775 = vsel %vm4768, 1.0, 0.0
    %v4776 = vsel %vm4769, 1.0, 0.0
    %v4777 = vsel %vm4770, 1.0, 0.0
    %v4778 = vpack.c.bf16 %v4772, %v4771
    %v4779 = vpack.c.bf16 %v4774, %v4773
    %v4780 = vpack.c.bf16 %v4776, %v4775
    %v4781 = vpack.c.bf16 %v4777, %v4777
    %v4783 = vsel %vm4161, %v4778, 0
    %v4786 = vsel %vm4161, %v4779, 0
    %v4789 = vsel %vm4161, %v4780, 0
    %v4792 = vsel %vm4161, %v4781, 0
    %4794 = vmatpush.bf16.msra.mxu0 0
    %4795 = vmatpush.bf16.msra.mxu0 %v4176
    %4796 = vmatpush.bf16.msra.mxu0 %v4159
    %4797 = vmatpush.bf16.msra.mxu0 %v4158
    %4798 = vmatpush.bf16.msra.mxu0 %v4157
    %4799 = vmatpush.bf16.msra.mxu0 %v4156
    %4800 = vmatpush.bf16.msra.mxu0 %v4155
    %4801 = vmatpush.bf16.msra.mxu0 %v4154
    %4802 = vmatmul.bf16.gmra.mxu0 %v4783
    %v4803 = vpop.f32.mrf.mxu0
    %v4804 = vadd.f32 0.0, %v4803
    %v4805 = vpop.f32.mrf.mxu0
    %v4806 = vadd.f32 0.0, %v4805
    %4807 = vmatmul.bf16.gmra.mxu0 %v4786
    %v4808 = vpop.f32.mrf.mxu0
    %v4809 = vadd.f32 0.0, %v4808
    %v4810 = vpop.f32.mrf.mxu0
    %v4811 = vadd.f32 0.0, %v4810
    %4812 = vmatmul.bf16.gmra.mxu0 %v4789
    %v4813 = vpop.f32.mrf.mxu0
    %v4814 = vadd.f32 0.0, %v4813
    %v4815 = vpop.f32.mrf.mxu0
    %v4816 = vadd.f32 0.0, %v4815
    %4817 = vmatmul.bf16.gmra.mxu0 %v4792
    %v4818 = vpop.f32.mrf.mxu0
    %v4819 = vadd.f32 0.0, %v4818
    %v4820 = vpop.f32.mrf.mxu0
    %4821 = vdwg.mxu0
    %s4822 = scalar_lea.vmem [#allocation7], 80
    %v4823 = vld [vmem:[%s4822] sm:$0xf]
    %v4824 = vld [vmem:[%s4822 + $0x4] sm:$0xf]
    %v4825 = vld [vmem:[%s4822 + $0x8] sm:$0xf]
    %v4826 = vld [vmem:[%s4822 + $0xc] sm:$0xf]
    %v4827 = vpack.c.bf16 %v4806, %v4804
    %v4828 = vpack.c.bf16 %v4811, %v4809
    %v4829 = vpack.c.bf16 %v4816, %v4814
    %v4830 = vpack.c.bf16 %v4819, %v4819
    %v4835 = vunpack.c.l.b16 %v4823
    %v4836 = vunpack.c.l.b16 %v4824
    %v4837 = vunpack.c.l.b16 %v4825
    %v4838 = vunpack.c.l.b16 %v4826
    %v4839 = vpack.c.b16 %v4836, %v4835
    %v4840 = vpack.c.b16 %v4838, %v4837
    %v4844 = vsel %vm4293, %v4827, 0
    %v4847 = vsel %vm4293, %v4828, 0
    %v4850 = vsel %vm4293, %v4829, 0
    %v4853 = vsel %vm4293, %v4830, 0
    %4855 = vmatpush.bf16.msra.mxu0 0
    %4856 = vmatpush.bf16.msra.mxu0 0
    %4857 = vmatpush.bf16.msra.mxu0 0
    %4858 = vmatpush.bf16.msra.mxu0 0
    %4859 = vmatpush.bf16.msra.mxu0 0
    %4860 = vmatpush.bf16.msra.mxu0 0
    %4861 = vmatpush.bf16.msra.mxu0 %v4840
    %4862 = vmatpush.bf16.msra.mxu0 %v4839
    %4863 = vmatmul.bf16.gmra.mxu0 %v4844
    %v4864 = vpop.f32.mrf.mxu0
    %v4865 = vadd.f32 0.0, %v4864
    %v4866 = vpop.f32.mrf.mxu0
    %v4867 = vadd.f32 0.0, %v4866
    %4868 = vmatmul.bf16.gmra.mxu0 %v4847
    %v4869 = vpop.f32.mrf.mxu0
    %v4870 = vadd.f32 0.0, %v4869
    %v4871 = vpop.f32.mrf.mxu0
    %v4872 = vadd.f32 0.0, %v4871
    %4873 = vmatmul.bf16.gmra.mxu0 %v4850
    %v4874 = vpop.f32.mrf.mxu0
    %v4875 = vadd.f32 0.0, %v4874
    %v4876 = vpop.f32.mrf.mxu0
    %v4877 = vadd.f32 0.0, %v4876
    %4878 = vmatmul.bf16.gmra.mxu0 %v4853
    %v4879 = vpop.f32.mrf.mxu0
    %v4880 = vadd.f32 0.0, %v4879
    %v4881 = vpop.f32.mrf.mxu0
    %4882 = vdwg.mxu0
    %v4883 = vadd.f32 %v4757, %v4865
    %v4884 = vadd.f32 %v4758, %v4867
    %v4885 = vadd.f32 %v4759, %v4870
    %v4886 = vadd.f32 %v4760, %v4872
    %v4887 = vadd.f32 %v4761, %v4875
    %v4888 = vadd.f32 %v4762, %v4877
    %v4889 = vadd.f32 %v4763, %v4880
    %vm4890 = vcmp.eq.s32.totalorder %v4129, 14
    %vm4891 = vcmp.eq.s32.totalorder %v4130, 14
    %vm4892 = vcmp.eq.s32.totalorder %v4131, 14
    %vm4893 = vcmp.eq.s32.totalorder %v4132, 14
    %vm4894 = vcmp.eq.s32.totalorder %v4133, 14
    %vm4895 = vcmp.eq.s32.totalorder %v4134, 14
    %vm4896 = vcmp.eq.s32.totalorder %v4135, 14
    %v4897 = vsel %vm4890, 1.0, 0.0
    %v4898 = vsel %vm4891, 1.0, 0.0
    %v4899 = vsel %vm4892, 1.0, 0.0
    %v4900 = vsel %vm4893, 1.0, 0.0
    %v4901 = vsel %vm4894, 1.0, 0.0
    %v4902 = vsel %vm4895, 1.0, 0.0
    %v4903 = vsel %vm4896, 1.0, 0.0
    %v4904 = vpack.c.bf16 %v4898, %v4897
    %v4905 = vpack.c.bf16 %v4900, %v4899
    %v4906 = vpack.c.bf16 %v4902, %v4901
    %v4907 = vpack.c.bf16 %v4903, %v4903
    %v4909 = vsel %vm4161, %v4904, 0
    %v4912 = vsel %vm4161, %v4905, 0
    %v4915 = vsel %vm4161, %v4906, 0
    %v4918 = vsel %vm4161, %v4907, 0
    %4920 = vmatpush.bf16.msra.mxu0 0
    %4921 = vmatpush.bf16.msra.mxu0 %v4176
    %4922 = vmatpush.bf16.msra.mxu0 %v4159
    %4923 = vmatpush.bf16.msra.mxu0 %v4158
    %4924 = vmatpush.bf16.msra.mxu0 %v4157
    %4925 = vmatpush.bf16.msra.mxu0 %v4156
    %4926 = vmatpush.bf16.msra.mxu0 %v4155
    %4927 = vmatpush.bf16.msra.mxu0 %v4154
    %4928 = vmatmul.bf16.gmra.mxu0 %v4909
    %v4929 = vpop.f32.mrf.mxu0
    %v4930 = vadd.f32 0.0, %v4929
    %v4931 = vpop.f32.mrf.mxu0
    %v4932 = vadd.f32 0.0, %v4931
    %4933 = vmatmul.bf16.gmra.mxu0 %v4912
    %v4934 = vpop.f32.mrf.mxu0
    %v4935 = vadd.f32 0.0, %v4934
    %v4936 = vpop.f32.mrf.mxu0
    %v4937 = vadd.f32 0.0, %v4936
    %4938 = vmatmul.bf16.gmra.mxu0 %v4915
    %v4939 = vpop.f32.mrf.mxu0
    %v4940 = vadd.f32 0.0, %v4939
    %v4941 = vpop.f32.mrf.mxu0
    %v4942 = vadd.f32 0.0, %v4941
    %4943 = vmatmul.bf16.gmra.mxu0 %v4918
    %v4944 = vpop.f32.mrf.mxu0
    %v4945 = vadd.f32 0.0, %v4944
    %v4946 = vpop.f32.mrf.mxu0
    %4947 = vdwg.mxu0
    %s4948 = scalar_lea.vmem [#allocation7], 96
    %v4949 = vld [vmem:[%s4948] sm:$0xf]
    %v4950 = vld [vmem:[%s4948 + $0x4] sm:$0xf]
    %v4951 = vld [vmem:[%s4948 + $0x8] sm:$0xf]
    %v4952 = vld [vmem:[%s4948 + $0xc] sm:$0xf]
    %v4953 = vpack.c.bf16 %v4932, %v4930
    %v4954 = vpack.c.bf16 %v4937, %v4935
    %v4955 = vpack.c.bf16 %v4942, %v4940
    %v4956 = vpack.c.bf16 %v4945, %v4945
    %v4961 = vunpack.c.l.b16 %v4949
    %v4962 = vunpack.c.l.b16 %v4950
    %v4963 = vunpack.c.l.b16 %v4951
    %v4964 = vunpack.c.l.b16 %v4952
    %v4965 = vpack.c.b16 %v4962, %v4961
    %v4966 = vpack.c.b16 %v4964, %v4963
    %v4970 = vsel %vm4293, %v4953, 0
    %v4973 = vsel %vm4293, %v4954, 0
    %v4976 = vsel %vm4293, %v4955, 0
    %v4979 = vsel %vm4293, %v4956, 0
    %4981 = vmatpush.bf16.msra.mxu0 0
    %4982 = vmatpush.bf16.msra.mxu0 0
    %4983 = vmatpush.bf16.msra.mxu0 0
    %4984 = vmatpush.bf16.msra.mxu0 0
    %4985 = vmatpush.bf16.msra.mxu0 0
    %4986 = vmatpush.bf16.msra.mxu0 0
    %4987 = vmatpush.bf16.msra.mxu0 %v4966
    %4988 = vmatpush.bf16.msra.mxu0 %v4965
    %4989 = vmatmul.bf16.gmra.mxu0 %v4970
    %v4990 = vpop.f32.mrf.mxu0
    %v4991 = vadd.f32 0.0, %v4990
    %v4992 = vpop.f32.mrf.mxu0
    %v4993 = vadd.f32 0.0, %v4992
    %4994 = vmatmul.bf16.gmra.mxu0 %v4973
    %v4995 = vpop.f32.mrf.mxu0
    %v4996 = vadd.f32 0.0, %v4995
    %v4997 = vpop.f32.mrf.mxu0
    %v4998 = vadd.f32 0.0, %v4997
    %4999 = vmatmul.bf16.gmra.mxu0 %v4976
    %v5000 = vpop.f32.mrf.mxu0
    %v5001 = vadd.f32 0.0, %v5000
    %v5002 = vpop.f32.mrf.mxu0
    %v5003 = vadd.f32 0.0, %v5002
    %5004 = vmatmul.bf16.gmra.mxu0 %v4979
    %v5005 = vpop.f32.mrf.mxu0
    %v5006 = vadd.f32 0.0, %v5005
    %v5007 = vpop.f32.mrf.mxu0
    %5008 = vdwg.mxu0
    %v5009 = vadd.f32 %v4883, %v4991
    %v5010 = vadd.f32 %v4884, %v4993
    %v5011 = vadd.f32 %v4885, %v4996
    %v5012 = vadd.f32 %v4886, %v4998
    %v5013 = vadd.f32 %v4887, %v5001
    %v5014 = vadd.f32 %v4888, %v5003
    %v5015 = vadd.f32 %v4889, %v5006
    %vm5016 = vcmp.eq.s32.totalorder %v4129, 15
    %vm5017 = vcmp.eq.s32.totalorder %v4130, 15
    %vm5018 = vcmp.eq.s32.totalorder %v4131, 15
    %vm5019 = vcmp.eq.s32.totalorder %v4132, 15
    %vm5020 = vcmp.eq.s32.totalorder %v4133, 15
    %vm5021 = vcmp.eq.s32.totalorder %v4134, 15
    %vm5022 = vcmp.eq.s32.totalorder %v4135, 15
    %v5023 = vsel %vm5016, 1.0, 0.0
    %v5024 = vsel %vm5017, 1.0, 0.0
    %v5025 = vsel %vm5018, 1.0, 0.0
    %v5026 = vsel %vm5019, 1.0, 0.0
    %v5027 = vsel %vm5020, 1.0, 0.0
    %v5028 = vsel %vm5021, 1.0, 0.0
    %v5029 = vsel %vm5022, 1.0, 0.0
    %v5030 = vpack.c.bf16 %v5024, %v5023
    %v5031 = vpack.c.bf16 %v5026, %v5025
    %v5032 = vpack.c.bf16 %v5028, %v5027
    %v5033 = vpack.c.bf16 %v5029, %v5029
    %v5035 = vsel %vm4161, %v5030, 0
    %v5038 = vsel %vm4161, %v5031, 0
    %v5041 = vsel %vm4161, %v5032, 0
    %v5044 = vsel %vm4161, %v5033, 0
    %5046 = vmatpush.bf16.msra.mxu0 0
    %5047 = vmatpush.bf16.msra.mxu0 %v4176
    %5048 = vmatpush.bf16.msra.mxu0 %v4159
    %5049 = vmatpush.bf16.msra.mxu0 %v4158
    %5050 = vmatpush.bf16.msra.mxu0 %v4157
    %5051 = vmatpush.bf16.msra.mxu0 %v4156
    %5052 = vmatpush.bf16.msra.mxu0 %v4155
    %5053 = vmatpush.bf16.msra.mxu0 %v4154
    %5054 = vmatmul.bf16.gmra.mxu0 %v5035
    %v5055 = vpop.f32.mrf.mxu0
    %v5056 = vadd.f32 0.0, %v5055
    %v5057 = vpop.f32.mrf.mxu0
    %v5058 = vadd.f32 0.0, %v5057
    %5059 = vmatmul.bf16.gmra.mxu0 %v5038
    %v5060 = vpop.f32.mrf.mxu0
    %v5061 = vadd.f32 0.0, %v5060
    %v5062 = vpop.f32.mrf.mxu0
    %v5063 = vadd.f32 0.0, %v5062
    %5064 = vmatmul.bf16.gmra.mxu0 %v5041
    %v5065 = vpop.f32.mrf.mxu0
    %v5066 = vadd.f32 0.0, %v5065
    %v5067 = vpop.f32.mrf.mxu0
    %v5068 = vadd.f32 0.0, %v5067
    %5069 = vmatmul.bf16.gmra.mxu0 %v5044
    %v5070 = vpop.f32.mrf.mxu0
    %v5071 = vadd.f32 0.0, %v5070
    %v5072 = vpop.f32.mrf.mxu0
    %5073 = vdwg.mxu0
    %s5074 = scalar_lea.vmem [#allocation7], 112
    %v5075 = vld [vmem:[%s5074] sm:$0xf]
    %v5076 = vld [vmem:[%s5074 + $0x4] sm:$0xf]
    %v5077 = vld [vmem:[%s5074 + $0x8] sm:$0xf]
    %v5078 = vld [vmem:[%s5074 + $0xc] sm:$0xf]
    %v5079 = vpack.c.bf16 %v5058, %v5056
    %v5080 = vpack.c.bf16 %v5063, %v5061
    %v5081 = vpack.c.bf16 %v5068, %v5066
    %v5082 = vpack.c.bf16 %v5071, %v5071
    %v5087 = vunpack.c.l.b16 %v5075
    %v5088 = vunpack.c.l.b16 %v5076
    %v5089 = vunpack.c.l.b16 %v5077
    %v5090 = vunpack.c.l.b16 %v5078
    %v5091 = vpack.c.b16 %v5088, %v5087
    %v5092 = vpack.c.b16 %v5090, %v5089
    %v5096 = vsel %vm4293, %v5079, 0
    %v5099 = vsel %vm4293, %v5080, 0
    %v5102 = vsel %vm4293, %v5081, 0
    %v5105 = vsel %vm4293, %v5082, 0
    %5107 = vmatpush.bf16.msra.mxu0 0
    %5108 = vmatpush.bf16.msra.mxu0 0
    %5109 = vmatpush.bf16.msra.mxu0 0
    %5110 = vmatpush.bf16.msra.mxu0 0
    %5111 = vmatpush.bf16.msra.mxu0 0
    %5112 = vmatpush.bf16.msra.mxu0 0
    %5113 = vmatpush.bf16.msra.mxu0 %v5092
    %5114 = vmatpush.bf16.msra.mxu0 %v5091
    %5115 = vmatmul.bf16.gmra.mxu0 %v5096
    %v5116 = vpop.f32.mrf.mxu0
    %v5117 = vadd.f32 0.0, %v5116
    %v5118 = vpop.f32.mrf.mxu0
    %v5119 = vadd.f32 0.0, %v5118
    %5120 = vmatmul.bf16.gmra.mxu0 %v5099
    %v5121 = vpop.f32.mrf.mxu0
    %v5122 = vadd.f32 0.0, %v5121
    %v5123 = vpop.f32.mrf.mxu0
    %v5124 = vadd.f32 0.0, %v5123
    %5125 = vmatmul.bf16.gmra.mxu0 %v5102
    %v5126 = vpop.f32.mrf.mxu0
    %v5127 = vadd.f32 0.0, %v5126
    %v5128 = vpop.f32.mrf.mxu0
    %v5129 = vadd.f32 0.0, %v5128
    %5130 = vmatmul.bf16.gmra.mxu0 %v5105
    %v5131 = vpop.f32.mrf.mxu0
    %v5132 = vadd.f32 0.0, %v5131
    %v5133 = vpop.f32.mrf.mxu0
    %5134 = vdwg.mxu0
    %v5135 = vadd.f32 %v5009, %v5117
    %v5136 = vadd.f32 %v5010, %v5119
    %v5137 = vadd.f32 %v5011, %v5122
    %v5138 = vadd.f32 %v5012, %v5124
    %v5139 = vadd.f32 %v5013, %v5127
    %v5140 = vadd.f32 %v5014, %v5129
    %v5141 = vadd.f32 %v5015, %v5132
    %vm5142 = vcmp.eq.s32.totalorder %v4129, 16
    %vm5143 = vcmp.eq.s32.totalorder %v4130, 16
    %vm5144 = vcmp.eq.s32.totalorder %v4131, 16
    %vm5145 = vcmp.eq.s32.totalorder %v4132, 16
    %vm5146 = vcmp.eq.s32.totalorder %v4133, 16
    %vm5147 = vcmp.eq.s32.totalorder %v4134, 16
    %vm5148 = vcmp.eq.s32.totalorder %v4135, 16
    %v5149 = vsel %vm5142, 1.0, 0.0
    %v5150 = vsel %vm5143, 1.0, 0.0
    %v5151 = vsel %vm5144, 1.0, 0.0
    %v5152 = vsel %vm5145, 1.0, 0.0
    %v5153 = vsel %vm5146, 1.0, 0.0
    %v5154 = vsel %vm5147, 1.0, 0.0
    %v5155 = vsel %vm5148, 1.0, 0.0
    %v5156 = vpack.c.bf16 %v5150, %v5149
    %v5157 = vpack.c.bf16 %v5152, %v5151
    %v5158 = vpack.c.bf16 %v5154, %v5153
    %v5159 = vpack.c.bf16 %v5155, %v5155
    %v5161 = vsel %vm4161, %v5156, 0
    %v5164 = vsel %vm4161, %v5157, 0
    %v5167 = vsel %vm4161, %v5158, 0
    %v5170 = vsel %vm4161, %v5159, 0
    %5172 = vmatpush.bf16.msra.mxu0 0
    %5173 = vmatpush.bf16.msra.mxu0 %v4176
    %5174 = vmatpush.bf16.msra.mxu0 %v4159
    %5175 = vmatpush.bf16.msra.mxu0 %v4158
    %5176 = vmatpush.bf16.msra.mxu0 %v4157
    %5177 = vmatpush.bf16.msra.mxu0 %v4156
    %5178 = vmatpush.bf16.msra.mxu0 %v4155
    %5179 = vmatpush.bf16.msra.mxu0 %v4154
    %5180 = vmatmul.bf16.gmra.mxu0 %v5161
    %v5181 = vpop.f32.mrf.mxu0
    %v5182 = vadd.f32 0.0, %v5181
    %v5183 = vpop.f32.mrf.mxu0
    %v5184 = vadd.f32 0.0, %v5183
    %5185 = vmatmul.bf16.gmra.mxu0 %v5164
    %v5186 = vpop.f32.mrf.mxu0
    %v5187 = vadd.f32 0.0, %v5186
    %v5188 = vpop.f32.mrf.mxu0
    %v5189 = vadd.f32 0.0, %v5188
    %5190 = vmatmul.bf16.gmra.mxu0 %v5167
    %v5191 = vpop.f32.mrf.mxu0
    %v5192 = vadd.f32 0.0, %v5191
    %v5193 = vpop.f32.mrf.mxu0
    %v5194 = vadd.f32 0.0, %v5193
    %5195 = vmatmul.bf16.gmra.mxu0 %v5170
    %v5196 = vpop.f32.mrf.mxu0
    %v5197 = vadd.f32 0.0, %v5196
    %v5198 = vpop.f32.mrf.mxu0
    %5199 = vdwg.mxu0
    %s5200 = scalar_lea.vmem [#allocation7], 128
    %v5201 = vld [vmem:[%s5200] sm:$0xf]
    %v5202 = vld [vmem:[%s5200 + $0x4] sm:$0xf]
    %v5203 = vld [vmem:[%s5200 + $0x8] sm:$0xf]
    %v5204 = vld [vmem:[%s5200 + $0xc] sm:$0xf]
    %v5205 = vpack.c.bf16 %v5184, %v5182
    %v5206 = vpack.c.bf16 %v5189, %v5187
    %v5207 = vpack.c.bf16 %v5194, %v5192
    %v5208 = vpack.c.bf16 %v5197, %v5197
    %v5213 = vunpack.c.l.b16 %v5201
    %v5214 = vunpack.c.l.b16 %v5202
    %v5215 = vunpack.c.l.b16 %v5203
    %v5216 = vunpack.c.l.b16 %v5204
    %v5217 = vpack.c.b16 %v5214, %v5213
    %v5218 = vpack.c.b16 %v5216, %v5215
    %v5222 = vsel %vm4293, %v5205, 0
    %v5225 = vsel %vm4293, %v5206, 0
    %v5228 = vsel %vm4293, %v5207, 0
    %v5231 = vsel %vm4293, %v5208, 0
    %5233 = vmatpush.bf16.msra.mxu0 0
    %5234 = vmatpush.bf16.msra.mxu0 0
    %5235 = vmatpush.bf16.msra.mxu0 0
    %5236 = vmatpush.bf16.msra.mxu0 0
    %5237 = vmatpush.bf16.msra.mxu0 0
    %5238 = vmatpush.bf16.msra.mxu0 0
    %5239 = vmatpush.bf16.msra.mxu0 %v5218
    %5240 = vmatpush.bf16.msra.mxu0 %v5217
    %5241 = vmatmul.bf16.gmra.mxu0 %v5222
    %v5242 = vpop.f32.mrf.mxu0
    %v5243 = vadd.f32 0.0, %v5242
    %v5244 = vpop.f32.mrf.mxu0
    %v5245 = vadd.f32 0.0, %v5244
    %5246 = vmatmul.bf16.gmra.mxu0 %v5225
    %v5247 = vpop.f32.mrf.mxu0
    %v5248 = vadd.f32 0.0, %v5247
    %v5249 = vpop.f32.mrf.mxu0
    %v5250 = vadd.f32 0.0, %v5249
    %5251 = vmatmul.bf16.gmra.mxu0 %v5228
    %v5252 = vpop.f32.mrf.mxu0
    %v5253 = vadd.f32 0.0, %v5252
    %v5254 = vpop.f32.mrf.mxu0
    %v5255 = vadd.f32 0.0, %v5254
    %5256 = vmatmul.bf16.gmra.mxu0 %v5231
    %v5257 = vpop.f32.mrf.mxu0
    %v5258 = vadd.f32 0.0, %v5257
    %v5259 = vpop.f32.mrf.mxu0
    %5260 = vdwg.mxu0
    %v5261 = vadd.f32 %v5135, %v5243
    %v5262 = vadd.f32 %v5136, %v5245
    %v5263 = vadd.f32 %v5137, %v5248
    %v5264 = vadd.f32 %v5138, %v5250
    %v5265 = vadd.f32 %v5139, %v5253
    %v5266 = vadd.f32 %v5140, %v5255
    %v5267 = vadd.f32 %v5141, %v5258
    %v5268 = vld [vmem:[#allocation9] sm:$0x1]
    %v5270 = vperm.slane %v5268, 0
    %v5272 = vadd.f32 %v5261, %v5270
    %v5273 = vadd.f32 %v5262, %v5270
    %v5274 = vadd.f32 %v5263, %v5270
    %v5275 = vadd.f32 %v5264, %v5270
    %v5276 = vadd.f32 %v5265, %v5270
    %v5277 = vadd.f32 %v5266, %v5270
    %v5278 = vadd.f32 %v5267, %v5270
    %v5279 = vmax.f32 %v5272, 0.0
    %v5280 = vmax.f32 %v5273, 0.0
    %v5281 = vmax.f32 %v5274, 0.0
    %v5282 = vmax.f32 %v5275, 0.0
    %v5283 = vmax.f32 %v5276, 0.0
    %v5284 = vmax.f32 %v5277, 0.0
    %v5285 = vmax.f32 %v5278, 0.0
    %v5286 = vld [vmem:[%s4] sm:$0xff]
    %v5287 = vld [vmem:[%s4 + $0x8] sm:$0xff]
    %v5288 = vld [vmem:[%s4 + $0x10] sm:$0x3]
    %5289 = vset.pattern.permute.xlu0 0
    %5290 = vperm.xlu0 %5289, %v5286
    %v5291 = vpop.permute.xlu0 %5290
    %5292 = vset.pattern.permute.xlu0 0
    %5293 = vperm.xlu0 %5292, %v5287
    %v5294 = vpop.permute.xlu0 %5293
    %5295 = vset.pattern.permute.xlu0 0
    %5296 = vperm.xlu0 %5295, %v5288
    %v5297 = vpop.permute.xlu0 %5296
    %v5298 = vsub.s32 %v419, %v5291
    %v5299 = vsub.s32 %v419, %v5294
    %v5300 = vsub.s32 %v419, %v5297
    %vm5301 = vcmp.eq.s32.totalorder %v5298, 0
    %vm5302 = vcmp.eq.s32.totalorder %v5299, 0
    %vm5303 = vcmp.eq.s32.totalorder %v5300, 0
    %v5304 = vsel %vm5301, 1.0, 0.0
    %v5305 = vsel %vm5302, 1.0, 0.0
    %v5306 = vsel %vm5303, 1.0, 0.0
    %v5307 = vpack.c.bf16 %v5305, %v5304
    %v5308 = vpack.c.bf16 %v5306, %v5306
    %v5309 = vpack.c.bf16 %v5280, %v5279
    %v5310 = vpack.c.bf16 %v5282, %v5281
    %v5311 = vpack.c.bf16 %v5284, %v5283
    %v5312 = vpack.c.bf16 %v5285, %v5285
    %vm5313 = vcmask 408576
    %v5315 = vsel %vm5313, %v5307, 0
    %v5318 = vsel %vm5313, %v5308, 0
    %v5321 = vsel %vm4174, %v5312, 0
    %5323 = vmatpush.bf16.msra.mxu0 0
    %5324 = vmatpush.bf16.msra.mxu0 0
    %5325 = vmatpush.bf16.msra.mxu0 0
    %5326 = vmatpush.bf16.msra.mxu0 0
    %5327 = vmatpush.bf16.msra.mxu0 %v5321
    %5328 = vmatpush.bf16.msra.mxu0 %v5311
    %5329 = vmatpush.bf16.msra.mxu0 %v5310
    %5330 = vmatpush.bf16.msra.mxu0 %v5309
    %5331 = vmatmul.bf16.gmra.mxu0 %v5315
    %v5332 = vpop.f32.mrf.mxu0
    %v5333 = vadd.f32 0.0, %v5332
    %v5334 = vpop.f32.mrf.mxu0
    %v5335 = vadd.f32 0.0, %v5334
    %5336 = vmatmul.bf16.gmra.mxu0 %v5318
    %v5337 = vpop.f32.mrf.mxu0
    %v5338 = vadd.f32 0.0, %v5337
    %v5339 = vpop.f32.mrf.mxu0
    %5340 = vdwg.mxu0
    %v5341 = vld [vmem:[#allocation10] sm:$0xf]
    %v5342 = vld [vmem:[#allocation10 + $0x4] sm:$0xf]
    %v5343 = vld [vmem:[#allocation10 + $0x8] sm:$0xf]
    %v5344 = vld [vmem:[#allocation10 + $0xc] sm:$0xf]
    %v5345 = vpack.c.bf16 %v5335, %v5333
    %v5346 = vpack.c.bf16 %v5338, %v5338
    %vm5347 = vcmp.eq.s32.totalorder %v5298, 1
    %vm5348 = vcmp.eq.s32.totalorder %v5299, 1
    %vm5349 = vcmp.eq.s32.totalorder %v5300, 1
    %v5350 = vsel %vm5347, 1.0, 0.0
    %v5351 = vsel %vm5348, 1.0, 0.0
    %v5352 = vsel %vm5349, 1.0, 0.0
    %v5353 = vpack.c.bf16 %v5351, %v5350
    %v5354 = vpack.c.bf16 %v5352, %v5352
    %v5356 = vsel %vm5313, %v5353, 0
    %v5359 = vsel %vm5313, %v5354, 0
    %5361 = vmatpush.bf16.msra.mxu0 0
    %5362 = vmatpush.bf16.msra.mxu0 0
    %5363 = vmatpush.bf16.msra.mxu0 0
    %5364 = vmatpush.bf16.msra.mxu0 0
    %5365 = vmatpush.bf16.msra.mxu0 %v5321
    %5366 = vmatpush.bf16.msra.mxu0 %v5311
    %5367 = vmatpush.bf16.msra.mxu0 %v5310
    %5368 = vmatpush.bf16.msra.mxu0 %v5309
    %5369 = vmatmul.bf16.gmra.mxu0 %v5356
    %v5370 = vpop.f32.mrf.mxu0
    %v5371 = vadd.f32 0.0, %v5370
    %v5372 = vpop.f32.mrf.mxu0
    %v5373 = vadd.f32 0.0, %v5372
    %5374 = vmatmul.bf16.gmra.mxu0 %v5359
    %v5375 = vpop.f32.mrf.mxu0
    %v5376 = vadd.f32 0.0, %v5375
    %v5377 = vpop.f32.mrf.mxu0
    %5378 = vdwg.mxu0
    %s5379 = scalar_lea.vmem [#allocation10], 16
    %v5380 = vld [vmem:[%s5379] sm:$0xf]
    %v5381 = vld [vmem:[%s5379 + $0x4] sm:$0xf]
    %v5382 = vld [vmem:[%s5379 + $0x8] sm:$0xf]
    %v5383 = vld [vmem:[%s5379 + $0xc] sm:$0xf]
    %v5384 = vpack.c.bf16 %v5373, %v5371
    %v5385 = vpack.c.bf16 %v5376, %v5376
    %v5390 = vunpack.c.l.b16 %v5380
    %v5391 = vunpack.c.l.b16 %v5381
    %v5392 = vunpack.c.l.b16 %v5382
    %v5393 = vunpack.c.l.b16 %v5383
    %v5394 = vpack.c.b16 %v5391, %v5390
    %v5395 = vpack.c.b16 %v5393, %v5392
    %v5399 = vsel %vm4293, %v5384, 0
    %v5402 = vsel %vm4293, %v5385, 0
    %5404 = vmatpush.bf16.msra.mxu0 0
    %5405 = vmatpush.bf16.msra.mxu0 0
    %5406 = vmatpush.bf16.msra.mxu0 0
    %5407 = vmatpush.bf16.msra.mxu0 0
    %5408 = vmatpush.bf16.msra.mxu0 0
    %5409 = vmatpush.bf16.msra.mxu0 0
    %5410 = vmatpush.bf16.msra.mxu0 %v5395
    %5411 = vmatpush.bf16.msra.mxu0 %v5394
    %5412 = vmatmul.bf16.gmra.mxu0 %v5399
    %v5413 = vpop.f32.mrf.mxu0
    %v5414 = vadd.f32 0.0, %v5413
    %v5415 = vpop.f32.mrf.mxu0
    %v5416 = vadd.f32 0.0, %v5415
    %5417 = vmatmul.bf16.gmra.mxu0 %v5402
    %v5418 = vpop.f32.mrf.mxu0
    %v5419 = vadd.f32 0.0, %v5418
    %v5420 = vpop.f32.mrf.mxu0
    %5421 = vdwg.mxu0
    %v5426 = vunpack.c.l.b16 %v5341
    %v5427 = vunpack.c.l.b16 %v5342
    %v5428 = vunpack.c.l.b16 %v5343
    %v5429 = vunpack.c.l.b16 %v5344
    %v5430 = vpack.c.b16 %v5427, %v5426
    %v5431 = vpack.c.b16 %v5429, %v5428
    %v5435 = vsel %vm4293, %v5345, 0
    %v5438 = vsel %vm4293, %v5346, 0
    %5440 = vmatpush.bf16.msra.mxu0 0
    %5441 = vmatpush.bf16.msra.mxu0 0
    %5442 = vmatpush.bf16.msra.mxu0 0
    %5443 = vmatpush.bf16.msra.mxu0 0
    %5444 = vmatpush.bf16.msra.mxu0 0
    %5445 = vmatpush.bf16.msra.mxu0 0
    %5446 = vmatpush.bf16.msra.mxu0 %v5431
    %5447 = vmatpush.bf16.msra.mxu0 %v5430
    %5448 = vmatmul.bf16.gmra.mxu0 %v5435
    %v5449 = vpop.f32.mrf.mxu0
    %v5450 = vadd.f32 %v5414, %v5449
    %v5451 = vpop.f32.mrf.mxu0
    %v5452 = vadd.f32 %v5416, %v5451
    %5453 = vmatmul.bf16.gmra.mxu0 %v5438
    %v5454 = vpop.f32.mrf.mxu0
    %v5455 = vadd.f32 %v5419, %v5454
    %v5456 = vpop.f32.mrf.mxu0
    %5457 = vdwg.mxu0
    %vm5458 = vcmp.eq.s32.totalorder %v5298, 2
    %vm5459 = vcmp.eq.s32.totalorder %v5299, 2
    %vm5460 = vcmp.eq.s32.totalorder %v5300, 2
    %v5461 = vsel %vm5458, 1.0, 0.0
    %v5462 = vsel %vm5459, 1.0, 0.0
    %v5463 = vsel %vm5460, 1.0, 0.0
    %v5464 = vpack.c.bf16 %v5462, %v5461
    %v5465 = vpack.c.bf16 %v5463, %v5463
    %v5467 = vsel %vm5313, %v5464, 0
    %v5470 = vsel %vm5313, %v5465, 0
    %5472 = vmatpush.bf16.msra.mxu0 0
    %5473 = vmatpush.bf16.msra.mxu0 0
    %5474 = vmatpush.bf16.msra.mxu0 0
    %5475 = vmatpush.bf16.msra.mxu0 0
    %5476 = vmatpush.bf16.msra.mxu0 %v5321
    %5477 = vmatpush.bf16.msra.mxu0 %v5311
    %5478 = vmatpush.bf16.msra.mxu0 %v5310
    %5479 = vmatpush.bf16.msra.mxu0 %v5309
    %5480 = vmatmul.bf16.gmra.mxu0 %v5467
    %v5481 = vpop.f32.mrf.mxu0
    %v5482 = vadd.f32 0.0, %v5481
    %v5483 = vpop.f32.mrf.mxu0
    %v5484 = vadd.f32 0.0, %v5483
    %5485 = vmatmul.bf16.gmra.mxu0 %v5470
    %v5486 = vpop.f32.mrf.mxu0
    %v5487 = vadd.f32 0.0, %v5486
    %v5488 = vpop.f32.mrf.mxu0
    %5489 = vdwg.mxu0
    %s5490 = scalar_lea.vmem [#allocation10], 32
    %v5491 = vld [vmem:[%s5490] sm:$0xf]
    %v5492 = vld [vmem:[%s5490 + $0x4] sm:$0xf]
    %v5493 = vld [vmem:[%s5490 + $0x8] sm:$0xf]
    %v5494 = vld [vmem:[%s5490 + $0xc] sm:$0xf]
    %v5495 = vpack.c.bf16 %v5484, %v5482
    %v5496 = vpack.c.bf16 %v5487, %v5487
    %v5501 = vunpack.c.l.b16 %v5491
    %v5502 = vunpack.c.l.b16 %v5492
    %v5503 = vunpack.c.l.b16 %v5493
    %v5504 = vunpack.c.l.b16 %v5494
    %v5505 = vpack.c.b16 %v5502, %v5501
    %v5506 = vpack.c.b16 %v5504, %v5503
    %v5510 = vsel %vm4293, %v5495, 0
    %v5513 = vsel %vm4293, %v5496, 0
    %5515 = vmatpush.bf16.msra.mxu0 0
    %5516 = vmatpush.bf16.msra.mxu0 0
    %5517 = vmatpush.bf16.msra.mxu0 0
    %5518 = vmatpush.bf16.msra.mxu0 0
    %5519 = vmatpush.bf16.msra.mxu0 0
    %5520 = vmatpush.bf16.msra.mxu0 0
    %5521 = vmatpush.bf16.msra.mxu0 %v5506
    %5522 = vmatpush.bf16.msra.mxu0 %v5505
    %5523 = vmatmul.bf16.gmra.mxu0 %v5510
    %v5524 = vpop.f32.mrf.mxu0
    %v5525 = vadd.f32 0.0, %v5524
    %v5526 = vpop.f32.mrf.mxu0
    %v5527 = vadd.f32 0.0, %v5526
    %5528 = vmatmul.bf16.gmra.mxu0 %v5513
    %v5529 = vpop.f32.mrf.mxu0
    %v5530 = vadd.f32 0.0, %v5529
    %v5531 = vpop.f32.mrf.mxu0
    %5532 = vdwg.mxu0
    %v5533 = vadd.f32 %v5450, %v5525
    %v5534 = vadd.f32 %v5452, %v5527
    %v5535 = vadd.f32 %v5455, %v5530
    %vm5536 = vcmp.eq.s32.totalorder %v5298, 5
    %vm5537 = vcmp.eq.s32.totalorder %v5299, 5
    %vm5538 = vcmp.eq.s32.totalorder %v5300, 5
    %v5539 = vsel %vm5536, 1.0, 0.0
    %v5540 = vsel %vm5537, 1.0, 0.0
    %v5541 = vsel %vm5538, 1.0, 0.0
    %v5542 = vpack.c.bf16 %v5540, %v5539
    %v5543 = vpack.c.bf16 %v5541, %v5541
    %v5545 = vsel %vm5313, %v5542, 0
    %v5548 = vsel %vm5313, %v5543, 0
    %5550 = vmatpush.bf16.msra.mxu0 0
    %5551 = vmatpush.bf16.msra.mxu0 0
    %5552 = vmatpush.bf16.msra.mxu0 0
    %5553 = vmatpush.bf16.msra.mxu0 0
    %5554 = vmatpush.bf16.msra.mxu0 %v5321
    %5555 = vmatpush.bf16.msra.mxu0 %v5311
    %5556 = vmatpush.bf16.msra.mxu0 %v5310
    %5557 = vmatpush.bf16.msra.mxu0 %v5309
    %5558 = vmatmul.bf16.gmra.mxu0 %v5545
    %v5559 = vpop.f32.mrf.mxu0
    %v5560 = vadd.f32 0.0, %v5559
    %v5561 = vpop.f32.mrf.mxu0
    %v5562 = vadd.f32 0.0, %v5561
    %5563 = vmatmul.bf16.gmra.mxu0 %v5548
    %v5564 = vpop.f32.mrf.mxu0
    %v5565 = vadd.f32 0.0, %v5564
    %v5566 = vpop.f32.mrf.mxu0
    %5567 = vdwg.mxu0
    %s5568 = scalar_lea.vmem [#allocation10], 48
    %v5569 = vld [vmem:[%s5568] sm:$0xf]
    %v5570 = vld [vmem:[%s5568 + $0x4] sm:$0xf]
    %v5571 = vld [vmem:[%s5568 + $0x8] sm:$0xf]
    %v5572 = vld [vmem:[%s5568 + $0xc] sm:$0xf]
    %v5573 = vpack.c.bf16 %v5562, %v5560
    %v5574 = vpack.c.bf16 %v5565, %v5565
    %v5579 = vunpack.c.l.b16 %v5569
    %v5580 = vunpack.c.l.b16 %v5570
    %v5581 = vunpack.c.l.b16 %v5571
    %v5582 = vunpack.c.l.b16 %v5572
    %v5583 = vpack.c.b16 %v5580, %v5579
    %v5584 = vpack.c.b16 %v5582, %v5581
    %v5588 = vsel %vm4293, %v5573, 0
    %v5591 = vsel %vm4293, %v5574, 0
    %5593 = vmatpush.bf16.msra.mxu0 0
    %5594 = vmatpush.bf16.msra.mxu0 0
    %5595 = vmatpush.bf16.msra.mxu0 0
    %5596 = vmatpush.bf16.msra.mxu0 0
    %5597 = vmatpush.bf16.msra.mxu0 0
    %5598 = vmatpush.bf16.msra.mxu0 0
    %5599 = vmatpush.bf16.msra.mxu0 %v5584
    %5600 = vmatpush.bf16.msra.mxu0 %v5583
    %5601 = vmatmul.bf16.gmra.mxu0 %v5588
    %v5602 = vpop.f32.mrf.mxu0
    %v5603 = vadd.f32 0.0, %v5602
    %v5604 = vpop.f32.mrf.mxu0
    %v5605 = vadd.f32 0.0, %v5604
    %5606 = vmatmul.bf16.gmra.mxu0 %v5591
    %v5607 = vpop.f32.mrf.mxu0
    %v5608 = vadd.f32 0.0, %v5607
    %v5609 = vpop.f32.mrf.mxu0
    %5610 = vdwg.mxu0
    %v5611 = vadd.f32 %v5533, %v5603
    %v5612 = vadd.f32 %v5534, %v5605
    %v5613 = vadd.f32 %v5535, %v5608
    %vm5614 = vcmp.eq.s32.totalorder %v5298, 6
    %vm5615 = vcmp.eq.s32.totalorder %v5299, 6
    %vm5616 = vcmp.eq.s32.totalorder %v5300, 6
    %v5617 = vsel %vm5614, 1.0, 0.0
    %v5618 = vsel %vm5615, 1.0, 0.0
    %v5619 = vsel %vm5616, 1.0, 0.0
    %v5620 = vpack.c.bf16 %v5618, %v5617
    %v5621 = vpack.c.bf16 %v5619, %v5619
    %v5623 = vsel %vm5313, %v5620, 0
    %v5626 = vsel %vm5313, %v5621, 0
    %5628 = vmatpush.bf16.msra.mxu0 0
    %5629 = vmatpush.bf16.msra.mxu0 0
    %5630 = vmatpush.bf16.msra.mxu0 0
    %5631 = vmatpush.bf16.msra.mxu0 0
    %5632 = vmatpush.bf16.msra.mxu0 %v5321
    %5633 = vmatpush.bf16.msra.mxu0 %v5311
    %5634 = vmatpush.bf16.msra.mxu0 %v5310
    %5635 = vmatpush.bf16.msra.mxu0 %v5309
    %5636 = vmatmul.bf16.gmra.mxu0 %v5623
    %v5637 = vpop.f32.mrf.mxu0
    %v5638 = vadd.f32 0.0, %v5637
    %v5639 = vpop.f32.mrf.mxu0
    %v5640 = vadd.f32 0.0, %v5639
    %5641 = vmatmul.bf16.gmra.mxu0 %v5626
    %v5642 = vpop.f32.mrf.mxu0
    %v5643 = vadd.f32 0.0, %v5642
    %v5644 = vpop.f32.mrf.mxu0
    %5645 = vdwg.mxu0
    %s5646 = scalar_lea.vmem [#allocation10], 64
    %v5647 = vld [vmem:[%s5646] sm:$0xf]
    %v5648 = vld [vmem:[%s5646 + $0x4] sm:$0xf]
    %v5649 = vld [vmem:[%s5646 + $0x8] sm:$0xf]
    %v5650 = vld [vmem:[%s5646 + $0xc] sm:$0xf]
    %v5651 = vpack.c.bf16 %v5640, %v5638
    %v5652 = vpack.c.bf16 %v5643, %v5643
    %v5657 = vunpack.c.l.b16 %v5647
    %v5658 = vunpack.c.l.b16 %v5648
    %v5659 = vunpack.c.l.b16 %v5649
    %v5660 = vunpack.c.l.b16 %v5650
    %v5661 = vpack.c.b16 %v5658, %v5657
    %v5662 = vpack.c.b16 %v5660, %v5659
    %v5666 = vsel %vm4293, %v5651, 0
    %v5669 = vsel %vm4293, %v5652, 0
    %5671 = vmatpush.bf16.msra.mxu0 0
    %5672 = vmatpush.bf16.msra.mxu0 0
    %5673 = vmatpush.bf16.msra.mxu0 0
    %5674 = vmatpush.bf16.msra.mxu0 0
    %5675 = vmatpush.bf16.msra.mxu0 0
    %5676 = vmatpush.bf16.msra.mxu0 0
    %5677 = vmatpush.bf16.msra.mxu0 %v5662
    %5678 = vmatpush.bf16.msra.mxu0 %v5661
    %5679 = vmatmul.bf16.gmra.mxu0 %v5666
    %v5680 = vpop.f32.mrf.mxu0
    %v5681 = vadd.f32 0.0, %v5680
    %v5682 = vpop.f32.mrf.mxu0
    %v5683 = vadd.f32 0.0, %v5682
    %5684 = vmatmul.bf16.gmra.mxu0 %v5669
    %v5685 = vpop.f32.mrf.mxu0
    %v5686 = vadd.f32 0.0, %v5685
    %v5687 = vpop.f32.mrf.mxu0
    %5688 = vdwg.mxu0
    %v5689 = vadd.f32 %v5611, %v5681
    %v5690 = vadd.f32 %v5612, %v5683
    %v5691 = vadd.f32 %v5613, %v5686
    %vm5692 = vcmp.eq.s32.totalorder %v5298, 7
    %vm5693 = vcmp.eq.s32.totalorder %v5299, 7
    %vm5694 = vcmp.eq.s32.totalorder %v5300, 7
    %v5695 = vsel %vm5692, 1.0, 0.0
    %v5696 = vsel %vm5693, 1.0, 0.0
    %v5697 = vsel %vm5694, 1.0, 0.0
    %v5698 = vpack.c.bf16 %v5696, %v5695
    %v5699 = vpack.c.bf16 %v5697, %v5697
    %v5701 = vsel %vm5313, %v5698, 0
    %v5704 = vsel %vm5313, %v5699, 0
    %5706 = vmatpush.bf16.msra.mxu0 0
    %5707 = vmatpush.bf16.msra.mxu0 0
    %5708 = vmatpush.bf16.msra.mxu0 0
    %5709 = vmatpush.bf16.msra.mxu0 0
    %5710 = vmatpush.bf16.msra.mxu0 %v5321
    %5711 = vmatpush.bf16.msra.mxu0 %v5311
    %5712 = vmatpush.bf16.msra.mxu0 %v5310
    %5713 = vmatpush.bf16.msra.mxu0 %v5309
    %5714 = vmatmul.bf16.gmra.mxu0 %v5701
    %v5715 = vpop.f32.mrf.mxu0
    %v5716 = vadd.f32 0.0, %v5715
    %v5717 = vpop.f32.mrf.mxu0
    %v5718 = vadd.f32 0.0, %v5717
    %5719 = vmatmul.bf16.gmra.mxu0 %v5704
    %v5720 = vpop.f32.mrf.mxu0
    %v5721 = vadd.f32 0.0, %v5720
    %v5722 = vpop.f32.mrf.mxu0
    %5723 = vdwg.mxu0
    %s5724 = scalar_lea.vmem [#allocation10], 80
    %v5725 = vld [vmem:[%s5724] sm:$0xf]
    %v5726 = vld [vmem:[%s5724 + $0x4] sm:$0xf]
    %v5727 = vld [vmem:[%s5724 + $0x8] sm:$0xf]
    %v5728 = vld [vmem:[%s5724 + $0xc] sm:$0xf]
    %v5729 = vpack.c.bf16 %v5718, %v5716
    %v5730 = vpack.c.bf16 %v5721, %v5721
    %v5735 = vunpack.c.l.b16 %v5725
    %v5736 = vunpack.c.l.b16 %v5726
    %v5737 = vunpack.c.l.b16 %v5727
    %v5738 = vunpack.c.l.b16 %v5728
    %v5739 = vpack.c.b16 %v5736, %v5735
    %v5740 = vpack.c.b16 %v5738, %v5737
    %v5744 = vsel %vm4293, %v5729, 0
    %v5747 = vsel %vm4293, %v5730, 0
    %5749 = vmatpush.bf16.msra.mxu0 0
    %5750 = vmatpush.bf16.msra.mxu0 0
    %5751 = vmatpush.bf16.msra.mxu0 0
    %5752 = vmatpush.bf16.msra.mxu0 0
    %5753 = vmatpush.bf16.msra.mxu0 0
    %5754 = vmatpush.bf16.msra.mxu0 0
    %5755 = vmatpush.bf16.msra.mxu0 %v5740
    %5756 = vmatpush.bf16.msra.mxu0 %v5739
    %5757 = vmatmul.bf16.gmra.mxu0 %v5744
    %v5758 = vpop.f32.mrf.mxu0
    %v5759 = vadd.f32 0.0, %v5758
    %v5760 = vpop.f32.mrf.mxu0
    %v5761 = vadd.f32 0.0, %v5760
    %5762 = vmatmul.bf16.gmra.mxu0 %v5747
    %v5763 = vpop.f32.mrf.mxu0
    %v5764 = vadd.f32 0.0, %v5763
    %v5765 = vpop.f32.mrf.mxu0
    %5766 = vdwg.mxu0
    %v5767 = vadd.f32 %v5689, %v5759
    %v5768 = vadd.f32 %v5690, %v5761
    %v5769 = vadd.f32 %v5691, %v5764
    %vm5770 = vcmp.eq.s32.totalorder %v5298, 10
    %vm5771 = vcmp.eq.s32.totalorder %v5299, 10
    %vm5772 = vcmp.eq.s32.totalorder %v5300, 10
    %v5773 = vsel %vm5770, 1.0, 0.0
    %v5774 = vsel %vm5771, 1.0, 0.0
    %v5775 = vsel %vm5772, 1.0, 0.0
    %v5776 = vpack.c.bf16 %v5774, %v5773
    %v5777 = vpack.c.bf16 %v5775, %v5775
    %v5779 = vsel %vm5313, %v5776, 0
    %v5782 = vsel %vm5313, %v5777, 0
    %5784 = vmatpush.bf16.msra.mxu0 0
    %5785 = vmatpush.bf16.msra.mxu0 0
    %5786 = vmatpush.bf16.msra.mxu0 0
    %5787 = vmatpush.bf16.msra.mxu0 0
    %5788 = vmatpush.bf16.msra.mxu0 %v5321
    %5789 = vmatpush.bf16.msra.mxu0 %v5311
    %5790 = vmatpush.bf16.msra.mxu0 %v5310
    %5791 = vmatpush.bf16.msra.mxu0 %v5309
    %5792 = vmatmul.bf16.gmra.mxu0 %v5779
    %v5793 = vpop.f32.mrf.mxu0
    %v5794 = vadd.f32 0.0, %v5793
    %v5795 = vpop.f32.mrf.mxu0
    %v5796 = vadd.f32 0.0, %v5795
    %5797 = vmatmul.bf16.gmra.mxu0 %v5782
    %v5798 = vpop.f32.mrf.mxu0
    %v5799 = vadd.f32 0.0, %v5798
    %v5800 = vpop.f32.mrf.mxu0
    %5801 = vdwg.mxu0
    %s5802 = scalar_lea.vmem [#allocation10], 96
    %v5803 = vld [vmem:[%s5802] sm:$0xf]
    %v5804 = vld [vmem:[%s5802 + $0x4] sm:$0xf]
    %v5805 = vld [vmem:[%s5802 + $0x8] sm:$0xf]
    %v5806 = vld [vmem:[%s5802 + $0xc] sm:$0xf]
    %v5807 = vpack.c.bf16 %v5796, %v5794
    %v5808 = vpack.c.bf16 %v5799, %v5799
    %v5813 = vunpack.c.l.b16 %v5803
    %v5814 = vunpack.c.l.b16 %v5804
    %v5815 = vunpack.c.l.b16 %v5805
    %v5816 = vunpack.c.l.b16 %v5806
    %v5817 = vpack.c.b16 %v5814, %v5813
    %v5818 = vpack.c.b16 %v5816, %v5815
    %v5822 = vsel %vm4293, %v5807, 0
    %v5825 = vsel %vm4293, %v5808, 0
    %5827 = vmatpush.bf16.msra.mxu0 0
    %5828 = vmatpush.bf16.msra.mxu0 0
    %5829 = vmatpush.bf16.msra.mxu0 0
    %5830 = vmatpush.bf16.msra.mxu0 0
    %5831 = vmatpush.bf16.msra.mxu0 0
    %5832 = vmatpush.bf16.msra.mxu0 0
    %5833 = vmatpush.bf16.msra.mxu0 %v5818
    %5834 = vmatpush.bf16.msra.mxu0 %v5817
    %5835 = vmatmul.bf16.gmra.mxu0 %v5822
    %v5836 = vpop.f32.mrf.mxu0
    %v5837 = vadd.f32 0.0, %v5836
    %v5838 = vpop.f32.mrf.mxu0
    %v5839 = vadd.f32 0.0, %v5838
    %5840 = vmatmul.bf16.gmra.mxu0 %v5825
    %v5841 = vpop.f32.mrf.mxu0
    %v5842 = vadd.f32 0.0, %v5841
    %v5843 = vpop.f32.mrf.mxu0
    %5844 = vdwg.mxu0
    %v5845 = vadd.f32 %v5767, %v5837
    %v5846 = vadd.f32 %v5768, %v5839
    %v5847 = vadd.f32 %v5769, %v5842
    %vm5848 = vcmp.eq.s32.totalorder %v5298, 11
    %vm5849 = vcmp.eq.s32.totalorder %v5299, 11
    %vm5850 = vcmp.eq.s32.totalorder %v5300, 11
    %v5851 = vsel %vm5848, 1.0, 0.0
    %v5852 = vsel %vm5849, 1.0, 0.0
    %v5853 = vsel %vm5850, 1.0, 0.0
    %v5854 = vpack.c.bf16 %v5852, %v5851
    %v5855 = vpack.c.bf16 %v5853, %v5853
    %v5857 = vsel %vm5313, %v5854, 0
    %v5860 = vsel %vm5313, %v5855, 0
    %5862 = vmatpush.bf16.msra.mxu0 0
    %5863 = vmatpush.bf16.msra.mxu0 0
    %5864 = vmatpush.bf16.msra.mxu0 0
    %5865 = vmatpush.bf16.msra.mxu0 0
    %5866 = vmatpush.bf16.msra.mxu0 %v5321
    %5867 = vmatpush.bf16.msra.mxu0 %v5311
    %5868 = vmatpush.bf16.msra.mxu0 %v5310
    %5869 = vmatpush.bf16.msra.mxu0 %v5309
    %5870 = vmatmul.bf16.gmra.mxu0 %v5857
    %v5871 = vpop.f32.mrf.mxu0
    %v5872 = vadd.f32 0.0, %v5871
    %v5873 = vpop.f32.mrf.mxu0
    %v5874 = vadd.f32 0.0, %v5873
    %5875 = vmatmul.bf16.gmra.mxu0 %v5860
    %v5876 = vpop.f32.mrf.mxu0
    %v5877 = vadd.f32 0.0, %v5876
    %v5878 = vpop.f32.mrf.mxu0
    %5879 = vdwg.mxu0
    %s5880 = scalar_lea.vmem [#allocation10], 112
    %v5881 = vld [vmem:[%s5880] sm:$0xf]
    %v5882 = vld [vmem:[%s5880 + $0x4] sm:$0xf]
    %v5883 = vld [vmem:[%s5880 + $0x8] sm:$0xf]
    %v5884 = vld [vmem:[%s5880 + $0xc] sm:$0xf]
    %v5885 = vpack.c.bf16 %v5874, %v5872
    %v5886 = vpack.c.bf16 %v5877, %v5877
    %v5891 = vunpack.c.l.b16 %v5881
    %v5892 = vunpack.c.l.b16 %v5882
    %v5893 = vunpack.c.l.b16 %v5883
    %v5894 = vunpack.c.l.b16 %v5884
    %v5895 = vpack.c.b16 %v5892, %v5891
    %v5896 = vpack.c.b16 %v5894, %v5893
    %v5900 = vsel %vm4293, %v5885, 0
    %v5903 = vsel %vm4293, %v5886, 0
    %5905 = vmatpush.bf16.msra.mxu0 0
    %5906 = vmatpush.bf16.msra.mxu0 0
    %5907 = vmatpush.bf16.msra.mxu0 0
    %5908 = vmatpush.bf16.msra.mxu0 0
    %5909 = vmatpush.bf16.msra.mxu0 0
    %5910 = vmatpush.bf16.msra.mxu0 0
    %5911 = vmatpush.bf16.msra.mxu0 %v5896
    %5912 = vmatpush.bf16.msra.mxu0 %v5895
    %5913 = vmatmul.bf16.gmra.mxu0 %v5900
    %v5914 = vpop.f32.mrf.mxu0
    %v5915 = vadd.f32 0.0, %v5914
    %v5916 = vpop.f32.mrf.mxu0
    %v5917 = vadd.f32 0.0, %v5916
    %5918 = vmatmul.bf16.gmra.mxu0 %v5903
    %v5919 = vpop.f32.mrf.mxu0
    %v5920 = vadd.f32 0.0, %v5919
    %v5921 = vpop.f32.mrf.mxu0
    %5922 = vdwg.mxu0
    %v5923 = vadd.f32 %v5845, %v5915
    %v5924 = vadd.f32 %v5846, %v5917
    %v5925 = vadd.f32 %v5847, %v5920
    %vm5926 = vcmp.eq.s32.totalorder %v5298, 12
    %vm5927 = vcmp.eq.s32.totalorder %v5299, 12
    %vm5928 = vcmp.eq.s32.totalorder %v5300, 12
    %v5929 = vsel %vm5926, 1.0, 0.0
    %v5930 = vsel %vm5927, 1.0, 0.0
    %v5931 = vsel %vm5928, 1.0, 0.0
    %v5932 = vpack.c.bf16 %v5930, %v5929
    %v5933 = vpack.c.bf16 %v5931, %v5931
    %v5935 = vsel %vm5313, %v5932, 0
    %v5938 = vsel %vm5313, %v5933, 0
    %5940 = vmatpush.bf16.msra.mxu0 0
    %5941 = vmatpush.bf16.msra.mxu0 0
    %5942 = vmatpush.bf16.msra.mxu0 0
    %5943 = vmatpush.bf16.msra.mxu0 0
    %5944 = vmatpush.bf16.msra.mxu0 %v5321
    %5945 = vmatpush.bf16.msra.mxu0 %v5311
    %5946 = vmatpush.bf16.msra.mxu0 %v5310
    %5947 = vmatpush.bf16.msra.mxu0 %v5309
    %5948 = vmatmul.bf16.gmra.mxu0 %v5935
    %v5949 = vpop.f32.mrf.mxu0
    %v5950 = vadd.f32 0.0, %v5949
    %v5951 = vpop.f32.mrf.mxu0
    %v5952 = vadd.f32 0.0, %v5951
    %5953 = vmatmul.bf16.gmra.mxu0 %v5938
    %v5954 = vpop.f32.mrf.mxu0
    %v5955 = vadd.f32 0.0, %v5954
    %v5956 = vpop.f32.mrf.mxu0
    %5957 = vdwg.mxu0
    %s5958 = scalar_lea.vmem [#allocation10], 128
    %v5959 = vld [vmem:[%s5958] sm:$0xf]
    %v5960 = vld [vmem:[%s5958 + $0x4] sm:$0xf]
    %v5961 = vld [vmem:[%s5958 + $0x8] sm:$0xf]
    %v5962 = vld [vmem:[%s5958 + $0xc] sm:$0xf]
    %v5963 = vpack.c.bf16 %v5952, %v5950
    %v5964 = vpack.c.bf16 %v5955, %v5955
    %v5969 = vunpack.c.l.b16 %v5959
    %v5970 = vunpack.c.l.b16 %v5960
    %v5971 = vunpack.c.l.b16 %v5961
    %v5972 = vunpack.c.l.b16 %v5962
    %v5973 = vpack.c.b16 %v5970, %v5969
    %v5974 = vpack.c.b16 %v5972, %v5971
    %v5978 = vsel %vm4293, %v5963, 0
    %v5981 = vsel %vm4293, %v5964, 0
    %5983 = vmatpush.bf16.msra.mxu0 0
    %5984 = vmatpush.bf16.msra.mxu0 0
    %5985 = vmatpush.bf16.msra.mxu0 0
    %5986 = vmatpush.bf16.msra.mxu0 0
    %5987 = vmatpush.bf16.msra.mxu0 0
    %5988 = vmatpush.bf16.msra.mxu0 0
    %5989 = vmatpush.bf16.msra.mxu0 %v5974
    %5990 = vmatpush.bf16.msra.mxu0 %v5973
    %5991 = vmatmul.bf16.gmra.mxu0 %v5978
    %v5992 = vpop.f32.mrf.mxu0
    %v5993 = vadd.f32 0.0, %v5992
    %v5994 = vpop.f32.mrf.mxu0
    %v5995 = vadd.f32 0.0, %v5994
    %5996 = vmatmul.bf16.gmra.mxu0 %v5981
    %v5997 = vpop.f32.mrf.mxu0
    %v5998 = vadd.f32 0.0, %v5997
    %v5999 = vpop.f32.mrf.mxu0
    %6000 = vdwg.mxu0
    %v6001 = vadd.f32 %v5923, %v5993
    %v6002 = vadd.f32 %v5924, %v5995
    %v6003 = vadd.f32 %v5925, %v5998
    %v6004 = vld [vmem:[#allocation12] sm:$0x1]
    %v6006 = vperm.slane %v6004, 0
    %v6008 = vadd.f32 %v6001, %v6006
    %v6009 = vadd.f32 %v6002, %v6006
    %v6010 = vadd.f32 %v6003, %v6006
    %v6011 = vmax.f32 %v6008, 0.0
    %v6012 = vmax.f32 %v6009, 0.0
    %v6013 = vmax.f32 %v6010, 0.0
    %v6014 = vld [vmem:[%s5] sm:$0x3]
    %6015 = vset.pattern.permute.xlu0 0
    %6016 = vperm.xlu0 %6015, %v6014
    %v6017 = vpop.permute.xlu0 %6016
    %v6018 = vsub.s32 %v419, %v6017
    %vm6019 = vcmp.eq.s32.totalorder %v6018, 0
    %v6020 = vsel %vm6019, 1.0, 0.0
    %v6021 = vpack.c.bf16 %v6020, %v6020
    %v6022 = vpack.c.bf16 %v6012, %v6011
    %v6023 = vpack.c.bf16 %v6013, %v6013
    %vm6024 = vcmask 146432
    %v6026 = vsel %vm6024, %v6021, 0
    %v6029 = vsel %vm4174, %v6023, 0
    %6031 = vmatpush.bf16.msra.mxu0 0
    %6032 = vmatpush.bf16.msra.mxu0 0
    %6033 = vmatpush.bf16.msra.mxu0 0
    %6034 = vmatpush.bf16.msra.mxu0 0
    %6035 = vmatpush.bf16.msra.mxu0 0
    %6036 = vmatpush.bf16.msra.mxu0 0
    %6037 = vmatpush.bf16.msra.mxu0 %v6029
    %6038 = vmatpush.bf16.msra.mxu0 %v6022
    %6039 = vmatmul.bf16.gmra.mxu0 %v6026
    %v6040 = vpop.f32.mrf.mxu0
    %v6041 = vadd.f32 0.0, %v6040
    %v6042 = vpop.f32.mrf.mxu0
    %6043 = vdwg.mxu0
    %v6044 = vld [vmem:[#allocation13] sm:$0xf]
    %v6045 = vld [vmem:[#allocation13 + $0x4] sm:$0xf]
    %v6046 = vld [vmem:[#allocation13 + $0x8] sm:$0xf]
    %v6047 = vld [vmem:[#allocation13 + $0xc] sm:$0xf]
    %v6048 = vpack.c.bf16 %v6041, %v6041
    %vm6049 = vcmp.eq.s32.totalorder %v6018, 1
    %v6050 = vsel %vm6049, 1.0, 0.0
    %v6051 = vpack.c.bf16 %v6050, %v6050
    %v6053 = vsel %vm6024, %v6051, 0
    %6055 = vmatpush.bf16.msra.mxu0 0
    %6056 = vmatpush.bf16.msra.mxu0 0
    %6057 = vmatpush.bf16.msra.mxu0 0
    %6058 = vmatpush.bf16.msra.mxu0 0
    %6059 = vmatpush.bf16.msra.mxu0 0
    %6060 = vmatpush.bf16.msra.mxu0 0
    %6061 = vmatpush.bf16.msra.mxu0 %v6029
    %6062 = vmatpush.bf16.msra.mxu0 %v6022
    %6063 = vmatmul.bf16.gmra.mxu0 %v6053
    %v6064 = vpop.f32.mrf.mxu0
    %v6065 = vadd.f32 0.0, %v6064
    %v6066 = vpop.f32.mrf.mxu0
    %6067 = vdwg.mxu0
    %s6068 = scalar_lea.vmem [#allocation13], 16
    %v6069 = vld [vmem:[%s6068] sm:$0xf]
    %v6070 = vld [vmem:[%s6068 + $0x4] sm:$0xf]
    %v6071 = vld [vmem:[%s6068 + $0x8] sm:$0xf]
    %v6072 = vld [vmem:[%s6068 + $0xc] sm:$0xf]
    %v6073 = vpack.c.bf16 %v6065, %v6065
    %v6078 = vunpack.c.l.b16 %v6069
    %v6079 = vunpack.c.l.b16 %v6070
    %v6080 = vunpack.c.l.b16 %v6071
    %v6081 = vunpack.c.l.b16 %v6072
    %v6082 = vpack.c.b16 %v6079, %v6078
    %v6083 = vpack.c.b16 %v6081, %v6080
    %v6087 = vsel %vm4293, %v6073, 0
    %6089 = vmatpush.bf16.msra.mxu0 0
    %6090 = vmatpush.bf16.msra.mxu0 0
    %6091 = vmatpush.bf16.msra.mxu0 0
    %6092 = vmatpush.bf16.msra.mxu0 0
    %6093 = vmatpush.bf16.msra.mxu0 0
    %6094 = vmatpush.bf16.msra.mxu0 0
    %6095 = vmatpush.bf16.msra.mxu0 %v6083
    %6096 = vmatpush.bf16.msra.mxu0 %v6082
    %6097 = vmatmul.bf16.gmra.mxu0 %v6087
    %v6098 = vpop.f32.mrf.mxu0
    %v6099 = vadd.f32 0.0, %v6098
    %v6100 = vpop.f32.mrf.mxu0
    %6101 = vdwg.mxu0
    %v6106 = vunpack.c.l.b16 %v6044
    %v6107 = vunpack.c.l.b16 %v6045
    %v6108 = vunpack.c.l.b16 %v6046
    %v6109 = vunpack.c.l.b16 %v6047
    %v6110 = vpack.c.b16 %v6107, %v6106
    %v6111 = vpack.c.b16 %v6109, %v6108
    %v6115 = vsel %vm4293, %v6048, 0
    %6117 = vmatpush.bf16.msra.mxu0 0
    %6118 = vmatpush.bf16.msra.mxu0 0
    %6119 = vmatpush.bf16.msra.mxu0 0
    %6120 = vmatpush.bf16.msra.mxu0 0
    %6121 = vmatpush.bf16.msra.mxu0 0
    %6122 = vmatpush.bf16.msra.mxu0 0
    %6123 = vmatpush.bf16.msra.mxu0 %v6111
    %6124 = vmatpush.bf16.msra.mxu0 %v6110
    %6125 = vmatmul.bf16.gmra.mxu0 %v6115
    %v6126 = vpop.f32.mrf.mxu0
    %v6127 = vadd.f32 %v6099, %v6126
    %v6128 = vpop.f32.mrf.mxu0
    %6129 = vdwg.mxu0
    %vm6130 = vcmp.eq.s32.totalorder %v6018, 2
    %v6131 = vsel %vm6130, 1.0, 0.0
    %v6132 = vpack.c.bf16 %v6131, %v6131
    %v6134 = vsel %vm6024, %v6132, 0
    %6136 = vmatpush.bf16.msra.mxu0 0
    %6137 = vmatpush.bf16.msra.mxu0 0
    %6138 = vmatpush.bf16.msra.mxu0 0
    %6139 = vmatpush.bf16.msra.mxu0 0
    %6140 = vmatpush.bf16.msra.mxu0 0
    %6141 = vmatpush.bf16.msra.mxu0 0
    %6142 = vmatpush.bf16.msra.mxu0 %v6029
    %6143 = vmatpush.bf16.msra.mxu0 %v6022
    %6144 = vmatmul.bf16.gmra.mxu0 %v6134
    %v6145 = vpop.f32.mrf.mxu0
    %v6146 = vadd.f32 0.0, %v6145
    %v6147 = vpop.f32.mrf.mxu0
    %6148 = vdwg.mxu0
    %s6149 = scalar_lea.vmem [#allocation13], 32
    %v6150 = vld [vmem:[%s6149] sm:$0xf]
    %v6151 = vld [vmem:[%s6149 + $0x4] sm:$0xf]
    %v6152 = vld [vmem:[%s6149 + $0x8] sm:$0xf]
    %v6153 = vld [vmem:[%s6149 + $0xc] sm:$0xf]
    %v6154 = vpack.c.bf16 %v6146, %v6146
    %v6159 = vunpack.c.l.b16 %v6150
    %v6160 = vunpack.c.l.b16 %v6151
    %v6161 = vunpack.c.l.b16 %v6152
    %v6162 = vunpack.c.l.b16 %v6153
    %v6163 = vpack.c.b16 %v6160, %v6159
    %v6164 = vpack.c.b16 %v6162, %v6161
    %v6168 = vsel %vm4293, %v6154, 0
    %6170 = vmatpush.bf16.msra.mxu0 0
    %6171 = vmatpush.bf16.msra.mxu0 0
    %6172 = vmatpush.bf16.msra.mxu0 0
    %6173 = vmatpush.bf16.msra.mxu0 0
    %6174 = vmatpush.bf16.msra.mxu0 0
    %6175 = vmatpush.bf16.msra.mxu0 0
    %6176 = vmatpush.bf16.msra.mxu0 %v6164
    %6177 = vmatpush.bf16.msra.mxu0 %v6163
    %6178 = vmatmul.bf16.gmra.mxu0 %v6168
    %v6179 = vpop.f32.mrf.mxu0
    %v6180 = vadd.f32 0.0, %v6179
    %v6181 = vpop.f32.mrf.mxu0
    %6182 = vdwg.mxu0
    %v6183 = vadd.f32 %v6127, %v6180
    %vm6184 = vcmp.eq.s32.totalorder %v6018, 3
    %v6185 = vsel %vm6184, 1.0, 0.0
    %v6186 = vpack.c.bf16 %v6185, %v6185
    %v6188 = vsel %vm6024, %v6186, 0
    %6190 = vmatpush.bf16.msra.mxu0 0
    %6191 = vmatpush.bf16.msra.mxu0 0
    %6192 = vmatpush.bf16.msra.mxu0 0
    %6193 = vmatpush.bf16.msra.mxu0 0
    %6194 = vmatpush.bf16.msra.mxu0 0
    %6195 = vmatpush.bf16.msra.mxu0 0
    %6196 = vmatpush.bf16.msra.mxu0 %v6029
    %6197 = vmatpush.bf16.msra.mxu0 %v6022
    %6198 = vmatmul.bf16.gmra.mxu0 %v6188
    %v6199 = vpop.f32.mrf.mxu0
    %v6200 = vadd.f32 0.0, %v6199
    %v6201 = vpop.f32.mrf.mxu0
    %6202 = vdwg.mxu0
    %s6203 = scalar_lea.vmem [#allocation13], 48
    %v6204 = vld [vmem:[%s6203] sm:$0xf]
    %v6205 = vld [vmem:[%s6203 + $0x4] sm:$0xf]
    %v6206 = vld [vmem:[%s6203 + $0x8] sm:$0xf]
    %v6207 = vld [vmem:[%s6203 + $0xc] sm:$0xf]
    %v6208 = vpack.c.bf16 %v6200, %v6200
    %v6213 = vunpack.c.l.b16 %v6204
    %v6214 = vunpack.c.l.b16 %v6205
    %v6215 = vunpack.c.l.b16 %v6206
    %v6216 = vunpack.c.l.b16 %v6207
    %v6217 = vpack.c.b16 %v6214, %v6213
    %v6218 = vpack.c.b16 %v6216, %v6215
    %v6222 = vsel %vm4293, %v6208, 0
    %6224 = vmatpush.bf16.msra.mxu0 0
    %6225 = vmatpush.bf16.msra.mxu0 0
    %6226 = vmatpush.bf16.msra.mxu0 0
    %6227 = vmatpush.bf16.msra.mxu0 0
    %6228 = vmatpush.bf16.msra.mxu0 0
    %6229 = vmatpush.bf16.msra.mxu0 0
    %6230 = vmatpush.bf16.msra.mxu0 %v6218
    %6231 = vmatpush.bf16.msra.mxu0 %v6217
    %6232 = vmatmul.bf16.gmra.mxu0 %v6222
    %v6233 = vpop.f32.mrf.mxu0
    %v6234 = vadd.f32 0.0, %v6233
    %v6235 = vpop.f32.mrf.mxu0
    %6236 = vdwg.mxu0
    %v6237 = vadd.f32 %v6183, %v6234
    %vm6238 = vcmp.eq.s32.totalorder %v6018, 4
    %v6239 = vsel %vm6238, 1.0, 0.0
    %v6240 = vpack.c.bf16 %v6239, %v6239
    %v6242 = vsel %vm6024, %v6240, 0
    %6244 = vmatpush.bf16.msra.mxu0 0
    %6245 = vmatpush.bf16.msra.mxu0 0
    %6246 = vmatpush.bf16.msra.mxu0 0
    %6247 = vmatpush.bf16.msra.mxu0 0
    %6248 = vmatpush.bf16.msra.mxu0 0
    %6249 = vmatpush.bf16.msra.mxu0 0
    %6250 = vmatpush.bf16.msra.mxu0 %v6029
    %6251 = vmatpush.bf16.msra.mxu0 %v6022
    %6252 = vmatmul.bf16.gmra.mxu0 %v6242
    %v6253 = vpop.f32.mrf.mxu0
    %v6254 = vadd.f32 0.0, %v6253
    %v6255 = vpop.f32.mrf.mxu0
    %6256 = vdwg.mxu0
    %s6257 = scalar_lea.vmem [#allocation13], 64
    %v6258 = vld [vmem:[%s6257] sm:$0xf]
    %v6259 = vld [vmem:[%s6257 + $0x4] sm:$0xf]
    %v6260 = vld [vmem:[%s6257 + $0x8] sm:$0xf]
    %v6261 = vld [vmem:[%s6257 + $0xc] sm:$0xf]
    %v6262 = vpack.c.bf16 %v6254, %v6254
    %v6267 = vunpack.c.l.b16 %v6258
    %v6268 = vunpack.c.l.b16 %v6259
    %v6269 = vunpack.c.l.b16 %v6260
    %v6270 = vunpack.c.l.b16 %v6261
    %v6271 = vpack.c.b16 %v6268, %v6267
    %v6272 = vpack.c.b16 %v6270, %v6269
    %v6276 = vsel %vm4293, %v6262, 0
    %6278 = vmatpush.bf16.msra.mxu0 0
    %6279 = vmatpush.bf16.msra.mxu0 0
    %6280 = vmatpush.bf16.msra.mxu0 0
    %6281 = vmatpush.bf16.msra.mxu0 0
    %6282 = vmatpush.bf16.msra.mxu0 0
    %6283 = vmatpush.bf16.msra.mxu0 0
    %6284 = vmatpush.bf16.msra.mxu0 %v6272
    %6285 = vmatpush.bf16.msra.mxu0 %v6271
    %6286 = vmatmul.bf16.gmra.mxu0 %v6276
    %v6287 = vpop.f32.mrf.mxu0
    %v6288 = vadd.f32 0.0, %v6287
    %v6289 = vpop.f32.mrf.mxu0
    %6290 = vdwg.mxu0
    %v6291 = vadd.f32 %v6237, %v6288
    %vm6292 = vcmp.eq.s32.totalorder %v6018, 5
    %v6293 = vsel %vm6292, 1.0, 0.0
    %v6294 = vpack.c.bf16 %v6293, %v6293
    %v6296 = vsel %vm6024, %v6294, 0
    %6298 = vmatpush.bf16.msra.mxu0 0
    %6299 = vmatpush.bf16.msra.mxu0 0
    %6300 = vmatpush.bf16.msra.mxu0 0
    %6301 = vmatpush.bf16.msra.mxu0 0
    %6302 = vmatpush.bf16.msra.mxu0 0
    %6303 = vmatpush.bf16.msra.mxu0 0
    %6304 = vmatpush.bf16.msra.mxu0 %v6029
    %6305 = vmatpush.bf16.msra.mxu0 %v6022
    %6306 = vmatmul.bf16.gmra.mxu0 %v6296
    %v6307 = vpop.f32.mrf.mxu0
    %v6308 = vadd.f32 0.0, %v6307
    %v6309 = vpop.f32.mrf.mxu0
    %6310 = vdwg.mxu0
    %s6311 = scalar_lea.vmem [#allocation13], 80
    %v6312 = vld [vmem:[%s6311] sm:$0xf]
    %v6313 = vld [vmem:[%s6311 + $0x4] sm:$0xf]
    %v6314 = vld [vmem:[%s6311 + $0x8] sm:$0xf]
    %v6315 = vld [vmem:[%s6311 + $0xc] sm:$0xf]
    %v6316 = vpack.c.bf16 %v6308, %v6308
    %v6321 = vunpack.c.l.b16 %v6312
    %v6322 = vunpack.c.l.b16 %v6313
    %v6323 = vunpack.c.l.b16 %v6314
    %v6324 = vunpack.c.l.b16 %v6315
    %v6325 = vpack.c.b16 %v6322, %v6321
    %v6326 = vpack.c.b16 %v6324, %v6323
    %v6330 = vsel %vm4293, %v6316, 0
    %6332 = vmatpush.bf16.msra.mxu0 0
    %6333 = vmatpush.bf16.msra.mxu0 0
    %6334 = vmatpush.bf16.msra.mxu0 0
    %6335 = vmatpush.bf16.msra.mxu0 0
    %6336 = vmatpush.bf16.msra.mxu0 0
    %6337 = vmatpush.bf16.msra.mxu0 0
    %6338 = vmatpush.bf16.msra.mxu0 %v6326
    %6339 = vmatpush.bf16.msra.mxu0 %v6325
    %6340 = vmatmul.bf16.gmra.mxu0 %v6330
    %v6341 = vpop.f32.mrf.mxu0
    %v6342 = vadd.f32 0.0, %v6341
    %v6343 = vpop.f32.mrf.mxu0
    %6344 = vdwg.mxu0
    %v6345 = vadd.f32 %v6291, %v6342
    %vm6346 = vcmp.eq.s32.totalorder %v6018, 6
    %v6347 = vsel %vm6346, 1.0, 0.0
    %v6348 = vpack.c.bf16 %v6347, %v6347
    %v6350 = vsel %vm6024, %v6348, 0
    %6352 = vmatpush.bf16.msra.mxu0 0
    %6353 = vmatpush.bf16.msra.mxu0 0
    %6354 = vmatpush.bf16.msra.mxu0 0
    %6355 = vmatpush.bf16.msra.mxu0 0
    %6356 = vmatpush.bf16.msra.mxu0 0
    %6357 = vmatpush.bf16.msra.mxu0 0
    %6358 = vmatpush.bf16.msra.mxu0 %v6029
    %6359 = vmatpush.bf16.msra.mxu0 %v6022
    %6360 = vmatmul.bf16.gmra.mxu0 %v6350
    %v6361 = vpop.f32.mrf.mxu0
    %v6362 = vadd.f32 0.0, %v6361
    %v6363 = vpop.f32.mrf.mxu0
    %6364 = vdwg.mxu0
    %s6365 = scalar_lea.vmem [#allocation13], 96
    %v6366 = vld [vmem:[%s6365] sm:$0xf]
    %v6367 = vld [vmem:[%s6365 + $0x4] sm:$0xf]
    %v6368 = vld [vmem:[%s6365 + $0x8] sm:$0xf]
    %v6369 = vld [vmem:[%s6365 + $0xc] sm:$0xf]
    %v6370 = vpack.c.bf16 %v6362, %v6362
    %v6375 = vunpack.c.l.b16 %v6366
    %v6376 = vunpack.c.l.b16 %v6367
    %v6377 = vunpack.c.l.b16 %v6368
    %v6378 = vunpack.c.l.b16 %v6369
    %v6379 = vpack.c.b16 %v6376, %v6375
    %v6380 = vpack.c.b16 %v6378, %v6377
    %v6384 = vsel %vm4293, %v6370, 0
    %6386 = vmatpush.bf16.msra.mxu0 0
    %6387 = vmatpush.bf16.msra.mxu0 0
    %6388 = vmatpush.bf16.msra.mxu0 0
    %6389 = vmatpush.bf16.msra.mxu0 0
    %6390 = vmatpush.bf16.msra.mxu0 0
    %6391 = vmatpush.bf16.msra.mxu0 0
    %6392 = vmatpush.bf16.msra.mxu0 %v6380
    %6393 = vmatpush.bf16.msra.mxu0 %v6379
    %6394 = vmatmul.bf16.gmra.mxu0 %v6384
    %v6395 = vpop.f32.mrf.mxu0
    %v6396 = vadd.f32 0.0, %v6395
    %v6397 = vpop.f32.mrf.mxu0
    %6398 = vdwg.mxu0
    %v6399 = vadd.f32 %v6345, %v6396
    %vm6400 = vcmp.eq.s32.totalorder %v6018, 7
    %v6401 = vsel %vm6400, 1.0, 0.0
    %v6402 = vpack.c.bf16 %v6401, %v6401
    %v6404 = vsel %vm6024, %v6402, 0
    %6406 = vmatpush.bf16.msra.mxu0 0
    %6407 = vmatpush.bf16.msra.mxu0 0
    %6408 = vmatpush.bf16.msra.mxu0 0
    %6409 = vmatpush.bf16.msra.mxu0 0
    %6410 = vmatpush.bf16.msra.mxu0 0
    %6411 = vmatpush.bf16.msra.mxu0 0
    %6412 = vmatpush.bf16.msra.mxu0 %v6029
    %6413 = vmatpush.bf16.msra.mxu0 %v6022
    %6414 = vmatmul.bf16.gmra.mxu0 %v6404
    %v6415 = vpop.f32.mrf.mxu0
    %v6416 = vadd.f32 0.0, %v6415
    %v6417 = vpop.f32.mrf.mxu0
    %6418 = vdwg.mxu0
    %s6419 = scalar_lea.vmem [#allocation13], 112
    %v6420 = vld [vmem:[%s6419] sm:$0xf]
    %v6421 = vld [vmem:[%s6419 + $0x4] sm:$0xf]
    %v6422 = vld [vmem:[%s6419 + $0x8] sm:$0xf]
    %v6423 = vld [vmem:[%s6419 + $0xc] sm:$0xf]
    %v6424 = vpack.c.bf16 %v6416, %v6416
    %v6429 = vunpack.c.l.b16 %v6420
    %v6430 = vunpack.c.l.b16 %v6421
    %v6431 = vunpack.c.l.b16 %v6422
    %v6432 = vunpack.c.l.b16 %v6423
    %v6433 = vpack.c.b16 %v6430, %v6429
    %v6434 = vpack.c.b16 %v6432, %v6431
    %v6438 = vsel %vm4293, %v6424, 0
    %6440 = vmatpush.bf16.msra.mxu0 0
    %6441 = vmatpush.bf16.msra.mxu0 0
    %6442 = vmatpush.bf16.msra.mxu0 0
    %6443 = vmatpush.bf16.msra.mxu0 0
    %6444 = vmatpush.bf16.msra.mxu0 0
    %6445 = vmatpush.bf16.msra.mxu0 0
    %6446 = vmatpush.bf16.msra.mxu0 %v6434
    %6447 = vmatpush.bf16.msra.mxu0 %v6433
    %6448 = vmatmul.bf16.gmra.mxu0 %v6438
    %v6449 = vpop.f32.mrf.mxu0
    %v6450 = vadd.f32 0.0, %v6449
    %v6451 = vpop.f32.mrf.mxu0
    %6452 = vdwg.mxu0
    %v6453 = vadd.f32 %v6399, %v6450
    %vm6454 = vcmp.eq.s32.totalorder %v6018, 8
    %v6455 = vsel %vm6454, 1.0, 0.0
    %v6456 = vpack.c.bf16 %v6455, %v6455
    %v6458 = vsel %vm6024, %v6456, 0
    %6460 = vmatpush.bf16.msra.mxu0 0
    %6461 = vmatpush.bf16.msra.mxu0 0
    %6462 = vmatpush.bf16.msra.mxu0 0
    %6463 = vmatpush.bf16.msra.mxu0 0
    %6464 = vmatpush.bf16.msra.mxu0 0
    %6465 = vmatpush.bf16.msra.mxu0 0
    %6466 = vmatpush.bf16.msra.mxu0 %v6029
    %6467 = vmatpush.bf16.msra.mxu0 %v6022
    %6468 = vmatmul.bf16.gmra.mxu0 %v6458
    %v6469 = vpop.f32.mrf.mxu0
    %v6470 = vadd.f32 0.0, %v6469
    %v6471 = vpop.f32.mrf.mxu0
    %6472 = vdwg.mxu0
    %s6473 = scalar_lea.vmem [#allocation13], 128
    %v6474 = vld [vmem:[%s6473] sm:$0xf]
    %v6475 = vld [vmem:[%s6473 + $0x4] sm:$0xf]
    %v6476 = vld [vmem:[%s6473 + $0x8] sm:$0xf]
    %v6477 = vld [vmem:[%s6473 + $0xc] sm:$0xf]
    %v6478 = vpack.c.bf16 %v6470, %v6470
    %v6483 = vunpack.c.l.b16 %v6474
    %v6484 = vunpack.c.l.b16 %v6475
    %v6485 = vunpack.c.l.b16 %v6476
    %v6486 = vunpack.c.l.b16 %v6477
    %v6487 = vpack.c.b16 %v6484, %v6483
    %v6488 = vpack.c.b16 %v6486, %v6485
    %v6492 = vsel %vm4293, %v6478, 0
    %6494 = vmatpush.bf16.msra.mxu0 0
    %6495 = vmatpush.bf16.msra.mxu0 0
    %6496 = vmatpush.bf16.msra.mxu0 0
    %6497 = vmatpush.bf16.msra.mxu0 0
    %6498 = vmatpush.bf16.msra.mxu0 0
    %6499 = vmatpush.bf16.msra.mxu0 0
    %6500 = vmatpush.bf16.msra.mxu0 %v6488
    %6501 = vmatpush.bf16.msra.mxu0 %v6487
    %6502 = vmatmul.bf16.gmra.mxu0 %v6492
    %v6503 = vpop.f32.mrf.mxu0
    %v6504 = vadd.f32 0.0, %v6503
    %v6505 = vpop.f32.mrf.mxu0
    %6506 = vdwg.mxu0
    %v6507 = vadd.f32 %v6453, %v6504
    %v6508 = vld [vmem:[#allocation15] sm:$0x1]
    %v6510 = vperm.slane %v6508, 0
    %v6512 = vadd.f32 %v6507, %v6510
    %v6513 = vmax.f32 %v6512, 0.0
    %v6514 = vld [vmem:[#allocation16] sm:$0xf]
    %v6515 = vld [vmem:[#allocation16 + $0x4] sm:$0xf]
    %v6516 = vld [vmem:[#allocation16 + $0x8] sm:$0xf]
    %v6517 = vld [vmem:[#allocation16 + $0xc] sm:$0xf]
    %v6518 = vpack.c.bf16 %v6513, %v6513
    %v6519 = vld [vmem:[#allocation18] sm:$0x1]
    %v6521 = vperm.slane %v6519, 0
    %v6527 = vunpack.c.l.b16 %v6514
    %v6528 = vunpack.c.l.b16 %v6515
    %v6529 = vunpack.c.l.b16 %v6516
    %v6530 = vunpack.c.l.b16 %v6517
    %v6531 = vpack.c.b16 %v6528, %v6527
    %v6532 = vpack.c.b16 %v6530, %v6529
    %v6536 = vsel %vm4293, %v6518, 0
    %6538 = vmatpush.bf16.msra.mxu0 0
    %6539 = vmatpush.bf16.msra.mxu0 0
    %6540 = vmatpush.bf16.msra.mxu0 0
    %6541 = vmatpush.bf16.msra.mxu0 0
    %6542 = vmatpush.bf16.msra.mxu0 0
    %6543 = vmatpush.bf16.msra.mxu0 0
    %6544 = vmatpush.bf16.msra.mxu0 %v6532
    %6545 = vmatpush.bf16.msra.mxu0 %v6531
    %6546 = vmatmul.bf16.gmra.mxu0 %v6536
    %v6547 = vpop.f32.mrf.mxu0
    %v6548 = vadd.f32 %v6521, %v6547
    %v6549 = vpop.f32.mrf.mxu0
    %6550 = vdwg.mxu0
    %vm6551 = vcmask 402432
    %v6552 = vsel %vm6551, %v6548, 0.0
    %6553 = vadd.xlane.f32.xlu0 %v6552
    %v6554 = vpop.xlane.xlu0 %6553
    %v6555 = vrcp.pop 50.0
    %v6556 = vmul.f32 50.0, %v6555
    %v6557 = vsub.f32 1.0, %v6556
    %v6558 = vmul.f32 %v6555, %v6557
    %v6559 = vadd.f32 %v6555, %v6558
    %vm6560 = vweird.f32 %v6555
    %v6561 = vsel %vm6560, %v6555, %v6559
    %v6562 = vmul.f32 %v6554, %v6561
    %v6563 = vsub.f32 %v6548, %v6562
    %v6564 = vmul.f32 %v6563, %v6563
    %v6565 = vsel %vm6551, %v6564, 0.0
    %6566 = vadd.xlane.f32.xlu0 %v6565
    %v6567 = vpop.xlane.xlu0 %6566
    %v6568 = vmul.f32 %v6567, %v6561
    %v6569 = vadd.f32 %v6568, 1e-05
    %v6570 = vrsqrt.pop %v6569
    %v6571 = vmul.f32 %v6570, %v6569
    %v6572 = vmul.f32 %v6571, %v6570
    %v6573 = vmul.f32 0.5, %v6572
    %v6574 = vsub.f32 1.5, %v6573
    %v6575 = vmul.f32 %v6570, %v6574
    %vm6576 = vweird.f32 %v6569
    %vm6577 = vweird.f32 %v6570
    %vm6578 = vmor %vm6576, %vm6577
    %v6579 = vsel %vm6578, %v6570, %v6575
    %v6580 = vmul.f32 %v6563, %v6579
    %v6581 = vld [vmem:[#allocation19] sm:$0x1]
    %v6583 = vperm.slane %v6581, 0
    %v6585 = vmul.f32 %v6580, %v6583
    %v6586 = vld [vmem:[#allocation21] sm:$0x1]
    %v6588 = vperm.slane %v6586, 0
    %v6590 = vadd.f32 %v6585, %v6588
    %v6591 = vtanh.pop %v6590
    %v6592 = vld [vmem:[#allocation22] sm:$0xff]
    %v6593 = vld [vmem:[#allocation22 + $0x8] sm:$0xff]
    %v6594 = vld [vmem:[#allocation22 + $0x10] sm:$0xff]
    %v6595 = vld [vmem:[#allocation22 + $0x18] sm:$0xff]
    %v6596 = vld [vmem:[#allocation22 + $0x20] sm:$0xff]
    %v6597 = vld [vmem:[#allocation22 + $0x28] sm:$0xff]
    %v6598 = vld [vmem:[#allocation22 + $0x30] sm:$0xff]
    %v6599 = vld [vmem:[#allocation22 + $0x38] sm:$0xff]
    %v6600 = vld [vmem:[#allocation22 + $0x40] sm:$0xff]
    %v6601 = vld [vmem:[#allocation22 + $0x48] sm:$0xff]
    %v6602 = vld [vmem:[#allocation22 + $0x50] sm:$0xff]
    %v6603 = vld [vmem:[#allocation22 + $0x58] sm:$0xff]
    %v6604 = vld [vmem:[#allocation22 + $0x60] sm:$0x11]
    %v6605 = vld [vmem:[#allocation22 + $0x68] sm:$0x11]
    %v6606 = vpack.c.bf16 %v6591, %v6591
    %v6607 = vld [vmem:[#allocation2] sm:$0x3]
    %v6608 = vld [vmem:[#allocation24] sm:$0x77]
    %v6609 = vld [vmem:[#allocation24 + $0x8] sm:$0x77]
    %v6610 = vpack.c.bf16 %v6607, %v6607
    %v6613 = vunpack.c.l.b16 %v6608
    %v6614 = vunpack.c.h.b16 %v6608
    %v6615 = vunpack.c.l.b16 %v6609
    %v6616 = vunpack.c.h.b16 %v6609
    %v6617 = vpack.c.b16 %v6613, %v6613
    %v6618 = vpack.c.b16 %v6614, %v6614
    %v6619 = vpack.c.b16 %v6615, %v6615
    %v6620 = vpack.c.b16 %v6616, %v6616
    %v6622 = vsel %vm1184, %v6610, 0
    %v6625 = vsel %vm1206, %v6617, 0
    %v6628 = vsel %vm1206, %v6618, 0
    %v6631 = vsel %vm1206, %v6619, 0
    %v6634 = vsel %vm1206, %v6620, 0
    %6636 = vmatpush.bf16.msra.mxu0 0
    %6637 = vmatpush.bf16.msra.mxu0 0
    %6638 = vmatpush.bf16.msra.mxu0 0
    %6639 = vmatpush.bf16.msra.mxu0 0
    %6640 = vmatpush.bf16.msra.mxu0 0
    %6641 = vmatpush.bf16.msra.mxu0 0
    %6642 = vmatpush.bf16.msra.mxu0 0
    %6643 = vmatpush.bf16.msra.mxu0 %v6625
    %6644 = vmatmul.bf16.gmra.mxu0 %v6622
    %v6645 = vpop.f32.mrf.mxu0
    %v6646 = vadd.f32 0.0, %v6645
    %v6647 = vpop.f32.mrf.mxu0
    %6648 = vdwg.mxu0
    %6649 = vmatpush.bf16.msra.mxu0 0
    %6650 = vmatpush.bf16.msra.mxu0 0
    %6651 = vmatpush.bf16.msra.mxu0 0
    %6652 = vmatpush.bf16.msra.mxu0 0
    %6653 = vmatpush.bf16.msra.mxu0 0
    %6654 = vmatpush.bf16.msra.mxu0 0
    %6655 = vmatpush.bf16.msra.mxu0 0
    %6656 = vmatpush.bf16.msra.mxu0 %v6628
    %6657 = vmatmul.bf16.gmra.mxu0 %v6622
    %v6658 = vpop.f32.mrf.mxu0
    %v6659 = vadd.f32 0.0, %v6658
    %v6660 = vpop.f32.mrf.mxu0
    %6661 = vdwg.mxu0
    %6662 = vmatpush.bf16.msra.mxu0 0
    %6663 = vmatpush.bf16.msra.mxu0 0
    %6664 = vmatpush.bf16.msra.mxu0 0
    %6665 = vmatpush.bf16.msra.mxu0 0
    %6666 = vmatpush.bf16.msra.mxu0 0
    %6667 = vmatpush.bf16.msra.mxu0 0
    %6668 = vmatpush.bf16.msra.mxu0 0
    %6669 = vmatpush.bf16.msra.mxu0 %v6631
    %6670 = vmatmul.bf16.gmra.mxu0 %v6622
    %v6671 = vpop.f32.mrf.mxu0
    %v6672 = vadd.f32 0.0, %v6671
    %v6673 = vpop.f32.mrf.mxu0
    %6674 = vdwg.mxu0
    %6675 = vmatpush.bf16.msra.mxu0 0
    %6676 = vmatpush.bf16.msra.mxu0 0
    %6677 = vmatpush.bf16.msra.mxu0 0
    %6678 = vmatpush.bf16.msra.mxu0 0
    %6679 = vmatpush.bf16.msra.mxu0 0
    %6680 = vmatpush.bf16.msra.mxu0 0
    %6681 = vmatpush.bf16.msra.mxu0 0
    %6682 = vmatpush.bf16.msra.mxu0 %v6634
    %6683 = vmatmul.bf16.gmra.mxu0 %v6622
    %v6684 = vpop.f32.mrf.mxu0
    %v6685 = vadd.f32 0.0, %v6684
    %v6686 = vpop.f32.mrf.mxu0
    %6687 = vdwg.mxu0
    %v6702 = vunpack.c.l.b16 %v6592
    %v6703 = vunpack.c.h.b16 %v6592
    %v6704 = vunpack.c.l.b16 %v6593
    %v6705 = vunpack.c.h.b16 %v6593
    %v6706 = vunpack.c.l.b16 %v6594
    %v6707 = vunpack.c.h.b16 %v6594
    %v6708 = vunpack.c.l.b16 %v6595
    %v6709 = vunpack.c.h.b16 %v6595
    %v6710 = vunpack.c.l.b16 %v6596
    %v6711 = vunpack.c.h.b16 %v6596
    %v6712 = vunpack.c.l.b16 %v6597
    %v6713 = vunpack.c.h.b16 %v6597
    %v6714 = vunpack.c.l.b16 %v6598
    %v6715 = vunpack.c.h.b16 %v6598
    %v6716 = vunpack.c.l.b16 %v6599
    %v6717 = vunpack.c.h.b16 %v6599
    %v6718 = vunpack.c.l.b16 %v6600
    %v6719 = vunpack.c.h.b16 %v6600
    %v6720 = vunpack.c.l.b16 %v6601
    %v6721 = vunpack.c.h.b16 %v6601
    %v6722 = vunpack.c.l.b16 %v6602
    %v6723 = vunpack.c.h.b16 %v6602
    %v6724 = vunpack.c.l.b16 %v6603
    %v6725 = vunpack.c.h.b16 %v6603
    %v6726 = vunpack.c.l.b16 %v6604
    %v6727 = vunpack.c.h.b16 %v6604
    %v6728 = vunpack.c.l.b16 %v6605
    %v6729 = vunpack.c.h.b16 %v6605
    %v6730 = vpack.c.b16 %v6706, %v6702
    %v6731 = vpack.c.b16 %v6707, %v6703
    %v6732 = vpack.c.b16 %v6708, %v6704
    %v6733 = vpack.c.b16 %v6709, %v6705
    %v6734 = vpack.c.b16 %v6714, %v6710
    %v6735 = vpack.c.b16 %v6715, %v6711
    %v6736 = vpack.c.b16 %v6716, %v6712
    %v6737 = vpack.c.b16 %v6717, %v6713
    %v6738 = vpack.c.b16 %v6722, %v6718
    %v6739 = vpack.c.b16 %v6723, %v6719
    %v6740 = vpack.c.b16 %v6724, %v6720
    %v6741 = vpack.c.b16 %v6725, %v6721
    %v6742 = vpack.c.b16 %v6726, %v6726
    %v6743 = vpack.c.b16 %v6727, %v6727
    %v6744 = vpack.c.b16 %v6728, %v6728
    %v6745 = vpack.c.b16 %v6729, %v6729
    %v6759 = vsel %vm5313, %v6606, 0
    %v6762 = vsel %vm4174, %v6742, 0
    %v6765 = vsel %vm4174, %v6743, 0
    %v6768 = vsel %vm4174, %v6744, 0
    %v6771 = vsel %vm4174, %v6745, 0
    %6773 = vmatpush.bf16.msra.mxu0 0
    %6774 = vmatpush.bf16.msra.mxu0 0
    %6775 = vmatpush.bf16.msra.mxu0 0
    %6776 = vmatpush.bf16.msra.mxu0 0
    %6777 = vmatpush.bf16.msra.mxu0 %v6762
    %6778 = vmatpush.bf16.msra.mxu0 %v6738
    %6779 = vmatpush.bf16.msra.mxu0 %v6734
    %6780 = vmatpush.bf16.msra.mxu0 %v6730
    %6781 = vmatmul.bf16.gmra.mxu0 %v6759
    %v6782 = vpop.f32.mrf.mxu0
    %v6783 = vadd.f32 %v6646, %v6782
    %v6784 = vpop.f32.mrf.mxu0
    %6785 = vdwg.mxu0
    %6786 = vmatpush.bf16.msra.mxu0 0
    %6787 = vmatpush.bf16.msra.mxu0 0
    %6788 = vmatpush.bf16.msra.mxu0 0
    %6789 = vmatpush.bf16.msra.mxu0 0
    %6790 = vmatpush.bf16.msra.mxu0 %v6765
    %6791 = vmatpush.bf16.msra.mxu0 %v6739
    %6792 = vmatpush.bf16.msra.mxu0 %v6735
    %6793 = vmatpush.bf16.msra.mxu0 %v6731
    %6794 = vmatmul.bf16.gmra.mxu0 %v6759
    %v6795 = vpop.f32.mrf.mxu0
    %v6796 = vadd.f32 %v6659, %v6795
    %v6797 = vpop.f32.mrf.mxu0
    %6798 = vdwg.mxu0
    %6799 = vmatpush.bf16.msra.mxu0 0
    %6800 = vmatpush.bf16.msra.mxu0 0
    %6801 = vmatpush.bf16.msra.mxu0 0
    %6802 = vmatpush.bf16.msra.mxu0 0
    %6803 = vmatpush.bf16.msra.mxu0 %v6768
    %6804 = vmatpush.bf16.msra.mxu0 %v6740
    %6805 = vmatpush.bf16.msra.mxu0 %v6736
    %6806 = vmatpush.bf16.msra.mxu0 %v6732
    %6807 = vmatmul.bf16.gmra.mxu0 %v6759
    %v6808 = vpop.f32.mrf.mxu0
    %v6809 = vadd.f32 %v6672, %v6808
    %v6810 = vpop.f32.mrf.mxu0
    %6811 = vdwg.mxu0
    %6812 = vmatpush.bf16.msra.mxu0 0
    %6813 = vmatpush.bf16.msra.mxu0 0
    %6814 = vmatpush.bf16.msra.mxu0 0
    %6815 = vmatpush.bf16.msra.mxu0 0
    %6816 = vmatpush.bf16.msra.mxu0 %v6771
    %6817 = vmatpush.bf16.msra.mxu0 %v6741
    %6818 = vmatpush.bf16.msra.mxu0 %v6737
    %6819 = vmatpush.bf16.msra.mxu0 %v6733
    %6820 = vmatmul.bf16.gmra.mxu0 %v6759
    %v6821 = vpop.f32.mrf.mxu0
    %v6822 = vadd.f32 %v6685, %v6821
    %v6823 = vpop.f32.mrf.mxu0
    %6824 = vdwg.mxu0
    %v6825 = vld [vmem:[#allocation25] sm:$0xf]
    %v6827 = vperm.slane %v6825, 0
    %v6828 = vperm.slane %v6825, 1
    %v6829 = vperm.slane %v6825, 2
    %v6830 = vperm.slane %v6825, 3
    %v6835 = vadd.f32 %v6783, %v6827
    %v6836 = vadd.f32 %v6796, %v6828
    %v6837 = vadd.f32 %v6809, %v6829
    %v6838 = vadd.f32 %v6822, %v6830
    %v6839 = vmax.f32 %v6835, 0.0
    %v6840 = vmax.f32 %v6836, 0.0
    %v6841 = vmax.f32 %v6837, 0.0
    %v6842 = vmax.f32 %v6838, 0.0
    %v6843 = vld [vmem:[%s21] sm:$0xff]
    %v6844 = vld [vmem:[%s21 + $0x8] sm:$0xff]
    %v6845 = vld [vmem:[%s21 + $0x10] sm:$0xff]
    %v6846 = vld [vmem:[%s21 + $0x18] sm:$0xff]
    %v6847 = vld [vmem:[%s21 + $0x20] sm:$0xff]
    %v6848 = vld [vmem:[%s21 + $0x28] sm:$0xff]
    %v6849 = vld [vmem:[%s21 + $0x30] sm:$0xff]
    %v6850 = vld [vmem:[%s21 + $0x38] sm:$0xff]
    %v6851 = vld [vmem:[%s21 + $0x40] sm:$0xff]
    %v6852 = vld [vmem:[%s21 + $0x48] sm:$0xff]
    %v6853 = vld [vmem:[%s21 + $0x50] sm:$0xff]
    %v6854 = vld [vmem:[%s21 + $0x58] sm:$0xff]
    %v6855 = vld [vmem:[%s21 + $0x60] sm:$0xff]
    %v6856 = vld [vmem:[%s21 + $0x68] sm:$0xff]
    %v6857 = vld [vmem:[%s21 + $0x70] sm:$0xff]
    %v6858 = vld [vmem:[%s21 + $0x78] sm:$0xff]
    %v6859 = vld [vmem:[%s21 + $0x80] sm:$0xff]
    %v6860 = vld [vmem:[%s21 + $0x88] sm:$0xff]
    %v6861 = vld [vmem:[%s21 + $0x90] sm:$0xff]
    %v6862 = vld [vmem:[%s21 + $0x98] sm:$0xff]
    %v6863 = vld [vmem:[%s21 + $0xa0] sm:$0xff]
    %v6864 = vld [vmem:[%s21 + $0xa8] sm:$0xff]
    %v6865 = vld [vmem:[%s21 + $0xb0] sm:$0xff]
    %v6866 = vld [vmem:[%s21 + $0xb8] sm:$0xff]
    %v6867 = vld [vmem:[%s21 + $0xc0] sm:$0xff]
    %v6868 = vld [vmem:[%s21 + $0xc8] sm:$0xff]
    %v6869 = vld [vmem:[%s21 + $0xd0] sm:$0xff]
    %v6870 = vld [vmem:[%s21 + $0xd8] sm:$0xff]
    %v6871 = vld [vmem:[%s21 + $0xe0] sm:$0xff]
    %v6872 = vld [vmem:[%s21 + $0xe8] sm:$0xff]
    %v6873 = vld [vmem:[%s21 + $0xf0] sm:$0xff]
    %v6874 = vld [vmem:[%s21 + $0xf8] sm:$0xff]
    %v6875 = vld [vmem:[%s21 + $0x100] sm:$0xff]
    %v6876 = vld [vmem:[%s21 + $0x108] sm:$0xff]
    %v6877 = vld [vmem:[%s21 + $0x110] sm:$0xff]
    %v6878 = vld [vmem:[%s21 + $0x118] sm:$0xff]
    %v6879 = vld [vmem:[%s21 + $0x120] sm:$0xff]
    %v6880 = vld [vmem:[%s21 + $0x128] sm:$0xff]
    %v6881 = vld [vmem:[%s21 + $0x130] sm:$0xff]
    %v6882 = vld [vmem:[%s21 + $0x138] sm:$0xff]
    %v6883 = vld [vmem:[%s21 + $0x140] sm:$0xff]
    %v6884 = vld [vmem:[%s21 + $0x148] sm:$0xff]
    %v6885 = vld [vmem:[%s21 + $0x150] sm:$0xff]
    %v6886 = vld [vmem:[%s21 + $0x158] sm:$0xff]
    %v6887 = vld [vmem:[%s21 + $0x160] sm:$0xff]
    %v6888 = vld [vmem:[%s21 + $0x168] sm:$0xff]
    %v6889 = vld [vmem:[%s21 + $0x170] sm:$0xff]
    %v6890 = vld [vmem:[%s21 + $0x178] sm:$0xff]
    %v6891 = vld [vmem:[%s21 + $0x180] sm:$0xff]
    %v6892 = vld [vmem:[%s21 + $0x188] sm:$0xff]
    %v6893 = vld [vmem:[%s21 + $0x190] sm:$0xff]
    %v6894 = vld [vmem:[%s21 + $0x198] sm:$0xff]
    %v6895 = vld [vmem:[%s21 + $0x1a0] sm:$0xff]
    %v6896 = vld [vmem:[%s21 + $0x1a8] sm:$0xff]
    %v6897 = vld [vmem:[%s21 + $0x1b0] sm:$0xff]
    %v6898 = vld [vmem:[%s21 + $0x1b8] sm:$0xff]
    %v6899 = vld [vmem:[%s21 + $0x1c0] sm:$0xff]
    %v6900 = vld [vmem:[%s21 + $0x1c8] sm:$0xff]
    %v6901 = vld [vmem:[%s21 + $0x1d0] sm:$0xff]
    %v6902 = vld [vmem:[%s21 + $0x1d8] sm:$0xff]
    %v6903 = vld [vmem:[%s21 + $0x1e0] sm:$0xff]
    %v6904 = vld [vmem:[%s21 + $0x1e8] sm:$0xff]
    %v6905 = vld [vmem:[%s21 + $0x1f0] sm:$0xff]
    %v6906 = vld [vmem:[%s21 + $0x1f8] sm:$0xff]
    %v6907 = vld [vmem:[%s21 + $0x200] sm:$0xff]
    %v6908 = vld [vmem:[%s21 + $0x208] sm:$0xff]
    %v6909 = vld [vmem:[%s21 + $0x210] sm:$0xff]
    %v6910 = vld [vmem:[%s21 + $0x218] sm:$0xff]
    %v6911 = vld [vmem:[%s21 + $0x220] sm:$0xff]
    %v6912 = vld [vmem:[%s21 + $0x228] sm:$0xff]
    %v6913 = vld [vmem:[%s21 + $0x230] sm:$0xff]
    %v6914 = vld [vmem:[%s21 + $0x238] sm:$0xff]
    %v6915 = vld [vmem:[%s21 + $0x240] sm:$0xff]
    %v6916 = vld [vmem:[%s21 + $0x248] sm:$0xff]
    %v6917 = vld [vmem:[%s21 + $0x250] sm:$0xff]
    %v6918 = vld [vmem:[%s21 + $0x258] sm:$0xff]
    %v6919 = vld [vmem:[%s21 + $0x260] sm:$0xff]
    %v6920 = vld [vmem:[%s21 + $0x268] sm:$0xff]
    %v6921 = vld [vmem:[%s21 + $0x270] sm:$0xff]
    %v6922 = vld [vmem:[%s21 + $0x278] sm:$0xff]
    %v6923 = vld [vmem:[%s21 + $0x280] sm:$0xff]
    %v6924 = vld [vmem:[%s21 + $0x288] sm:$0xff]
    %v6925 = vld [vmem:[%s21 + $0x290] sm:$0xff]
    %v6926 = vld [vmem:[%s21 + $0x298] sm:$0xff]
    %v6927 = vld [vmem:[%s21 + $0x2a0] sm:$0xff]
    %v6928 = vld [vmem:[%s21 + $0x2a8] sm:$0xff]
    %v6929 = vld [vmem:[%s21 + $0x2b0] sm:$0xff]
    %v6930 = vld [vmem:[%s21 + $0x2b8] sm:$0xff]
    %v6931 = vld [vmem:[%s21 + $0x2c0] sm:$0xff]
    %v6932 = vld [vmem:[%s21 + $0x2c8] sm:$0xff]
    %v6933 = vld [vmem:[%s21 + $0x2d0] sm:$0xff]
    %v6934 = vld [vmem:[%s21 + $0x2d8] sm:$0xff]
    %v6935 = vld [vmem:[%s21 + $0x2e0] sm:$0xff]
    %v6936 = vld [vmem:[%s21 + $0x2e8] sm:$0xff]
    %v6937 = vld [vmem:[%s21 + $0x2f0] sm:$0xff]
    %v6938 = vld [vmem:[%s21 + $0x2f8] sm:$0xff]
    %v6939 = vld [vmem:[%s21 + $0x300] sm:$0xff]
    %v6940 = vld [vmem:[%s21 + $0x308] sm:$0xff]
    %v6941 = vld [vmem:[%s21 + $0x310] sm:$0xff]
    %v6942 = vld [vmem:[%s21 + $0x318] sm:$0xff]
    %v6943 = vld [vmem:[%s21 + $0x320] sm:$0xff]
    %v6944 = vld [vmem:[%s21 + $0x328] sm:$0xff]
    %v6945 = vld [vmem:[%s21 + $0x330] sm:$0xff]
    %v6946 = vld [vmem:[%s21 + $0x338] sm:$0xff]
    %v6947 = vld [vmem:[%s21 + $0x340] sm:$0xff]
    %v6948 = vld [vmem:[%s21 + $0x348] sm:$0xff]
    %v6949 = vld [vmem:[%s21 + $0x350] sm:$0xff]
    %v6950 = vld [vmem:[%s21 + $0x358] sm:$0xff]
    %v6951 = vld [vmem:[%s21 + $0x360] sm:$0xff]
    %v6952 = vld [vmem:[%s21 + $0x368] sm:$0xff]
    %v6953 = vld [vmem:[%s21 + $0x370] sm:$0xff]
    %v6954 = vld [vmem:[%s21 + $0x378] sm:$0xff]
    %v6955 = vld [vmem:[%s21 + $0x380] sm:$0xff]
    %v6956 = vld [vmem:[%s21 + $0x388] sm:$0xff]
    %v6957 = vld [vmem:[%s21 + $0x390] sm:$0xff]
    %v6958 = vld [vmem:[%s21 + $0x398] sm:$0xff]
    %v6959 = vld [vmem:[%s21 + $0x3a0] sm:$0xff]
    %v6960 = vld [vmem:[%s21 + $0x3a8] sm:$0xff]
    %v6961 = vld [vmem:[%s21 + $0x3b0] sm:$0xff]
    %v6962 = vld [vmem:[%s21 + $0x3b8] sm:$0xff]
    %v6963 = vld [vmem:[%s21 + $0x3c0] sm:$0xff]
    %v6964 = vld [vmem:[%s21 + $0x3c8] sm:$0xff]
    %v6965 = vld [vmem:[%s21 + $0x3d0] sm:$0xff]
    %v6966 = vld [vmem:[%s21 + $0x3d8] sm:$0xff]
    %v6967 = vld [vmem:[%s21 + $0x3e0] sm:$0xff]
    %v6968 = vld [vmem:[%s21 + $0x3e8] sm:$0xff]
    %v6969 = vld [vmem:[%s21 + $0x3f0] sm:$0xff]
    %v6970 = vld [vmem:[%s21 + $0x3f8] sm:$0xff]
    %v6971 = vpack.c.bf16 %v6839, %v6839
    %v6972 = vpack.c.bf16 %v6840, %v6840
    %v6973 = vpack.c.bf16 %v6841, %v6841
    %v6974 = vpack.c.bf16 %v6842, %v6842
    %v6975 = vld [vmem:[#allocation27] sm:$0xf]
    %v6977 = vperm.slane %v6975, 0
    %v6978 = vperm.slane %v6975, 1
    %v6979 = vperm.slane %v6975, 2
    %v6980 = vperm.slane %v6975, 3
    %v7113 = vunpack.c.l.b16 %v6843
    %v7114 = vunpack.c.h.b16 %v6843
    %v7115 = vunpack.c.l.b16 %v6844
    %v7116 = vunpack.c.h.b16 %v6844
    %v7117 = vunpack.c.l.b16 %v6845
    %v7118 = vunpack.c.h.b16 %v6845
    %v7119 = vunpack.c.l.b16 %v6846
    %v7120 = vunpack.c.h.b16 %v6846
    %v7121 = vunpack.c.l.b16 %v6847
    %v7122 = vunpack.c.h.b16 %v6847
    %v7123 = vunpack.c.l.b16 %v6848
    %v7124 = vunpack.c.h.b16 %v6848
    %v7125 = vunpack.c.l.b16 %v6849
    %v7126 = vunpack.c.h.b16 %v6849
    %v7127 = vunpack.c.l.b16 %v6850
    %v7128 = vunpack.c.h.b16 %v6850
    %v7129 = vunpack.c.l.b16 %v6851
    %v7130 = vunpack.c.h.b16 %v6851
    %v7131 = vunpack.c.l.b16 %v6852
    %v7132 = vunpack.c.h.b16 %v6852
    %v7133 = vunpack.c.l.b16 %v6853
    %v7134 = vunpack.c.h.b16 %v6853
    %v7135 = vunpack.c.l.b16 %v6854
    %v7136 = vunpack.c.h.b16 %v6854
    %v7137 = vunpack.c.l.b16 %v6855
    %v7138 = vunpack.c.h.b16 %v6855
    %v7139 = vunpack.c.l.b16 %v6856
    %v7140 = vunpack.c.h.b16 %v6856
    %v7141 = vunpack.c.l.b16 %v6857
    %v7142 = vunpack.c.h.b16 %v6857
    %v7143 = vunpack.c.l.b16 %v6858
    %v7144 = vunpack.c.h.b16 %v6858
    %v7145 = vunpack.c.l.b16 %v6859
    %v7146 = vunpack.c.h.b16 %v6859
    %v7147 = vunpack.c.l.b16 %v6860
    %v7148 = vunpack.c.h.b16 %v6860
    %v7149 = vunpack.c.l.b16 %v6861
    %v7150 = vunpack.c.h.b16 %v6861
    %v7151 = vunpack.c.l.b16 %v6862
    %v7152 = vunpack.c.h.b16 %v6862
    %v7153 = vunpack.c.l.b16 %v6863
    %v7154 = vunpack.c.h.b16 %v6863
    %v7155 = vunpack.c.l.b16 %v6864
    %v7156 = vunpack.c.h.b16 %v6864
    %v7157 = vunpack.c.l.b16 %v6865
    %v7158 = vunpack.c.h.b16 %v6865
    %v7159 = vunpack.c.l.b16 %v6866
    %v7160 = vunpack.c.h.b16 %v6866
    %v7161 = vunpack.c.l.b16 %v6867
    %v7162 = vunpack.c.h.b16 %v6867
    %v7163 = vunpack.c.l.b16 %v6868
    %v7164 = vunpack.c.h.b16 %v6868
    %v7165 = vunpack.c.l.b16 %v6869
    %v7166 = vunpack.c.h.b16 %v6869
    %v7167 = vunpack.c.l.b16 %v6870
    %v7168 = vunpack.c.h.b16 %v6870
    %v7169 = vunpack.c.l.b16 %v6871
    %v7170 = vunpack.c.h.b16 %v6871
    %v7171 = vunpack.c.l.b16 %v6872
    %v7172 = vunpack.c.h.b16 %v6872
    %v7173 = vunpack.c.l.b16 %v6873
    %v7174 = vunpack.c.h.b16 %v6873
    %v7175 = vunpack.c.l.b16 %v6874
    %v7176 = vunpack.c.h.b16 %v6874
    %v7177 = vunpack.c.l.b16 %v6875
    %v7178 = vunpack.c.h.b16 %v6875
    %v7179 = vunpack.c.l.b16 %v6876
    %v7180 = vunpack.c.h.b16 %v6876
    %v7181 = vunpack.c.l.b16 %v6877
    %v7182 = vunpack.c.h.b16 %v6877
    %v7183 = vunpack.c.l.b16 %v6878
    %v7184 = vunpack.c.h.b16 %v6878
    %v7185 = vunpack.c.l.b16 %v6879
    %v7186 = vunpack.c.h.b16 %v6879
    %v7187 = vunpack.c.l.b16 %v6880
    %v7188 = vunpack.c.h.b16 %v6880
    %v7189 = vunpack.c.l.b16 %v6881
    %v7190 = vunpack.c.h.b16 %v6881
    %v7191 = vunpack.c.l.b16 %v6882
    %v7192 = vunpack.c.h.b16 %v6882
    %v7193 = vunpack.c.l.b16 %v6883
    %v7194 = vunpack.c.h.b16 %v6883
    %v7195 = vunpack.c.l.b16 %v6884
    %v7196 = vunpack.c.h.b16 %v6884
    %v7197 = vunpack.c.l.b16 %v6885
    %v7198 = vunpack.c.h.b16 %v6885
    %v7199 = vunpack.c.l.b16 %v6886
    %v7200 = vunpack.c.h.b16 %v6886
    %v7201 = vunpack.c.l.b16 %v6887
    %v7202 = vunpack.c.h.b16 %v6887
    %v7203 = vunpack.c.l.b16 %v6888
    %v7204 = vunpack.c.h.b16 %v6888
    %v7205 = vunpack.c.l.b16 %v6889
    %v7206 = vunpack.c.h.b16 %v6889
    %v7207 = vunpack.c.l.b16 %v6890
    %v7208 = vunpack.c.h.b16 %v6890
    %v7209 = vunpack.c.l.b16 %v6891
    %v7210 = vunpack.c.h.b16 %v6891
    %v7211 = vunpack.c.l.b16 %v6892
    %v7212 = vunpack.c.h.b16 %v6892
    %v7213 = vunpack.c.l.b16 %v6893
    %v7214 = vunpack.c.h.b16 %v6893
    %v7215 = vunpack.c.l.b16 %v6894
    %v7216 = vunpack.c.h.b16 %v6894
    %v7217 = vunpack.c.l.b16 %v6895
    %v7218 = vunpack.c.h.b16 %v6895
    %v7219 = vunpack.c.l.b16 %v6896
    %v7220 = vunpack.c.h.b16 %v6896
    %v7221 = vunpack.c.l.b16 %v6897
    %v7222 = vunpack.c.h.b16 %v6897
    %v7223 = vunpack.c.l.b16 %v6898
    %v7224 = vunpack.c.h.b16 %v6898
    %v7225 = vunpack.c.l.b16 %v6899
    %v7226 = vunpack.c.h.b16 %v6899
    %v7227 = vunpack.c.l.b16 %v6900
    %v7228 = vunpack.c.h.b16 %v6900
    %v7229 = vunpack.c.l.b16 %v6901
    %v7230 = vunpack.c.h.b16 %v6901
    %v7231 = vunpack.c.l.b16 %v6902
    %v7232 = vunpack.c.h.b16 %v6902
    %v7233 = vunpack.c.l.b16 %v6903
    %v7234 = vunpack.c.h.b16 %v6903
    %v7235 = vunpack.c.l.b16 %v6904
    %v7236 = vunpack.c.h.b16 %v6904
    %v7237 = vunpack.c.l.b16 %v6905
    %v7238 = vunpack.c.h.b16 %v6905
    %v7239 = vunpack.c.l.b16 %v6906
    %v7240 = vunpack.c.h.b16 %v6906
    %v7241 = vunpack.c.l.b16 %v6907
    %v7242 = vunpack.c.h.b16 %v6907
    %v7243 = vunpack.c.l.b16 %v6908
    %v7244 = vunpack.c.h.b16 %v6908
    %v7245 = vunpack.c.l.b16 %v6909
    %v7246 = vunpack.c.h.b16 %v6909
    %v7247 = vunpack.c.l.b16 %v6910
    %v7248 = vunpack.c.h.b16 %v6910
    %v7249 = vunpack.c.l.b16 %v6911
    %v7250 = vunpack.c.h.b16 %v6911
    %v7251 = vunpack.c.l.b16 %v6912
    %v7252 = vunpack.c.h.b16 %v6912
    %v7253 = vunpack.c.l.b16 %v6913
    %v7254 = vunpack.c.h.b16 %v6913
    %v7255 = vunpack.c.l.b16 %v6914
    %v7256 = vunpack.c.h.b16 %v6914
    %v7257 = vunpack.c.l.b16 %v6915
    %v7258 = vunpack.c.h.b16 %v6915
    %v7259 = vunpack.c.l.b16 %v6916
    %v7260 = vunpack.c.h.b16 %v6916
    %v7261 = vunpack.c.l.b16 %v6917
    %v7262 = vunpack.c.h.b16 %v6917
    %v7263 = vunpack.c.l.b16 %v6918
    %v7264 = vunpack.c.h.b16 %v6918
    %v7265 = vunpack.c.l.b16 %v6919
    %v7266 = vunpack.c.h.b16 %v6919
    %v7267 = vunpack.c.l.b16 %v6920
    %v7268 = vunpack.c.h.b16 %v6920
    %v7269 = vunpack.c.l.b16 %v6921
    %v7270 = vunpack.c.h.b16 %v6921
    %v7271 = vunpack.c.l.b16 %v6922
    %v7272 = vunpack.c.h.b16 %v6922
    %v7273 = vunpack.c.l.b16 %v6923
    %v7274 = vunpack.c.h.b16 %v6923
    %v7275 = vunpack.c.l.b16 %v6924
    %v7276 = vunpack.c.h.b16 %v6924
    %v7277 = vunpack.c.l.b16 %v6925
    %v7278 = vunpack.c.h.b16 %v6925
    %v7279 = vunpack.c.l.b16 %v6926
    %v7280 = vunpack.c.h.b16 %v6926
    %v7281 = vunpack.c.l.b16 %v6927
    %v7282 = vunpack.c.h.b16 %v6927
    %v7283 = vunpack.c.l.b16 %v6928
    %v7284 = vunpack.c.h.b16 %v6928
    %v7285 = vunpack.c.l.b16 %v6929
    %v7286 = vunpack.c.h.b16 %v6929
    %v7287 = vunpack.c.l.b16 %v6930
    %v7288 = vunpack.c.h.b16 %v6930
    %v7289 = vunpack.c.l.b16 %v6931
    %v7290 = vunpack.c.h.b16 %v6931
    %v7291 = vunpack.c.l.b16 %v6932
    %v7292 = vunpack.c.h.b16 %v6932
    %v7293 = vunpack.c.l.b16 %v6933
    %v7294 = vunpack.c.h.b16 %v6933
    %v7295 = vunpack.c.l.b16 %v6934
    %v7296 = vunpack.c.h.b16 %v6934
    %v7297 = vunpack.c.l.b16 %v6935
    %v7298 = vunpack.c.h.b16 %v6935
    %v7299 = vunpack.c.l.b16 %v6936
    %v7300 = vunpack.c.h.b16 %v6936
    %v7301 = vunpack.c.l.b16 %v6937
    %v7302 = vunpack.c.h.b16 %v6937
    %v7303 = vunpack.c.l.b16 %v6938
    %v7304 = vunpack.c.h.b16 %v6938
    %v7305 = vunpack.c.l.b16 %v6939
    %v7306 = vunpack.c.h.b16 %v6939
    %v7307 = vunpack.c.l.b16 %v6940
    %v7308 = vunpack.c.h.b16 %v6940
    %v7309 = vunpack.c.l.b16 %v6941
    %v7310 = vunpack.c.h.b16 %v6941
    %v7311 = vunpack.c.l.b16 %v6942
    %v7312 = vunpack.c.h.b16 %v6942
    %v7313 = vunpack.c.l.b16 %v6943
    %v7314 = vunpack.c.h.b16 %v6943
    %v7315 = vunpack.c.l.b16 %v6944
    %v7316 = vunpack.c.h.b16 %v6944
    %v7317 = vunpack.c.l.b16 %v6945
    %v7318 = vunpack.c.h.b16 %v6945
    %v7319 = vunpack.c.l.b16 %v6946
    %v7320 = vunpack.c.h.b16 %v6946
    %v7321 = vunpack.c.l.b16 %v6947
    %v7322 = vunpack.c.h.b16 %v6947
    %v7323 = vunpack.c.l.b16 %v6948
    %v7324 = vunpack.c.h.b16 %v6948
    %v7325 = vunpack.c.l.b16 %v6949
    %v7326 = vunpack.c.h.b16 %v6949
    %v7327 = vunpack.c.l.b16 %v6950
    %v7328 = vunpack.c.h.b16 %v6950
    %v7329 = vunpack.c.l.b16 %v6951
    %v7330 = vunpack.c.h.b16 %v6951
    %v7331 = vunpack.c.l.b16 %v6952
    %v7332 = vunpack.c.h.b16 %v6952
    %v7333 = vunpack.c.l.b16 %v6953
    %v7334 = vunpack.c.h.b16 %v6953
    %v7335 = vunpack.c.l.b16 %v6954
    %v7336 = vunpack.c.h.b16 %v6954
    %v7337 = vunpack.c.l.b16 %v6955
    %v7338 = vunpack.c.h.b16 %v6955
    %v7339 = vunpack.c.l.b16 %v6956
    %v7340 = vunpack.c.h.b16 %v6956
    %v7341 = vunpack.c.l.b16 %v6957
    %v7342 = vunpack.c.h.b16 %v6957
    %v7343 = vunpack.c.l.b16 %v6958
    %v7344 = vunpack.c.h.b16 %v6958
    %v7345 = vunpack.c.l.b16 %v6959
    %v7346 = vunpack.c.h.b16 %v6959
    %v7347 = vunpack.c.l.b16 %v6960
    %v7348 = vunpack.c.h.b16 %v6960
    %v7349 = vunpack.c.l.b16 %v6961
    %v7350 = vunpack.c.h.b16 %v6961
    %v7351 = vunpack.c.l.b16 %v6962
    %v7352 = vunpack.c.h.b16 %v6962
    %v7353 = vunpack.c.l.b16 %v6963
    %v7354 = vunpack.c.h.b16 %v6963
    %v7355 = vunpack.c.l.b16 %v6964
    %v7356 = vunpack.c.h.b16 %v6964
    %v7357 = vunpack.c.l.b16 %v6965
    %v7358 = vunpack.c.h.b16 %v6965
    %v7359 = vunpack.c.l.b16 %v6966
    %v7360 = vunpack.c.h.b16 %v6966
    %v7361 = vunpack.c.l.b16 %v6967
    %v7362 = vunpack.c.h.b16 %v6967
    %v7363 = vunpack.c.l.b16 %v6968
    %v7364 = vunpack.c.h.b16 %v6968
    %v7365 = vunpack.c.l.b16 %v6969
    %v7366 = vunpack.c.h.b16 %v6969
    %v7367 = vunpack.c.l.b16 %v6970
    %v7368 = vunpack.c.h.b16 %v6970
    %v7369 = vpack.c.b16 %v7117, %v7113
    %v7370 = vpack.c.b16 %v7118, %v7114
    %v7371 = vpack.c.b16 %v7119, %v7115
    %v7372 = vpack.c.b16 %v7120, %v7116
    %v7373 = vpack.c.b16 %v7125, %v7121
    %v7374 = vpack.c.b16 %v7126, %v7122
    %v7375 = vpack.c.b16 %v7127, %v7123
    %v7376 = vpack.c.b16 %v7128, %v7124
    %v7377 = vpack.c.b16 %v7133, %v7129
    %v7378 = vpack.c.b16 %v7134, %v7130
    %v7379 = vpack.c.b16 %v7135, %v7131
    %v7380 = vpack.c.b16 %v7136, %v7132
    %v7381 = vpack.c.b16 %v7141, %v7137
    %v7382 = vpack.c.b16 %v7142, %v7138
    %v7383 = vpack.c.b16 %v7143, %v7139
    %v7384 = vpack.c.b16 %v7144, %v7140
    %v7385 = vpack.c.b16 %v7149, %v7145
    %v7386 = vpack.c.b16 %v7150, %v7146
    %v7387 = vpack.c.b16 %v7151, %v7147
    %v7388 = vpack.c.b16 %v7152, %v7148
    %v7389 = vpack.c.b16 %v7157, %v7153
    %v7390 = vpack.c.b16 %v7158, %v7154
    %v7391 = vpack.c.b16 %v7159, %v7155
    %v7392 = vpack.c.b16 %v7160, %v7156
    %v7393 = vpack.c.b16 %v7165, %v7161
    %v7394 = vpack.c.b16 %v7166, %v7162
    %v7395 = vpack.c.b16 %v7167, %v7163
    %v7396 = vpack.c.b16 %v7168, %v7164
    %v7397 = vpack.c.b16 %v7173, %v7169
    %v7398 = vpack.c.b16 %v7174, %v7170
    %v7399 = vpack.c.b16 %v7175, %v7171
    %v7400 = vpack.c.b16 %v7176, %v7172
    %v7401 = vpack.c.b16 %v7181, %v7177
    %v7402 = vpack.c.b16 %v7182, %v7178
    %v7403 = vpack.c.b16 %v7183, %v7179
    %v7404 = vpack.c.b16 %v7184, %v7180
    %v7405 = vpack.c.b16 %v7189, %v7185
    %v7406 = vpack.c.b16 %v7190, %v7186
    %v7407 = vpack.c.b16 %v7191, %v7187
    %v7408 = vpack.c.b16 %v7192, %v7188
    %v7409 = vpack.c.b16 %v7197, %v7193
    %v7410 = vpack.c.b16 %v7198, %v7194
    %v7411 = vpack.c.b16 %v7199, %v7195
    %v7412 = vpack.c.b16 %v7200, %v7196
    %v7413 = vpack.c.b16 %v7205, %v7201
    %v7414 = vpack.c.b16 %v7206, %v7202
    %v7415 = vpack.c.b16 %v7207, %v7203
    %v7416 = vpack.c.b16 %v7208, %v7204
    %v7417 = vpack.c.b16 %v7213, %v7209
    %v7418 = vpack.c.b16 %v7214, %v7210
    %v7419 = vpack.c.b16 %v7215, %v7211
    %v7420 = vpack.c.b16 %v7216, %v7212
    %v7421 = vpack.c.b16 %v7221, %v7217
    %v7422 = vpack.c.b16 %v7222, %v7218
    %v7423 = vpack.c.b16 %v7223, %v7219
    %v7424 = vpack.c.b16 %v7224, %v7220
    %v7425 = vpack.c.b16 %v7229, %v7225
    %v7426 = vpack.c.b16 %v7230, %v7226
    %v7427 = vpack.c.b16 %v7231, %v7227
    %v7428 = vpack.c.b16 %v7232, %v7228
    %v7429 = vpack.c.b16 %v7237, %v7233
    %v7430 = vpack.c.b16 %v7238, %v7234
    %v7431 = vpack.c.b16 %v7239, %v7235
    %v7432 = vpack.c.b16 %v7240, %v7236
    %v7433 = vpack.c.b16 %v7245, %v7241
    %v7434 = vpack.c.b16 %v7246, %v7242
    %v7435 = vpack.c.b16 %v7247, %v7243
    %v7436 = vpack.c.b16 %v7248, %v7244
    %v7437 = vpack.c.b16 %v7253, %v7249
    %v7438 = vpack.c.b16 %v7254, %v7250
    %v7439 = vpack.c.b16 %v7255, %v7251
    %v7440 = vpack.c.b16 %v7256, %v7252
    %v7441 = vpack.c.b16 %v7261, %v7257
    %v7442 = vpack.c.b16 %v7262, %v7258
    %v7443 = vpack.c.b16 %v7263, %v7259
    %v7444 = vpack.c.b16 %v7264, %v7260
    %v7445 = vpack.c.b16 %v7269, %v7265
    %v7446 = vpack.c.b16 %v7270, %v7266
    %v7447 = vpack.c.b16 %v7271, %v7267
    %v7448 = vpack.c.b16 %v7272, %v7268
    %v7449 = vpack.c.b16 %v7277, %v7273
    %v7450 = vpack.c.b16 %v7278, %v7274
    %v7451 = vpack.c.b16 %v7279, %v7275
    %v7452 = vpack.c.b16 %v7280, %v7276
    %v7453 = vpack.c.b16 %v7285, %v7281
    %v7454 = vpack.c.b16 %v7286, %v7282
    %v7455 = vpack.c.b16 %v7287, %v7283
    %v7456 = vpack.c.b16 %v7288, %v7284
    %v7457 = vpack.c.b16 %v7293, %v7289
    %v7458 = vpack.c.b16 %v7294, %v7290
    %v7459 = vpack.c.b16 %v7295, %v7291
    %v7460 = vpack.c.b16 %v7296, %v7292
    %v7461 = vpack.c.b16 %v7301, %v7297
    %v7462 = vpack.c.b16 %v7302, %v7298
    %v7463 = vpack.c.b16 %v7303, %v7299
    %v7464 = vpack.c.b16 %v7304, %v7300
    %v7465 = vpack.c.b16 %v7309, %v7305
    %v7466 = vpack.c.b16 %v7310, %v7306
    %v7467 = vpack.c.b16 %v7311, %v7307
    %v7468 = vpack.c.b16 %v7312, %v7308
    %v7469 = vpack.c.b16 %v7317, %v7313
    %v7470 = vpack.c.b16 %v7318, %v7314
    %v7471 = vpack.c.b16 %v7319, %v7315
    %v7472 = vpack.c.b16 %v7320, %v7316
    %v7473 = vpack.c.b16 %v7325, %v7321
    %v7474 = vpack.c.b16 %v7326, %v7322
    %v7475 = vpack.c.b16 %v7327, %v7323
    %v7476 = vpack.c.b16 %v7328, %v7324
    %v7477 = vpack.c.b16 %v7333, %v7329
    %v7478 = vpack.c.b16 %v7334, %v7330
    %v7479 = vpack.c.b16 %v7335, %v7331
    %v7480 = vpack.c.b16 %v7336, %v7332
    %v7481 = vpack.c.b16 %v7341, %v7337
    %v7482 = vpack.c.b16 %v7342, %v7338
    %v7483 = vpack.c.b16 %v7343, %v7339
    %v7484 = vpack.c.b16 %v7344, %v7340
    %v7485 = vpack.c.b16 %v7349, %v7345
    %v7486 = vpack.c.b16 %v7350, %v7346
    %v7487 = vpack.c.b16 %v7351, %v7347
    %v7488 = vpack.c.b16 %v7352, %v7348
    %v7489 = vpack.c.b16 %v7357, %v7353
    %v7490 = vpack.c.b16 %v7358, %v7354
    %v7491 = vpack.c.b16 %v7359, %v7355
    %v7492 = vpack.c.b16 %v7360, %v7356
    %v7493 = vpack.c.b16 %v7365, %v7361
    %v7494 = vpack.c.b16 %v7366, %v7362
    %v7495 = vpack.c.b16 %v7367, %v7363
    %v7496 = vpack.c.b16 %v7368, %v7364
    %7625 = vmatpush.bf16.msra.mxu0 %v7397
    %7626 = vmatpush.bf16.msra.mxu0 %v7393
    %7627 = vmatpush.bf16.msra.mxu0 %v7389
    %7628 = vmatpush.bf16.msra.mxu0 %v7385
    %7629 = vmatpush.bf16.msra.mxu0 %v7381
    %7630 = vmatpush.bf16.msra.mxu0 %v7377
    %7631 = vmatpush.bf16.msra.mxu0 %v7373
    %7632 = vmatpush.bf16.msra.mxu0 %v7369
    %7633 = vmatmul.bf16.gmra.mxu0 %v6971
    %v7634 = vpop.f32.mrf.mxu0
    %v7635 = vadd.f32 %v6977, %v7634
    %v7636 = vpop.f32.mrf.mxu0
    %7637 = vdwg.mxu0
    %7638 = vmatpush.bf16.msra.mxu0 %v7429
    %7639 = vmatpush.bf16.msra.mxu0 %v7425
    %7640 = vmatpush.bf16.msra.mxu0 %v7421
    %7641 = vmatpush.bf16.msra.mxu0 %v7417
    %7642 = vmatpush.bf16.msra.mxu0 %v7413
    %7643 = vmatpush.bf16.msra.mxu0 %v7409
    %7644 = vmatpush.bf16.msra.mxu0 %v7405
    %7645 = vmatpush.bf16.msra.mxu0 %v7401
    %7646 = vmatmul.bf16.gmra.mxu0 %v6972
    %v7647 = vpop.f32.mrf.mxu0
    %v7648 = vadd.f32 %v7635, %v7647
    %v7649 = vpop.f32.mrf.mxu0
    %7650 = vdwg.mxu0
    %7651 = vmatpush.bf16.msra.mxu0 %v7461
    %7652 = vmatpush.bf16.msra.mxu0 %v7457
    %7653 = vmatpush.bf16.msra.mxu0 %v7453
    %7654 = vmatpush.bf16.msra.mxu0 %v7449
    %7655 = vmatpush.bf16.msra.mxu0 %v7445
    %7656 = vmatpush.bf16.msra.mxu0 %v7441
    %7657 = vmatpush.bf16.msra.mxu0 %v7437
    %7658 = vmatpush.bf16.msra.mxu0 %v7433
    %7659 = vmatmul.bf16.gmra.mxu0 %v6973
    %v7660 = vpop.f32.mrf.mxu0
    %v7661 = vadd.f32 %v7648, %v7660
    %v7662 = vpop.f32.mrf.mxu0
    %7663 = vdwg.mxu0
    %7664 = vmatpush.bf16.msra.mxu0 %v7493
    %7665 = vmatpush.bf16.msra.mxu0 %v7489
    %7666 = vmatpush.bf16.msra.mxu0 %v7485
    %7667 = vmatpush.bf16.msra.mxu0 %v7481
    %7668 = vmatpush.bf16.msra.mxu0 %v7477
    %7669 = vmatpush.bf16.msra.mxu0 %v7473
    %7670 = vmatpush.bf16.msra.mxu0 %v7469
    %7671 = vmatpush.bf16.msra.mxu0 %v7465
    %7672 = vmatmul.bf16.gmra.mxu0 %v6974
    %v7673 = vpop.f32.mrf.mxu0
    %v7674 = vadd.f32 %v7661, %v7673
    %v7675 = vpop.f32.mrf.mxu0
    %7676 = vdwg.mxu0
    %7677 = vmatpush.bf16.msra.mxu0 %v7398
    %7678 = vmatpush.bf16.msra.mxu0 %v7394
    %7679 = vmatpush.bf16.msra.mxu0 %v7390
    %7680 = vmatpush.bf16.msra.mxu0 %v7386
    %7681 = vmatpush.bf16.msra.mxu0 %v7382
    %7682 = vmatpush.bf16.msra.mxu0 %v7378
    %7683 = vmatpush.bf16.msra.mxu0 %v7374
    %7684 = vmatpush.bf16.msra.mxu0 %v7370
    %7685 = vmatmul.bf16.gmra.mxu0 %v6971
    %v7686 = vpop.f32.mrf.mxu0
    %v7687 = vadd.f32 %v6978, %v7686
    %v7688 = vpop.f32.mrf.mxu0
    %7689 = vdwg.mxu0
    %7690 = vmatpush.bf16.msra.mxu0 %v7430
    %7691 = vmatpush.bf16.msra.mxu0 %v7426
    %7692 = vmatpush.bf16.msra.mxu0 %v7422
    %7693 = vmatpush.bf16.msra.mxu0 %v7418
    %7694 = vmatpush.bf16.msra.mxu0 %v7414
    %7695 = vmatpush.bf16.msra.mxu0 %v7410
    %7696 = vmatpush.bf16.msra.mxu0 %v7406
    %7697 = vmatpush.bf16.msra.mxu0 %v7402
    %7698 = vmatmul.bf16.gmra.mxu0 %v6972
    %v7699 = vpop.f32.mrf.mxu0
    %v7700 = vadd.f32 %v7687, %v7699
    %v7701 = vpop.f32.mrf.mxu0
    %7702 = vdwg.mxu0
    %7703 = vmatpush.bf16.msra.mxu0 %v7462
    %7704 = vmatpush.bf16.msra.mxu0 %v7458
    %7705 = vmatpush.bf16.msra.mxu0 %v7454
    %7706 = vmatpush.bf16.msra.mxu0 %v7450
    %7707 = vmatpush.bf16.msra.mxu0 %v7446
    %7708 = vmatpush.bf16.msra.mxu0 %v7442
    %7709 = vmatpush.bf16.msra.mxu0 %v7438
    %7710 = vmatpush.bf16.msra.mxu0 %v7434
    %7711 = vmatmul.bf16.gmra.mxu0 %v6973
    %v7712 = vpop.f32.mrf.mxu0
    %v7713 = vadd.f32 %v7700, %v7712
    %v7714 = vpop.f32.mrf.mxu0
    %7715 = vdwg.mxu0
    %7716 = vmatpush.bf16.msra.mxu0 %v7494
    %7717 = vmatpush.bf16.msra.mxu0 %v7490
    %7718 = vmatpush.bf16.msra.mxu0 %v7486
    %7719 = vmatpush.bf16.msra.mxu0 %v7482
    %7720 = vmatpush.bf16.msra.mxu0 %v7478
    %7721 = vmatpush.bf16.msra.mxu0 %v7474
    %7722 = vmatpush.bf16.msra.mxu0 %v7470
    %7723 = vmatpush.bf16.msra.mxu0 %v7466
    %7724 = vmatmul.bf16.gmra.mxu0 %v6974
    %v7725 = vpop.f32.mrf.mxu0
    %v7726 = vadd.f32 %v7713, %v7725
    %v7727 = vpop.f32.mrf.mxu0
    %7728 = vdwg.mxu0
    %7729 = vmatpush.bf16.msra.mxu0 %v7399
    %7730 = vmatpush.bf16.msra.mxu0 %v7395
    %7731 = vmatpush.bf16.msra.mxu0 %v7391
    %7732 = vmatpush.bf16.msra.mxu0 %v7387
    %7733 = vmatpush.bf16.msra.mxu0 %v7383
    %7734 = vmatpush.bf16.msra.mxu0 %v7379
    %7735 = vmatpush.bf16.msra.mxu0 %v7375
    %7736 = vmatpush.bf16.msra.mxu0 %v7371
    %7737 = vmatmul.bf16.gmra.mxu0 %v6971
    %v7738 = vpop.f32.mrf.mxu0
    %v7739 = vadd.f32 %v6979, %v7738
    %v7740 = vpop.f32.mrf.mxu0
    %7741 = vdwg.mxu0
    %7742 = vmatpush.bf16.msra.mxu0 %v7431
    %7743 = vmatpush.bf16.msra.mxu0 %v7427
    %7744 = vmatpush.bf16.msra.mxu0 %v7423
    %7745 = vmatpush.bf16.msra.mxu0 %v7419
    %7746 = vmatpush.bf16.msra.mxu0 %v7415
    %7747 = vmatpush.bf16.msra.mxu0 %v7411
    %7748 = vmatpush.bf16.msra.mxu0 %v7407
    %7749 = vmatpush.bf16.msra.mxu0 %v7403
    %7750 = vmatmul.bf16.gmra.mxu0 %v6972
    %v7751 = vpop.f32.mrf.mxu0
    %v7752 = vadd.f32 %v7739, %v7751
    %v7753 = vpop.f32.mrf.mxu0
    %7754 = vdwg.mxu0
    %7755 = vmatpush.bf16.msra.mxu0 %v7463
    %7756 = vmatpush.bf16.msra.mxu0 %v7459
    %7757 = vmatpush.bf16.msra.mxu0 %v7455
    %7758 = vmatpush.bf16.msra.mxu0 %v7451
    %7759 = vmatpush.bf16.msra.mxu0 %v7447
    %7760 = vmatpush.bf16.msra.mxu0 %v7443
    %7761 = vmatpush.bf16.msra.mxu0 %v7439
    %7762 = vmatpush.bf16.msra.mxu0 %v7435
    %7763 = vmatmul.bf16.gmra.mxu0 %v6973
    %v7764 = vpop.f32.mrf.mxu0
    %v7765 = vadd.f32 %v7752, %v7764
    %v7766 = vpop.f32.mrf.mxu0
    %7767 = vdwg.mxu0
    %7768 = vmatpush.bf16.msra.mxu0 %v7495
    %7769 = vmatpush.bf16.msra.mxu0 %v7491
    %7770 = vmatpush.bf16.msra.mxu0 %v7487
    %7771 = vmatpush.bf16.msra.mxu0 %v7483
    %7772 = vmatpush.bf16.msra.mxu0 %v7479
    %7773 = vmatpush.bf16.msra.mxu0 %v7475
    %7774 = vmatpush.bf16.msra.mxu0 %v7471
    %7775 = vmatpush.bf16.msra.mxu0 %v7467
    %7776 = vmatmul.bf16.gmra.mxu0 %v6974
    %v7777 = vpop.f32.mrf.mxu0
    %v7778 = vadd.f32 %v7765, %v7777
    %v7779 = vpop.f32.mrf.mxu0
    %7780 = vdwg.mxu0
    %7781 = vmatpush.bf16.msra.mxu0 %v7400
    %7782 = vmatpush.bf16.msra.mxu0 %v7396
    %7783 = vmatpush.bf16.msra.mxu0 %v7392
    %7784 = vmatpush.bf16.msra.mxu0 %v7388
    %7785 = vmatpush.bf16.msra.mxu0 %v7384
    %7786 = vmatpush.bf16.msra.mxu0 %v7380
    %7787 = vmatpush.bf16.msra.mxu0 %v7376
    %7788 = vmatpush.bf16.msra.mxu0 %v7372
    %7789 = vmatmul.bf16.gmra.mxu0 %v6971
    %v7790 = vpop.f32.mrf.mxu0
    %v7791 = vadd.f32 %v6980, %v7790
    %v7792 = vpop.f32.mrf.mxu0
    %7793 = vdwg.mxu0
    %7794 = vmatpush.bf16.msra.mxu0 %v7432
    %7795 = vmatpush.bf16.msra.mxu0 %v7428
    %7796 = vmatpush.bf16.msra.mxu0 %v7424
    %7797 = vmatpush.bf16.msra.mxu0 %v7420
    %7798 = vmatpush.bf16.msra.mxu0 %v7416
    %7799 = vmatpush.bf16.msra.mxu0 %v7412
    %7800 = vmatpush.bf16.msra.mxu0 %v7408
    %7801 = vmatpush.bf16.msra.mxu0 %v7404
    %7802 = vmatmul.bf16.gmra.mxu0 %v6972
    %v7803 = vpop.f32.mrf.mxu0
    %v7804 = vadd.f32 %v7791, %v7803
    %v7805 = vpop.f32.mrf.mxu0
    %7806 = vdwg.mxu0
    %7807 = vmatpush.bf16.msra.mxu0 %v7464
    %7808 = vmatpush.bf16.msra.mxu0 %v7460
    %7809 = vmatpush.bf16.msra.mxu0 %v7456
    %7810 = vmatpush.bf16.msra.mxu0 %v7452
    %7811 = vmatpush.bf16.msra.mxu0 %v7448
    %7812 = vmatpush.bf16.msra.mxu0 %v7444
    %7813 = vmatpush.bf16.msra.mxu0 %v7440
    %7814 = vmatpush.bf16.msra.mxu0 %v7436
    %7815 = vmatmul.bf16.gmra.mxu0 %v6973
    %v7816 = vpop.f32.mrf.mxu0
    %v7817 = vadd.f32 %v7804, %v7816
    %v7818 = vpop.f32.mrf.mxu0
    %7819 = vdwg.mxu0
    %7820 = vmatpush.bf16.msra.mxu0 %v7496
    %7821 = vmatpush.bf16.msra.mxu0 %v7492
    %7822 = vmatpush.bf16.msra.mxu0 %v7488
    %7823 = vmatpush.bf16.msra.mxu0 %v7484
    %7824 = vmatpush.bf16.msra.mxu0 %v7480
    %7825 = vmatpush.bf16.msra.mxu0 %v7476
    %7826 = vmatpush.bf16.msra.mxu0 %v7472
    %7827 = vmatpush.bf16.msra.mxu0 %v7468
    %7828 = vmatmul.bf16.gmra.mxu0 %v6974
    %v7829 = vpop.f32.mrf.mxu0
    %v7830 = vadd.f32 %v7817, %v7829
    %v7831 = vpop.f32.mrf.mxu0
    %7832 = vdwg.mxu0
    %v7833 = vmax.f32 %v7674, 0.0
    %v7834 = vmax.f32 %v7726, 0.0
    %v7835 = vmax.f32 %v7778, 0.0
    %v7836 = vmax.f32 %v7830, 0.0
    %v7837 = vld [vmem:[#allocation28] sm:$0xf]
    %v7838 = vld [vmem:[#allocation28 + $0x4] sm:$0xf]
    %v7839 = vld [vmem:[#allocation28 + $0x8] sm:$0xf]
    %v7840 = vld [vmem:[#allocation28 + $0xc] sm:$0xf]
    %v7841 = vld [vmem:[#allocation28 + $0x10] sm:$0xf]
    %v7842 = vld [vmem:[#allocation28 + $0x14] sm:$0xf]
    %v7843 = vld [vmem:[#allocation28 + $0x18] sm:$0xf]
    %v7844 = vld [vmem:[#allocation28 + $0x1c] sm:$0xf]
    %v7845 = vld [vmem:[#allocation28 + $0x20] sm:$0xf]
    %v7846 = vld [vmem:[#allocation28 + $0x24] sm:$0xf]
    %v7847 = vld [vmem:[#allocation28 + $0x28] sm:$0xf]
    %v7848 = vld [vmem:[#allocation28 + $0x2c] sm:$0xf]
    %v7849 = vld [vmem:[#allocation28 + $0x30] sm:$0xf]
    %v7850 = vld [vmem:[#allocation28 + $0x34] sm:$0xf]
    %v7851 = vld [vmem:[#allocation28 + $0x38] sm:$0xf]
    %v7852 = vld [vmem:[#allocation28 + $0x3c] sm:$0xf]
    %v7853 = vld [vmem:[#allocation28 + $0x40] sm:$0xf]
    %v7854 = vld [vmem:[#allocation28 + $0x44] sm:$0xf]
    %v7855 = vld [vmem:[#allocation28 + $0x48] sm:$0xf]
    %v7856 = vld [vmem:[#allocation28 + $0x4c] sm:$0xf]
    %v7857 = vld [vmem:[#allocation28 + $0x50] sm:$0xf]
    %v7858 = vld [vmem:[#allocation28 + $0x54] sm:$0xf]
    %v7859 = vld [vmem:[#allocation28 + $0x58] sm:$0xf]
    %v7860 = vld [vmem:[#allocation28 + $0x5c] sm:$0xf]
    %v7861 = vld [vmem:[#allocation28 + $0x60] sm:$0xf]
    %v7862 = vld [vmem:[#allocation28 + $0x64] sm:$0xf]
    %v7863 = vld [vmem:[#allocation28 + $0x68] sm:$0xf]
    %v7864 = vld [vmem:[#allocation28 + $0x6c] sm:$0xf]
    %v7865 = vld [vmem:[#allocation28 + $0x70] sm:$0xf]
    %v7866 = vld [vmem:[#allocation28 + $0x74] sm:$0xf]
    %v7867 = vld [vmem:[#allocation28 + $0x78] sm:$0xf]
    %v7868 = vld [vmem:[#allocation28 + $0x7c] sm:$0xf]
    %v7869 = vld [vmem:[#allocation28 + $0x80] sm:$0xf]
    %v7870 = vld [vmem:[#allocation28 + $0x84] sm:$0xf]
    %v7871 = vld [vmem:[#allocation28 + $0x88] sm:$0xf]
    %v7872 = vld [vmem:[#allocation28 + $0x8c] sm:$0xf]
    %v7873 = vld [vmem:[#allocation28 + $0x90] sm:$0xf]
    %v7874 = vld [vmem:[#allocation28 + $0x94] sm:$0xf]
    %v7875 = vld [vmem:[#allocation28 + $0x98] sm:$0xf]
    %v7876 = vld [vmem:[#allocation28 + $0x9c] sm:$0xf]
    %v7877 = vld [vmem:[#allocation28 + $0xa0] sm:$0xf]
    %v7878 = vld [vmem:[#allocation28 + $0xa4] sm:$0xf]
    %v7879 = vld [vmem:[#allocation28 + $0xa8] sm:$0xf]
    %v7880 = vld [vmem:[#allocation28 + $0xac] sm:$0xf]
    %v7881 = vld [vmem:[#allocation28 + $0xb0] sm:$0xf]
    %v7882 = vld [vmem:[#allocation28 + $0xb4] sm:$0xf]
    %v7883 = vld [vmem:[#allocation28 + $0xb8] sm:$0xf]
    %v7884 = vld [vmem:[#allocation28 + $0xbc] sm:$0xf]
    %v7885 = vld [vmem:[#allocation28 + $0xc0] sm:$0xf]
    %v7886 = vld [vmem:[#allocation28 + $0xc4] sm:$0xf]
    %v7887 = vld [vmem:[#allocation28 + $0xc8] sm:$0xf]
    %v7888 = vld [vmem:[#allocation28 + $0xcc] sm:$0xf]
    %v7889 = vld [vmem:[#allocation28 + $0xd0] sm:$0xf]
    %v7890 = vld [vmem:[#allocation28 + $0xd4] sm:$0xf]
    %v7891 = vld [vmem:[#allocation28 + $0xd8] sm:$0xf]
    %v7892 = vld [vmem:[#allocation28 + $0xdc] sm:$0xf]
    %v7893 = vld [vmem:[#allocation28 + $0xe0] sm:$0xf]
    %v7894 = vld [vmem:[#allocation28 + $0xe4] sm:$0xf]
    %v7895 = vld [vmem:[#allocation28 + $0xe8] sm:$0xf]
    %v7896 = vld [vmem:[#allocation28 + $0xec] sm:$0xf]
    %v7897 = vld [vmem:[#allocation28 + $0xf0] sm:$0xf]
    %v7898 = vld [vmem:[#allocation28 + $0xf4] sm:$0xf]
    %v7899 = vld [vmem:[#allocation28 + $0xf8] sm:$0xf]
    %v7900 = vld [vmem:[#allocation28 + $0xfc] sm:$0xf]
    %v7901 = vpack.c.bf16 %v7833, %v7833
    %v7902 = vpack.c.bf16 %v7834, %v7834
    %v7903 = vpack.c.bf16 %v7835, %v7835
    %v7904 = vpack.c.bf16 %v7836, %v7836
    %v7905 = vld [vmem:[#allocation30] sm:$0x1]
    %v7907 = vperm.slane %v7905, 0
    %v7973 = vunpack.c.l.b16 %v7837
    %v7974 = vunpack.c.l.b16 %v7838
    %v7975 = vunpack.c.l.b16 %v7839
    %v7976 = vunpack.c.l.b16 %v7840
    %v7977 = vunpack.c.l.b16 %v7841
    %v7978 = vunpack.c.l.b16 %v7842
    %v7979 = vunpack.c.l.b16 %v7843
    %v7980 = vunpack.c.l.b16 %v7844
    %v7981 = vunpack.c.l.b16 %v7845
    %v7982 = vunpack.c.l.b16 %v7846
    %v7983 = vunpack.c.l.b16 %v7847
    %v7984 = vunpack.c.l.b16 %v7848
    %v7985 = vunpack.c.l.b16 %v7849
    %v7986 = vunpack.c.l.b16 %v7850
    %v7987 = vunpack.c.l.b16 %v7851
    %v7988 = vunpack.c.l.b16 %v7852
    %v7989 = vunpack.c.l.b16 %v7853
    %v7990 = vunpack.c.l.b16 %v7854
    %v7991 = vunpack.c.l.b16 %v7855
    %v7992 = vunpack.c.l.b16 %v7856
    %v7993 = vunpack.c.l.b16 %v7857
    %v7994 = vunpack.c.l.b16 %v7858
    %v7995 = vunpack.c.l.b16 %v7859
    %v7996 = vunpack.c.l.b16 %v7860
    %v7997 = vunpack.c.l.b16 %v7861
    %v7998 = vunpack.c.l.b16 %v7862
    %v7999 = vunpack.c.l.b16 %v7863
    %v8000 = vunpack.c.l.b16 %v7864
    %v8001 = vunpack.c.l.b16 %v7865
    %v8002 = vunpack.c.l.b16 %v7866
    %v8003 = vunpack.c.l.b16 %v7867
    %v8004 = vunpack.c.l.b16 %v7868
    %v8005 = vunpack.c.l.b16 %v7869
    %v8006 = vunpack.c.l.b16 %v7870
    %v8007 = vunpack.c.l.b16 %v7871
    %v8008 = vunpack.c.l.b16 %v7872
    %v8009 = vunpack.c.l.b16 %v7873
    %v8010 = vunpack.c.l.b16 %v7874
    %v8011 = vunpack.c.l.b16 %v7875
    %v8012 = vunpack.c.l.b16 %v7876
    %v8013 = vunpack.c.l.b16 %v7877
    %v8014 = vunpack.c.l.b16 %v7878
    %v8015 = vunpack.c.l.b16 %v7879
    %v8016 = vunpack.c.l.b16 %v7880
    %v8017 = vunpack.c.l.b16 %v7881
    %v8018 = vunpack.c.l.b16 %v7882
    %v8019 = vunpack.c.l.b16 %v7883
    %v8020 = vunpack.c.l.b16 %v7884
    %v8021 = vunpack.c.l.b16 %v7885
    %v8022 = vunpack.c.l.b16 %v7886
    %v8023 = vunpack.c.l.b16 %v7887
    %v8024 = vunpack.c.l.b16 %v7888
    %v8025 = vunpack.c.l.b16 %v7889
    %v8026 = vunpack.c.l.b16 %v7890
    %v8027 = vunpack.c.l.b16 %v7891
    %v8028 = vunpack.c.l.b16 %v7892
    %v8029 = vunpack.c.l.b16 %v7893
    %v8030 = vunpack.c.l.b16 %v7894
    %v8031 = vunpack.c.l.b16 %v7895
    %v8032 = vunpack.c.l.b16 %v7896
    %v8033 = vunpack.c.l.b16 %v7897
    %v8034 = vunpack.c.l.b16 %v7898
    %v8035 = vunpack.c.l.b16 %v7899
    %v8036 = vunpack.c.l.b16 %v7900
    %v8037 = vpack.c.b16 %v7974, %v7973
    %v8038 = vpack.c.b16 %v7976, %v7975
    %v8039 = vpack.c.b16 %v7978, %v7977
    %v8040 = vpack.c.b16 %v7980, %v7979
    %v8041 = vpack.c.b16 %v7982, %v7981
    %v8042 = vpack.c.b16 %v7984, %v7983
    %v8043 = vpack.c.b16 %v7986, %v7985
    %v8044 = vpack.c.b16 %v7988, %v7987
    %v8045 = vpack.c.b16 %v7990, %v7989
    %v8046 = vpack.c.b16 %v7992, %v7991
    %v8047 = vpack.c.b16 %v7994, %v7993
    %v8048 = vpack.c.b16 %v7996, %v7995
    %v8049 = vpack.c.b16 %v7998, %v7997
    %v8050 = vpack.c.b16 %v8000, %v7999
    %v8051 = vpack.c.b16 %v8002, %v8001
    %v8052 = vpack.c.b16 %v8004, %v8003
    %v8053 = vpack.c.b16 %v8006, %v8005
    %v8054 = vpack.c.b16 %v8008, %v8007
    %v8055 = vpack.c.b16 %v8010, %v8009
    %v8056 = vpack.c.b16 %v8012, %v8011
    %v8057 = vpack.c.b16 %v8014, %v8013
    %v8058 = vpack.c.b16 %v8016, %v8015
    %v8059 = vpack.c.b16 %v8018, %v8017
    %v8060 = vpack.c.b16 %v8020, %v8019
    %v8061 = vpack.c.b16 %v8022, %v8021
    %v8062 = vpack.c.b16 %v8024, %v8023
    %v8063 = vpack.c.b16 %v8026, %v8025
    %v8064 = vpack.c.b16 %v8028, %v8027
    %v8065 = vpack.c.b16 %v8030, %v8029
    %v8066 = vpack.c.b16 %v8032, %v8031
    %v8067 = vpack.c.b16 %v8034, %v8033
    %v8068 = vpack.c.b16 %v8036, %v8035
    %8101 = vmatpush.bf16.msra.mxu0 %v8044
    %8102 = vmatpush.bf16.msra.mxu0 %v8043
    %8103 = vmatpush.bf16.msra.mxu0 %v8042
    %8104 = vmatpush.bf16.msra.mxu0 %v8041
    %8105 = vmatpush.bf16.msra.mxu0 %v8040
    %8106 = vmatpush.bf16.msra.mxu0 %v8039
    %8107 = vmatpush.bf16.msra.mxu0 %v8038
    %8108 = vmatpush.bf16.msra.mxu0 %v8037
    %8109 = vmatmul.bf16.gmra.mxu0 %v7901
    %v8110 = vpop.f32.mrf.mxu0
    %v8111 = vadd.f32 %v7907, %v8110
    %v8112 = vpop.f32.mrf.mxu0
    %8113 = vdwg.mxu0
    %8114 = vmatpush.bf16.msra.mxu0 %v8052
    %8115 = vmatpush.bf16.msra.mxu0 %v8051
    %8116 = vmatpush.bf16.msra.mxu0 %v8050
    %8117 = vmatpush.bf16.msra.mxu0 %v8049
    %8118 = vmatpush.bf16.msra.mxu0 %v8048
    %8119 = vmatpush.bf16.msra.mxu0 %v8047
    %8120 = vmatpush.bf16.msra.mxu0 %v8046
    %8121 = vmatpush.bf16.msra.mxu0 %v8045
    %8122 = vmatmul.bf16.gmra.mxu0 %v7902
    %v8123 = vpop.f32.mrf.mxu0
    %v8124 = vadd.f32 %v8111, %v8123
    %v8125 = vpop.f32.mrf.mxu0
    %8126 = vdwg.mxu0
    %8127 = vmatpush.bf16.msra.mxu0 %v8060
    %8128 = vmatpush.bf16.msra.mxu0 %v8059
    %8129 = vmatpush.bf16.msra.mxu0 %v8058
    %8130 = vmatpush.bf16.msra.mxu0 %v8057
    %8131 = vmatpush.bf16.msra.mxu0 %v8056
    %8132 = vmatpush.bf16.msra.mxu0 %v8055
    %8133 = vmatpush.bf16.msra.mxu0 %v8054
    %8134 = vmatpush.bf16.msra.mxu0 %v8053
    %8135 = vmatmul.bf16.gmra.mxu0 %v7903
    %v8136 = vpop.f32.mrf.mxu0
    %v8137 = vadd.f32 %v8124, %v8136
    %v8138 = vpop.f32.mrf.mxu0
    %8139 = vdwg.mxu0
    %8140 = vmatpush.bf16.msra.mxu0 %v8068
    %8141 = vmatpush.bf16.msra.mxu0 %v8067
    %8142 = vmatpush.bf16.msra.mxu0 %v8066
    %8143 = vmatpush.bf16.msra.mxu0 %v8065
    %8144 = vmatpush.bf16.msra.mxu0 %v8064
    %8145 = vmatpush.bf16.msra.mxu0 %v8063
    %8146 = vmatpush.bf16.msra.mxu0 %v8062
    %8147 = vmatpush.bf16.msra.mxu0 %v8061
    %8148 = vmatmul.bf16.gmra.mxu0 %v7904
    %v8149 = vpop.f32.mrf.mxu0
    %v8150 = vadd.f32 %v8137, %v8149
    %v8151 = vpop.f32.mrf.mxu0
    %8152 = vdwg.mxu0
    %8153 = vst [vmem:[%s25] sm:$0x3] %v8150
    // Predicated region
    $region178: #{forward.1} parent=1 // pred_check
      _
    $region179: #{forward.1} parent=1 // pred_check_branch
      %8155 = sbr.rel (0) target = $region181
    $region180: #{forward.1} parent=1 // pred_region
      _
    $region181: #{forward.1} parent=1 // pred_fallthru
      _
    // Predicated region
    $region182: #{forward.1} parent=1 // pred_check
      _
    $region183: #{forward.1} parent=1 // pred_check_branch
      %8157 = sbr.rel (0) target = $region185
    $region184: #{forward.1} parent=1 // pred_region
      _
    $region185: #{forward.1} parent=1 // pred_fallthru
      _
    %8158 = vsyncpa [#allocation3], 1
    %8159 = vsyncpa [#allocation5], 1
    %8160 = vsyncpa [#allocation8], 1
    %8161 = vsyncpa [#allocation11], 1
    %8162 = vsyncpa [#allocation14], 1
    %8163 = vsyncpa [#allocation17], 1
    %8164 = vsyncpa [#allocation20], 1
    %8165 = vsyncpa [#allocation23], 1
    %8166 = vsyncpa [#allocation26], 1
    %8167 = vsyncpa [#allocation29], 1

</llo_original>
